<compile_context>
chip_gen: v7x
topology: tpu7x:2x2x1
jax: 0.10.0
libtpu: 0.0.40
codegen_flags: <defaults>
</compile_context>

<pallas_src>
import functools

import jax
import jax.numpy as jnp
from jax import lax
from jax.experimental import pallas as pl
from jax.experimental.pallas import tpu as pltpu


# ----------------------------- Pallas kernel --------------------------------

def rnn_block_kernel(xe_ref,     # ((T-1)*B, C)  encoder inputs, time-major, flattened
                     wih_e_ref,  # (C, 3H)   encoder GRU input weights (gates r,z,n)
                     whh_e_ref,  # (H, 3H)   encoder GRU hidden weights
                     bih_e_ref,  # (1, 3H)
                     bhh_e_ref,  # (1, 3H)
                     w_d_ref,    # (H, 4H)   fused decoder weights [r|z|n_i|n_h]
                     b_d_ref,    # (1, 4H)   fused decoder bias
                     wfc_ref,    # (H, Cp)   rnn_fc.weight^T, lane-padded to Cp=128k
                     bfc_ref,    # (1, Cp)
                     out_ref,    # (T*B, Cp) output frames, time-major, flattened
                     *, T, B, H):
    f32 = jnp.float32
    HI = lax.Precision.HIGHEST   # exact f32 matmuls (matches reference bit-closely)

    # ---- encoder input-side GEMM, hoisted off the recurrence ----------------
    # gi_all[t*B:(t+1)*B] = x_t @ Wih_e + bih_e   -- one big MXU-friendly matmul.
    gi_all = jnp.dot(xe_ref[...], wih_e_ref[...], precision=HI,
                     preferred_element_type=f32) + bih_e_ref[...]     # ((T-1)*B, 3H)

    whh_e = whh_e_ref[...]
    bhh_e = jnp.broadcast_to(bhh_e_ref[...], (B, 3 * H))   # hoisted broadcast

    # ---- encoder recurrence (fully unrolled; only the h-dependent matmul) ---
    h = jnp.zeros((B, H), f32)
    for t in range(T - 1):                                  # static unroll, small T
        gi = gi_all[t * B:(t + 1) * B, :]
        gh = jnp.dot(h, whh_e, precision=HI, preferred_element_type=f32) + bhh_e
        r = jax.nn.sigmoid(gi[:, 0:H] + gh[:, 0:H])
        z = jax.nn.sigmoid(gi[:, H:2 * H] + gh[:, H:2 * H])
        n = jnp.tanh(gi[:, 2 * H:3 * H] + r * gh[:, 2 * H:3 * H])
        h = (1.0 - z) * n + z * h

    # ---- decoder: for a 1-layer GRU, input == hidden every step, so each step
    #      is ONE fused (B,H)x(H,4H) matmul. State and frames stay in vregs. ---
    w_d = w_d_ref[...]
    b_d = jnp.broadcast_to(b_d_ref[...], (B, 4 * H))        # hoisted broadcast
    frames = []
    for t in range(T):                                      # static unroll
        g = jnp.dot(h, w_d, precision=HI, preferred_element_type=f32) + b_d  # (B, 4H)
        r = jax.nn.sigmoid(g[:, 0:H])
        z = jax.nn.sigmoid(g[:, H:2 * H])
        n = jnp.tanh(g[:, 2 * H:3 * H] + r * g[:, 3 * H:4 * H])
        h = (1.0 - z) * n + z * h
        frames.append(h)

    hs = jnp.concatenate(frames, axis=0)                    # (T*B, H), in vregs

    # ---- rnn_fc over all T frames as one GEMM (spatial_norm = Identity) -----
    # Lane-padded output -> single unmasked, lane-dense store.
    out_ref[...] = (jnp.dot(hs, wfc_ref[...], precision=HI,
                            preferred_element_type=f32) + bfc_ref[...]
                    ).astype(out_ref.dtype)


# ------------------------------ wrapper --------------------------------------

def rnn_block_forward(x, params):
    """x: (B, T, C) float32, batch-first (PyTorch batch_first=True). Returns (B, T, C)."""
    B, T, C = x.shape
    H = params["whh_e"].shape[0]
    assert T >= 2, "need at least one encoder frame"
    B_pad = -(-B // 8) * 8                                   # f32 sublane multiple
    C_pad = -(-C // 128) * 128                               # lane-dense output width

    # Encoder inputs: time-major, batch-padded, flattened to 2D for one big GI GEMM.
    xe = jnp.transpose(x[:, :T - 1, :], (1, 0, 2)).astype(jnp.float32)   # (T-1, B, C)
    xe = jnp.pad(xe, ((0, 0), (0, B_pad - B), (0, 0)))
    xe2d = xe.reshape((T - 1) * B_pad, C)

    # Fused decoder weights: decoder input == decoder hidden for a 1-layer GRU, so
    #   r = sig(h@(Wir+Whr)+bir+bhr), z = sig(h@(Wiz+Whz)+biz+bhz),
    #   n = tanh((h@Win+bin) + r*(h@Whn+bhn))
    # collapse into a single (H, 4H) weight / (1, 4H) bias.
    wih_d, whh_d = params["wih_d"], params["whh_d"]
    bih_d, bhh_d = params["bih_d"], params["bhh_d"]
    w_d = jnp.concatenate([wih_d[:, :2 * H] + whh_d[:, :2 * H],
                           wih_d[:, 2 * H:], whh_d[:, 2 * H:]], axis=1)   # (H, 4H)
    b_d = jnp.concatenate([bih_d[:, :2 * H] + bhh_d[:, :2 * H],
                           bih_d[:, 2 * H:], bhh_d[:, 2 * H:]], axis=1)   # (1, 4H)

    # rnn_fc weights lane-padded to C_pad (zeros) so the output store is unmasked.
    wfc_p = jnp.pad(params["wfc"], ((0, 0), (0, C_pad - C)))              # (H, Cp)
    bfc_p = jnp.pad(params["bfc"], ((0, 0), (0, C_pad - C)))              # (1, Cp)

    kernel = functools.partial(rnn_block_kernel, T=T, B=B_pad, H=H)
    vmem = pl.BlockSpec(memory_space=pltpu.MemorySpace.VMEM)
    out2d = pl.pallas_call(
        kernel,
        out_shape=jax.ShapeDtypeStruct((T * B_pad, C_pad), jnp.float32),
        in_specs=[vmem] * 9,
        out_specs=vmem,
        compiler_params=pltpu.CompilerParams(vmem_limit_bytes=32 * 1024 * 1024),
    )(xe2d, params["wih_e"], params["whh_e"], params["bih_e"], params["bhh_e"],
      w_d, b_d, wfc_p, bfc_p)

    out = out2d.reshape(T, B_pad, C_pad)[:, :B, :C]          # drop batch / lane padding
    return jnp.transpose(out, (1, 0, 2))                     # back to (B, T, C)


# --------------------------- pure-JAX reference ------------------------------
# Faithful to the PyTorch module (separate gi/gh matmuls, dec_in tracked explicitly).

def _gru_cell_ref(x, h, wih, whh, bih, bhh):
    H = h.shape[1]
    gi = jnp.dot(x, wih, precision=lax.Precision.HIGHEST) + bih
    gh = jnp.dot(h, whh, precision=lax.Precision.HIGHEST) + bhh
    r = jax.nn.sigmoid(gi[:, :H] + gh[:, :H])
    z = jax.nn.sigmoid(gi[:, H:2 * H] + gh[:, H:2 * H])
    n = jnp.tanh(gi[:, 2 * H:] + r * gh[:, 2 * H:])
    return (1.0 - z) * n + z * h


def reference_forward(x, p):
    B, T, C = x.shape
    H = p["whh_e"].shape[0]
    # encoder GRU over x[:, :-1, :]
    h = jnp.zeros((B, H), jnp.float32)
    for t in range(T - 1):
        h = _gru_cell_ref(x[:, t, :], h,
                          p["wih_e"], p["whh_e"], p["bih_e"], p["bhh_e"])
    dec_in = h              # last_input_frame = encoder_out[:, -1, :] (1 layer)
    h_dec = h               # rnn_states handed to the decoder
    frames = []
    for _ in range(T):
        h_dec = _gru_cell_ref(dec_in, h_dec,
                              p["wih_d"], p["whh_d"], p["bih_d"], p["bhh_d"])
        frames.append(h_dec)
        dec_in = h_dec
    delta = jnp.stack(frames, axis=1)                          # (B, T, H)
    out = jnp.dot(delta, p["wfc"], precision=lax.Precision.HIGHEST) + p["bfc"]
    return out                                                 # spatial_norm = Identity


# --------------------------------- main ---------------------------------------

def make_params(key, C, H):
    ks = jax.random.split(key, 10)
    k = 1.0 / jnp.sqrt(jnp.float32(H))
    u = lambda kk, shape, s: jax.random.uniform(kk, shape, jnp.float32, -s, s)
    return {
        # encoder GRU (C -> H): PyTorch weights transposed to (in, 3H), gate order r,z,n
        "wih_e": u(ks[0], (C, 3 * H), k),
        "whh_e": u(ks[1], (H, 3 * H), k),
        "bih_e": u(ks[2], (1, 3 * H), k),
        "bhh_e": u(ks[3], (1, 3 * H), k),
        # decoder GRU (H -> H)
        "wih_d": u(ks[4], (H, 3 * H), k),
        "whh_d": u(ks[5], (H, 3 * H), k),
        "bih_d": u(ks[6], (1, 3 * H), k),
        "bhh_d": u(ks[7], (1, 3 * H), k),
        # rnn_fc: Linear(H -> C), weight stored transposed (H, C)
        "wfc": 0.1 * jax.random.normal(ks[8], (H, C), jnp.float32),
        "bfc": 0.1 * jax.random.normal(ks[9], (1, C), jnp.float32),
    }


if __name__ == "__main__":
    B, T, C = 2, 8, 16          # batch, frames, motion dim (config.motion.dim)
    H = 32                      # rnn_state_size (4H = 128 -> full lane width)

    key = jax.random.PRNGKey(0)
    kx, kp = jax.random.split(key)
    x = jax.random.normal(kx, (B, T, C), jnp.float32)
    params = make_params(kp, C, H)

    out = rnn_block_forward(x, params)
    out = jax.block_until_ready(out)
    assert out.shape == (B, T, C)

    ref = jax.block_until_ready(reference_forward(x, params))
    assert jnp.allclose(out, ref, rtol=1e-3, atol=1e-3), (
        float(jnp.max(jnp.abs(out - ref))))

    print("KERNEL_OK")
</pallas_src>

<mosaic_0001>
module attributes {stable_mosaic.version = 11 : i64} {
  func.func @rnn_block_kernel(%arg0: memref<56x16xf32, #tpu.memory_space<vmem>>, %arg1: memref<16x96xf32, #tpu.memory_space<vmem>>, %arg2: memref<32x96xf32, #tpu.memory_space<vmem>>, %arg3: memref<1x96xf32, #tpu.memory_space<vmem>>, %arg4: memref<1x96xf32, #tpu.memory_space<vmem>>, %arg5: memref<32x128xf32, #tpu.memory_space<vmem>>, %arg6: memref<1x128xf32, #tpu.memory_space<vmem>>, %arg7: memref<32x128xf32, #tpu.memory_space<vmem>>, %arg8: memref<1x128xf32, #tpu.memory_space<vmem>>, %arg9: memref<64x128xf32, #tpu.memory_space<vmem>>) attributes {dimension_semantics = [], scalar_prefetch = 0 : i64, scratch_operands = 0 : i64, tpu.core_type = #tpu.core_type<tc>} {
    %c0 = arith.constant 0 : index
    %c0_0 = arith.constant 0 : index
    %0 = vector.load %arg0[%c0, %c0_0] : memref<56x16xf32, #tpu.memory_space<vmem>>, vector<56x16xf32>
    %c0_1 = arith.constant 0 : index
    %c0_2 = arith.constant 0 : index
    %1 = vector.load %arg1[%c0_1, %c0_2] : memref<16x96xf32, #tpu.memory_space<vmem>>, vector<16x96xf32>
    %cst = arith.constant dense<0.000000e+00> : vector<56x96xf32>
    %2 = tpu.matmul %0, %1, %cst {dimension_numbers = #tpu.dot_dimension_numbers<[1], [0], [0], [1], [0, 0, 1, 1], [], []>, precision = #tpu.contract_precision<fp32>} : vector<56x16xf32>, vector<16x96xf32>, vector<56x96xf32> -> vector<56x96xf32>
    %c0_3 = arith.constant 0 : index
    %c0_4 = arith.constant 0 : index
    %3 = vector.load %arg3[%c0_3, %c0_4] : memref<1x96xf32, #tpu.memory_space<vmem>>, vector<1x96xf32>
    %4 = vector.broadcast %3 : vector<1x96xf32> to vector<56x96xf32>
    %5 = arith.addf %2, %4 : vector<56x96xf32>
    %c0_5 = arith.constant 0 : index
    %c0_6 = arith.constant 0 : index
    %6 = vector.load %arg2[%c0_5, %c0_6] : memref<32x96xf32, #tpu.memory_space<vmem>>, vector<32x96xf32>
    %c0_7 = arith.constant 0 : index
    %c0_8 = arith.constant 0 : index
    %7 = vector.load %arg4[%c0_7, %c0_8] : memref<1x96xf32, #tpu.memory_space<vmem>>, vector<1x96xf32>
    %8 = vector.shape_cast %7 : vector<1x96xf32> to vector<1x96xf32>
    %9 = vector.broadcast %8 : vector<1x96xf32> to vector<8x96xf32>
    %cst_9 = arith.constant 0.000000e+00 : f32
    %10 = vector.broadcast %cst_9 : f32 to vector<8x32xf32>
    %11 = vector.extract_strided_slice %5 {offsets = [0, 0], sizes = [8, 96], strides = [1, 1]} : vector<56x96xf32> to vector<8x96xf32>
    %cst_10 = arith.constant dense<0.000000e+00> : vector<8x96xf32>
    %12 = tpu.matmul %10, %6, %cst_10 {dimension_numbers = #tpu.dot_dimension_numbers<[1], [0], [0], [1], [0, 0, 1, 1], [], []>, precision = #tpu.contract_precision<fp32>} : vector<8x32xf32>, vector<32x96xf32>, vector<8x96xf32> -> vector<8x96xf32>
    %13 = arith.addf %12, %9 : vector<8x96xf32>
    %14 = vector.extract_strided_slice %11 {offsets = [0, 0], sizes = [8, 32], strides = [1, 1]} : vector<8x96xf32> to vector<8x32xf32>
    %15 = vector.extract_strided_slice %13 {offsets = [0, 0], sizes = [8, 32], strides = [1, 1]} : vector<8x96xf32> to vector<8x32xf32>
    %16 = arith.addf %14, %15 : vector<8x32xf32>
    %17 = arith.negf %16 : vector<8x32xf32>
    %18 = math.exp %17 : vector<8x32xf32>
    %cst_11 = arith.constant 1.000000e+00 : f32
    %19 = vector.broadcast %cst_11 : f32 to vector<8x32xf32>
    %20 = arith.addf %19, %18 : vector<8x32xf32>
    %21 = arith.divf %19, %20 : vector<8x32xf32>
    %22 = vector.extract_strided_slice %11 {offsets = [0, 32], sizes = [8, 32], strides = [1, 1]} : vector<8x96xf32> to vector<8x32xf32>
    %23 = vector.extract_strided_slice %13 {offsets = [0, 32], sizes = [8, 32], strides = [1, 1]} : vector<8x96xf32> to vector<8x32xf32>
    %24 = arith.addf %22, %23 : vector<8x32xf32>
    %25 = arith.negf %24 : vector<8x32xf32>
    %26 = math.exp %25 : vector<8x32xf32>
    %cst_12 = arith.constant 1.000000e+00 : f32
    %27 = vector.broadcast %cst_12 : f32 to vector<8x32xf32>
    %28 = arith.addf %27, %26 : vector<8x32xf32>
    %29 = arith.divf %27, %28 : vector<8x32xf32>
    %30 = vector.extract_strided_slice %11 {offsets = [0, 64], sizes = [8, 32], strides = [1, 1]} : vector<8x96xf32> to vector<8x32xf32>
    %31 = vector.extract_strided_slice %13 {offsets = [0, 64], sizes = [8, 32], strides = [1, 1]} : vector<8x96xf32> to vector<8x32xf32>
    %32 = arith.mulf %21, %31 : vector<8x32xf32>
    %33 = arith.addf %30, %32 : vector<8x32xf32>
    %34 = math.tanh %33 : vector<8x32xf32>
    %cst_13 = arith.constant 1.000000e+00 : f32
    %35 = vector.broadcast %cst_13 : f32 to vector<8x32xf32>
    %36 = arith.subf %35, %29 : vector<8x32xf32>
    %37 = arith.mulf %36, %34 : vector<8x32xf32>
    %38 = arith.mulf %29, %10 : vector<8x32xf32>
    %39 = arith.addf %37, %38 : vector<8x32xf32>
    %40 = vector.extract_strided_slice %5 {offsets = [8, 0], sizes = [8, 96], strides = [1, 1]} : vector<56x96xf32> to vector<8x96xf32>
    %cst_14 = arith.constant dense<0.000000e+00> : vector<8x96xf32>
    %41 = tpu.matmul %39, %6, %cst_14 {dimension_numbers = #tpu.dot_dimension_numbers<[1], [0], [0], [1], [0, 0, 1, 1], [], []>, precision = #tpu.contract_precision<fp32>} : vector<8x32xf32>, vector<32x96xf32>, vector<8x96xf32> -> vector<8x96xf32>
    %42 = arith.addf %41, %9 : vector<8x96xf32>
    %43 = vector.extract_strided_slice %40 {offsets = [0, 0], sizes = [8, 32], strides = [1, 1]} : vector<8x96xf32> to vector<8x32xf32>
    %44 = vector.extract_strided_slice %42 {offsets = [0, 0], sizes = [8, 32], strides = [1, 1]} : vector<8x96xf32> to vector<8x32xf32>
    %45 = arith.addf %43, %44 : vector<8x32xf32>
    %46 = arith.negf %45 : vector<8x32xf32>
    %47 = math.exp %46 : vector<8x32xf32>
    %cst_15 = arith.constant 1.000000e+00 : f32
    %48 = vector.broadcast %cst_15 : f32 to vector<8x32xf32>
    %49 = arith.addf %48, %47 : vector<8x32xf32>
    %50 = arith.divf %48, %49 : vector<8x32xf32>
    %51 = vector.extract_strided_slice %40 {offsets = [0, 32], sizes = [8, 32], strides = [1, 1]} : vector<8x96xf32> to vector<8x32xf32>
    %52 = vector.extract_strided_slice %42 {offsets = [0, 32], sizes = [8, 32], strides = [1, 1]} : vector<8x96xf32> to vector<8x32xf32>
    %53 = arith.addf %51, %52 : vector<8x32xf32>
    %54 = arith.negf %53 : vector<8x32xf32>
    %55 = math.exp %54 : vector<8x32xf32>
    %cst_16 = arith.constant 1.000000e+00 : f32
    %56 = vector.broadcast %cst_16 : f32 to vector<8x32xf32>
    %57 = arith.addf %56, %55 : vector<8x32xf32>
    %58 = arith.divf %56, %57 : vector<8x32xf32>
    %59 = vector.extract_strided_slice %40 {offsets = [0, 64], sizes = [8, 32], strides = [1, 1]} : vector<8x96xf32> to vector<8x32xf32>
    %60 = vector.extract_strided_slice %42 {offsets = [0, 64], sizes = [8, 32], strides = [1, 1]} : vector<8x96xf32> to vector<8x32xf32>
    %61 = arith.mulf %50, %60 : vector<8x32xf32>
    %62 = arith.addf %59, %61 : vector<8x32xf32>
    %63 = math.tanh %62 : vector<8x32xf32>
    %cst_17 = arith.constant 1.000000e+00 : f32
    %64 = vector.broadcast %cst_17 : f32 to vector<8x32xf32>
    %65 = arith.subf %64, %58 : vector<8x32xf32>
    %66 = arith.mulf %65, %63 : vector<8x32xf32>
    %67 = arith.mulf %58, %39 : vector<8x32xf32>
    %68 = arith.addf %66, %67 : vector<8x32xf32>
    %69 = vector.extract_strided_slice %5 {offsets = [16, 0], sizes = [8, 96], strides = [1, 1]} : vector<56x96xf32> to vector<8x96xf32>
    %cst_18 = arith.constant dense<0.000000e+00> : vector<8x96xf32>
    %70 = tpu.matmul %68, %6, %cst_18 {dimension_numbers = #tpu.dot_dimension_numbers<[1], [0], [0], [1], [0, 0, 1, 1], [], []>, precision = #tpu.contract_precision<fp32>} : vector<8x32xf32>, vector<32x96xf32>, vector<8x96xf32> -> vector<8x96xf32>
    %71 = arith.addf %70, %9 : vector<8x96xf32>
    %72 = vector.extract_strided_slice %69 {offsets = [0, 0], sizes = [8, 32], strides = [1, 1]} : vector<8x96xf32> to vector<8x32xf32>
    %73 = vector.extract_strided_slice %71 {offsets = [0, 0], sizes = [8, 32], strides = [1, 1]} : vector<8x96xf32> to vector<8x32xf32>
    %74 = arith.addf %72, %73 : vector<8x32xf32>
    %75 = arith.negf %74 : vector<8x32xf32>
    %76 = math.exp %75 : vector<8x32xf32>
    %cst_19 = arith.constant 1.000000e+00 : f32
    %77 = vector.broadcast %cst_19 : f32 to vector<8x32xf32>
    %78 = arith.addf %77, %76 : vector<8x32xf32>
    %79 = arith.divf %77, %78 : vector<8x32xf32>
    %80 = vector.extract_strided_slice %69 {offsets = [0, 32], sizes = [8, 32], strides = [1, 1]} : vector<8x96xf32> to vector<8x32xf32>
    %81 = vector.extract_strided_slice %71 {offsets = [0, 32], sizes = [8, 32], strides = [1, 1]} : vector<8x96xf32> to vector<8x32xf32>
    %82 = arith.addf %80, %81 : vector<8x32xf32>
    %83 = arith.negf %82 : vector<8x32xf32>
    %84 = math.exp %83 : vector<8x32xf32>
    %cst_20 = arith.constant 1.000000e+00 : f32
    %85 = vector.broadcast %cst_20 : f32 to vector<8x32xf32>
    %86 = arith.addf %85, %84 : vector<8x32xf32>
    %87 = arith.divf %85, %86 : vector<8x32xf32>
    %88 = vector.extract_strided_slice %69 {offsets = [0, 64], sizes = [8, 32], strides = [1, 1]} : vector<8x96xf32> to vector<8x32xf32>
    %89 = vector.extract_strided_slice %71 {offsets = [0, 64], sizes = [8, 32], strides = [1, 1]} : vector<8x96xf32> to vector<8x32xf32>
    %90 = arith.mulf %79, %89 : vector<8x32xf32>
    %91 = arith.addf %88, %90 : vector<8x32xf32>
    %92 = math.tanh %91 : vector<8x32xf32>
    %cst_21 = arith.constant 1.000000e+00 : f32
    %93 = vector.broadcast %cst_21 : f32 to vector<8x32xf32>
    %94 = arith.subf %93, %87 : vector<8x32xf32>
    %95 = arith.mulf %94, %92 : vector<8x32xf32>
    %96 = arith.mulf %87, %68 : vector<8x32xf32>
    %97 = arith.addf %95, %96 : vector<8x32xf32>
    %98 = vector.extract_strided_slice %5 {offsets = [24, 0], sizes = [8, 96], strides = [1, 1]} : vector<56x96xf32> to vector<8x96xf32>
    %cst_22 = arith.constant dense<0.000000e+00> : vector<8x96xf32>
    %99 = tpu.matmul %97, %6, %cst_22 {dimension_numbers = #tpu.dot_dimension_numbers<[1], [0], [0], [1], [0, 0, 1, 1], [], []>, precision = #tpu.contract_precision<fp32>} : vector<8x32xf32>, vector<32x96xf32>, vector<8x96xf32> -> vector<8x96xf32>
    %100 = arith.addf %99, %9 : vector<8x96xf32>
    %101 = vector.extract_strided_slice %98 {offsets = [0, 0], sizes = [8, 32], strides = [1, 1]} : vector<8x96xf32> to vector<8x32xf32>
    %102 = vector.extract_strided_slice %100 {offsets = [0, 0], sizes = [8, 32], strides = [1, 1]} : vector<8x96xf32> to vector<8x32xf32>
    %103 = arith.addf %101, %102 : vector<8x32xf32>
    %104 = arith.negf %103 : vector<8x32xf32>
    %105 = math.exp %104 : vector<8x32xf32>
    %cst_23 = arith.constant 1.000000e+00 : f32
    %106 = vector.broadcast %cst_23 : f32 to vector<8x32xf32>
    %107 = arith.addf %106, %105 : vector<8x32xf32>
    %108 = arith.divf %106, %107 : vector<8x32xf32>
    %109 = vector.extract_strided_slice %98 {offsets = [0, 32], sizes = [8, 32], strides = [1, 1]} : vector<8x96xf32> to vector<8x32xf32>
    %110 = vector.extract_strided_slice %100 {offsets = [0, 32], sizes = [8, 32], strides = [1, 1]} : vector<8x96xf32> to vector<8x32xf32>
    %111 = arith.addf %109, %110 : vector<8x32xf32>
    %112 = arith.negf %111 : vector<8x32xf32>
    %113 = math.exp %112 : vector<8x32xf32>
    %cst_24 = arith.constant 1.000000e+00 : f32
    %114 = vector.broadcast %cst_24 : f32 to vector<8x32xf32>
    %115 = arith.addf %114, %113 : vector<8x32xf32>
    %116 = arith.divf %114, %115 : vector<8x32xf32>
    %117 = vector.extract_strided_slice %98 {offsets = [0, 64], sizes = [8, 32], strides = [1, 1]} : vector<8x96xf32> to vector<8x32xf32>
    %118 = vector.extract_strided_slice %100 {offsets = [0, 64], sizes = [8, 32], strides = [1, 1]} : vector<8x96xf32> to vector<8x32xf32>
    %119 = arith.mulf %108, %118 : vector<8x32xf32>
    %120 = arith.addf %117, %119 : vector<8x32xf32>
    %121 = math.tanh %120 : vector<8x32xf32>
    %cst_25 = arith.constant 1.000000e+00 : f32
    %122 = vector.broadcast %cst_25 : f32 to vector<8x32xf32>
    %123 = arith.subf %122, %116 : vector<8x32xf32>
    %124 = arith.mulf %123, %121 : vector<8x32xf32>
    %125 = arith.mulf %116, %97 : vector<8x32xf32>
    %126 = arith.addf %124, %125 : vector<8x32xf32>
    %127 = vector.extract_strided_slice %5 {offsets = [32, 0], sizes = [8, 96], strides = [1, 1]} : vector<56x96xf32> to vector<8x96xf32>
    %cst_26 = arith.constant dense<0.000000e+00> : vector<8x96xf32>
    %128 = tpu.matmul %126, %6, %cst_26 {dimension_numbers = #tpu.dot_dimension_numbers<[1], [0], [0], [1], [0, 0, 1, 1], [], []>, precision = #tpu.contract_precision<fp32>} : vector<8x32xf32>, vector<32x96xf32>, vector<8x96xf32> -> vector<8x96xf32>
    %129 = arith.addf %128, %9 : vector<8x96xf32>
    %130 = vector.extract_strided_slice %127 {offsets = [0, 0], sizes = [8, 32], strides = [1, 1]} : vector<8x96xf32> to vector<8x32xf32>
    %131 = vector.extract_strided_slice %129 {offsets = [0, 0], sizes = [8, 32], strides = [1, 1]} : vector<8x96xf32> to vector<8x32xf32>
    %132 = arith.addf %130, %131 : vector<8x32xf32>
    %133 = arith.negf %132 : vector<8x32xf32>
    %134 = math.exp %133 : vector<8x32xf32>
    %cst_27 = arith.constant 1.000000e+00 : f32
    %135 = vector.broadcast %cst_27 : f32 to vector<8x32xf32>
    %136 = arith.addf %135, %134 : vector<8x32xf32>
    %137 = arith.divf %135, %136 : vector<8x32xf32>
    %138 = vector.extract_strided_slice %127 {offsets = [0, 32], sizes = [8, 32], strides = [1, 1]} : vector<8x96xf32> to vector<8x32xf32>
    %139 = vector.extract_strided_slice %129 {offsets = [0, 32], sizes = [8, 32], strides = [1, 1]} : vector<8x96xf32> to vector<8x32xf32>
    %140 = arith.addf %138, %139 : vector<8x32xf32>
    %141 = arith.negf %140 : vector<8x32xf32>
    %142 = math.exp %141 : vector<8x32xf32>
    %cst_28 = arith.constant 1.000000e+00 : f32
    %143 = vector.broadcast %cst_28 : f32 to vector<8x32xf32>
    %144 = arith.addf %143, %142 : vector<8x32xf32>
    %145 = arith.divf %143, %144 : vector<8x32xf32>
    %146 = vector.extract_strided_slice %127 {offsets = [0, 64], sizes = [8, 32], strides = [1, 1]} : vector<8x96xf32> to vector<8x32xf32>
    %147 = vector.extract_strided_slice %129 {offsets = [0, 64], sizes = [8, 32], strides = [1, 1]} : vector<8x96xf32> to vector<8x32xf32>
    %148 = arith.mulf %137, %147 : vector<8x32xf32>
    %149 = arith.addf %146, %148 : vector<8x32xf32>
    %150 = math.tanh %149 : vector<8x32xf32>
    %cst_29 = arith.constant 1.000000e+00 : f32
    %151 = vector.broadcast %cst_29 : f32 to vector<8x32xf32>
    %152 = arith.subf %151, %145 : vector<8x32xf32>
    %153 = arith.mulf %152, %150 : vector<8x32xf32>
    %154 = arith.mulf %145, %126 : vector<8x32xf32>
    %155 = arith.addf %153, %154 : vector<8x32xf32>
    %156 = vector.extract_strided_slice %5 {offsets = [40, 0], sizes = [8, 96], strides = [1, 1]} : vector<56x96xf32> to vector<8x96xf32>
    %cst_30 = arith.constant dense<0.000000e+00> : vector<8x96xf32>
    %157 = tpu.matmul %155, %6, %cst_30 {dimension_numbers = #tpu.dot_dimension_numbers<[1], [0], [0], [1], [0, 0, 1, 1], [], []>, precision = #tpu.contract_precision<fp32>} : vector<8x32xf32>, vector<32x96xf32>, vector<8x96xf32> -> vector<8x96xf32>
    %158 = arith.addf %157, %9 : vector<8x96xf32>
    %159 = vector.extract_strided_slice %156 {offsets = [0, 0], sizes = [8, 32], strides = [1, 1]} : vector<8x96xf32> to vector<8x32xf32>
    %160 = vector.extract_strided_slice %158 {offsets = [0, 0], sizes = [8, 32], strides = [1, 1]} : vector<8x96xf32> to vector<8x32xf32>
    %161 = arith.addf %159, %160 : vector<8x32xf32>
    %162 = arith.negf %161 : vector<8x32xf32>
    %163 = math.exp %162 : vector<8x32xf32>
    %cst_31 = arith.constant 1.000000e+00 : f32
    %164 = vector.broadcast %cst_31 : f32 to vector<8x32xf32>
    %165 = arith.addf %164, %163 : vector<8x32xf32>
    %166 = arith.divf %164, %165 : vector<8x32xf32>
    %167 = vector.extract_strided_slice %156 {offsets = [0, 32], sizes = [8, 32], strides = [1, 1]} : vector<8x96xf32> to vector<8x32xf32>
    %168 = vector.extract_strided_slice %158 {offsets = [0, 32], sizes = [8, 32], strides = [1, 1]} : vector<8x96xf32> to vector<8x32xf32>
    %169 = arith.addf %167, %168 : vector<8x32xf32>
    %170 = arith.negf %169 : vector<8x32xf32>
    %171 = math.exp %170 : vector<8x32xf32>
    %cst_32 = arith.constant 1.000000e+00 : f32
    %172 = vector.broadcast %cst_32 : f32 to vector<8x32xf32>
    %173 = arith.addf %172, %171 : vector<8x32xf32>
    %174 = arith.divf %172, %173 : vector<8x32xf32>
    %175 = vector.extract_strided_slice %156 {offsets = [0, 64], sizes = [8, 32], strides = [1, 1]} : vector<8x96xf32> to vector<8x32xf32>
    %176 = vector.extract_strided_slice %158 {offsets = [0, 64], sizes = [8, 32], strides = [1, 1]} : vector<8x96xf32> to vector<8x32xf32>
    %177 = arith.mulf %166, %176 : vector<8x32xf32>
    %178 = arith.addf %175, %177 : vector<8x32xf32>
    %179 = math.tanh %178 : vector<8x32xf32>
    %cst_33 = arith.constant 1.000000e+00 : f32
    %180 = vector.broadcast %cst_33 : f32 to vector<8x32xf32>
    %181 = arith.subf %180, %174 : vector<8x32xf32>
    %182 = arith.mulf %181, %179 : vector<8x32xf32>
    %183 = arith.mulf %174, %155 : vector<8x32xf32>
    %184 = arith.addf %182, %183 : vector<8x32xf32>
    %185 = vector.extract_strided_slice %5 {offsets = [48, 0], sizes = [8, 96], strides = [1, 1]} : vector<56x96xf32> to vector<8x96xf32>
    %cst_34 = arith.constant dense<0.000000e+00> : vector<8x96xf32>
    %186 = tpu.matmul %184, %6, %cst_34 {dimension_numbers = #tpu.dot_dimension_numbers<[1], [0], [0], [1], [0, 0, 1, 1], [], []>, precision = #tpu.contract_precision<fp32>} : vector<8x32xf32>, vector<32x96xf32>, vector<8x96xf32> -> vector<8x96xf32>
    %187 = arith.addf %186, %9 : vector<8x96xf32>
    %188 = vector.extract_strided_slice %185 {offsets = [0, 0], sizes = [8, 32], strides = [1, 1]} : vector<8x96xf32> to vector<8x32xf32>
    %189 = vector.extract_strided_slice %187 {offsets = [0, 0], sizes = [8, 32], strides = [1, 1]} : vector<8x96xf32> to vector<8x32xf32>
    %190 = arith.addf %188, %189 : vector<8x32xf32>
    %191 = arith.negf %190 : vector<8x32xf32>
    %192 = math.exp %191 : vector<8x32xf32>
    %cst_35 = arith.constant 1.000000e+00 : f32
    %193 = vector.broadcast %cst_35 : f32 to vector<8x32xf32>
    %194 = arith.addf %193, %192 : vector<8x32xf32>
    %195 = arith.divf %193, %194 : vector<8x32xf32>
    %196 = vector.extract_strided_slice %185 {offsets = [0, 32], sizes = [8, 32], strides = [1, 1]} : vector<8x96xf32> to vector<8x32xf32>
    %197 = vector.extract_strided_slice %187 {offsets = [0, 32], sizes = [8, 32], strides = [1, 1]} : vector<8x96xf32> to vector<8x32xf32>
    %198 = arith.addf %196, %197 : vector<8x32xf32>
    %199 = arith.negf %198 : vector<8x32xf32>
    %200 = math.exp %199 : vector<8x32xf32>
    %cst_36 = arith.constant 1.000000e+00 : f32
    %201 = vector.broadcast %cst_36 : f32 to vector<8x32xf32>
    %202 = arith.addf %201, %200 : vector<8x32xf32>
    %203 = arith.divf %201, %202 : vector<8x32xf32>
    %204 = vector.extract_strided_slice %185 {offsets = [0, 64], sizes = [8, 32], strides = [1, 1]} : vector<8x96xf32> to vector<8x32xf32>
    %205 = vector.extract_strided_slice %187 {offsets = [0, 64], sizes = [8, 32], strides = [1, 1]} : vector<8x96xf32> to vector<8x32xf32>
    %206 = arith.mulf %195, %205 : vector<8x32xf32>
    %207 = arith.addf %204, %206 : vector<8x32xf32>
    %208 = math.tanh %207 : vector<8x32xf32>
    %cst_37 = arith.constant 1.000000e+00 : f32
    %209 = vector.broadcast %cst_37 : f32 to vector<8x32xf32>
    %210 = arith.subf %209, %203 : vector<8x32xf32>
    %211 = arith.mulf %210, %208 : vector<8x32xf32>
    %212 = arith.mulf %203, %184 : vector<8x32xf32>
    %213 = arith.addf %211, %212 : vector<8x32xf32>
    %c0_38 = arith.constant 0 : index
    %c0_39 = arith.constant 0 : index
    %214 = vector.load %arg5[%c0_38, %c0_39] : memref<32x128xf32, #tpu.memory_space<vmem>>, vector<32x128xf32>
    %c0_40 = arith.constant 0 : index
    %c0_41 = arith.constant 0 : index
    %215 = vector.load %arg6[%c0_40, %c0_41] : memref<1x128xf32, #tpu.memory_space<vmem>>, vector<1x128xf32>
    %216 = vector.shape_cast %215 : vector<1x128xf32> to vector<1x128xf32>
    %217 = vector.broadcast %216 : vector<1x128xf32> to vector<8x128xf32>
    %cst_42 = arith.constant dense<0.000000e+00> : vector<8x128xf32>
    %218 = tpu.matmul %213, %214, %cst_42 {dimension_numbers = #tpu.dot_dimension_numbers<[1], [0], [0], [1], [0, 0, 1, 1], [], []>, precision = #tpu.contract_precision<fp32>} : vector<8x32xf32>, vector<32x128xf32>, vector<8x128xf32> -> vector<8x128xf32>
    %219 = arith.addf %218, %217 : vector<8x128xf32>
    %220 = vector.extract_strided_slice %219 {offsets = [0, 0], sizes = [8, 32], strides = [1, 1]} : vector<8x128xf32> to vector<8x32xf32>
    %221 = arith.negf %220 : vector<8x32xf32>
    %222 = math.exp %221 : vector<8x32xf32>
    %cst_43 = arith.constant 1.000000e+00 : f32
    %223 = vector.broadcast %cst_43 : f32 to vector<8x32xf32>
    %224 = arith.addf %223, %222 : vector<8x32xf32>
    %225 = arith.divf %223, %224 : vector<8x32xf32>
    %226 = vector.extract_strided_slice %219 {offsets = [0, 32], sizes = [8, 32], strides = [1, 1]} : vector<8x128xf32> to vector<8x32xf32>
    %227 = arith.negf %226 : vector<8x32xf32>
    %228 = math.exp %227 : vector<8x32xf32>
    %cst_44 = arith.constant 1.000000e+00 : f32
    %229 = vector.broadcast %cst_44 : f32 to vector<8x32xf32>
    %230 = arith.addf %229, %228 : vector<8x32xf32>
    %231 = arith.divf %229, %230 : vector<8x32xf32>
    %232 = vector.extract_strided_slice %219 {offsets = [0, 64], sizes = [8, 32], strides = [1, 1]} : vector<8x128xf32> to vector<8x32xf32>
    %233 = vector.extract_strided_slice %219 {offsets = [0, 96], sizes = [8, 32], strides = [1, 1]} : vector<8x128xf32> to vector<8x32xf32>
    %234 = arith.mulf %225, %233 : vector<8x32xf32>
    %235 = arith.addf %232, %234 : vector<8x32xf32>
    %236 = math.tanh %235 : vector<8x32xf32>
    %cst_45 = arith.constant 1.000000e+00 : f32
    %237 = vector.broadcast %cst_45 : f32 to vector<8x32xf32>
    %238 = arith.subf %237, %231 : vector<8x32xf32>
    %239 = arith.mulf %238, %236 : vector<8x32xf32>
    %240 = arith.mulf %231, %213 : vector<8x32xf32>
    %241 = arith.addf %239, %240 : vector<8x32xf32>
    %cst_46 = arith.constant dense<0.000000e+00> : vector<8x128xf32>
    %242 = tpu.matmul %241, %214, %cst_46 {dimension_numbers = #tpu.dot_dimension_numbers<[1], [0], [0], [1], [0, 0, 1, 1], [], []>, precision = #tpu.contract_precision<fp32>} : vector<8x32xf32>, vector<32x128xf32>, vector<8x128xf32> -> vector<8x128xf32>
    %243 = arith.addf %242, %217 : vector<8x128xf32>
    %244 = vector.extract_strided_slice %243 {offsets = [0, 0], sizes = [8, 32], strides = [1, 1]} : vector<8x128xf32> to vector<8x32xf32>
    %245 = arith.negf %244 : vector<8x32xf32>
    %246 = math.exp %245 : vector<8x32xf32>
    %cst_47 = arith.constant 1.000000e+00 : f32
    %247 = vector.broadcast %cst_47 : f32 to vector<8x32xf32>
    %248 = arith.addf %247, %246 : vector<8x32xf32>
    %249 = arith.divf %247, %248 : vector<8x32xf32>
    %250 = vector.extract_strided_slice %243 {offsets = [0, 32], sizes = [8, 32], strides = [1, 1]} : vector<8x128xf32> to vector<8x32xf32>
    %251 = arith.negf %250 : vector<8x32xf32>
    %252 = math.exp %251 : vector<8x32xf32>
    %cst_48 = arith.constant 1.000000e+00 : f32
    %253 = vector.broadcast %cst_48 : f32 to vector<8x32xf32>
    %254 = arith.addf %253, %252 : vector<8x32xf32>
    %255 = arith.divf %253, %254 : vector<8x32xf32>
    %256 = vector.extract_strided_slice %243 {offsets = [0, 64], sizes = [8, 32], strides = [1, 1]} : vector<8x128xf32> to vector<8x32xf32>
    %257 = vector.extract_strided_slice %243 {offsets = [0, 96], sizes = [8, 32], strides = [1, 1]} : vector<8x128xf32> to vector<8x32xf32>
    %258 = arith.mulf %249, %257 : vector<8x32xf32>
    %259 = arith.addf %256, %258 : vector<8x32xf32>
    %260 = math.tanh %259 : vector<8x32xf32>
    %cst_49 = arith.constant 1.000000e+00 : f32
    %261 = vector.broadcast %cst_49 : f32 to vector<8x32xf32>
    %262 = arith.subf %261, %255 : vector<8x32xf32>
    %263 = arith.mulf %262, %260 : vector<8x32xf32>
    %264 = arith.mulf %255, %241 : vector<8x32xf32>
    %265 = arith.addf %263, %264 : vector<8x32xf32>
    %cst_50 = arith.constant dense<0.000000e+00> : vector<8x128xf32>
    %266 = tpu.matmul %265, %214, %cst_50 {dimension_numbers = #tpu.dot_dimension_numbers<[1], [0], [0], [1], [0, 0, 1, 1], [], []>, precision = #tpu.contract_precision<fp32>} : vector<8x32xf32>, vector<32x128xf32>, vector<8x128xf32> -> vector<8x128xf32>
    %267 = arith.addf %266, %217 : vector<8x128xf32>
    %268 = vector.extract_strided_slice %267 {offsets = [0, 0], sizes = [8, 32], strides = [1, 1]} : vector<8x128xf32> to vector<8x32xf32>
    %269 = arith.negf %268 : vector<8x32xf32>
    %270 = math.exp %269 : vector<8x32xf32>
    %cst_51 = arith.constant 1.000000e+00 : f32
    %271 = vector.broadcast %cst_51 : f32 to vector<8x32xf32>
    %272 = arith.addf %271, %270 : vector<8x32xf32>
    %273 = arith.divf %271, %272 : vector<8x32xf32>
    %274 = vector.extract_strided_slice %267 {offsets = [0, 32], sizes = [8, 32], strides = [1, 1]} : vector<8x128xf32> to vector<8x32xf32>
    %275 = arith.negf %274 : vector<8x32xf32>
    %276 = math.exp %275 : vector<8x32xf32>
    %cst_52 = arith.constant 1.000000e+00 : f32
    %277 = vector.broadcast %cst_52 : f32 to vector<8x32xf32>
    %278 = arith.addf %277, %276 : vector<8x32xf32>
    %279 = arith.divf %277, %278 : vector<8x32xf32>
    %280 = vector.extract_strided_slice %267 {offsets = [0, 64], sizes = [8, 32], strides = [1, 1]} : vector<8x128xf32> to vector<8x32xf32>
    %281 = vector.extract_strided_slice %267 {offsets = [0, 96], sizes = [8, 32], strides = [1, 1]} : vector<8x128xf32> to vector<8x32xf32>
    %282 = arith.mulf %273, %281 : vector<8x32xf32>
    %283 = arith.addf %280, %282 : vector<8x32xf32>
    %284 = math.tanh %283 : vector<8x32xf32>
    %cst_53 = arith.constant 1.000000e+00 : f32
    %285 = vector.broadcast %cst_53 : f32 to vector<8x32xf32>
    %286 = arith.subf %285, %279 : vector<8x32xf32>
    %287 = arith.mulf %286, %284 : vector<8x32xf32>
    %288 = arith.mulf %279, %265 : vector<8x32xf32>
    %289 = arith.addf %287, %288 : vector<8x32xf32>
    %cst_54 = arith.constant dense<0.000000e+00> : vector<8x128xf32>
    %290 = tpu.matmul %289, %214, %cst_54 {dimension_numbers = #tpu.dot_dimension_numbers<[1], [0], [0], [1], [0, 0, 1, 1], [], []>, precision = #tpu.contract_precision<fp32>} : vector<8x32xf32>, vector<32x128xf32>, vector<8x128xf32> -> vector<8x128xf32>
    %291 = arith.addf %290, %217 : vector<8x128xf32>
    %292 = vector.extract_strided_slice %291 {offsets = [0, 0], sizes = [8, 32], strides = [1, 1]} : vector<8x128xf32> to vector<8x32xf32>
    %293 = arith.negf %292 : vector<8x32xf32>
    %294 = math.exp %293 : vector<8x32xf32>
    %cst_55 = arith.constant 1.000000e+00 : f32
    %295 = vector.broadcast %cst_55 : f32 to vector<8x32xf32>
    %296 = arith.addf %295, %294 : vector<8x32xf32>
    %297 = arith.divf %295, %296 : vector<8x32xf32>
    %298 = vector.extract_strided_slice %291 {offsets = [0, 32], sizes = [8, 32], strides = [1, 1]} : vector<8x128xf32> to vector<8x32xf32>
    %299 = arith.negf %298 : vector<8x32xf32>
    %300 = math.exp %299 : vector<8x32xf32>
    %cst_56 = arith.constant 1.000000e+00 : f32
    %301 = vector.broadcast %cst_56 : f32 to vector<8x32xf32>
    %302 = arith.addf %301, %300 : vector<8x32xf32>
    %303 = arith.divf %301, %302 : vector<8x32xf32>
    %304 = vector.extract_strided_slice %291 {offsets = [0, 64], sizes = [8, 32], strides = [1, 1]} : vector<8x128xf32> to vector<8x32xf32>
    %305 = vector.extract_strided_slice %291 {offsets = [0, 96], sizes = [8, 32], strides = [1, 1]} : vector<8x128xf32> to vector<8x32xf32>
    %306 = arith.mulf %297, %305 : vector<8x32xf32>
    %307 = arith.addf %304, %306 : vector<8x32xf32>
    %308 = math.tanh %307 : vector<8x32xf32>
    %cst_57 = arith.constant 1.000000e+00 : f32
    %309 = vector.broadcast %cst_57 : f32 to vector<8x32xf32>
    %310 = arith.subf %309, %303 : vector<8x32xf32>
    %311 = arith.mulf %310, %308 : vector<8x32xf32>
    %312 = arith.mulf %303, %289 : vector<8x32xf32>
    %313 = arith.addf %311, %312 : vector<8x32xf32>
    %cst_58 = arith.constant dense<0.000000e+00> : vector<8x128xf32>
    %314 = tpu.matmul %313, %214, %cst_58 {dimension_numbers = #tpu.dot_dimension_numbers<[1], [0], [0], [1], [0, 0, 1, 1], [], []>, precision = #tpu.contract_precision<fp32>} : vector<8x32xf32>, vector<32x128xf32>, vector<8x128xf32> -> vector<8x128xf32>
    %315 = arith.addf %314, %217 : vector<8x128xf32>
    %316 = vector.extract_strided_slice %315 {offsets = [0, 0], sizes = [8, 32], strides = [1, 1]} : vector<8x128xf32> to vector<8x32xf32>
    %317 = arith.negf %316 : vector<8x32xf32>
    %318 = math.exp %317 : vector<8x32xf32>
    %cst_59 = arith.constant 1.000000e+00 : f32
    %319 = vector.broadcast %cst_59 : f32 to vector<8x32xf32>
    %320 = arith.addf %319, %318 : vector<8x32xf32>
    %321 = arith.divf %319, %320 : vector<8x32xf32>
    %322 = vector.extract_strided_slice %315 {offsets = [0, 32], sizes = [8, 32], strides = [1, 1]} : vector<8x128xf32> to vector<8x32xf32>
    %323 = arith.negf %322 : vector<8x32xf32>
    %324 = math.exp %323 : vector<8x32xf32>
    %cst_60 = arith.constant 1.000000e+00 : f32
    %325 = vector.broadcast %cst_60 : f32 to vector<8x32xf32>
    %326 = arith.addf %325, %324 : vector<8x32xf32>
    %327 = arith.divf %325, %326 : vector<8x32xf32>
    %328 = vector.extract_strided_slice %315 {offsets = [0, 64], sizes = [8, 32], strides = [1, 1]} : vector<8x128xf32> to vector<8x32xf32>
    %329 = vector.extract_strided_slice %315 {offsets = [0, 96], sizes = [8, 32], strides = [1, 1]} : vector<8x128xf32> to vector<8x32xf32>
    %330 = arith.mulf %321, %329 : vector<8x32xf32>
    %331 = arith.addf %328, %330 : vector<8x32xf32>
    %332 = math.tanh %331 : vector<8x32xf32>
    %cst_61 = arith.constant 1.000000e+00 : f32
    %333 = vector.broadcast %cst_61 : f32 to vector<8x32xf32>
    %334 = arith.subf %333, %327 : vector<8x32xf32>
    %335 = arith.mulf %334, %332 : vector<8x32xf32>
    %336 = arith.mulf %327, %313 : vector<8x32xf32>
    %337 = arith.addf %335, %336 : vector<8x32xf32>
    %cst_62 = arith.constant dense<0.000000e+00> : vector<8x128xf32>
    %338 = tpu.matmul %337, %214, %cst_62 {dimension_numbers = #tpu.dot_dimension_numbers<[1], [0], [0], [1], [0, 0, 1, 1], [], []>, precision = #tpu.contract_precision<fp32>} : vector<8x32xf32>, vector<32x128xf32>, vector<8x128xf32> -> vector<8x128xf32>
    %339 = arith.addf %338, %217 : vector<8x128xf32>
    %340 = vector.extract_strided_slice %339 {offsets = [0, 0], sizes = [8, 32], strides = [1, 1]} : vector<8x128xf32> to vector<8x32xf32>
    %341 = arith.negf %340 : vector<8x32xf32>
    %342 = math.exp %341 : vector<8x32xf32>
    %cst_63 = arith.constant 1.000000e+00 : f32
    %343 = vector.broadcast %cst_63 : f32 to vector<8x32xf32>
    %344 = arith.addf %343, %342 : vector<8x32xf32>
    %345 = arith.divf %343, %344 : vector<8x32xf32>
    %346 = vector.extract_strided_slice %339 {offsets = [0, 32], sizes = [8, 32], strides = [1, 1]} : vector<8x128xf32> to vector<8x32xf32>
    %347 = arith.negf %346 : vector<8x32xf32>
    %348 = math.exp %347 : vector<8x32xf32>
    %cst_64 = arith.constant 1.000000e+00 : f32
    %349 = vector.broadcast %cst_64 : f32 to vector<8x32xf32>
    %350 = arith.addf %349, %348 : vector<8x32xf32>
    %351 = arith.divf %349, %350 : vector<8x32xf32>
    %352 = vector.extract_strided_slice %339 {offsets = [0, 64], sizes = [8, 32], strides = [1, 1]} : vector<8x128xf32> to vector<8x32xf32>
    %353 = vector.extract_strided_slice %339 {offsets = [0, 96], sizes = [8, 32], strides = [1, 1]} : vector<8x128xf32> to vector<8x32xf32>
    %354 = arith.mulf %345, %353 : vector<8x32xf32>
    %355 = arith.addf %352, %354 : vector<8x32xf32>
    %356 = math.tanh %355 : vector<8x32xf32>
    %cst_65 = arith.constant 1.000000e+00 : f32
    %357 = vector.broadcast %cst_65 : f32 to vector<8x32xf32>
    %358 = arith.subf %357, %351 : vector<8x32xf32>
    %359 = arith.mulf %358, %356 : vector<8x32xf32>
    %360 = arith.mulf %351, %337 : vector<8x32xf32>
    %361 = arith.addf %359, %360 : vector<8x32xf32>
    %cst_66 = arith.constant dense<0.000000e+00> : vector<8x128xf32>
    %362 = tpu.matmul %361, %214, %cst_66 {dimension_numbers = #tpu.dot_dimension_numbers<[1], [0], [0], [1], [0, 0, 1, 1], [], []>, precision = #tpu.contract_precision<fp32>} : vector<8x32xf32>, vector<32x128xf32>, vector<8x128xf32> -> vector<8x128xf32>
    %363 = arith.addf %362, %217 : vector<8x128xf32>
    %364 = vector.extract_strided_slice %363 {offsets = [0, 0], sizes = [8, 32], strides = [1, 1]} : vector<8x128xf32> to vector<8x32xf32>
    %365 = arith.negf %364 : vector<8x32xf32>
    %366 = math.exp %365 : vector<8x32xf32>
    %cst_67 = arith.constant 1.000000e+00 : f32
    %367 = vector.broadcast %cst_67 : f32 to vector<8x32xf32>
    %368 = arith.addf %367, %366 : vector<8x32xf32>
    %369 = arith.divf %367, %368 : vector<8x32xf32>
    %370 = vector.extract_strided_slice %363 {offsets = [0, 32], sizes = [8, 32], strides = [1, 1]} : vector<8x128xf32> to vector<8x32xf32>
    %371 = arith.negf %370 : vector<8x32xf32>
    %372 = math.exp %371 : vector<8x32xf32>
    %cst_68 = arith.constant 1.000000e+00 : f32
    %373 = vector.broadcast %cst_68 : f32 to vector<8x32xf32>
    %374 = arith.addf %373, %372 : vector<8x32xf32>
    %375 = arith.divf %373, %374 : vector<8x32xf32>
    %376 = vector.extract_strided_slice %363 {offsets = [0, 64], sizes = [8, 32], strides = [1, 1]} : vector<8x128xf32> to vector<8x32xf32>
    %377 = vector.extract_strided_slice %363 {offsets = [0, 96], sizes = [8, 32], strides = [1, 1]} : vector<8x128xf32> to vector<8x32xf32>
    %378 = arith.mulf %369, %377 : vector<8x32xf32>
    %379 = arith.addf %376, %378 : vector<8x32xf32>
    %380 = math.tanh %379 : vector<8x32xf32>
    %cst_69 = arith.constant 1.000000e+00 : f32
    %381 = vector.broadcast %cst_69 : f32 to vector<8x32xf32>
    %382 = arith.subf %381, %375 : vector<8x32xf32>
    %383 = arith.mulf %382, %380 : vector<8x32xf32>
    %384 = arith.mulf %375, %361 : vector<8x32xf32>
    %385 = arith.addf %383, %384 : vector<8x32xf32>
    %cst_70 = arith.constant dense<0.000000e+00> : vector<8x128xf32>
    %386 = tpu.matmul %385, %214, %cst_70 {dimension_numbers = #tpu.dot_dimension_numbers<[1], [0], [0], [1], [0, 0, 1, 1], [], []>, precision = #tpu.contract_precision<fp32>} : vector<8x32xf32>, vector<32x128xf32>, vector<8x128xf32> -> vector<8x128xf32>
    %387 = arith.addf %386, %217 : vector<8x128xf32>
    %388 = vector.extract_strided_slice %387 {offsets = [0, 0], sizes = [8, 32], strides = [1, 1]} : vector<8x128xf32> to vector<8x32xf32>
    %389 = arith.negf %388 : vector<8x32xf32>
    %390 = math.exp %389 : vector<8x32xf32>
    %cst_71 = arith.constant 1.000000e+00 : f32
    %391 = vector.broadcast %cst_71 : f32 to vector<8x32xf32>
    %392 = arith.addf %391, %390 : vector<8x32xf32>
    %393 = arith.divf %391, %392 : vector<8x32xf32>
    %394 = vector.extract_strided_slice %387 {offsets = [0, 32], sizes = [8, 32], strides = [1, 1]} : vector<8x128xf32> to vector<8x32xf32>
    %395 = arith.negf %394 : vector<8x32xf32>
    %396 = math.exp %395 : vector<8x32xf32>
    %cst_72 = arith.constant 1.000000e+00 : f32
    %397 = vector.broadcast %cst_72 : f32 to vector<8x32xf32>
    %398 = arith.addf %397, %396 : vector<8x32xf32>
    %399 = arith.divf %397, %398 : vector<8x32xf32>
    %400 = vector.extract_strided_slice %387 {offsets = [0, 64], sizes = [8, 32], strides = [1, 1]} : vector<8x128xf32> to vector<8x32xf32>
    %401 = vector.extract_strided_slice %387 {offsets = [0, 96], sizes = [8, 32], strides = [1, 1]} : vector<8x128xf32> to vector<8x32xf32>
    %402 = arith.mulf %393, %401 : vector<8x32xf32>
    %403 = arith.addf %400, %402 : vector<8x32xf32>
    %404 = math.tanh %403 : vector<8x32xf32>
    %cst_73 = arith.constant 1.000000e+00 : f32
    %405 = vector.broadcast %cst_73 : f32 to vector<8x32xf32>
    %406 = arith.subf %405, %399 : vector<8x32xf32>
    %407 = arith.mulf %406, %404 : vector<8x32xf32>
    %408 = arith.mulf %399, %385 : vector<8x32xf32>
    %409 = arith.addf %407, %408 : vector<8x32xf32>
    %410 = tpu.concatenate %241, %265, %289, %313, %337, %361, %385, %409 in 0 : vector<8x32xf32>, vector<8x32xf32>, vector<8x32xf32>, vector<8x32xf32>, vector<8x32xf32>, vector<8x32xf32>, vector<8x32xf32>, vector<8x32xf32> -> vector<64x32xf32>
    %c0_74 = arith.constant 0 : index
    %c0_75 = arith.constant 0 : index
    %411 = vector.load %arg7[%c0_74, %c0_75] : memref<32x128xf32, #tpu.memory_space<vmem>>, vector<32x128xf32>
    %cst_76 = arith.constant dense<0.000000e+00> : vector<64x128xf32>
    %412 = tpu.matmul %410, %411, %cst_76 {dimension_numbers = #tpu.dot_dimension_numbers<[1], [0], [0], [1], [0, 0, 1, 1], [], []>, precision = #tpu.contract_precision<fp32>} : vector<64x32xf32>, vector<32x128xf32>, vector<64x128xf32> -> vector<64x128xf32>
    %c0_77 = arith.constant 0 : index
    %c0_78 = arith.constant 0 : index
    %413 = vector.load %arg8[%c0_77, %c0_78] : memref<1x128xf32, #tpu.memory_space<vmem>>, vector<1x128xf32>
    %414 = vector.broadcast %413 : vector<1x128xf32> to vector<64x128xf32>
    %415 = arith.addf %412, %414 : vector<64x128xf32>
    %c0_79 = arith.constant 0 : index
    %c0_80 = arith.constant 0 : index
    %416 = vector.load %arg9[%c0_79, %c0_80] : memref<64x128xf32, #tpu.memory_space<vmem>>, vector<64x128xf32>
    tpu.vector_store %arg9[%c0_79, %c0_80], %415 {strides = array<i32>} : memref<64x128xf32, #tpu.memory_space<vmem>>, vector<64x128xf32>,
    return
  }
}

</mosaic_0001>

<llo_original>
// kernel: tpu_custom_call.1
$region0: #{tpu_custom_call.1}
  #allocation0 [shape = 'u32[]', space=smem, size = 0x4, offset = 0x4, fixed_abs, tag = 'smem constant byte address 0x4 - core index']
  #allocation1 [shape = 'u32[144,128]{1,0:T(1,128)}', space=vmem, size = 0x12000, scoped, tag = 'internal scratch']
  %s0 = inlined_call_operand.vmem [shape: f32[56,16], index: 0, kind: input, shape index: {}]
  %s1 = inlined_call_operand.hbm [shape: f32[16,96], index: 1, kind: input, shape index: {}]
  %s2 = inlined_call_operand.vmem [shape: f32[32,96], index: 2, kind: input, shape index: {}]
  %s3 = inlined_call_operand.vmem [shape: f32[1,96], index: 3, kind: input, shape index: {}]
  %s4 = inlined_call_operand.vmem [shape: f32[1,96], index: 4, kind: input, shape index: {}]
  %s5 = inlined_call_operand.vmem [shape: f32[32,128], index: 5, kind: input, shape index: {}]
  %s6 = inlined_call_operand.hbm [shape: f32[1,128], index: 6, kind: input, shape index: {}]
  %s7 = inlined_call_operand.vmem [shape: f32[32,128], index: 7, kind: input, shape index: {}]
  %s8 = inlined_call_operand.vmem [shape: f32[1,128], index: 8, kind: input, shape index: {}]
  %s9 = inlined_call_operand.hbm [shape: f32[64,128], index: 9, kind: output, shape index: {}]
  %s10 = sld [smem:[#allocation0]]
  $region54: #{tpu_custom_call.1} parent=0
    _
  %s12 = ssub.s32 1, %s10
  %s13 = scalar_select 0, %s12, %s10
  $region1: #{tpu_custom_call.1} parent=0
    #allocation2 [shape = 'u8[8192]{0}', space=vmem, size = 0x2000, scoped, tag = 'input window, operand 1, single buffered']
    #allocation3 [shape = 's32[1]{0}', space=sflag, size = 0x4, scoped, tag = 'scoped memory for tpu_custom_call.1']
    #allocation4 [shape = 's32[1]{0}', space=sflag, size = 0x4, scoped, tag = 'scoped memory for tpu_custom_call.1']
    #allocation5 [shape = 'u8[512]{0}', space=vmem, size = 0x400, scoped, tag = 'input window, operand 6, single buffered']
    #allocation6 [shape = 's32[1]{0}', space=sflag, size = 0x4, scoped, tag = 'scoped memory for tpu_custom_call.1']
    #allocation7 [shape = 'u8[32768]{0}', space=vmem, size = 0x8000, scoped, tag = 'output window, operand 0, single buffered']
    %14 = vsyncpa [#allocation3], 0
    %15 = vsyncpa [#allocation6], 0
    %16 = vsyncpa [#allocation4], 0
    // Predicated region
    $region2: #{tpu_custom_call.1} parent=1 // pred_check
      _
    $region3: #{tpu_custom_call.1} parent=1 // pred_check_branch
      %18 = sbr.rel (0) target = $region5
    $region4: #{tpu_custom_call.1} parent=1 // pred_region
      _
    $region5: #{tpu_custom_call.1} parent=1 // pred_fallthru
      _
    // Predicated region
    $region6: #{tpu_custom_call.1} parent=1 // pred_check
      _
    $region7: #{tpu_custom_call.1} parent=1 // pred_check_branch
      %20 = sbr.rel (0) target = $region9
    $region8: #{tpu_custom_call.1} parent=1 // pred_region
      %s22 = ssub.s32 256, 256
      %23 = vsyncadd [#allocation3], %s22
      %s24 = sshll.u32 [#allocation2], 4
      %s25 = int_to_ptr.vmem [resolvable:$true] %s24
      %30 = dma.hbm_to_vmem [thread:$0]  %s1, 256, %s25, [#allocation3], 128, 128, 8
    $region9: #{tpu_custom_call.1} parent=1 // pred_fallthru
      _
    // Predicated region
    $region10: #{tpu_custom_call.1} parent=1 // pred_check
      _
    $region11: #{tpu_custom_call.1} parent=1 // pred_check_branch
      %32 = sbr.rel (0) target = $region13
    $region12: #{tpu_custom_call.1} parent=1 // pred_region
      _
    $region13: #{tpu_custom_call.1} parent=1 // pred_fallthru
      _
    // Predicated region
    $region14: #{tpu_custom_call.1} parent=1 // pred_check
      _
    $region15: #{tpu_custom_call.1} parent=1 // pred_check_branch
      %34 = sbr.rel (0) target = $region17
    $region16: #{tpu_custom_call.1} parent=1 // pred_region
      _
    $region17: #{tpu_custom_call.1} parent=1 // pred_fallthru
      _
    // Predicated region
    $region18: #{tpu_custom_call.1} parent=1 // pred_check
      _
    $region19: #{tpu_custom_call.1} parent=1 // pred_check_branch
      %36 = sbr.rel (0) target = $region21
    $region20: #{tpu_custom_call.1} parent=1 // pred_region
      _
    $region21: #{tpu_custom_call.1} parent=1 // pred_fallthru
      _
    // Predicated region
    $region22: #{tpu_custom_call.1} parent=1 // pred_check
      _
    $region23: #{tpu_custom_call.1} parent=1 // pred_check_branch
      %38 = sbr.rel (0) target = $region25
    $region24: #{tpu_custom_call.1} parent=1 // pred_region
      _
    $region25: #{tpu_custom_call.1} parent=1 // pred_fallthru
      _
    // Predicated region
    $region26: #{tpu_custom_call.1} parent=1 // pred_check
      _
    $region27: #{tpu_custom_call.1} parent=1 // pred_check_branch
      %40 = sbr.rel (0) target = $region29
    $region28: #{tpu_custom_call.1} parent=1 // pred_region
      %s42 = ssub.s32 16, 16
      %43 = vsyncadd [#allocation6], %s42
      %s45 = sshll.u32 [#allocation5], 4
      %s46 = int_to_ptr.vmem [resolvable:$true] %s45
      %48 = dma.hbm_to_vmem [thread:$0]  %s6, 16, %s46, [#allocation6]
    $region29: #{tpu_custom_call.1} parent=1 // pred_fallthru
      _
    // Predicated region
    $region30: #{tpu_custom_call.1} parent=1 // pred_check
      _
    $region31: #{tpu_custom_call.1} parent=1 // pred_check_branch
      %50 = sbr.rel (0) target = $region33
    $region32: #{tpu_custom_call.1} parent=1 // pred_region
      _
    $region33: #{tpu_custom_call.1} parent=1 // pred_fallthru
      _
    // Predicated region
    $region34: #{tpu_custom_call.1} parent=1 // pred_check
      _
    $region35: #{tpu_custom_call.1} parent=1 // pred_check_branch
      %52 = sbr.rel (0) target = $region37
    $region36: #{tpu_custom_call.1} parent=1 // pred_region
      _
    $region37: #{tpu_custom_call.1} parent=1 // pred_fallthru
      _
    // Predicated region
    $region38: #{tpu_custom_call.1} parent=1 // pred_check
      _
    $region39: #{tpu_custom_call.1} parent=1 // pred_check_branch
      %54 = sbr.rel (0) target = $region41
    $region40: #{tpu_custom_call.1} parent=1 // pred_region
      %55 = dma.done [#allocation3], 256
    $region41: #{tpu_custom_call.1} parent=1 // pred_fallthru
      _
    // Predicated region
    $region42: #{tpu_custom_call.1} parent=1 // pred_check
      _
    $region43: #{tpu_custom_call.1} parent=1 // pred_check_branch
      %57 = sbr.rel (0) target = $region45
    $region44: #{tpu_custom_call.1} parent=1 // pred_region
      %58 = dma.done [#allocation6], 16
    $region45: #{tpu_custom_call.1} parent=1 // pred_fallthru
      _
    %v59 = vld [vmem:[%s0] sm:$0xff]
    %v60 = vld [vmem:[%s0 + $0x8] sm:$0xff]
    %v61 = vld [vmem:[%s0 + $0x10] sm:$0xff]
    %v62 = vld [vmem:[%s0 + $0x18] sm:$0xff]
    %v63 = vld [vmem:[%s0 + $0x20] sm:$0xff]
    %v64 = vld [vmem:[%s0 + $0x28] sm:$0xff]
    %v65 = vld [vmem:[%s0 + $0x30] sm:$0xff]
    %v66 = vld [vmem:[#allocation2] sm:$0xff]
    %v67 = vld [vmem:[#allocation2 + $0x8] sm:$0xff]
    %v68 = vld [vmem:[%s3] sm:$0x1]
    %v70 = vlaneseq
    %v71 = vshrl.u32 %v70, 7
    %v72 = vsub.s32 0, %v71
    %v73 = vrot.slane %v68, %v72
    %vm75 = vcmask 130048
    %v77 = vsel %vm75, %v59, 0
    %v80 = vsel %vm75, %v60, 0
    %v83 = vsel %vm75, %v61, 0
    %v86 = vsel %vm75, %v62, 0
    %v89 = vsel %vm75, %v63, 0
    %v92 = vsel %vm75, %v64, 0
    %v95 = vsel %vm75, %v65, 0
    %97 = vmatprep.subr.mxu0 0.0
    %v98 = vand.u32 %v66, 4294901760
    %99 = vmatpush1.msra.mxu0 %v98
    %100 = vmatprep.subr.mxu0 0.0
    %v101 = vand.u32 %v67, 4294901760
    %102 = vmatpush1.msra.mxu0 %v101
    %103 = vmatprep.subr.mxu0 0.0
    %104 = vmatpush1.msra.mxu0 0.0
    %105 = vmatprep.subr.mxu0 0.0
    %106 = vmatpush1.msra.mxu0 0.0
    %107 = vmatprep.subr.mxu0 0.0
    %108 = vmatpush1.msra.mxu0 0.0
    %109 = vmatprep.subr.mxu0 0.0
    %110 = vmatpush1.msra.mxu0 0.0
    %111 = vmatprep.subr.mxu0 0.0
    %112 = vmatpush1.msra.mxu0 0.0
    %113 = vmatprep.subr.mxu0 0.0
    %114 = vmatpush1.msra.mxu0 0.0
    %115 = vmatprep.subr.mxu0 0.0
    %116 = vmatpush1.msra.mxu0 0.0
    %117 = vmatprep.subr.mxu0 0.0
    %118 = vmatpush1.msra.mxu0 0.0
    %119 = vmatprep.subr.mxu0 0.0
    %120 = vmatpush1.msra.mxu0 0.0
    %121 = vmatprep.subr.mxu0 0.0
    %122 = vmatpush1.msra.mxu0 0.0
    %123 = vmatprep.subr.mxu0 0.0
    %124 = vmatpush1.msra.mxu0 0.0
    %125 = vmatprep.subr.mxu0 0.0
    %126 = vmatpush1.msra.mxu0 0.0
    %127 = vmatprep.subr.mxu0 0.0
    %128 = vmatpush1.msra.mxu0 0.0
    %129 = vmatprep.subr.mxu0 0.0
    %130 = vmatpush1.msra.mxu0 0.0
    %131 = vmatprep.subr.mxu0 0.0
    %132 = vmatpush1.msra.mxu0 0.0
    %133 = vmatprep.subr.mxu0 0.0
    %134 = vmatpush1.msra.mxu0 0.0
    %135 = vmatprep.subr.mxu0 0.0
    %136 = vmatpush1.msra.mxu0 0.0
    %137 = vmatprep.subr.mxu0 0.0
    %138 = vmatpush1.msra.mxu0 0.0
    %139 = vmatprep.subr.mxu0 0.0
    %140 = vmatpush1.msra.mxu0 0.0
    %141 = vmatprep.subr.mxu0 0.0
    %142 = vmatpush1.msra.mxu0 0.0
    %143 = vmatprep.subr.mxu0 0.0
    %144 = vmatpush1.msra.mxu0 0.0
    %145 = vmatprep.subr.mxu0 0.0
    %146 = vmatpush1.msra.mxu0 0.0
    %147 = vmatprep.subr.mxu0 0.0
    %148 = vmatpush1.msra.mxu0 0.0
    %149 = vmatprep.subr.mxu0 0.0
    %150 = vmatpush1.msra.mxu0 0.0
    %151 = vmatprep.subr.mxu0 0.0
    %152 = vmatpush1.msra.mxu0 0.0
    %153 = vmatprep.subr.mxu0 0.0
    %154 = vmatpush1.msra.mxu0 0.0
    %155 = vmatprep.subr.mxu0 0.0
    %156 = vmatpush1.msra.mxu0 0.0
    %157 = vmatprep.subr.mxu0 0.0
    %158 = vmatpush1.msra.mxu0 0.0
    %159 = vmatprep.subr.mxu0 0.0
    %160 = vmatpush1.msra.mxu0 0.0
    %161 = vmatprep.subr.mxu0 0.0
    %162 = vmatpush1.msra.mxu0 0.0
    %163 = vmatprep.mubr.f32.mxu0 0.0
    %v164 = vand.u32 %v77, 4294901760
    %v165 = vsub.f32 %v77, %v164
    %v166 = vand.u32 %v165, 4294901760
    %v167 = vsub.f32 %v165, %v166
    %v168 = vand.u32 %v167, 4294901760
    %169 = vmatmul.mubr.f32.gmra.mrb[0].mxu0 %v168
    %v170 = vpop.f32.mrb[0].mxu0
    %v171 = vadd.f32 %v73, %v170
    %v172 = vpop.f32.mrb[0].mxu0
    %173 = vmatprep.mubr.f32.mxu0 0.0
    %v174 = vand.u32 %v80, 4294901760
    %v175 = vsub.f32 %v80, %v174
    %v176 = vand.u32 %v175, 4294901760
    %v177 = vsub.f32 %v175, %v176
    %v178 = vand.u32 %v177, 4294901760
    %179 = vmatmul.mubr.f32.gmra.mrb[0].mxu0 %v178
    %v180 = vpop.f32.mrb[0].mxu0
    %v181 = vadd.f32 %v73, %v180
    %v182 = vpop.f32.mrb[0].mxu0
    %183 = vmatprep.mubr.f32.mxu0 0.0
    %v184 = vand.u32 %v83, 4294901760
    %v185 = vsub.f32 %v83, %v184
    %v186 = vand.u32 %v185, 4294901760
    %v187 = vsub.f32 %v185, %v186
    %v188 = vand.u32 %v187, 4294901760
    %189 = vmatmul.mubr.f32.gmra.mrb[0].mxu0 %v188
    %v190 = vpop.f32.mrb[0].mxu0
    %v191 = vadd.f32 %v73, %v190
    %v192 = vpop.f32.mrb[0].mxu0
    %193 = vmatprep.mubr.f32.mxu0 0.0
    %v194 = vand.u32 %v86, 4294901760
    %v195 = vsub.f32 %v86, %v194
    %v196 = vand.u32 %v195, 4294901760
    %v197 = vsub.f32 %v195, %v196
    %v198 = vand.u32 %v197, 4294901760
    %199 = vmatmul.mubr.f32.gmra.mrb[0].mxu0 %v198
    %v200 = vpop.f32.mrb[0].mxu0
    %v201 = vadd.f32 %v73, %v200
    %v202 = vpop.f32.mrb[0].mxu0
    %203 = vmatprep.mubr.f32.mxu0 0.0
    %v204 = vand.u32 %v89, 4294901760
    %v205 = vsub.f32 %v89, %v204
    %v206 = vand.u32 %v205, 4294901760
    %v207 = vsub.f32 %v205, %v206
    %v208 = vand.u32 %v207, 4294901760
    %209 = vmatmul.mubr.f32.gmra.mrb[0].mxu0 %v208
    %v210 = vpop.f32.mrb[0].mxu0
    %v211 = vadd.f32 %v73, %v210
    %v212 = vpop.f32.mrb[0].mxu0
    %213 = vmatprep.mubr.f32.mxu0 0.0
    %v214 = vand.u32 %v92, 4294901760
    %v215 = vsub.f32 %v92, %v214
    %v216 = vand.u32 %v215, 4294901760
    %v217 = vsub.f32 %v215, %v216
    %v218 = vand.u32 %v217, 4294901760
    %219 = vmatmul.mubr.f32.gmra.mrb[0].mxu0 %v218
    %v220 = vpop.f32.mrb[0].mxu0
    %v221 = vadd.f32 %v73, %v220
    %v222 = vpop.f32.mrb[0].mxu0
    %223 = vmatprep.mubr.f32.mxu0 0.0
    %v224 = vand.u32 %v95, 4294901760
    %v225 = vsub.f32 %v95, %v224
    %v226 = vand.u32 %v225, 4294901760
    %v227 = vsub.f32 %v225, %v226
    %v228 = vand.u32 %v227, 4294901760
    %229 = vmatmul.mubr.f32.gmra.mrb[0].mxu0 %v228
    %v230 = vpop.f32.mrb[0].mxu0
    %v231 = vadd.f32 %v73, %v230
    %v232 = vpop.f32.mrb[0].mxu0
    %233 = vdwg.mxu0
    %234 = vmatprep.subr.mxu0 0.0
    %v235 = vand.u32 %v66, 4294901760
    %v236 = vsub.f32 %v66, %v235
    %v237 = vand.u32 %v236, 4294901760
    %v238 = vsub.f32 %v236, %v237
    %v239 = vand.u32 %v238, 4294901760
    %240 = vmatpush1.msra.mxu0 %v239
    %241 = vmatprep.subr.mxu0 0.0
    %v242 = vand.u32 %v67, 4294901760
    %v243 = vsub.f32 %v67, %v242
    %v244 = vand.u32 %v243, 4294901760
    %v245 = vsub.f32 %v243, %v244
    %v246 = vand.u32 %v245, 4294901760
    %247 = vmatpush1.msra.mxu0 %v246
    %248 = vmatprep.subr.mxu0 0.0
    %249 = vmatpush1.msra.mxu0 0.0
    %250 = vmatprep.subr.mxu0 0.0
    %251 = vmatpush1.msra.mxu0 0.0
    %252 = vmatprep.subr.mxu0 0.0
    %253 = vmatpush1.msra.mxu0 0.0
    %254 = vmatprep.subr.mxu0 0.0
    %255 = vmatpush1.msra.mxu0 0.0
    %256 = vmatprep.subr.mxu0 0.0
    %257 = vmatpush1.msra.mxu0 0.0
    %258 = vmatprep.subr.mxu0 0.0
    %259 = vmatpush1.msra.mxu0 0.0
    %260 = vmatprep.subr.mxu0 0.0
    %261 = vmatpush1.msra.mxu0 0.0
    %262 = vmatprep.subr.mxu0 0.0
    %263 = vmatpush1.msra.mxu0 0.0
    %264 = vmatprep.subr.mxu0 0.0
    %265 = vmatpush1.msra.mxu0 0.0
    %266 = vmatprep.subr.mxu0 0.0
    %267 = vmatpush1.msra.mxu0 0.0
    %268 = vmatprep.subr.mxu0 0.0
    %269 = vmatpush1.msra.mxu0 0.0
    %270 = vmatprep.subr.mxu0 0.0
    %271 = vmatpush1.msra.mxu0 0.0
    %272 = vmatprep.subr.mxu0 0.0
    %273 = vmatpush1.msra.mxu0 0.0
    %274 = vmatprep.subr.mxu0 0.0
    %275 = vmatpush1.msra.mxu0 0.0
    %276 = vmatprep.subr.mxu0 0.0
    %277 = vmatpush1.msra.mxu0 0.0
    %278 = vmatprep.subr.mxu0 0.0
    %279 = vmatpush1.msra.mxu0 0.0
    %280 = vmatprep.subr.mxu0 0.0
    %281 = vmatpush1.msra.mxu0 0.0
    %282 = vmatprep.subr.mxu0 0.0
    %283 = vmatpush1.msra.mxu0 0.0
    %284 = vmatprep.subr.mxu0 0.0
    %285 = vmatpush1.msra.mxu0 0.0
    %286 = vmatprep.subr.mxu0 0.0
    %287 = vmatpush1.msra.mxu0 0.0
    %288 = vmatprep.subr.mxu0 0.0
    %289 = vmatpush1.msra.mxu0 0.0
    %290 = vmatprep.subr.mxu0 0.0
    %291 = vmatpush1.msra.mxu0 0.0
    %292 = vmatprep.subr.mxu0 0.0
    %293 = vmatpush1.msra.mxu0 0.0
    %294 = vmatprep.subr.mxu0 0.0
    %295 = vmatpush1.msra.mxu0 0.0
    %296 = vmatprep.subr.mxu0 0.0
    %297 = vmatpush1.msra.mxu0 0.0
    %298 = vmatprep.subr.mxu0 0.0
    %299 = vmatpush1.msra.mxu0 0.0
    %300 = vmatprep.subr.mxu0 0.0
    %301 = vmatpush1.msra.mxu0 0.0
    %302 = vmatprep.subr.mxu0 0.0
    %303 = vmatpush1.msra.mxu0 0.0
    %304 = vmatprep.subr.mxu0 0.0
    %305 = vmatpush1.msra.mxu0 0.0
    %306 = vmatprep.subr.mxu0 0.0
    %307 = vmatpush1.msra.mxu0 0.0
    %308 = vmatprep.mubr.f32.mxu0 0.0
    %v309 = vand.u32 %v77, 4294901760
    %310 = vmatmul.mubr.f32.gmra.mrb[0].mxu0 %v309
    %v311 = vpop.f32.mrb[0].mxu0
    %v312 = vadd.f32 %v171, %v311
    %v313 = vpop.f32.mrb[0].mxu0
    %314 = vmatprep.mubr.f32.mxu0 0.0
    %v315 = vand.u32 %v80, 4294901760
    %316 = vmatmul.mubr.f32.gmra.mrb[0].mxu0 %v315
    %v317 = vpop.f32.mrb[0].mxu0
    %v318 = vadd.f32 %v181, %v317
    %v319 = vpop.f32.mrb[0].mxu0
    %320 = vmatprep.mubr.f32.mxu0 0.0
    %v321 = vand.u32 %v83, 4294901760
    %322 = vmatmul.mubr.f32.gmra.mrb[0].mxu0 %v321
    %v323 = vpop.f32.mrb[0].mxu0
    %v324 = vadd.f32 %v191, %v323
    %v325 = vpop.f32.mrb[0].mxu0
    %326 = vmatprep.mubr.f32.mxu0 0.0
    %v327 = vand.u32 %v86, 4294901760
    %328 = vmatmul.mubr.f32.gmra.mrb[0].mxu0 %v327
    %v329 = vpop.f32.mrb[0].mxu0
    %v330 = vadd.f32 %v201, %v329
    %v331 = vpop.f32.mrb[0].mxu0
    %332 = vmatprep.mubr.f32.mxu0 0.0
    %v333 = vand.u32 %v89, 4294901760
    %334 = vmatmul.mubr.f32.gmra.mrb[0].mxu0 %v333
    %v335 = vpop.f32.mrb[0].mxu0
    %v336 = vadd.f32 %v211, %v335
    %v337 = vpop.f32.mrb[0].mxu0
    %338 = vmatprep.mubr.f32.mxu0 0.0
    %v339 = vand.u32 %v92, 4294901760
    %340 = vmatmul.mubr.f32.gmra.mrb[0].mxu0 %v339
    %v341 = vpop.f32.mrb[0].mxu0
    %v342 = vadd.f32 %v221, %v341
    %v343 = vpop.f32.mrb[0].mxu0
    %344 = vmatprep.mubr.f32.mxu0 0.0
    %v345 = vand.u32 %v95, 4294901760
    %346 = vmatmul.mubr.f32.gmra.mrb[0].mxu0 %v345
    %v347 = vpop.f32.mrb[0].mxu0
    %v348 = vadd.f32 %v231, %v347
    %v349 = vpop.f32.mrb[0].mxu0
    %350 = vdwg.mxu0
    %351 = vmatprep.subr.mxu0 0.0
    %v352 = vand.u32 %v66, 4294901760
    %v353 = vsub.f32 %v66, %v352
    %354 = vmatpush1.msra.mxu0 %v353
    %355 = vmatprep.subr.mxu0 0.0
    %v356 = vand.u32 %v67, 4294901760
    %v357 = vsub.f32 %v67, %v356
    %358 = vmatpush1.msra.mxu0 %v357
    %359 = vmatprep.subr.mxu0 0.0
    %360 = vmatpush1.msra.mxu0 0.0
    %361 = vmatprep.subr.mxu0 0.0
    %362 = vmatpush1.msra.mxu0 0.0
    %363 = vmatprep.subr.mxu0 0.0
    %364 = vmatpush1.msra.mxu0 0.0
    %365 = vmatprep.subr.mxu0 0.0
    %366 = vmatpush1.msra.mxu0 0.0
    %367 = vmatprep.subr.mxu0 0.0
    %368 = vmatpush1.msra.mxu0 0.0
    %369 = vmatprep.subr.mxu0 0.0
    %370 = vmatpush1.msra.mxu0 0.0
    %371 = vmatprep.subr.mxu0 0.0
    %372 = vmatpush1.msra.mxu0 0.0
    %373 = vmatprep.subr.mxu0 0.0
    %374 = vmatpush1.msra.mxu0 0.0
    %375 = vmatprep.subr.mxu0 0.0
    %376 = vmatpush1.msra.mxu0 0.0
    %377 = vmatprep.subr.mxu0 0.0
    %378 = vmatpush1.msra.mxu0 0.0
    %379 = vmatprep.subr.mxu0 0.0
    %380 = vmatpush1.msra.mxu0 0.0
    %381 = vmatprep.subr.mxu0 0.0
    %382 = vmatpush1.msra.mxu0 0.0
    %383 = vmatprep.subr.mxu0 0.0
    %384 = vmatpush1.msra.mxu0 0.0
    %385 = vmatprep.subr.mxu0 0.0
    %386 = vmatpush1.msra.mxu0 0.0
    %387 = vmatprep.subr.mxu0 0.0
    %388 = vmatpush1.msra.mxu0 0.0
    %389 = vmatprep.subr.mxu0 0.0
    %390 = vmatpush1.msra.mxu0 0.0
    %391 = vmatprep.subr.mxu0 0.0
    %392 = vmatpush1.msra.mxu0 0.0
    %393 = vmatprep.subr.mxu0 0.0
    %394 = vmatpush1.msra.mxu0 0.0
    %395 = vmatprep.subr.mxu0 0.0
    %396 = vmatpush1.msra.mxu0 0.0
    %397 = vmatprep.subr.mxu0 0.0
    %398 = vmatpush1.msra.mxu0 0.0
    %399 = vmatprep.subr.mxu0 0.0
    %400 = vmatpush1.msra.mxu0 0.0
    %401 = vmatprep.subr.mxu0 0.0
    %402 = vmatpush1.msra.mxu0 0.0
    %403 = vmatprep.subr.mxu0 0.0
    %404 = vmatpush1.msra.mxu0 0.0
    %405 = vmatprep.subr.mxu0 0.0
    %406 = vmatpush1.msra.mxu0 0.0
    %407 = vmatprep.subr.mxu0 0.0
    %408 = vmatpush1.msra.mxu0 0.0
    %409 = vmatprep.subr.mxu0 0.0
    %410 = vmatpush1.msra.mxu0 0.0
    %411 = vmatprep.subr.mxu0 0.0
    %412 = vmatpush1.msra.mxu0 0.0
    %413 = vmatprep.subr.mxu0 0.0
    %414 = vmatpush1.msra.mxu0 0.0
    %415 = vmatprep.subr.mxu0 0.0
    %416 = vmatpush1.msra.mxu0 0.0
    %417 = vmatprep.subr.mxu0 0.0
    %418 = vmatpush1.msra.mxu0 0.0
    %419 = vmatprep.mubr.f32.mxu0 0.0
    %v420 = vand.u32 %v77, 4294901760
    %v421 = vsub.f32 %v77, %v420
    %422 = vmatmul.mubr.f32.gmra.mrb[0].mxu0 %v421
    %v423 = vpop.f32.mrb[0].mxu0
    %v424 = vadd.f32 %v312, %v423
    %v425 = vpop.f32.mrb[0].mxu0
    %426 = vmatprep.mubr.f32.mxu0 0.0
    %v427 = vand.u32 %v80, 4294901760
    %v428 = vsub.f32 %v80, %v427
    %429 = vmatmul.mubr.f32.gmra.mrb[0].mxu0 %v428
    %v430 = vpop.f32.mrb[0].mxu0
    %v431 = vadd.f32 %v318, %v430
    %v432 = vpop.f32.mrb[0].mxu0
    %433 = vmatprep.mubr.f32.mxu0 0.0
    %v434 = vand.u32 %v83, 4294901760
    %v435 = vsub.f32 %v83, %v434
    %436 = vmatmul.mubr.f32.gmra.mrb[0].mxu0 %v435
    %v437 = vpop.f32.mrb[0].mxu0
    %v438 = vadd.f32 %v324, %v437
    %v439 = vpop.f32.mrb[0].mxu0
    %440 = vmatprep.mubr.f32.mxu0 0.0
    %v441 = vand.u32 %v86, 4294901760
    %v442 = vsub.f32 %v86, %v441
    %443 = vmatmul.mubr.f32.gmra.mrb[0].mxu0 %v442
    %v444 = vpop.f32.mrb[0].mxu0
    %v445 = vadd.f32 %v330, %v444
    %v446 = vpop.f32.mrb[0].mxu0
    %447 = vmatprep.mubr.f32.mxu0 0.0
    %v448 = vand.u32 %v89, 4294901760
    %v449 = vsub.f32 %v89, %v448
    %450 = vmatmul.mubr.f32.gmra.mrb[0].mxu0 %v449
    %v451 = vpop.f32.mrb[0].mxu0
    %v452 = vadd.f32 %v336, %v451
    %v453 = vpop.f32.mrb[0].mxu0
    %454 = vmatprep.mubr.f32.mxu0 0.0
    %v455 = vand.u32 %v92, 4294901760
    %v456 = vsub.f32 %v92, %v455
    %457 = vmatmul.mubr.f32.gmra.mrb[0].mxu0 %v456
    %v458 = vpop.f32.mrb[0].mxu0
    %v459 = vadd.f32 %v342, %v458
    %v460 = vpop.f32.mrb[0].mxu0
    %461 = vmatprep.mubr.f32.mxu0 0.0
    %v462 = vand.u32 %v95, 4294901760
    %v463 = vsub.f32 %v95, %v462
    %464 = vmatmul.mubr.f32.gmra.mrb[0].mxu0 %v463
    %v465 = vpop.f32.mrb[0].mxu0
    %v466 = vadd.f32 %v348, %v465
    %v467 = vpop.f32.mrb[0].mxu0
    %468 = vdwg.mxu0
    %469 = vmatprep.subr.mxu0 0.0
    %v470 = vand.u32 %v66, 4294901760
    %471 = vmatpush1.msra.mxu0 %v470
    %472 = vmatprep.subr.mxu0 0.0
    %v473 = vand.u32 %v67, 4294901760
    %474 = vmatpush1.msra.mxu0 %v473
    %475 = vmatprep.subr.mxu0 0.0
    %476 = vmatpush1.msra.mxu0 0.0
    %477 = vmatprep.subr.mxu0 0.0
    %478 = vmatpush1.msra.mxu0 0.0
    %479 = vmatprep.subr.mxu0 0.0
    %480 = vmatpush1.msra.mxu0 0.0
    %481 = vmatprep.subr.mxu0 0.0
    %482 = vmatpush1.msra.mxu0 0.0
    %483 = vmatprep.subr.mxu0 0.0
    %484 = vmatpush1.msra.mxu0 0.0
    %485 = vmatprep.subr.mxu0 0.0
    %486 = vmatpush1.msra.mxu0 0.0
    %487 = vmatprep.subr.mxu0 0.0
    %488 = vmatpush1.msra.mxu0 0.0
    %489 = vmatprep.subr.mxu0 0.0
    %490 = vmatpush1.msra.mxu0 0.0
    %491 = vmatprep.subr.mxu0 0.0
    %492 = vmatpush1.msra.mxu0 0.0
    %493 = vmatprep.subr.mxu0 0.0
    %494 = vmatpush1.msra.mxu0 0.0
    %495 = vmatprep.subr.mxu0 0.0
    %496 = vmatpush1.msra.mxu0 0.0
    %497 = vmatprep.subr.mxu0 0.0
    %498 = vmatpush1.msra.mxu0 0.0
    %499 = vmatprep.subr.mxu0 0.0
    %500 = vmatpush1.msra.mxu0 0.0
    %501 = vmatprep.subr.mxu0 0.0
    %502 = vmatpush1.msra.mxu0 0.0
    %503 = vmatprep.subr.mxu0 0.0
    %504 = vmatpush1.msra.mxu0 0.0
    %505 = vmatprep.subr.mxu0 0.0
    %506 = vmatpush1.msra.mxu0 0.0
    %507 = vmatprep.subr.mxu0 0.0
    %508 = vmatpush1.msra.mxu0 0.0
    %509 = vmatprep.subr.mxu0 0.0
    %510 = vmatpush1.msra.mxu0 0.0
    %511 = vmatprep.subr.mxu0 0.0
    %512 = vmatpush1.msra.mxu0 0.0
    %513 = vmatprep.subr.mxu0 0.0
    %514 = vmatpush1.msra.mxu0 0.0
    %515 = vmatprep.subr.mxu0 0.0
    %516 = vmatpush1.msra.mxu0 0.0
    %517 = vmatprep.subr.mxu0 0.0
    %518 = vmatpush1.msra.mxu0 0.0
    %519 = vmatprep.subr.mxu0 0.0
    %520 = vmatpush1.msra.mxu0 0.0
    %521 = vmatprep.subr.mxu0 0.0
    %522 = vmatpush1.msra.mxu0 0.0
    %523 = vmatprep.subr.mxu0 0.0
    %524 = vmatpush1.msra.mxu0 0.0
    %525 = vmatprep.subr.mxu0 0.0
    %526 = vmatpush1.msra.mxu0 0.0
    %527 = vmatprep.subr.mxu0 0.0
    %528 = vmatpush1.msra.mxu0 0.0
    %529 = vmatprep.subr.mxu0 0.0
    %530 = vmatpush1.msra.mxu0 0.0
    %531 = vmatprep.subr.mxu0 0.0
    %532 = vmatpush1.msra.mxu0 0.0
    %533 = vmatprep.subr.mxu0 0.0
    %534 = vmatpush1.msra.mxu0 0.0
    %535 = vmatprep.mubr.f32.mxu0 0.0
    %v536 = vand.u32 %v77, 4294901760
    %v537 = vsub.f32 %v77, %v536
    %v538 = vand.u32 %v537, 4294901760
    %539 = vmatmul.mubr.f32.gmra.mrb[0].mxu0 %v538
    %v540 = vpop.f32.mrb[0].mxu0
    %v541 = vadd.f32 %v424, %v540
    %v542 = vpop.f32.mrb[0].mxu0
    %543 = vmatprep.mubr.f32.mxu0 0.0
    %v544 = vand.u32 %v80, 4294901760
    %v545 = vsub.f32 %v80, %v544
    %v546 = vand.u32 %v545, 4294901760
    %547 = vmatmul.mubr.f32.gmra.mrb[0].mxu0 %v546
    %v548 = vpop.f32.mrb[0].mxu0
    %v549 = vadd.f32 %v431, %v548
    %v550 = vpop.f32.mrb[0].mxu0
    %551 = vmatprep.mubr.f32.mxu0 0.0
    %v552 = vand.u32 %v83, 4294901760
    %v553 = vsub.f32 %v83, %v552
    %v554 = vand.u32 %v553, 4294901760
    %555 = vmatmul.mubr.f32.gmra.mrb[0].mxu0 %v554
    %v556 = vpop.f32.mrb[0].mxu0
    %v557 = vadd.f32 %v438, %v556
    %v558 = vpop.f32.mrb[0].mxu0
    %559 = vmatprep.mubr.f32.mxu0 0.0
    %v560 = vand.u32 %v86, 4294901760
    %v561 = vsub.f32 %v86, %v560
    %v562 = vand.u32 %v561, 4294901760
    %563 = vmatmul.mubr.f32.gmra.mrb[0].mxu0 %v562
    %v564 = vpop.f32.mrb[0].mxu0
    %v565 = vadd.f32 %v445, %v564
    %v566 = vpop.f32.mrb[0].mxu0
    %567 = vmatprep.mubr.f32.mxu0 0.0
    %v568 = vand.u32 %v89, 4294901760
    %v569 = vsub.f32 %v89, %v568
    %v570 = vand.u32 %v569, 4294901760
    %571 = vmatmul.mubr.f32.gmra.mrb[0].mxu0 %v570
    %v572 = vpop.f32.mrb[0].mxu0
    %v573 = vadd.f32 %v452, %v572
    %v574 = vpop.f32.mrb[0].mxu0
    %575 = vmatprep.mubr.f32.mxu0 0.0
    %v576 = vand.u32 %v92, 4294901760
    %v577 = vsub.f32 %v92, %v576
    %v578 = vand.u32 %v577, 4294901760
    %579 = vmatmul.mubr.f32.gmra.mrb[0].mxu0 %v578
    %v580 = vpop.f32.mrb[0].mxu0
    %v581 = vadd.f32 %v459, %v580
    %v582 = vpop.f32.mrb[0].mxu0
    %583 = vmatprep.mubr.f32.mxu0 0.0
    %v584 = vand.u32 %v95, 4294901760
    %v585 = vsub.f32 %v95, %v584
    %v586 = vand.u32 %v585, 4294901760
    %587 = vmatmul.mubr.f32.gmra.mrb[0].mxu0 %v586
    %v588 = vpop.f32.mrb[0].mxu0
    %v589 = vadd.f32 %v466, %v588
    %v590 = vpop.f32.mrb[0].mxu0
    %591 = vdwg.mxu0
    %592 = vmatprep.subr.mxu0 0.0
    %v593 = vand.u32 %v66, 4294901760
    %v594 = vsub.f32 %v66, %v593
    %v595 = vand.u32 %v594, 4294901760
    %596 = vmatpush1.msra.mxu0 %v595
    %597 = vmatprep.subr.mxu0 0.0
    %v598 = vand.u32 %v67, 4294901760
    %v599 = vsub.f32 %v67, %v598
    %v600 = vand.u32 %v599, 4294901760
    %601 = vmatpush1.msra.mxu0 %v600
    %602 = vmatprep.subr.mxu0 0.0
    %603 = vmatpush1.msra.mxu0 0.0
    %604 = vmatprep.subr.mxu0 0.0
    %605 = vmatpush1.msra.mxu0 0.0
    %606 = vmatprep.subr.mxu0 0.0
    %607 = vmatpush1.msra.mxu0 0.0
    %608 = vmatprep.subr.mxu0 0.0
    %609 = vmatpush1.msra.mxu0 0.0
    %610 = vmatprep.subr.mxu0 0.0
    %611 = vmatpush1.msra.mxu0 0.0
    %612 = vmatprep.subr.mxu0 0.0
    %613 = vmatpush1.msra.mxu0 0.0
    %614 = vmatprep.subr.mxu0 0.0
    %615 = vmatpush1.msra.mxu0 0.0
    %616 = vmatprep.subr.mxu0 0.0
    %617 = vmatpush1.msra.mxu0 0.0
    %618 = vmatprep.subr.mxu0 0.0
    %619 = vmatpush1.msra.mxu0 0.0
    %620 = vmatprep.subr.mxu0 0.0
    %621 = vmatpush1.msra.mxu0 0.0
    %622 = vmatprep.subr.mxu0 0.0
    %623 = vmatpush1.msra.mxu0 0.0
    %624 = vmatprep.subr.mxu0 0.0
    %625 = vmatpush1.msra.mxu0 0.0
    %626 = vmatprep.subr.mxu0 0.0
    %627 = vmatpush1.msra.mxu0 0.0
    %628 = vmatprep.subr.mxu0 0.0
    %629 = vmatpush1.msra.mxu0 0.0
    %630 = vmatprep.subr.mxu0 0.0
    %631 = vmatpush1.msra.mxu0 0.0
    %632 = vmatprep.subr.mxu0 0.0
    %633 = vmatpush1.msra.mxu0 0.0
    %634 = vmatprep.subr.mxu0 0.0
    %635 = vmatpush1.msra.mxu0 0.0
    %636 = vmatprep.subr.mxu0 0.0
    %637 = vmatpush1.msra.mxu0 0.0
    %638 = vmatprep.subr.mxu0 0.0
    %639 = vmatpush1.msra.mxu0 0.0
    %640 = vmatprep.subr.mxu0 0.0
    %641 = vmatpush1.msra.mxu0 0.0
    %642 = vmatprep.subr.mxu0 0.0
    %643 = vmatpush1.msra.mxu0 0.0
    %644 = vmatprep.subr.mxu0 0.0
    %645 = vmatpush1.msra.mxu0 0.0
    %646 = vmatprep.subr.mxu0 0.0
    %647 = vmatpush1.msra.mxu0 0.0
    %648 = vmatprep.subr.mxu0 0.0
    %649 = vmatpush1.msra.mxu0 0.0
    %650 = vmatprep.subr.mxu0 0.0
    %651 = vmatpush1.msra.mxu0 0.0
    %652 = vmatprep.subr.mxu0 0.0
    %653 = vmatpush1.msra.mxu0 0.0
    %654 = vmatprep.subr.mxu0 0.0
    %655 = vmatpush1.msra.mxu0 0.0
    %656 = vmatprep.subr.mxu0 0.0
    %657 = vmatpush1.msra.mxu0 0.0
    %658 = vmatprep.subr.mxu0 0.0
    %659 = vmatpush1.msra.mxu0 0.0
    %660 = vmatprep.subr.mxu0 0.0
    %661 = vmatpush1.msra.mxu0 0.0
    %662 = vmatprep.mubr.f32.mxu0 0.0
    %v663 = vand.u32 %v77, 4294901760
    %664 = vmatmul.mubr.f32.gmra.mrb[0].mxu0 %v663
    %v665 = vpop.f32.mrb[0].mxu0
    %v666 = vadd.f32 %v541, %v665
    %v667 = vpop.f32.mrb[0].mxu0
    %668 = vmatprep.mubr.f32.mxu0 0.0
    %v669 = vand.u32 %v80, 4294901760
    %670 = vmatmul.mubr.f32.gmra.mrb[0].mxu0 %v669
    %v671 = vpop.f32.mrb[0].mxu0
    %v672 = vadd.f32 %v549, %v671
    %v673 = vpop.f32.mrb[0].mxu0
    %674 = vmatprep.mubr.f32.mxu0 0.0
    %v675 = vand.u32 %v83, 4294901760
    %676 = vmatmul.mubr.f32.gmra.mrb[0].mxu0 %v675
    %v677 = vpop.f32.mrb[0].mxu0
    %v678 = vadd.f32 %v557, %v677
    %v679 = vpop.f32.mrb[0].mxu0
    %680 = vmatprep.mubr.f32.mxu0 0.0
    %v681 = vand.u32 %v86, 4294901760
    %682 = vmatmul.mubr.f32.gmra.mrb[0].mxu0 %v681
    %v683 = vpop.f32.mrb[0].mxu0
    %v684 = vadd.f32 %v565, %v683
    %v685 = vpop.f32.mrb[0].mxu0
    %686 = vmatprep.mubr.f32.mxu0 0.0
    %v687 = vand.u32 %v89, 4294901760
    %688 = vmatmul.mubr.f32.gmra.mrb[0].mxu0 %v687
    %v689 = vpop.f32.mrb[0].mxu0
    %v690 = vadd.f32 %v573, %v689
    %v691 = vpop.f32.mrb[0].mxu0
    %692 = vmatprep.mubr.f32.mxu0 0.0
    %v693 = vand.u32 %v92, 4294901760
    %694 = vmatmul.mubr.f32.gmra.mrb[0].mxu0 %v693
    %v695 = vpop.f32.mrb[0].mxu0
    %v696 = vadd.f32 %v581, %v695
    %v697 = vpop.f32.mrb[0].mxu0
    %698 = vmatprep.mubr.f32.mxu0 0.0
    %v699 = vand.u32 %v95, 4294901760
    %700 = vmatmul.mubr.f32.gmra.mrb[0].mxu0 %v699
    %v701 = vpop.f32.mrb[0].mxu0
    %v702 = vadd.f32 %v589, %v701
    %v703 = vpop.f32.mrb[0].mxu0
    %704 = vdwg.mxu0
    %705 = vmatprep.subr.mxu0 0.0
    %v706 = vand.u32 %v66, 4294901760
    %707 = vmatpush1.msra.mxu0 %v706
    %708 = vmatprep.subr.mxu0 0.0
    %v709 = vand.u32 %v67, 4294901760
    %710 = vmatpush1.msra.mxu0 %v709
    %711 = vmatprep.subr.mxu0 0.0
    %712 = vmatpush1.msra.mxu0 0.0
    %713 = vmatprep.subr.mxu0 0.0
    %714 = vmatpush1.msra.mxu0 0.0
    %715 = vmatprep.subr.mxu0 0.0
    %716 = vmatpush1.msra.mxu0 0.0
    %717 = vmatprep.subr.mxu0 0.0
    %718 = vmatpush1.msra.mxu0 0.0
    %719 = vmatprep.subr.mxu0 0.0
    %720 = vmatpush1.msra.mxu0 0.0
    %721 = vmatprep.subr.mxu0 0.0
    %722 = vmatpush1.msra.mxu0 0.0
    %723 = vmatprep.subr.mxu0 0.0
    %724 = vmatpush1.msra.mxu0 0.0
    %725 = vmatprep.subr.mxu0 0.0
    %726 = vmatpush1.msra.mxu0 0.0
    %727 = vmatprep.subr.mxu0 0.0
    %728 = vmatpush1.msra.mxu0 0.0
    %729 = vmatprep.subr.mxu0 0.0
    %730 = vmatpush1.msra.mxu0 0.0
    %731 = vmatprep.subr.mxu0 0.0
    %732 = vmatpush1.msra.mxu0 0.0
    %733 = vmatprep.subr.mxu0 0.0
    %734 = vmatpush1.msra.mxu0 0.0
    %735 = vmatprep.subr.mxu0 0.0
    %736 = vmatpush1.msra.mxu0 0.0
    %737 = vmatprep.subr.mxu0 0.0
    %738 = vmatpush1.msra.mxu0 0.0
    %739 = vmatprep.subr.mxu0 0.0
    %740 = vmatpush1.msra.mxu0 0.0
    %741 = vmatprep.subr.mxu0 0.0
    %742 = vmatpush1.msra.mxu0 0.0
    %743 = vmatprep.subr.mxu0 0.0
    %744 = vmatpush1.msra.mxu0 0.0
    %745 = vmatprep.subr.mxu0 0.0
    %746 = vmatpush1.msra.mxu0 0.0
    %747 = vmatprep.subr.mxu0 0.0
    %748 = vmatpush1.msra.mxu0 0.0
    %749 = vmatprep.subr.mxu0 0.0
    %750 = vmatpush1.msra.mxu0 0.0
    %751 = vmatprep.subr.mxu0 0.0
    %752 = vmatpush1.msra.mxu0 0.0
    %753 = vmatprep.subr.mxu0 0.0
    %754 = vmatpush1.msra.mxu0 0.0
    %755 = vmatprep.subr.mxu0 0.0
    %756 = vmatpush1.msra.mxu0 0.0
    %757 = vmatprep.subr.mxu0 0.0
    %758 = vmatpush1.msra.mxu0 0.0
    %759 = vmatprep.subr.mxu0 0.0
    %760 = vmatpush1.msra.mxu0 0.0
    %761 = vmatprep.subr.mxu0 0.0
    %762 = vmatpush1.msra.mxu0 0.0
    %763 = vmatprep.subr.mxu0 0.0
    %764 = vmatpush1.msra.mxu0 0.0
    %765 = vmatprep.subr.mxu0 0.0
    %766 = vmatpush1.msra.mxu0 0.0
    %767 = vmatprep.subr.mxu0 0.0
    %768 = vmatpush1.msra.mxu0 0.0
    %769 = vmatprep.subr.mxu0 0.0
    %770 = vmatpush1.msra.mxu0 0.0
    %771 = vmatprep.mubr.f32.mxu0 0.0
    %v772 = vand.u32 %v77, 4294901760
    %773 = vmatmul.mubr.f32.gmra.mrb[0].mxu0 %v772
    %v774 = vpop.f32.mrb[0].mxu0
    %v775 = vadd.f32 %v666, %v774
    %v776 = vpop.f32.mrb[0].mxu0
    %777 = vmatprep.mubr.f32.mxu0 0.0
    %v778 = vand.u32 %v80, 4294901760
    %779 = vmatmul.mubr.f32.gmra.mrb[0].mxu0 %v778
    %v780 = vpop.f32.mrb[0].mxu0
    %v781 = vadd.f32 %v672, %v780
    %v782 = vpop.f32.mrb[0].mxu0
    %783 = vmatprep.mubr.f32.mxu0 0.0
    %v784 = vand.u32 %v83, 4294901760
    %785 = vmatmul.mubr.f32.gmra.mrb[0].mxu0 %v784
    %v786 = vpop.f32.mrb[0].mxu0
    %v787 = vadd.f32 %v678, %v786
    %v788 = vpop.f32.mrb[0].mxu0
    %789 = vmatprep.mubr.f32.mxu0 0.0
    %v790 = vand.u32 %v86, 4294901760
    %791 = vmatmul.mubr.f32.gmra.mrb[0].mxu0 %v790
    %v792 = vpop.f32.mrb[0].mxu0
    %v793 = vadd.f32 %v684, %v792
    %v794 = vpop.f32.mrb[0].mxu0
    %795 = vmatprep.mubr.f32.mxu0 0.0
    %v796 = vand.u32 %v89, 4294901760
    %797 = vmatmul.mubr.f32.gmra.mrb[0].mxu0 %v796
    %v798 = vpop.f32.mrb[0].mxu0
    %v799 = vadd.f32 %v690, %v798
    %v800 = vpop.f32.mrb[0].mxu0
    %801 = vmatprep.mubr.f32.mxu0 0.0
    %v802 = vand.u32 %v92, 4294901760
    %803 = vmatmul.mubr.f32.gmra.mrb[0].mxu0 %v802
    %v804 = vpop.f32.mrb[0].mxu0
    %v805 = vadd.f32 %v696, %v804
    %v806 = vpop.f32.mrb[0].mxu0
    %807 = vmatprep.mubr.f32.mxu0 0.0
    %v808 = vand.u32 %v95, 4294901760
    %809 = vmatmul.mubr.f32.gmra.mrb[0].mxu0 %v808
    %v810 = vpop.f32.mrb[0].mxu0
    %v811 = vadd.f32 %v702, %v810
    %v812 = vpop.f32.mrb[0].mxu0
    %813 = vdwg.mxu0
    %v814 = vld [vmem:[%s2] sm:$0xff]
    %v815 = vld [vmem:[%s2 + $0x8] sm:$0xff]
    %v816 = vld [vmem:[%s2 + $0x10] sm:$0xff]
    %v817 = vld [vmem:[%s2 + $0x18] sm:$0xff]
    %v818 = vld [vmem:[%s4] sm:$0x1]
    %v820 = vlaneseq
    %v821 = vshrl.u32 %v820, 7
    %v822 = vsub.s32 0, %v821
    %v823 = vrot.slane %v818, %v822
    %vm825 = vcmask 261120
    %v827 = vsel %vm825, 0.0, 0
    %829 = vmatprep.subr.mxu0 0.0
    %v830 = vand.u32 %v814, 4294901760
    %831 = vmatpush1.msra.mxu0 %v830
    %832 = vmatprep.subr.mxu0 0.0
    %v833 = vand.u32 %v815, 4294901760
    %834 = vmatpush1.msra.mxu0 %v833
    %835 = vmatprep.subr.mxu0 0.0
    %v836 = vand.u32 %v816, 4294901760
    %837 = vmatpush1.msra.mxu0 %v836
    %838 = vmatprep.subr.mxu0 0.0
    %v839 = vand.u32 %v817, 4294901760
    %840 = vmatpush1.msra.mxu0 %v839
    %841 = vmatprep.subr.mxu0 0.0
    %842 = vmatpush1.msra.mxu0 0.0
    %843 = vmatprep.subr.mxu0 0.0
    %844 = vmatpush1.msra.mxu0 0.0
    %845 = vmatprep.subr.mxu0 0.0
    %846 = vmatpush1.msra.mxu0 0.0
    %847 = vmatprep.subr.mxu0 0.0
    %848 = vmatpush1.msra.mxu0 0.0
    %849 = vmatprep.subr.mxu0 0.0
    %850 = vmatpush1.msra.mxu0 0.0
    %851 = vmatprep.subr.mxu0 0.0
    %852 = vmatpush1.msra.mxu0 0.0
    %853 = vmatprep.subr.mxu0 0.0
    %854 = vmatpush1.msra.mxu0 0.0
    %855 = vmatprep.subr.mxu0 0.0
    %856 = vmatpush1.msra.mxu0 0.0
    %857 = vmatprep.subr.mxu0 0.0
    %858 = vmatpush1.msra.mxu0 0.0
    %859 = vmatprep.subr.mxu0 0.0
    %860 = vmatpush1.msra.mxu0 0.0
    %861 = vmatprep.subr.mxu0 0.0
    %862 = vmatpush1.msra.mxu0 0.0
    %863 = vmatprep.subr.mxu0 0.0
    %864 = vmatpush1.msra.mxu0 0.0
    %865 = vmatprep.subr.mxu0 0.0
    %866 = vmatpush1.msra.mxu0 0.0
    %867 = vmatprep.subr.mxu0 0.0
    %868 = vmatpush1.msra.mxu0 0.0
    %869 = vmatprep.subr.mxu0 0.0
    %870 = vmatpush1.msra.mxu0 0.0
    %871 = vmatprep.subr.mxu0 0.0
    %872 = vmatpush1.msra.mxu0 0.0
    %873 = vmatprep.subr.mxu0 0.0
    %874 = vmatpush1.msra.mxu0 0.0
    %875 = vmatprep.subr.mxu0 0.0
    %876 = vmatpush1.msra.mxu0 0.0
    %877 = vmatprep.subr.mxu0 0.0
    %878 = vmatpush1.msra.mxu0 0.0
    %879 = vmatprep.subr.mxu0 0.0
    %880 = vmatpush1.msra.mxu0 0.0
    %881 = vmatprep.subr.mxu0 0.0
    %882 = vmatpush1.msra.mxu0 0.0
    %883 = vmatprep.subr.mxu0 0.0
    %884 = vmatpush1.msra.mxu0 0.0
    %885 = vmatprep.subr.mxu0 0.0
    %886 = vmatpush1.msra.mxu0 0.0
    %887 = vmatprep.subr.mxu0 0.0
    %888 = vmatpush1.msra.mxu0 0.0
    %889 = vmatprep.subr.mxu0 0.0
    %890 = vmatpush1.msra.mxu0 0.0
    %891 = vmatprep.subr.mxu0 0.0
    %892 = vmatpush1.msra.mxu0 0.0
    %893 = vmatprep.subr.mxu0 0.0
    %894 = vmatpush1.msra.mxu0 0.0
    %895 = vmatprep.subr.mxu0 0.0
    %896 = vmatpush1.msra.mxu0 0.0
    %897 = vmatprep.mubr.f32.mxu0 0.0
    %v898 = vand.u32 %v827, 4294901760
    %v899 = vsub.f32 %v827, %v898
    %v900 = vand.u32 %v899, 4294901760
    %v901 = vsub.f32 %v899, %v900
    %v902 = vand.u32 %v901, 4294901760
    %903 = vmatmul.mubr.f32.gmra.mrb[0].mxu0 %v902
    %v904 = vpop.f32.mrb[0].mxu0
    %v905 = vadd.f32 %v823, %v904
    %v906 = vpop.f32.mrb[0].mxu0
    %907 = vdwg.mxu0
    %908 = vmatprep.subr.mxu0 0.0
    %v909 = vand.u32 %v814, 4294901760
    %v910 = vsub.f32 %v814, %v909
    %v911 = vand.u32 %v910, 4294901760
    %v912 = vsub.f32 %v910, %v911
    %v913 = vand.u32 %v912, 4294901760
    %914 = vmatpush1.msra.mxu0 %v913
    %915 = vmatprep.subr.mxu0 0.0
    %v916 = vand.u32 %v815, 4294901760
    %v917 = vsub.f32 %v815, %v916
    %v918 = vand.u32 %v917, 4294901760
    %v919 = vsub.f32 %v917, %v918
    %v920 = vand.u32 %v919, 4294901760
    %921 = vmatpush1.msra.mxu0 %v920
    %922 = vmatprep.subr.mxu0 0.0
    %v923 = vand.u32 %v816, 4294901760
    %v924 = vsub.f32 %v816, %v923
    %v925 = vand.u32 %v924, 4294901760
    %v926 = vsub.f32 %v924, %v925
    %v927 = vand.u32 %v926, 4294901760
    %928 = vmatpush1.msra.mxu0 %v927
    %929 = vmatprep.subr.mxu0 0.0
    %v930 = vand.u32 %v817, 4294901760
    %v931 = vsub.f32 %v817, %v930
    %v932 = vand.u32 %v931, 4294901760
    %v933 = vsub.f32 %v931, %v932
    %v934 = vand.u32 %v933, 4294901760
    %935 = vmatpush1.msra.mxu0 %v934
    %936 = vmatprep.subr.mxu0 0.0
    %937 = vmatpush1.msra.mxu0 0.0
    %938 = vmatprep.subr.mxu0 0.0
    %939 = vmatpush1.msra.mxu0 0.0
    %940 = vmatprep.subr.mxu0 0.0
    %941 = vmatpush1.msra.mxu0 0.0
    %942 = vmatprep.subr.mxu0 0.0
    %943 = vmatpush1.msra.mxu0 0.0
    %944 = vmatprep.subr.mxu0 0.0
    %945 = vmatpush1.msra.mxu0 0.0
    %946 = vmatprep.subr.mxu0 0.0
    %947 = vmatpush1.msra.mxu0 0.0
    %948 = vmatprep.subr.mxu0 0.0
    %949 = vmatpush1.msra.mxu0 0.0
    %950 = vmatprep.subr.mxu0 0.0
    %951 = vmatpush1.msra.mxu0 0.0
    %952 = vmatprep.subr.mxu0 0.0
    %953 = vmatpush1.msra.mxu0 0.0
    %954 = vmatprep.subr.mxu0 0.0
    %955 = vmatpush1.msra.mxu0 0.0
    %956 = vmatprep.subr.mxu0 0.0
    %957 = vmatpush1.msra.mxu0 0.0
    %958 = vmatprep.subr.mxu0 0.0
    %959 = vmatpush1.msra.mxu0 0.0
    %960 = vmatprep.subr.mxu0 0.0
    %961 = vmatpush1.msra.mxu0 0.0
    %962 = vmatprep.subr.mxu0 0.0
    %963 = vmatpush1.msra.mxu0 0.0
    %964 = vmatprep.subr.mxu0 0.0
    %965 = vmatpush1.msra.mxu0 0.0
    %966 = vmatprep.subr.mxu0 0.0
    %967 = vmatpush1.msra.mxu0 0.0
    %968 = vmatprep.subr.mxu0 0.0
    %969 = vmatpush1.msra.mxu0 0.0
    %970 = vmatprep.subr.mxu0 0.0
    %971 = vmatpush1.msra.mxu0 0.0
    %972 = vmatprep.subr.mxu0 0.0
    %973 = vmatpush1.msra.mxu0 0.0
    %974 = vmatprep.subr.mxu0 0.0
    %975 = vmatpush1.msra.mxu0 0.0
    %976 = vmatprep.subr.mxu0 0.0
    %977 = vmatpush1.msra.mxu0 0.0
    %978 = vmatprep.subr.mxu0 0.0
    %979 = vmatpush1.msra.mxu0 0.0
    %980 = vmatprep.subr.mxu0 0.0
    %981 = vmatpush1.msra.mxu0 0.0
    %982 = vmatprep.subr.mxu0 0.0
    %983 = vmatpush1.msra.mxu0 0.0
    %984 = vmatprep.subr.mxu0 0.0
    %985 = vmatpush1.msra.mxu0 0.0
    %986 = vmatprep.subr.mxu0 0.0
    %987 = vmatpush1.msra.mxu0 0.0
    %988 = vmatprep.subr.mxu0 0.0
    %989 = vmatpush1.msra.mxu0 0.0
    %990 = vmatprep.subr.mxu0 0.0
    %991 = vmatpush1.msra.mxu0 0.0
    %992 = vmatprep.mubr.f32.mxu0 0.0
    %v993 = vand.u32 %v827, 4294901760
    %994 = vmatmul.mubr.f32.gmra.mrb[0].mxu0 %v993
    %v995 = vpop.f32.mrb[0].mxu0
    %v996 = vadd.f32 %v905, %v995
    %v997 = vpop.f32.mrb[0].mxu0
    %998 = vdwg.mxu0
    %999 = vmatprep.subr.mxu0 0.0
    %v1000 = vand.u32 %v814, 4294901760
    %v1001 = vsub.f32 %v814, %v1000
    %1002 = vmatpush1.msra.mxu0 %v1001
    %1003 = vmatprep.subr.mxu0 0.0
    %v1004 = vand.u32 %v815, 4294901760
    %v1005 = vsub.f32 %v815, %v1004
    %1006 = vmatpush1.msra.mxu0 %v1005
    %1007 = vmatprep.subr.mxu0 0.0
    %v1008 = vand.u32 %v816, 4294901760
    %v1009 = vsub.f32 %v816, %v1008
    %1010 = vmatpush1.msra.mxu0 %v1009
    %1011 = vmatprep.subr.mxu0 0.0
    %v1012 = vand.u32 %v817, 4294901760
    %v1013 = vsub.f32 %v817, %v1012
    %1014 = vmatpush1.msra.mxu0 %v1013
    %1015 = vmatprep.subr.mxu0 0.0
    %1016 = vmatpush1.msra.mxu0 0.0
    %1017 = vmatprep.subr.mxu0 0.0
    %1018 = vmatpush1.msra.mxu0 0.0
    %1019 = vmatprep.subr.mxu0 0.0
    %1020 = vmatpush1.msra.mxu0 0.0
    %1021 = vmatprep.subr.mxu0 0.0
    %1022 = vmatpush1.msra.mxu0 0.0
    %1023 = vmatprep.subr.mxu0 0.0
    %1024 = vmatpush1.msra.mxu0 0.0
    %1025 = vmatprep.subr.mxu0 0.0
    %1026 = vmatpush1.msra.mxu0 0.0
    %1027 = vmatprep.subr.mxu0 0.0
    %1028 = vmatpush1.msra.mxu0 0.0
    %1029 = vmatprep.subr.mxu0 0.0
    %1030 = vmatpush1.msra.mxu0 0.0
    %1031 = vmatprep.subr.mxu0 0.0
    %1032 = vmatpush1.msra.mxu0 0.0
    %1033 = vmatprep.subr.mxu0 0.0
    %1034 = vmatpush1.msra.mxu0 0.0
    %1035 = vmatprep.subr.mxu0 0.0
    %1036 = vmatpush1.msra.mxu0 0.0
    %1037 = vmatprep.subr.mxu0 0.0
    %1038 = vmatpush1.msra.mxu0 0.0
    %1039 = vmatprep.subr.mxu0 0.0
    %1040 = vmatpush1.msra.mxu0 0.0
    %1041 = vmatprep.subr.mxu0 0.0
    %1042 = vmatpush1.msra.mxu0 0.0
    %1043 = vmatprep.subr.mxu0 0.0
    %1044 = vmatpush1.msra.mxu0 0.0
    %1045 = vmatprep.subr.mxu0 0.0
    %1046 = vmatpush1.msra.mxu0 0.0
    %1047 = vmatprep.subr.mxu0 0.0
    %1048 = vmatpush1.msra.mxu0 0.0
    %1049 = vmatprep.subr.mxu0 0.0
    %1050 = vmatpush1.msra.mxu0 0.0
    %1051 = vmatprep.subr.mxu0 0.0
    %1052 = vmatpush1.msra.mxu0 0.0
    %1053 = vmatprep.subr.mxu0 0.0
    %1054 = vmatpush1.msra.mxu0 0.0
    %1055 = vmatprep.subr.mxu0 0.0
    %1056 = vmatpush1.msra.mxu0 0.0
    %1057 = vmatprep.subr.mxu0 0.0
    %1058 = vmatpush1.msra.mxu0 0.0
    %1059 = vmatprep.subr.mxu0 0.0
    %1060 = vmatpush1.msra.mxu0 0.0
    %1061 = vmatprep.subr.mxu0 0.0
    %1062 = vmatpush1.msra.mxu0 0.0
    %1063 = vmatprep.subr.mxu0 0.0
    %1064 = vmatpush1.msra.mxu0 0.0
    %1065 = vmatprep.subr.mxu0 0.0
    %1066 = vmatpush1.msra.mxu0 0.0
    %1067 = vmatprep.subr.mxu0 0.0
    %1068 = vmatpush1.msra.mxu0 0.0
    %1069 = vmatprep.subr.mxu0 0.0
    %1070 = vmatpush1.msra.mxu0 0.0
    %1071 = vmatprep.mubr.f32.mxu0 0.0
    %v1072 = vand.u32 %v827, 4294901760
    %v1073 = vsub.f32 %v827, %v1072
    %1074 = vmatmul.mubr.f32.gmra.mrb[0].mxu0 %v1073
    %v1075 = vpop.f32.mrb[0].mxu0
    %v1076 = vadd.f32 %v996, %v1075
    %v1077 = vpop.f32.mrb[0].mxu0
    %1078 = vdwg.mxu0
    %1079 = vmatprep.subr.mxu0 0.0
    %v1080 = vand.u32 %v814, 4294901760
    %1081 = vmatpush1.msra.mxu0 %v1080
    %1082 = vmatprep.subr.mxu0 0.0
    %v1083 = vand.u32 %v815, 4294901760
    %1084 = vmatpush1.msra.mxu0 %v1083
    %1085 = vmatprep.subr.mxu0 0.0
    %v1086 = vand.u32 %v816, 4294901760
    %1087 = vmatpush1.msra.mxu0 %v1086
    %1088 = vmatprep.subr.mxu0 0.0
    %v1089 = vand.u32 %v817, 4294901760
    %1090 = vmatpush1.msra.mxu0 %v1089
    %1091 = vmatprep.subr.mxu0 0.0
    %1092 = vmatpush1.msra.mxu0 0.0
    %1093 = vmatprep.subr.mxu0 0.0
    %1094 = vmatpush1.msra.mxu0 0.0
    %1095 = vmatprep.subr.mxu0 0.0
    %1096 = vmatpush1.msra.mxu0 0.0
    %1097 = vmatprep.subr.mxu0 0.0
    %1098 = vmatpush1.msra.mxu0 0.0
    %1099 = vmatprep.subr.mxu0 0.0
    %1100 = vmatpush1.msra.mxu0 0.0
    %1101 = vmatprep.subr.mxu0 0.0
    %1102 = vmatpush1.msra.mxu0 0.0
    %1103 = vmatprep.subr.mxu0 0.0
    %1104 = vmatpush1.msra.mxu0 0.0
    %1105 = vmatprep.subr.mxu0 0.0
    %1106 = vmatpush1.msra.mxu0 0.0
    %1107 = vmatprep.subr.mxu0 0.0
    %1108 = vmatpush1.msra.mxu0 0.0
    %1109 = vmatprep.subr.mxu0 0.0
    %1110 = vmatpush1.msra.mxu0 0.0
    %1111 = vmatprep.subr.mxu0 0.0
    %1112 = vmatpush1.msra.mxu0 0.0
    %1113 = vmatprep.subr.mxu0 0.0
    %1114 = vmatpush1.msra.mxu0 0.0
    %1115 = vmatprep.subr.mxu0 0.0
    %1116 = vmatpush1.msra.mxu0 0.0
    %1117 = vmatprep.subr.mxu0 0.0
    %1118 = vmatpush1.msra.mxu0 0.0
    %1119 = vmatprep.subr.mxu0 0.0
    %1120 = vmatpush1.msra.mxu0 0.0
    %1121 = vmatprep.subr.mxu0 0.0
    %1122 = vmatpush1.msra.mxu0 0.0
    %1123 = vmatprep.subr.mxu0 0.0
    %1124 = vmatpush1.msra.mxu0 0.0
    %1125 = vmatprep.subr.mxu0 0.0
    %1126 = vmatpush1.msra.mxu0 0.0
    %1127 = vmatprep.subr.mxu0 0.0
    %1128 = vmatpush1.msra.mxu0 0.0
    %1129 = vmatprep.subr.mxu0 0.0
    %1130 = vmatpush1.msra.mxu0 0.0
    %1131 = vmatprep.subr.mxu0 0.0
    %1132 = vmatpush1.msra.mxu0 0.0
    %1133 = vmatprep.subr.mxu0 0.0
    %1134 = vmatpush1.msra.mxu0 0.0
    %1135 = vmatprep.subr.mxu0 0.0
    %1136 = vmatpush1.msra.mxu0 0.0
    %1137 = vmatprep.subr.mxu0 0.0
    %1138 = vmatpush1.msra.mxu0 0.0
    %1139 = vmatprep.subr.mxu0 0.0
    %1140 = vmatpush1.msra.mxu0 0.0
    %1141 = vmatprep.subr.mxu0 0.0
    %1142 = vmatpush1.msra.mxu0 0.0
    %1143 = vmatprep.subr.mxu0 0.0
    %1144 = vmatpush1.msra.mxu0 0.0
    %1145 = vmatprep.subr.mxu0 0.0
    %1146 = vmatpush1.msra.mxu0 0.0
    %1147 = vmatprep.mubr.f32.mxu0 0.0
    %v1148 = vand.u32 %v827, 4294901760
    %v1149 = vsub.f32 %v827, %v1148
    %v1150 = vand.u32 %v1149, 4294901760
    %1151 = vmatmul.mubr.f32.gmra.mrb[0].mxu0 %v1150
    %v1152 = vpop.f32.mrb[0].mxu0
    %v1153 = vadd.f32 %v1076, %v1152
    %v1154 = vpop.f32.mrb[0].mxu0
    %1155 = vdwg.mxu0
    %1156 = vmatprep.subr.mxu0 0.0
    %v1157 = vand.u32 %v814, 4294901760
    %v1158 = vsub.f32 %v814, %v1157
    %v1159 = vand.u32 %v1158, 4294901760
    %1160 = vmatpush1.msra.mxu0 %v1159
    %1161 = vmatprep.subr.mxu0 0.0
    %v1162 = vand.u32 %v815, 4294901760
    %v1163 = vsub.f32 %v815, %v1162
    %v1164 = vand.u32 %v1163, 4294901760
    %1165 = vmatpush1.msra.mxu0 %v1164
    %1166 = vmatprep.subr.mxu0 0.0
    %v1167 = vand.u32 %v816, 4294901760
    %v1168 = vsub.f32 %v816, %v1167
    %v1169 = vand.u32 %v1168, 4294901760
    %1170 = vmatpush1.msra.mxu0 %v1169
    %1171 = vmatprep.subr.mxu0 0.0
    %v1172 = vand.u32 %v817, 4294901760
    %v1173 = vsub.f32 %v817, %v1172
    %v1174 = vand.u32 %v1173, 4294901760
    %1175 = vmatpush1.msra.mxu0 %v1174
    %1176 = vmatprep.subr.mxu0 0.0
    %1177 = vmatpush1.msra.mxu0 0.0
    %1178 = vmatprep.subr.mxu0 0.0
    %1179 = vmatpush1.msra.mxu0 0.0
    %1180 = vmatprep.subr.mxu0 0.0
    %1181 = vmatpush1.msra.mxu0 0.0
    %1182 = vmatprep.subr.mxu0 0.0
    %1183 = vmatpush1.msra.mxu0 0.0
    %1184 = vmatprep.subr.mxu0 0.0
    %1185 = vmatpush1.msra.mxu0 0.0
    %1186 = vmatprep.subr.mxu0 0.0
    %1187 = vmatpush1.msra.mxu0 0.0
    %1188 = vmatprep.subr.mxu0 0.0
    %1189 = vmatpush1.msra.mxu0 0.0
    %1190 = vmatprep.subr.mxu0 0.0
    %1191 = vmatpush1.msra.mxu0 0.0
    %1192 = vmatprep.subr.mxu0 0.0
    %1193 = vmatpush1.msra.mxu0 0.0
    %1194 = vmatprep.subr.mxu0 0.0
    %1195 = vmatpush1.msra.mxu0 0.0
    %1196 = vmatprep.subr.mxu0 0.0
    %1197 = vmatpush1.msra.mxu0 0.0
    %1198 = vmatprep.subr.mxu0 0.0
    %1199 = vmatpush1.msra.mxu0 0.0
    %1200 = vmatprep.subr.mxu0 0.0
    %1201 = vmatpush1.msra.mxu0 0.0
    %1202 = vmatprep.subr.mxu0 0.0
    %1203 = vmatpush1.msra.mxu0 0.0
    %1204 = vmatprep.subr.mxu0 0.0
    %1205 = vmatpush1.msra.mxu0 0.0
    %1206 = vmatprep.subr.mxu0 0.0
    %1207 = vmatpush1.msra.mxu0 0.0
    %1208 = vmatprep.subr.mxu0 0.0
    %1209 = vmatpush1.msra.mxu0 0.0
    %1210 = vmatprep.subr.mxu0 0.0
    %1211 = vmatpush1.msra.mxu0 0.0
    %1212 = vmatprep.subr.mxu0 0.0
    %1213 = vmatpush1.msra.mxu0 0.0
    %1214 = vmatprep.subr.mxu0 0.0
    %1215 = vmatpush1.msra.mxu0 0.0
    %1216 = vmatprep.subr.mxu0 0.0
    %1217 = vmatpush1.msra.mxu0 0.0
    %1218 = vmatprep.subr.mxu0 0.0
    %1219 = vmatpush1.msra.mxu0 0.0
    %1220 = vmatprep.subr.mxu0 0.0
    %1221 = vmatpush1.msra.mxu0 0.0
    %1222 = vmatprep.subr.mxu0 0.0
    %1223 = vmatpush1.msra.mxu0 0.0
    %1224 = vmatprep.subr.mxu0 0.0
    %1225 = vmatpush1.msra.mxu0 0.0
    %1226 = vmatprep.subr.mxu0 0.0
    %1227 = vmatpush1.msra.mxu0 0.0
    %1228 = vmatprep.subr.mxu0 0.0
    %1229 = vmatpush1.msra.mxu0 0.0
    %1230 = vmatprep.subr.mxu0 0.0
    %1231 = vmatpush1.msra.mxu0 0.0
    %1232 = vmatprep.mubr.f32.mxu0 0.0
    %v1233 = vand.u32 %v827, 4294901760
    %1234 = vmatmul.mubr.f32.gmra.mrb[0].mxu0 %v1233
    %v1235 = vpop.f32.mrb[0].mxu0
    %v1236 = vadd.f32 %v1153, %v1235
    %v1237 = vpop.f32.mrb[0].mxu0
    %1238 = vdwg.mxu0
    %1239 = vmatprep.subr.mxu0 0.0
    %v1240 = vand.u32 %v814, 4294901760
    %1241 = vmatpush1.msra.mxu0 %v1240
    %1242 = vmatprep.subr.mxu0 0.0
    %v1243 = vand.u32 %v815, 4294901760
    %1244 = vmatpush1.msra.mxu0 %v1243
    %1245 = vmatprep.subr.mxu0 0.0
    %v1246 = vand.u32 %v816, 4294901760
    %1247 = vmatpush1.msra.mxu0 %v1246
    %1248 = vmatprep.subr.mxu0 0.0
    %v1249 = vand.u32 %v817, 4294901760
    %1250 = vmatpush1.msra.mxu0 %v1249
    %1251 = vmatprep.subr.mxu0 0.0
    %1252 = vmatpush1.msra.mxu0 0.0
    %1253 = vmatprep.subr.mxu0 0.0
    %1254 = vmatpush1.msra.mxu0 0.0
    %1255 = vmatprep.subr.mxu0 0.0
    %1256 = vmatpush1.msra.mxu0 0.0
    %1257 = vmatprep.subr.mxu0 0.0
    %1258 = vmatpush1.msra.mxu0 0.0
    %1259 = vmatprep.subr.mxu0 0.0
    %1260 = vmatpush1.msra.mxu0 0.0
    %1261 = vmatprep.subr.mxu0 0.0
    %1262 = vmatpush1.msra.mxu0 0.0
    %1263 = vmatprep.subr.mxu0 0.0
    %1264 = vmatpush1.msra.mxu0 0.0
    %1265 = vmatprep.subr.mxu0 0.0
    %1266 = vmatpush1.msra.mxu0 0.0
    %1267 = vmatprep.subr.mxu0 0.0
    %1268 = vmatpush1.msra.mxu0 0.0
    %1269 = vmatprep.subr.mxu0 0.0
    %1270 = vmatpush1.msra.mxu0 0.0
    %1271 = vmatprep.subr.mxu0 0.0
    %1272 = vmatpush1.msra.mxu0 0.0
    %1273 = vmatprep.subr.mxu0 0.0
    %1274 = vmatpush1.msra.mxu0 0.0
    %1275 = vmatprep.subr.mxu0 0.0
    %1276 = vmatpush1.msra.mxu0 0.0
    %1277 = vmatprep.subr.mxu0 0.0
    %1278 = vmatpush1.msra.mxu0 0.0
    %1279 = vmatprep.subr.mxu0 0.0
    %1280 = vmatpush1.msra.mxu0 0.0
    %1281 = vmatprep.subr.mxu0 0.0
    %1282 = vmatpush1.msra.mxu0 0.0
    %1283 = vmatprep.subr.mxu0 0.0
    %1284 = vmatpush1.msra.mxu0 0.0
    %1285 = vmatprep.subr.mxu0 0.0
    %1286 = vmatpush1.msra.mxu0 0.0
    %1287 = vmatprep.subr.mxu0 0.0
    %1288 = vmatpush1.msra.mxu0 0.0
    %1289 = vmatprep.subr.mxu0 0.0
    %1290 = vmatpush1.msra.mxu0 0.0
    %1291 = vmatprep.subr.mxu0 0.0
    %1292 = vmatpush1.msra.mxu0 0.0
    %1293 = vmatprep.subr.mxu0 0.0
    %1294 = vmatpush1.msra.mxu0 0.0
    %1295 = vmatprep.subr.mxu0 0.0
    %1296 = vmatpush1.msra.mxu0 0.0
    %1297 = vmatprep.subr.mxu0 0.0
    %1298 = vmatpush1.msra.mxu0 0.0
    %1299 = vmatprep.subr.mxu0 0.0
    %1300 = vmatpush1.msra.mxu0 0.0
    %1301 = vmatprep.subr.mxu0 0.0
    %1302 = vmatpush1.msra.mxu0 0.0
    %1303 = vmatprep.subr.mxu0 0.0
    %1304 = vmatpush1.msra.mxu0 0.0
    %1305 = vmatprep.subr.mxu0 0.0
    %1306 = vmatpush1.msra.mxu0 0.0
    %1307 = vmatprep.mubr.f32.mxu0 0.0
    %v1308 = vand.u32 %v827, 4294901760
    %1309 = vmatmul.mubr.f32.gmra.mrb[0].mxu0 %v1308
    %v1310 = vpop.f32.mrb[0].mxu0
    %v1311 = vadd.f32 %v1236, %v1310
    %v1312 = vpop.f32.mrb[0].mxu0
    %1313 = vdwg.mxu0
    %v1314 = vadd.f32 %v775, %v1311
    %v1315 = vxor.u32 %v1314, 2147483648
    %v1316 = vmul.f32 %v1315, 1.442695
    %v1317 = vpow.pop %v1316
    %v1318 = vadd.f32 %v1317, 1.0
    %v1319 = vrcp.pop %v1318
    %v1320 = vmul.f32 1.0, %v1319
    %1322 = vrot.lane.b32.xlu0 %v1311, 64
    %v1323 = vpop.permute.xlu0 %1322
    %v1325 = vmul.f32 %v1320, %v1323
    %1327 = vrot.lane.b32.xlu0 %v1325, 64
    %v1328 = vpop.permute.xlu0 %1327
    %v1330 = vadd.f32 %v775, %v1328
    %v1331 = vtanh.pop %v1330
    %v1332 = vsub.f32 1.0, %v1320
    %1334 = vrot.lane.b32.xlu0 %v1331, 96
    %v1335 = vpop.permute.xlu0 %1334
    %v1337 = vmul.f32 %v1332, %v1335
    %v1338 = vmul.f32 %v1320, 0.0
    %v1339 = vadd.f32 %v1337, %v1338
    %1341 = vrot.lane.b32.xlu0 %v1339, 96
    %v1342 = vpop.permute.xlu0 %1341
    %v1343 = vsel %vm825, %v1342, 0
    %1345 = vmatprep.subr.mxu0 0.0
    %v1346 = vand.u32 %v814, 4294901760
    %1347 = vmatpush1.msra.mxu0 %v1346
    %1348 = vmatprep.subr.mxu0 0.0
    %v1349 = vand.u32 %v815, 4294901760
    %1350 = vmatpush1.msra.mxu0 %v1349
    %1351 = vmatprep.subr.mxu0 0.0
    %v1352 = vand.u32 %v816, 4294901760
    %1353 = vmatpush1.msra.mxu0 %v1352
    %1354 = vmatprep.subr.mxu0 0.0
    %v1355 = vand.u32 %v817, 4294901760
    %1356 = vmatpush1.msra.mxu0 %v1355
    %1357 = vmatprep.subr.mxu0 0.0
    %1358 = vmatpush1.msra.mxu0 0.0
    %1359 = vmatprep.subr.mxu0 0.0
    %1360 = vmatpush1.msra.mxu0 0.0
    %1361 = vmatprep.subr.mxu0 0.0
    %1362 = vmatpush1.msra.mxu0 0.0
    %1363 = vmatprep.subr.mxu0 0.0
    %1364 = vmatpush1.msra.mxu0 0.0
    %1365 = vmatprep.subr.mxu0 0.0
    %1366 = vmatpush1.msra.mxu0 0.0
    %1367 = vmatprep.subr.mxu0 0.0
    %1368 = vmatpush1.msra.mxu0 0.0
    %1369 = vmatprep.subr.mxu0 0.0
    %1370 = vmatpush1.msra.mxu0 0.0
    %1371 = vmatprep.subr.mxu0 0.0
    %1372 = vmatpush1.msra.mxu0 0.0
    %1373 = vmatprep.subr.mxu0 0.0
    %1374 = vmatpush1.msra.mxu0 0.0
    %1375 = vmatprep.subr.mxu0 0.0
    %1376 = vmatpush1.msra.mxu0 0.0
    %1377 = vmatprep.subr.mxu0 0.0
    %1378 = vmatpush1.msra.mxu0 0.0
    %1379 = vmatprep.subr.mxu0 0.0
    %1380 = vmatpush1.msra.mxu0 0.0
    %1381 = vmatprep.subr.mxu0 0.0
    %1382 = vmatpush1.msra.mxu0 0.0
    %1383 = vmatprep.subr.mxu0 0.0
    %1384 = vmatpush1.msra.mxu0 0.0
    %1385 = vmatprep.subr.mxu0 0.0
    %1386 = vmatpush1.msra.mxu0 0.0
    %1387 = vmatprep.subr.mxu0 0.0
    %1388 = vmatpush1.msra.mxu0 0.0
    %1389 = vmatprep.subr.mxu0 0.0
    %1390 = vmatpush1.msra.mxu0 0.0
    %1391 = vmatprep.subr.mxu0 0.0
    %1392 = vmatpush1.msra.mxu0 0.0
    %1393 = vmatprep.subr.mxu0 0.0
    %1394 = vmatpush1.msra.mxu0 0.0
    %1395 = vmatprep.subr.mxu0 0.0
    %1396 = vmatpush1.msra.mxu0 0.0
    %1397 = vmatprep.subr.mxu0 0.0
    %1398 = vmatpush1.msra.mxu0 0.0
    %1399 = vmatprep.subr.mxu0 0.0
    %1400 = vmatpush1.msra.mxu0 0.0
    %1401 = vmatprep.subr.mxu0 0.0
    %1402 = vmatpush1.msra.mxu0 0.0
    %1403 = vmatprep.subr.mxu0 0.0
    %1404 = vmatpush1.msra.mxu0 0.0
    %1405 = vmatprep.subr.mxu0 0.0
    %1406 = vmatpush1.msra.mxu0 0.0
    %1407 = vmatprep.subr.mxu0 0.0
    %1408 = vmatpush1.msra.mxu0 0.0
    %1409 = vmatprep.subr.mxu0 0.0
    %1410 = vmatpush1.msra.mxu0 0.0
    %1411 = vmatprep.subr.mxu0 0.0
    %1412 = vmatpush1.msra.mxu0 0.0
    %1413 = vmatprep.mubr.f32.mxu0 0.0
    %v1414 = vand.u32 %v1343, 4294901760
    %v1415 = vsub.f32 %v1343, %v1414
    %v1416 = vand.u32 %v1415, 4294901760
    %v1417 = vsub.f32 %v1415, %v1416
    %v1418 = vand.u32 %v1417, 4294901760
    %1419 = vmatmul.mubr.f32.gmra.mrb[0].mxu0 %v1418
    %v1420 = vpop.f32.mrb[0].mxu0
    %v1421 = vadd.f32 %v823, %v1420
    %v1422 = vpop.f32.mrb[0].mxu0
    %1423 = vdwg.mxu0
    %1424 = vmatprep.subr.mxu0 0.0
    %v1425 = vand.u32 %v814, 4294901760
    %v1426 = vsub.f32 %v814, %v1425
    %v1427 = vand.u32 %v1426, 4294901760
    %v1428 = vsub.f32 %v1426, %v1427
    %v1429 = vand.u32 %v1428, 4294901760
    %1430 = vmatpush1.msra.mxu0 %v1429
    %1431 = vmatprep.subr.mxu0 0.0
    %v1432 = vand.u32 %v815, 4294901760
    %v1433 = vsub.f32 %v815, %v1432
    %v1434 = vand.u32 %v1433, 4294901760
    %v1435 = vsub.f32 %v1433, %v1434
    %v1436 = vand.u32 %v1435, 4294901760
    %1437 = vmatpush1.msra.mxu0 %v1436
    %1438 = vmatprep.subr.mxu0 0.0
    %v1439 = vand.u32 %v816, 4294901760
    %v1440 = vsub.f32 %v816, %v1439
    %v1441 = vand.u32 %v1440, 4294901760
    %v1442 = vsub.f32 %v1440, %v1441
    %v1443 = vand.u32 %v1442, 4294901760
    %1444 = vmatpush1.msra.mxu0 %v1443
    %1445 = vmatprep.subr.mxu0 0.0
    %v1446 = vand.u32 %v817, 4294901760
    %v1447 = vsub.f32 %v817, %v1446
    %v1448 = vand.u32 %v1447, 4294901760
    %v1449 = vsub.f32 %v1447, %v1448
    %v1450 = vand.u32 %v1449, 4294901760
    %1451 = vmatpush1.msra.mxu0 %v1450
    %1452 = vmatprep.subr.mxu0 0.0
    %1453 = vmatpush1.msra.mxu0 0.0
    %1454 = vmatprep.subr.mxu0 0.0
    %1455 = vmatpush1.msra.mxu0 0.0
    %1456 = vmatprep.subr.mxu0 0.0
    %1457 = vmatpush1.msra.mxu0 0.0
    %1458 = vmatprep.subr.mxu0 0.0
    %1459 = vmatpush1.msra.mxu0 0.0
    %1460 = vmatprep.subr.mxu0 0.0
    %1461 = vmatpush1.msra.mxu0 0.0
    %1462 = vmatprep.subr.mxu0 0.0
    %1463 = vmatpush1.msra.mxu0 0.0
    %1464 = vmatprep.subr.mxu0 0.0
    %1465 = vmatpush1.msra.mxu0 0.0
    %1466 = vmatprep.subr.mxu0 0.0
    %1467 = vmatpush1.msra.mxu0 0.0
    %1468 = vmatprep.subr.mxu0 0.0
    %1469 = vmatpush1.msra.mxu0 0.0
    %1470 = vmatprep.subr.mxu0 0.0
    %1471 = vmatpush1.msra.mxu0 0.0
    %1472 = vmatprep.subr.mxu0 0.0
    %1473 = vmatpush1.msra.mxu0 0.0
    %1474 = vmatprep.subr.mxu0 0.0
    %1475 = vmatpush1.msra.mxu0 0.0
    %1476 = vmatprep.subr.mxu0 0.0
    %1477 = vmatpush1.msra.mxu0 0.0
    %1478 = vmatprep.subr.mxu0 0.0
    %1479 = vmatpush1.msra.mxu0 0.0
    %1480 = vmatprep.subr.mxu0 0.0
    %1481 = vmatpush1.msra.mxu0 0.0
    %1482 = vmatprep.subr.mxu0 0.0
    %1483 = vmatpush1.msra.mxu0 0.0
    %1484 = vmatprep.subr.mxu0 0.0
    %1485 = vmatpush1.msra.mxu0 0.0
    %1486 = vmatprep.subr.mxu0 0.0
    %1487 = vmatpush1.msra.mxu0 0.0
    %1488 = vmatprep.subr.mxu0 0.0
    %1489 = vmatpush1.msra.mxu0 0.0
    %1490 = vmatprep.subr.mxu0 0.0
    %1491 = vmatpush1.msra.mxu0 0.0
    %1492 = vmatprep.subr.mxu0 0.0
    %1493 = vmatpush1.msra.mxu0 0.0
    %1494 = vmatprep.subr.mxu0 0.0
    %1495 = vmatpush1.msra.mxu0 0.0
    %1496 = vmatprep.subr.mxu0 0.0
    %1497 = vmatpush1.msra.mxu0 0.0
    %1498 = vmatprep.subr.mxu0 0.0
    %1499 = vmatpush1.msra.mxu0 0.0
    %1500 = vmatprep.subr.mxu0 0.0
    %1501 = vmatpush1.msra.mxu0 0.0
    %1502 = vmatprep.subr.mxu0 0.0
    %1503 = vmatpush1.msra.mxu0 0.0
    %1504 = vmatprep.subr.mxu0 0.0
    %1505 = vmatpush1.msra.mxu0 0.0
    %1506 = vmatprep.subr.mxu0 0.0
    %1507 = vmatpush1.msra.mxu0 0.0
    %1508 = vmatprep.mubr.f32.mxu0 0.0
    %v1509 = vand.u32 %v1343, 4294901760
    %1510 = vmatmul.mubr.f32.gmra.mrb[0].mxu0 %v1509
    %v1511 = vpop.f32.mrb[0].mxu0
    %v1512 = vadd.f32 %v1421, %v1511
    %v1513 = vpop.f32.mrb[0].mxu0
    %1514 = vdwg.mxu0
    %1515 = vmatprep.subr.mxu0 0.0
    %v1516 = vand.u32 %v814, 4294901760
    %v1517 = vsub.f32 %v814, %v1516
    %1518 = vmatpush1.msra.mxu0 %v1517
    %1519 = vmatprep.subr.mxu0 0.0
    %v1520 = vand.u32 %v815, 4294901760
    %v1521 = vsub.f32 %v815, %v1520
    %1522 = vmatpush1.msra.mxu0 %v1521
    %1523 = vmatprep.subr.mxu0 0.0
    %v1524 = vand.u32 %v816, 4294901760
    %v1525 = vsub.f32 %v816, %v1524
    %1526 = vmatpush1.msra.mxu0 %v1525
    %1527 = vmatprep.subr.mxu0 0.0
    %v1528 = vand.u32 %v817, 4294901760
    %v1529 = vsub.f32 %v817, %v1528
    %1530 = vmatpush1.msra.mxu0 %v1529
    %1531 = vmatprep.subr.mxu0 0.0
    %1532 = vmatpush1.msra.mxu0 0.0
    %1533 = vmatprep.subr.mxu0 0.0
    %1534 = vmatpush1.msra.mxu0 0.0
    %1535 = vmatprep.subr.mxu0 0.0
    %1536 = vmatpush1.msra.mxu0 0.0
    %1537 = vmatprep.subr.mxu0 0.0
    %1538 = vmatpush1.msra.mxu0 0.0
    %1539 = vmatprep.subr.mxu0 0.0
    %1540 = vmatpush1.msra.mxu0 0.0
    %1541 = vmatprep.subr.mxu0 0.0
    %1542 = vmatpush1.msra.mxu0 0.0
    %1543 = vmatprep.subr.mxu0 0.0
    %1544 = vmatpush1.msra.mxu0 0.0
    %1545 = vmatprep.subr.mxu0 0.0
    %1546 = vmatpush1.msra.mxu0 0.0
    %1547 = vmatprep.subr.mxu0 0.0
    %1548 = vmatpush1.msra.mxu0 0.0
    %1549 = vmatprep.subr.mxu0 0.0
    %1550 = vmatpush1.msra.mxu0 0.0
    %1551 = vmatprep.subr.mxu0 0.0
    %1552 = vmatpush1.msra.mxu0 0.0
    %1553 = vmatprep.subr.mxu0 0.0
    %1554 = vmatpush1.msra.mxu0 0.0
    %1555 = vmatprep.subr.mxu0 0.0
    %1556 = vmatpush1.msra.mxu0 0.0
    %1557 = vmatprep.subr.mxu0 0.0
    %1558 = vmatpush1.msra.mxu0 0.0
    %1559 = vmatprep.subr.mxu0 0.0
    %1560 = vmatpush1.msra.mxu0 0.0
    %1561 = vmatprep.subr.mxu0 0.0
    %1562 = vmatpush1.msra.mxu0 0.0
    %1563 = vmatprep.subr.mxu0 0.0
    %1564 = vmatpush1.msra.mxu0 0.0
    %1565 = vmatprep.subr.mxu0 0.0
    %1566 = vmatpush1.msra.mxu0 0.0
    %1567 = vmatprep.subr.mxu0 0.0
    %1568 = vmatpush1.msra.mxu0 0.0
    %1569 = vmatprep.subr.mxu0 0.0
    %1570 = vmatpush1.msra.mxu0 0.0
    %1571 = vmatprep.subr.mxu0 0.0
    %1572 = vmatpush1.msra.mxu0 0.0
    %1573 = vmatprep.subr.mxu0 0.0
    %1574 = vmatpush1.msra.mxu0 0.0
    %1575 = vmatprep.subr.mxu0 0.0
    %1576 = vmatpush1.msra.mxu0 0.0
    %1577 = vmatprep.subr.mxu0 0.0
    %1578 = vmatpush1.msra.mxu0 0.0
    %1579 = vmatprep.subr.mxu0 0.0
    %1580 = vmatpush1.msra.mxu0 0.0
    %1581 = vmatprep.subr.mxu0 0.0
    %1582 = vmatpush1.msra.mxu0 0.0
    %1583 = vmatprep.subr.mxu0 0.0
    %1584 = vmatpush1.msra.mxu0 0.0
    %1585 = vmatprep.subr.mxu0 0.0
    %1586 = vmatpush1.msra.mxu0 0.0
    %1587 = vmatprep.mubr.f32.mxu0 0.0
    %v1588 = vand.u32 %v1343, 4294901760
    %v1589 = vsub.f32 %v1343, %v1588
    %1590 = vmatmul.mubr.f32.gmra.mrb[0].mxu0 %v1589
    %v1591 = vpop.f32.mrb[0].mxu0
    %v1592 = vadd.f32 %v1512, %v1591
    %v1593 = vpop.f32.mrb[0].mxu0
    %1594 = vdwg.mxu0
    %1595 = vmatprep.subr.mxu0 0.0
    %v1596 = vand.u32 %v814, 4294901760
    %1597 = vmatpush1.msra.mxu0 %v1596
    %1598 = vmatprep.subr.mxu0 0.0
    %v1599 = vand.u32 %v815, 4294901760
    %1600 = vmatpush1.msra.mxu0 %v1599
    %1601 = vmatprep.subr.mxu0 0.0
    %v1602 = vand.u32 %v816, 4294901760
    %1603 = vmatpush1.msra.mxu0 %v1602
    %1604 = vmatprep.subr.mxu0 0.0
    %v1605 = vand.u32 %v817, 4294901760
    %1606 = vmatpush1.msra.mxu0 %v1605
    %1607 = vmatprep.subr.mxu0 0.0
    %1608 = vmatpush1.msra.mxu0 0.0
    %1609 = vmatprep.subr.mxu0 0.0
    %1610 = vmatpush1.msra.mxu0 0.0
    %1611 = vmatprep.subr.mxu0 0.0
    %1612 = vmatpush1.msra.mxu0 0.0
    %1613 = vmatprep.subr.mxu0 0.0
    %1614 = vmatpush1.msra.mxu0 0.0
    %1615 = vmatprep.subr.mxu0 0.0
    %1616 = vmatpush1.msra.mxu0 0.0
    %1617 = vmatprep.subr.mxu0 0.0
    %1618 = vmatpush1.msra.mxu0 0.0
    %1619 = vmatprep.subr.mxu0 0.0
    %1620 = vmatpush1.msra.mxu0 0.0
    %1621 = vmatprep.subr.mxu0 0.0
    %1622 = vmatpush1.msra.mxu0 0.0
    %1623 = vmatprep.subr.mxu0 0.0
    %1624 = vmatpush1.msra.mxu0 0.0
    %1625 = vmatprep.subr.mxu0 0.0
    %1626 = vmatpush1.msra.mxu0 0.0
    %1627 = vmatprep.subr.mxu0 0.0
    %1628 = vmatpush1.msra.mxu0 0.0
    %1629 = vmatprep.subr.mxu0 0.0
    %1630 = vmatpush1.msra.mxu0 0.0
    %1631 = vmatprep.subr.mxu0 0.0
    %1632 = vmatpush1.msra.mxu0 0.0
    %1633 = vmatprep.subr.mxu0 0.0
    %1634 = vmatpush1.msra.mxu0 0.0
    %1635 = vmatprep.subr.mxu0 0.0
    %1636 = vmatpush1.msra.mxu0 0.0
    %1637 = vmatprep.subr.mxu0 0.0
    %1638 = vmatpush1.msra.mxu0 0.0
    %1639 = vmatprep.subr.mxu0 0.0
    %1640 = vmatpush1.msra.mxu0 0.0
    %1641 = vmatprep.subr.mxu0 0.0
    %1642 = vmatpush1.msra.mxu0 0.0
    %1643 = vmatprep.subr.mxu0 0.0
    %1644 = vmatpush1.msra.mxu0 0.0
    %1645 = vmatprep.subr.mxu0 0.0
    %1646 = vmatpush1.msra.mxu0 0.0
    %1647 = vmatprep.subr.mxu0 0.0
    %1648 = vmatpush1.msra.mxu0 0.0
    %1649 = vmatprep.subr.mxu0 0.0
    %1650 = vmatpush1.msra.mxu0 0.0
    %1651 = vmatprep.subr.mxu0 0.0
    %1652 = vmatpush1.msra.mxu0 0.0
    %1653 = vmatprep.subr.mxu0 0.0
    %1654 = vmatpush1.msra.mxu0 0.0
    %1655 = vmatprep.subr.mxu0 0.0
    %1656 = vmatpush1.msra.mxu0 0.0
    %1657 = vmatprep.subr.mxu0 0.0
    %1658 = vmatpush1.msra.mxu0 0.0
    %1659 = vmatprep.subr.mxu0 0.0
    %1660 = vmatpush1.msra.mxu0 0.0
    %1661 = vmatprep.subr.mxu0 0.0
    %1662 = vmatpush1.msra.mxu0 0.0
    %1663 = vmatprep.mubr.f32.mxu0 0.0
    %v1664 = vand.u32 %v1343, 4294901760
    %v1665 = vsub.f32 %v1343, %v1664
    %v1666 = vand.u32 %v1665, 4294901760
    %1667 = vmatmul.mubr.f32.gmra.mrb[0].mxu0 %v1666
    %v1668 = vpop.f32.mrb[0].mxu0
    %v1669 = vadd.f32 %v1592, %v1668
    %v1670 = vpop.f32.mrb[0].mxu0
    %1671 = vdwg.mxu0
    %1672 = vmatprep.subr.mxu0 0.0
    %v1673 = vand.u32 %v814, 4294901760
    %v1674 = vsub.f32 %v814, %v1673
    %v1675 = vand.u32 %v1674, 4294901760
    %1676 = vmatpush1.msra.mxu0 %v1675
    %1677 = vmatprep.subr.mxu0 0.0
    %v1678 = vand.u32 %v815, 4294901760
    %v1679 = vsub.f32 %v815, %v1678
    %v1680 = vand.u32 %v1679, 4294901760
    %1681 = vmatpush1.msra.mxu0 %v1680
    %1682 = vmatprep.subr.mxu0 0.0
    %v1683 = vand.u32 %v816, 4294901760
    %v1684 = vsub.f32 %v816, %v1683
    %v1685 = vand.u32 %v1684, 4294901760
    %1686 = vmatpush1.msra.mxu0 %v1685
    %1687 = vmatprep.subr.mxu0 0.0
    %v1688 = vand.u32 %v817, 4294901760
    %v1689 = vsub.f32 %v817, %v1688
    %v1690 = vand.u32 %v1689, 4294901760
    %1691 = vmatpush1.msra.mxu0 %v1690
    %1692 = vmatprep.subr.mxu0 0.0
    %1693 = vmatpush1.msra.mxu0 0.0
    %1694 = vmatprep.subr.mxu0 0.0
    %1695 = vmatpush1.msra.mxu0 0.0
    %1696 = vmatprep.subr.mxu0 0.0
    %1697 = vmatpush1.msra.mxu0 0.0
    %1698 = vmatprep.subr.mxu0 0.0
    %1699 = vmatpush1.msra.mxu0 0.0
    %1700 = vmatprep.subr.mxu0 0.0
    %1701 = vmatpush1.msra.mxu0 0.0
    %1702 = vmatprep.subr.mxu0 0.0
    %1703 = vmatpush1.msra.mxu0 0.0
    %1704 = vmatprep.subr.mxu0 0.0
    %1705 = vmatpush1.msra.mxu0 0.0
    %1706 = vmatprep.subr.mxu0 0.0
    %1707 = vmatpush1.msra.mxu0 0.0
    %1708 = vmatprep.subr.mxu0 0.0
    %1709 = vmatpush1.msra.mxu0 0.0
    %1710 = vmatprep.subr.mxu0 0.0
    %1711 = vmatpush1.msra.mxu0 0.0
    %1712 = vmatprep.subr.mxu0 0.0
    %1713 = vmatpush1.msra.mxu0 0.0
    %1714 = vmatprep.subr.mxu0 0.0
    %1715 = vmatpush1.msra.mxu0 0.0
    %1716 = vmatprep.subr.mxu0 0.0
    %1717 = vmatpush1.msra.mxu0 0.0
    %1718 = vmatprep.subr.mxu0 0.0
    %1719 = vmatpush1.msra.mxu0 0.0
    %1720 = vmatprep.subr.mxu0 0.0
    %1721 = vmatpush1.msra.mxu0 0.0
    %1722 = vmatprep.subr.mxu0 0.0
    %1723 = vmatpush1.msra.mxu0 0.0
    %1724 = vmatprep.subr.mxu0 0.0
    %1725 = vmatpush1.msra.mxu0 0.0
    %1726 = vmatprep.subr.mxu0 0.0
    %1727 = vmatpush1.msra.mxu0 0.0
    %1728 = vmatprep.subr.mxu0 0.0
    %1729 = vmatpush1.msra.mxu0 0.0
    %1730 = vmatprep.subr.mxu0 0.0
    %1731 = vmatpush1.msra.mxu0 0.0
    %1732 = vmatprep.subr.mxu0 0.0
    %1733 = vmatpush1.msra.mxu0 0.0
    %1734 = vmatprep.subr.mxu0 0.0
    %1735 = vmatpush1.msra.mxu0 0.0
    %1736 = vmatprep.subr.mxu0 0.0
    %1737 = vmatpush1.msra.mxu0 0.0
    %1738 = vmatprep.subr.mxu0 0.0
    %1739 = vmatpush1.msra.mxu0 0.0
    %1740 = vmatprep.subr.mxu0 0.0
    %1741 = vmatpush1.msra.mxu0 0.0
    %1742 = vmatprep.subr.mxu0 0.0
    %1743 = vmatpush1.msra.mxu0 0.0
    %1744 = vmatprep.subr.mxu0 0.0
    %1745 = vmatpush1.msra.mxu0 0.0
    %1746 = vmatprep.subr.mxu0 0.0
    %1747 = vmatpush1.msra.mxu0 0.0
    %1748 = vmatprep.mubr.f32.mxu0 0.0
    %v1749 = vand.u32 %v1343, 4294901760
    %1750 = vmatmul.mubr.f32.gmra.mrb[0].mxu0 %v1749
    %v1751 = vpop.f32.mrb[0].mxu0
    %v1752 = vadd.f32 %v1669, %v1751
    %v1753 = vpop.f32.mrb[0].mxu0
    %1754 = vdwg.mxu0
    %1755 = vmatprep.subr.mxu0 0.0
    %v1756 = vand.u32 %v814, 4294901760
    %1757 = vmatpush1.msra.mxu0 %v1756
    %1758 = vmatprep.subr.mxu0 0.0
    %v1759 = vand.u32 %v815, 4294901760
    %1760 = vmatpush1.msra.mxu0 %v1759
    %1761 = vmatprep.subr.mxu0 0.0
    %v1762 = vand.u32 %v816, 4294901760
    %1763 = vmatpush1.msra.mxu0 %v1762
    %1764 = vmatprep.subr.mxu0 0.0
    %v1765 = vand.u32 %v817, 4294901760
    %1766 = vmatpush1.msra.mxu0 %v1765
    %1767 = vmatprep.subr.mxu0 0.0
    %1768 = vmatpush1.msra.mxu0 0.0
    %1769 = vmatprep.subr.mxu0 0.0
    %1770 = vmatpush1.msra.mxu0 0.0
    %1771 = vmatprep.subr.mxu0 0.0
    %1772 = vmatpush1.msra.mxu0 0.0
    %1773 = vmatprep.subr.mxu0 0.0
    %1774 = vmatpush1.msra.mxu0 0.0
    %1775 = vmatprep.subr.mxu0 0.0
    %1776 = vmatpush1.msra.mxu0 0.0
    %1777 = vmatprep.subr.mxu0 0.0
    %1778 = vmatpush1.msra.mxu0 0.0
    %1779 = vmatprep.subr.mxu0 0.0
    %1780 = vmatpush1.msra.mxu0 0.0
    %1781 = vmatprep.subr.mxu0 0.0
    %1782 = vmatpush1.msra.mxu0 0.0
    %1783 = vmatprep.subr.mxu0 0.0
    %1784 = vmatpush1.msra.mxu0 0.0
    %1785 = vmatprep.subr.mxu0 0.0
    %1786 = vmatpush1.msra.mxu0 0.0
    %1787 = vmatprep.subr.mxu0 0.0
    %1788 = vmatpush1.msra.mxu0 0.0
    %1789 = vmatprep.subr.mxu0 0.0
    %1790 = vmatpush1.msra.mxu0 0.0
    %1791 = vmatprep.subr.mxu0 0.0
    %1792 = vmatpush1.msra.mxu0 0.0
    %1793 = vmatprep.subr.mxu0 0.0
    %1794 = vmatpush1.msra.mxu0 0.0
    %1795 = vmatprep.subr.mxu0 0.0
    %1796 = vmatpush1.msra.mxu0 0.0
    %1797 = vmatprep.subr.mxu0 0.0
    %1798 = vmatpush1.msra.mxu0 0.0
    %1799 = vmatprep.subr.mxu0 0.0
    %1800 = vmatpush1.msra.mxu0 0.0
    %1801 = vmatprep.subr.mxu0 0.0
    %1802 = vmatpush1.msra.mxu0 0.0
    %1803 = vmatprep.subr.mxu0 0.0
    %1804 = vmatpush1.msra.mxu0 0.0
    %1805 = vmatprep.subr.mxu0 0.0
    %1806 = vmatpush1.msra.mxu0 0.0
    %1807 = vmatprep.subr.mxu0 0.0
    %1808 = vmatpush1.msra.mxu0 0.0
    %1809 = vmatprep.subr.mxu0 0.0
    %1810 = vmatpush1.msra.mxu0 0.0
    %1811 = vmatprep.subr.mxu0 0.0
    %1812 = vmatpush1.msra.mxu0 0.0
    %1813 = vmatprep.subr.mxu0 0.0
    %1814 = vmatpush1.msra.mxu0 0.0
    %1815 = vmatprep.subr.mxu0 0.0
    %1816 = vmatpush1.msra.mxu0 0.0
    %1817 = vmatprep.subr.mxu0 0.0
    %1818 = vmatpush1.msra.mxu0 0.0
    %1819 = vmatprep.subr.mxu0 0.0
    %1820 = vmatpush1.msra.mxu0 0.0
    %1821 = vmatprep.subr.mxu0 0.0
    %1822 = vmatpush1.msra.mxu0 0.0
    %1823 = vmatprep.mubr.f32.mxu0 0.0
    %v1824 = vand.u32 %v1343, 4294901760
    %1825 = vmatmul.mubr.f32.gmra.mrb[0].mxu0 %v1824
    %v1826 = vpop.f32.mrb[0].mxu0
    %v1827 = vadd.f32 %v1752, %v1826
    %v1828 = vpop.f32.mrb[0].mxu0
    %1829 = vdwg.mxu0
    %v1830 = vadd.f32 %v781, %v1827
    %v1831 = vxor.u32 %v1830, 2147483648
    %v1832 = vmul.f32 %v1831, 1.442695
    %v1833 = vpow.pop %v1832
    %v1834 = vadd.f32 %v1833, 1.0
    %v1835 = vrcp.pop %v1834
    %v1836 = vmul.f32 1.0, %v1835
    %1838 = vrot.lane.b32.xlu0 %v1827, 64
    %v1839 = vpop.permute.xlu0 %1838
    %v1841 = vmul.f32 %v1836, %v1839
    %1843 = vrot.lane.b32.xlu0 %v1841, 64
    %v1844 = vpop.permute.xlu0 %1843
    %v1846 = vadd.f32 %v781, %v1844
    %v1847 = vtanh.pop %v1846
    %v1848 = vsub.f32 1.0, %v1836
    %1850 = vrot.lane.b32.xlu0 %v1847, 96
    %v1851 = vpop.permute.xlu0 %1850
    %v1853 = vmul.f32 %v1848, %v1851
    %v1854 = vmul.f32 %v1836, %v1339
    %v1855 = vadd.f32 %v1853, %v1854
    %1857 = vrot.lane.b32.xlu0 %v1855, 96
    %v1858 = vpop.permute.xlu0 %1857
    %v1859 = vsel %vm825, %v1858, 0
    %1861 = vmatprep.subr.mxu0 0.0
    %v1862 = vand.u32 %v814, 4294901760
    %1863 = vmatpush1.msra.mxu0 %v1862
    %1864 = vmatprep.subr.mxu0 0.0
    %v1865 = vand.u32 %v815, 4294901760
    %1866 = vmatpush1.msra.mxu0 %v1865
    %1867 = vmatprep.subr.mxu0 0.0
    %v1868 = vand.u32 %v816, 4294901760
    %1869 = vmatpush1.msra.mxu0 %v1868
    %1870 = vmatprep.subr.mxu0 0.0
    %v1871 = vand.u32 %v817, 4294901760
    %1872 = vmatpush1.msra.mxu0 %v1871
    %1873 = vmatprep.subr.mxu0 0.0
    %1874 = vmatpush1.msra.mxu0 0.0
    %1875 = vmatprep.subr.mxu0 0.0
    %1876 = vmatpush1.msra.mxu0 0.0
    %1877 = vmatprep.subr.mxu0 0.0
    %1878 = vmatpush1.msra.mxu0 0.0
    %1879 = vmatprep.subr.mxu0 0.0
    %1880 = vmatpush1.msra.mxu0 0.0
    %1881 = vmatprep.subr.mxu0 0.0
    %1882 = vmatpush1.msra.mxu0 0.0
    %1883 = vmatprep.subr.mxu0 0.0
    %1884 = vmatpush1.msra.mxu0 0.0
    %1885 = vmatprep.subr.mxu0 0.0
    %1886 = vmatpush1.msra.mxu0 0.0
    %1887 = vmatprep.subr.mxu0 0.0
    %1888 = vmatpush1.msra.mxu0 0.0
    %1889 = vmatprep.subr.mxu0 0.0
    %1890 = vmatpush1.msra.mxu0 0.0
    %1891 = vmatprep.subr.mxu0 0.0
    %1892 = vmatpush1.msra.mxu0 0.0
    %1893 = vmatprep.subr.mxu0 0.0
    %1894 = vmatpush1.msra.mxu0 0.0
    %1895 = vmatprep.subr.mxu0 0.0
    %1896 = vmatpush1.msra.mxu0 0.0
    %1897 = vmatprep.subr.mxu0 0.0
    %1898 = vmatpush1.msra.mxu0 0.0
    %1899 = vmatprep.subr.mxu0 0.0
    %1900 = vmatpush1.msra.mxu0 0.0
    %1901 = vmatprep.subr.mxu0 0.0
    %1902 = vmatpush1.msra.mxu0 0.0
    %1903 = vmatprep.subr.mxu0 0.0
    %1904 = vmatpush1.msra.mxu0 0.0
    %1905 = vmatprep.subr.mxu0 0.0
    %1906 = vmatpush1.msra.mxu0 0.0
    %1907 = vmatprep.subr.mxu0 0.0
    %1908 = vmatpush1.msra.mxu0 0.0
    %1909 = vmatprep.subr.mxu0 0.0
    %1910 = vmatpush1.msra.mxu0 0.0
    %1911 = vmatprep.subr.mxu0 0.0
    %1912 = vmatpush1.msra.mxu0 0.0
    %1913 = vmatprep.subr.mxu0 0.0
    %1914 = vmatpush1.msra.mxu0 0.0
    %1915 = vmatprep.subr.mxu0 0.0
    %1916 = vmatpush1.msra.mxu0 0.0
    %1917 = vmatprep.subr.mxu0 0.0
    %1918 = vmatpush1.msra.mxu0 0.0
    %1919 = vmatprep.subr.mxu0 0.0
    %1920 = vmatpush1.msra.mxu0 0.0
    %1921 = vmatprep.subr.mxu0 0.0
    %1922 = vmatpush1.msra.mxu0 0.0
    %1923 = vmatprep.subr.mxu0 0.0
    %1924 = vmatpush1.msra.mxu0 0.0
    %1925 = vmatprep.subr.mxu0 0.0
    %1926 = vmatpush1.msra.mxu0 0.0
    %1927 = vmatprep.subr.mxu0 0.0
    %1928 = vmatpush1.msra.mxu0 0.0
    %1929 = vmatprep.mubr.f32.mxu0 0.0
    %v1930 = vand.u32 %v1859, 4294901760
    %v1931 = vsub.f32 %v1859, %v1930
    %v1932 = vand.u32 %v1931, 4294901760
    %v1933 = vsub.f32 %v1931, %v1932
    %v1934 = vand.u32 %v1933, 4294901760
    %1935 = vmatmul.mubr.f32.gmra.mrb[0].mxu0 %v1934
    %v1936 = vpop.f32.mrb[0].mxu0
    %v1937 = vadd.f32 %v823, %v1936
    %v1938 = vpop.f32.mrb[0].mxu0
    %1939 = vdwg.mxu0
    %1940 = vmatprep.subr.mxu0 0.0
    %v1941 = vand.u32 %v814, 4294901760
    %v1942 = vsub.f32 %v814, %v1941
    %v1943 = vand.u32 %v1942, 4294901760
    %v1944 = vsub.f32 %v1942, %v1943
    %v1945 = vand.u32 %v1944, 4294901760
    %1946 = vmatpush1.msra.mxu0 %v1945
    %1947 = vmatprep.subr.mxu0 0.0
    %v1948 = vand.u32 %v815, 4294901760
    %v1949 = vsub.f32 %v815, %v1948
    %v1950 = vand.u32 %v1949, 4294901760
    %v1951 = vsub.f32 %v1949, %v1950
    %v1952 = vand.u32 %v1951, 4294901760
    %1953 = vmatpush1.msra.mxu0 %v1952
    %1954 = vmatprep.subr.mxu0 0.0
    %v1955 = vand.u32 %v816, 4294901760
    %v1956 = vsub.f32 %v816, %v1955
    %v1957 = vand.u32 %v1956, 4294901760
    %v1958 = vsub.f32 %v1956, %v1957
    %v1959 = vand.u32 %v1958, 4294901760
    %1960 = vmatpush1.msra.mxu0 %v1959
    %1961 = vmatprep.subr.mxu0 0.0
    %v1962 = vand.u32 %v817, 4294901760
    %v1963 = vsub.f32 %v817, %v1962
    %v1964 = vand.u32 %v1963, 4294901760
    %v1965 = vsub.f32 %v1963, %v1964
    %v1966 = vand.u32 %v1965, 4294901760
    %1967 = vmatpush1.msra.mxu0 %v1966
    %1968 = vmatprep.subr.mxu0 0.0
    %1969 = vmatpush1.msra.mxu0 0.0
    %1970 = vmatprep.subr.mxu0 0.0
    %1971 = vmatpush1.msra.mxu0 0.0
    %1972 = vmatprep.subr.mxu0 0.0
    %1973 = vmatpush1.msra.mxu0 0.0
    %1974 = vmatprep.subr.mxu0 0.0
    %1975 = vmatpush1.msra.mxu0 0.0
    %1976 = vmatprep.subr.mxu0 0.0
    %1977 = vmatpush1.msra.mxu0 0.0
    %1978 = vmatprep.subr.mxu0 0.0
    %1979 = vmatpush1.msra.mxu0 0.0
    %1980 = vmatprep.subr.mxu0 0.0
    %1981 = vmatpush1.msra.mxu0 0.0
    %1982 = vmatprep.subr.mxu0 0.0
    %1983 = vmatpush1.msra.mxu0 0.0
    %1984 = vmatprep.subr.mxu0 0.0
    %1985 = vmatpush1.msra.mxu0 0.0
    %1986 = vmatprep.subr.mxu0 0.0
    %1987 = vmatpush1.msra.mxu0 0.0
    %1988 = vmatprep.subr.mxu0 0.0
    %1989 = vmatpush1.msra.mxu0 0.0
    %1990 = vmatprep.subr.mxu0 0.0
    %1991 = vmatpush1.msra.mxu0 0.0
    %1992 = vmatprep.subr.mxu0 0.0
    %1993 = vmatpush1.msra.mxu0 0.0
    %1994 = vmatprep.subr.mxu0 0.0
    %1995 = vmatpush1.msra.mxu0 0.0
    %1996 = vmatprep.subr.mxu0 0.0
    %1997 = vmatpush1.msra.mxu0 0.0
    %1998 = vmatprep.subr.mxu0 0.0
    %1999 = vmatpush1.msra.mxu0 0.0
    %2000 = vmatprep.subr.mxu0 0.0
    %2001 = vmatpush1.msra.mxu0 0.0
    %2002 = vmatprep.subr.mxu0 0.0
    %2003 = vmatpush1.msra.mxu0 0.0
    %2004 = vmatprep.subr.mxu0 0.0
    %2005 = vmatpush1.msra.mxu0 0.0
    %2006 = vmatprep.subr.mxu0 0.0
    %2007 = vmatpush1.msra.mxu0 0.0
    %2008 = vmatprep.subr.mxu0 0.0
    %2009 = vmatpush1.msra.mxu0 0.0
    %2010 = vmatprep.subr.mxu0 0.0
    %2011 = vmatpush1.msra.mxu0 0.0
    %2012 = vmatprep.subr.mxu0 0.0
    %2013 = vmatpush1.msra.mxu0 0.0
    %2014 = vmatprep.subr.mxu0 0.0
    %2015 = vmatpush1.msra.mxu0 0.0
    %2016 = vmatprep.subr.mxu0 0.0
    %2017 = vmatpush1.msra.mxu0 0.0
    %2018 = vmatprep.subr.mxu0 0.0
    %2019 = vmatpush1.msra.mxu0 0.0
    %2020 = vmatprep.subr.mxu0 0.0
    %2021 = vmatpush1.msra.mxu0 0.0
    %2022 = vmatprep.subr.mxu0 0.0
    %2023 = vmatpush1.msra.mxu0 0.0
    %2024 = vmatprep.mubr.f32.mxu0 0.0
    %v2025 = vand.u32 %v1859, 4294901760
    %2026 = vmatmul.mubr.f32.gmra.mrb[0].mxu0 %v2025
    %v2027 = vpop.f32.mrb[0].mxu0
    %v2028 = vadd.f32 %v1937, %v2027
    %v2029 = vpop.f32.mrb[0].mxu0
    %2030 = vdwg.mxu0
    %2031 = vmatprep.subr.mxu0 0.0
    %v2032 = vand.u32 %v814, 4294901760
    %v2033 = vsub.f32 %v814, %v2032
    %2034 = vmatpush1.msra.mxu0 %v2033
    %2035 = vmatprep.subr.mxu0 0.0
    %v2036 = vand.u32 %v815, 4294901760
    %v2037 = vsub.f32 %v815, %v2036
    %2038 = vmatpush1.msra.mxu0 %v2037
    %2039 = vmatprep.subr.mxu0 0.0
    %v2040 = vand.u32 %v816, 4294901760
    %v2041 = vsub.f32 %v816, %v2040
    %2042 = vmatpush1.msra.mxu0 %v2041
    %2043 = vmatprep.subr.mxu0 0.0
    %v2044 = vand.u32 %v817, 4294901760
    %v2045 = vsub.f32 %v817, %v2044
    %2046 = vmatpush1.msra.mxu0 %v2045
    %2047 = vmatprep.subr.mxu0 0.0
    %2048 = vmatpush1.msra.mxu0 0.0
    %2049 = vmatprep.subr.mxu0 0.0
    %2050 = vmatpush1.msra.mxu0 0.0
    %2051 = vmatprep.subr.mxu0 0.0
    %2052 = vmatpush1.msra.mxu0 0.0
    %2053 = vmatprep.subr.mxu0 0.0
    %2054 = vmatpush1.msra.mxu0 0.0
    %2055 = vmatprep.subr.mxu0 0.0
    %2056 = vmatpush1.msra.mxu0 0.0
    %2057 = vmatprep.subr.mxu0 0.0
    %2058 = vmatpush1.msra.mxu0 0.0
    %2059 = vmatprep.subr.mxu0 0.0
    %2060 = vmatpush1.msra.mxu0 0.0
    %2061 = vmatprep.subr.mxu0 0.0
    %2062 = vmatpush1.msra.mxu0 0.0
    %2063 = vmatprep.subr.mxu0 0.0
    %2064 = vmatpush1.msra.mxu0 0.0
    %2065 = vmatprep.subr.mxu0 0.0
    %2066 = vmatpush1.msra.mxu0 0.0
    %2067 = vmatprep.subr.mxu0 0.0
    %2068 = vmatpush1.msra.mxu0 0.0
    %2069 = vmatprep.subr.mxu0 0.0
    %2070 = vmatpush1.msra.mxu0 0.0
    %2071 = vmatprep.subr.mxu0 0.0
    %2072 = vmatpush1.msra.mxu0 0.0
    %2073 = vmatprep.subr.mxu0 0.0
    %2074 = vmatpush1.msra.mxu0 0.0
    %2075 = vmatprep.subr.mxu0 0.0
    %2076 = vmatpush1.msra.mxu0 0.0
    %2077 = vmatprep.subr.mxu0 0.0
    %2078 = vmatpush1.msra.mxu0 0.0
    %2079 = vmatprep.subr.mxu0 0.0
    %2080 = vmatpush1.msra.mxu0 0.0
    %2081 = vmatprep.subr.mxu0 0.0
    %2082 = vmatpush1.msra.mxu0 0.0
    %2083 = vmatprep.subr.mxu0 0.0
    %2084 = vmatpush1.msra.mxu0 0.0
    %2085 = vmatprep.subr.mxu0 0.0
    %2086 = vmatpush1.msra.mxu0 0.0
    %2087 = vmatprep.subr.mxu0 0.0
    %2088 = vmatpush1.msra.mxu0 0.0
    %2089 = vmatprep.subr.mxu0 0.0
    %2090 = vmatpush1.msra.mxu0 0.0
    %2091 = vmatprep.subr.mxu0 0.0
    %2092 = vmatpush1.msra.mxu0 0.0
    %2093 = vmatprep.subr.mxu0 0.0
    %2094 = vmatpush1.msra.mxu0 0.0
    %2095 = vmatprep.subr.mxu0 0.0
    %2096 = vmatpush1.msra.mxu0 0.0
    %2097 = vmatprep.subr.mxu0 0.0
    %2098 = vmatpush1.msra.mxu0 0.0
    %2099 = vmatprep.subr.mxu0 0.0
    %2100 = vmatpush1.msra.mxu0 0.0
    %2101 = vmatprep.subr.mxu0 0.0
    %2102 = vmatpush1.msra.mxu0 0.0
    %2103 = vmatprep.mubr.f32.mxu0 0.0
    %v2104 = vand.u32 %v1859, 4294901760
    %v2105 = vsub.f32 %v1859, %v2104
    %2106 = vmatmul.mubr.f32.gmra.mrb[0].mxu0 %v2105
    %v2107 = vpop.f32.mrb[0].mxu0
    %v2108 = vadd.f32 %v2028, %v2107
    %v2109 = vpop.f32.mrb[0].mxu0
    %2110 = vdwg.mxu0
    %2111 = vmatprep.subr.mxu0 0.0
    %v2112 = vand.u32 %v814, 4294901760
    %2113 = vmatpush1.msra.mxu0 %v2112
    %2114 = vmatprep.subr.mxu0 0.0
    %v2115 = vand.u32 %v815, 4294901760
    %2116 = vmatpush1.msra.mxu0 %v2115
    %2117 = vmatprep.subr.mxu0 0.0
    %v2118 = vand.u32 %v816, 4294901760
    %2119 = vmatpush1.msra.mxu0 %v2118
    %2120 = vmatprep.subr.mxu0 0.0
    %v2121 = vand.u32 %v817, 4294901760
    %2122 = vmatpush1.msra.mxu0 %v2121
    %2123 = vmatprep.subr.mxu0 0.0
    %2124 = vmatpush1.msra.mxu0 0.0
    %2125 = vmatprep.subr.mxu0 0.0
    %2126 = vmatpush1.msra.mxu0 0.0
    %2127 = vmatprep.subr.mxu0 0.0
    %2128 = vmatpush1.msra.mxu0 0.0
    %2129 = vmatprep.subr.mxu0 0.0
    %2130 = vmatpush1.msra.mxu0 0.0
    %2131 = vmatprep.subr.mxu0 0.0
    %2132 = vmatpush1.msra.mxu0 0.0
    %2133 = vmatprep.subr.mxu0 0.0
    %2134 = vmatpush1.msra.mxu0 0.0
    %2135 = vmatprep.subr.mxu0 0.0
    %2136 = vmatpush1.msra.mxu0 0.0
    %2137 = vmatprep.subr.mxu0 0.0
    %2138 = vmatpush1.msra.mxu0 0.0
    %2139 = vmatprep.subr.mxu0 0.0
    %2140 = vmatpush1.msra.mxu0 0.0
    %2141 = vmatprep.subr.mxu0 0.0
    %2142 = vmatpush1.msra.mxu0 0.0
    %2143 = vmatprep.subr.mxu0 0.0
    %2144 = vmatpush1.msra.mxu0 0.0
    %2145 = vmatprep.subr.mxu0 0.0
    %2146 = vmatpush1.msra.mxu0 0.0
    %2147 = vmatprep.subr.mxu0 0.0
    %2148 = vmatpush1.msra.mxu0 0.0
    %2149 = vmatprep.subr.mxu0 0.0
    %2150 = vmatpush1.msra.mxu0 0.0
    %2151 = vmatprep.subr.mxu0 0.0
    %2152 = vmatpush1.msra.mxu0 0.0
    %2153 = vmatprep.subr.mxu0 0.0
    %2154 = vmatpush1.msra.mxu0 0.0
    %2155 = vmatprep.subr.mxu0 0.0
    %2156 = vmatpush1.msra.mxu0 0.0
    %2157 = vmatprep.subr.mxu0 0.0
    %2158 = vmatpush1.msra.mxu0 0.0
    %2159 = vmatprep.subr.mxu0 0.0
    %2160 = vmatpush1.msra.mxu0 0.0
    %2161 = vmatprep.subr.mxu0 0.0
    %2162 = vmatpush1.msra.mxu0 0.0
    %2163 = vmatprep.subr.mxu0 0.0
    %2164 = vmatpush1.msra.mxu0 0.0
    %2165 = vmatprep.subr.mxu0 0.0
    %2166 = vmatpush1.msra.mxu0 0.0
    %2167 = vmatprep.subr.mxu0 0.0
    %2168 = vmatpush1.msra.mxu0 0.0
    %2169 = vmatprep.subr.mxu0 0.0
    %2170 = vmatpush1.msra.mxu0 0.0
    %2171 = vmatprep.subr.mxu0 0.0
    %2172 = vmatpush1.msra.mxu0 0.0
    %2173 = vmatprep.subr.mxu0 0.0
    %2174 = vmatpush1.msra.mxu0 0.0
    %2175 = vmatprep.subr.mxu0 0.0
    %2176 = vmatpush1.msra.mxu0 0.0
    %2177 = vmatprep.subr.mxu0 0.0
    %2178 = vmatpush1.msra.mxu0 0.0
    %2179 = vmatprep.mubr.f32.mxu0 0.0
    %v2180 = vand.u32 %v1859, 4294901760
    %v2181 = vsub.f32 %v1859, %v2180
    %v2182 = vand.u32 %v2181, 4294901760
    %2183 = vmatmul.mubr.f32.gmra.mrb[0].mxu0 %v2182
    %v2184 = vpop.f32.mrb[0].mxu0
    %v2185 = vadd.f32 %v2108, %v2184
    %v2186 = vpop.f32.mrb[0].mxu0
    %2187 = vdwg.mxu0
    %2188 = vmatprep.subr.mxu0 0.0
    %v2189 = vand.u32 %v814, 4294901760
    %v2190 = vsub.f32 %v814, %v2189
    %v2191 = vand.u32 %v2190, 4294901760
    %2192 = vmatpush1.msra.mxu0 %v2191
    %2193 = vmatprep.subr.mxu0 0.0
    %v2194 = vand.u32 %v815, 4294901760
    %v2195 = vsub.f32 %v815, %v2194
    %v2196 = vand.u32 %v2195, 4294901760
    %2197 = vmatpush1.msra.mxu0 %v2196
    %2198 = vmatprep.subr.mxu0 0.0
    %v2199 = vand.u32 %v816, 4294901760
    %v2200 = vsub.f32 %v816, %v2199
    %v2201 = vand.u32 %v2200, 4294901760
    %2202 = vmatpush1.msra.mxu0 %v2201
    %2203 = vmatprep.subr.mxu0 0.0
    %v2204 = vand.u32 %v817, 4294901760
    %v2205 = vsub.f32 %v817, %v2204
    %v2206 = vand.u32 %v2205, 4294901760
    %2207 = vmatpush1.msra.mxu0 %v2206
    %2208 = vmatprep.subr.mxu0 0.0
    %2209 = vmatpush1.msra.mxu0 0.0
    %2210 = vmatprep.subr.mxu0 0.0
    %2211 = vmatpush1.msra.mxu0 0.0
    %2212 = vmatprep.subr.mxu0 0.0
    %2213 = vmatpush1.msra.mxu0 0.0
    %2214 = vmatprep.subr.mxu0 0.0
    %2215 = vmatpush1.msra.mxu0 0.0
    %2216 = vmatprep.subr.mxu0 0.0
    %2217 = vmatpush1.msra.mxu0 0.0
    %2218 = vmatprep.subr.mxu0 0.0
    %2219 = vmatpush1.msra.mxu0 0.0
    %2220 = vmatprep.subr.mxu0 0.0
    %2221 = vmatpush1.msra.mxu0 0.0
    %2222 = vmatprep.subr.mxu0 0.0
    %2223 = vmatpush1.msra.mxu0 0.0
    %2224 = vmatprep.subr.mxu0 0.0
    %2225 = vmatpush1.msra.mxu0 0.0
    %2226 = vmatprep.subr.mxu0 0.0
    %2227 = vmatpush1.msra.mxu0 0.0
    %2228 = vmatprep.subr.mxu0 0.0
    %2229 = vmatpush1.msra.mxu0 0.0
    %2230 = vmatprep.subr.mxu0 0.0
    %2231 = vmatpush1.msra.mxu0 0.0
    %2232 = vmatprep.subr.mxu0 0.0
    %2233 = vmatpush1.msra.mxu0 0.0
    %2234 = vmatprep.subr.mxu0 0.0
    %2235 = vmatpush1.msra.mxu0 0.0
    %2236 = vmatprep.subr.mxu0 0.0
    %2237 = vmatpush1.msra.mxu0 0.0
    %2238 = vmatprep.subr.mxu0 0.0
    %2239 = vmatpush1.msra.mxu0 0.0
    %2240 = vmatprep.subr.mxu0 0.0
    %2241 = vmatpush1.msra.mxu0 0.0
    %2242 = vmatprep.subr.mxu0 0.0
    %2243 = vmatpush1.msra.mxu0 0.0
    %2244 = vmatprep.subr.mxu0 0.0
    %2245 = vmatpush1.msra.mxu0 0.0
    %2246 = vmatprep.subr.mxu0 0.0
    %2247 = vmatpush1.msra.mxu0 0.0
    %2248 = vmatprep.subr.mxu0 0.0
    %2249 = vmatpush1.msra.mxu0 0.0
    %2250 = vmatprep.subr.mxu0 0.0
    %2251 = vmatpush1.msra.mxu0 0.0
    %2252 = vmatprep.subr.mxu0 0.0
    %2253 = vmatpush1.msra.mxu0 0.0
    %2254 = vmatprep.subr.mxu0 0.0
    %2255 = vmatpush1.msra.mxu0 0.0
    %2256 = vmatprep.subr.mxu0 0.0
    %2257 = vmatpush1.msra.mxu0 0.0
    %2258 = vmatprep.subr.mxu0 0.0
    %2259 = vmatpush1.msra.mxu0 0.0
    %2260 = vmatprep.subr.mxu0 0.0
    %2261 = vmatpush1.msra.mxu0 0.0
    %2262 = vmatprep.subr.mxu0 0.0
    %2263 = vmatpush1.msra.mxu0 0.0
    %2264 = vmatprep.mubr.f32.mxu0 0.0
    %v2265 = vand.u32 %v1859, 4294901760
    %2266 = vmatmul.mubr.f32.gmra.mrb[0].mxu0 %v2265
    %v2267 = vpop.f32.mrb[0].mxu0
    %v2268 = vadd.f32 %v2185, %v2267
    %v2269 = vpop.f32.mrb[0].mxu0
    %2270 = vdwg.mxu0
    %2271 = vmatprep.subr.mxu0 0.0
    %v2272 = vand.u32 %v814, 4294901760
    %2273 = vmatpush1.msra.mxu0 %v2272
    %2274 = vmatprep.subr.mxu0 0.0
    %v2275 = vand.u32 %v815, 4294901760
    %2276 = vmatpush1.msra.mxu0 %v2275
    %2277 = vmatprep.subr.mxu0 0.0
    %v2278 = vand.u32 %v816, 4294901760
    %2279 = vmatpush1.msra.mxu0 %v2278
    %2280 = vmatprep.subr.mxu0 0.0
    %v2281 = vand.u32 %v817, 4294901760
    %2282 = vmatpush1.msra.mxu0 %v2281
    %2283 = vmatprep.subr.mxu0 0.0
    %2284 = vmatpush1.msra.mxu0 0.0
    %2285 = vmatprep.subr.mxu0 0.0
    %2286 = vmatpush1.msra.mxu0 0.0
    %2287 = vmatprep.subr.mxu0 0.0
    %2288 = vmatpush1.msra.mxu0 0.0
    %2289 = vmatprep.subr.mxu0 0.0
    %2290 = vmatpush1.msra.mxu0 0.0
    %2291 = vmatprep.subr.mxu0 0.0
    %2292 = vmatpush1.msra.mxu0 0.0
    %2293 = vmatprep.subr.mxu0 0.0
    %2294 = vmatpush1.msra.mxu0 0.0
    %2295 = vmatprep.subr.mxu0 0.0
    %2296 = vmatpush1.msra.mxu0 0.0
    %2297 = vmatprep.subr.mxu0 0.0
    %2298 = vmatpush1.msra.mxu0 0.0
    %2299 = vmatprep.subr.mxu0 0.0
    %2300 = vmatpush1.msra.mxu0 0.0
    %2301 = vmatprep.subr.mxu0 0.0
    %2302 = vmatpush1.msra.mxu0 0.0
    %2303 = vmatprep.subr.mxu0 0.0
    %2304 = vmatpush1.msra.mxu0 0.0
    %2305 = vmatprep.subr.mxu0 0.0
    %2306 = vmatpush1.msra.mxu0 0.0
    %2307 = vmatprep.subr.mxu0 0.0
    %2308 = vmatpush1.msra.mxu0 0.0
    %2309 = vmatprep.subr.mxu0 0.0
    %2310 = vmatpush1.msra.mxu0 0.0
    %2311 = vmatprep.subr.mxu0 0.0
    %2312 = vmatpush1.msra.mxu0 0.0
    %2313 = vmatprep.subr.mxu0 0.0
    %2314 = vmatpush1.msra.mxu0 0.0
    %2315 = vmatprep.subr.mxu0 0.0
    %2316 = vmatpush1.msra.mxu0 0.0
    %2317 = vmatprep.subr.mxu0 0.0
    %2318 = vmatpush1.msra.mxu0 0.0
    %2319 = vmatprep.subr.mxu0 0.0
    %2320 = vmatpush1.msra.mxu0 0.0
    %2321 = vmatprep.subr.mxu0 0.0
    %2322 = vmatpush1.msra.mxu0 0.0
    %2323 = vmatprep.subr.mxu0 0.0
    %2324 = vmatpush1.msra.mxu0 0.0
    %2325 = vmatprep.subr.mxu0 0.0
    %2326 = vmatpush1.msra.mxu0 0.0
    %2327 = vmatprep.subr.mxu0 0.0
    %2328 = vmatpush1.msra.mxu0 0.0
    %2329 = vmatprep.subr.mxu0 0.0
    %2330 = vmatpush1.msra.mxu0 0.0
    %2331 = vmatprep.subr.mxu0 0.0
    %2332 = vmatpush1.msra.mxu0 0.0
    %2333 = vmatprep.subr.mxu0 0.0
    %2334 = vmatpush1.msra.mxu0 0.0
    %2335 = vmatprep.subr.mxu0 0.0
    %2336 = vmatpush1.msra.mxu0 0.0
    %2337 = vmatprep.subr.mxu0 0.0
    %2338 = vmatpush1.msra.mxu0 0.0
    %2339 = vmatprep.mubr.f32.mxu0 0.0
    %v2340 = vand.u32 %v1859, 4294901760
    %2341 = vmatmul.mubr.f32.gmra.mrb[0].mxu0 %v2340
    %v2342 = vpop.f32.mrb[0].mxu0
    %v2343 = vadd.f32 %v2268, %v2342
    %v2344 = vpop.f32.mrb[0].mxu0
    %2345 = vdwg.mxu0
    %v2346 = vadd.f32 %v787, %v2343
    %v2347 = vxor.u32 %v2346, 2147483648
    %v2348 = vmul.f32 %v2347, 1.442695
    %v2349 = vpow.pop %v2348
    %v2350 = vadd.f32 %v2349, 1.0
    %v2351 = vrcp.pop %v2350
    %v2352 = vmul.f32 1.0, %v2351
    %2354 = vrot.lane.b32.xlu0 %v2343, 64
    %v2355 = vpop.permute.xlu0 %2354
    %v2357 = vmul.f32 %v2352, %v2355
    %2359 = vrot.lane.b32.xlu0 %v2357, 64
    %v2360 = vpop.permute.xlu0 %2359
    %v2362 = vadd.f32 %v787, %v2360
    %v2363 = vtanh.pop %v2362
    %v2364 = vsub.f32 1.0, %v2352
    %2366 = vrot.lane.b32.xlu0 %v2363, 96
    %v2367 = vpop.permute.xlu0 %2366
    %v2369 = vmul.f32 %v2364, %v2367
    %v2370 = vmul.f32 %v2352, %v1855
    %v2371 = vadd.f32 %v2369, %v2370
    %2373 = vrot.lane.b32.xlu0 %v2371, 96
    %v2374 = vpop.permute.xlu0 %2373
    %v2375 = vsel %vm825, %v2374, 0
    %2377 = vmatprep.subr.mxu0 0.0
    %v2378 = vand.u32 %v814, 4294901760
    %2379 = vmatpush1.msra.mxu0 %v2378
    %2380 = vmatprep.subr.mxu0 0.0
    %v2381 = vand.u32 %v815, 4294901760
    %2382 = vmatpush1.msra.mxu0 %v2381
    %2383 = vmatprep.subr.mxu0 0.0
    %v2384 = vand.u32 %v816, 4294901760
    %2385 = vmatpush1.msra.mxu0 %v2384
    %2386 = vmatprep.subr.mxu0 0.0
    %v2387 = vand.u32 %v817, 4294901760
    %2388 = vmatpush1.msra.mxu0 %v2387
    %2389 = vmatprep.subr.mxu0 0.0
    %2390 = vmatpush1.msra.mxu0 0.0
    %2391 = vmatprep.subr.mxu0 0.0
    %2392 = vmatpush1.msra.mxu0 0.0
    %2393 = vmatprep.subr.mxu0 0.0
    %2394 = vmatpush1.msra.mxu0 0.0
    %2395 = vmatprep.subr.mxu0 0.0
    %2396 = vmatpush1.msra.mxu0 0.0
    %2397 = vmatprep.subr.mxu0 0.0
    %2398 = vmatpush1.msra.mxu0 0.0
    %2399 = vmatprep.subr.mxu0 0.0
    %2400 = vmatpush1.msra.mxu0 0.0
    %2401 = vmatprep.subr.mxu0 0.0
    %2402 = vmatpush1.msra.mxu0 0.0
    %2403 = vmatprep.subr.mxu0 0.0
    %2404 = vmatpush1.msra.mxu0 0.0
    %2405 = vmatprep.subr.mxu0 0.0
    %2406 = vmatpush1.msra.mxu0 0.0
    %2407 = vmatprep.subr.mxu0 0.0
    %2408 = vmatpush1.msra.mxu0 0.0
    %2409 = vmatprep.subr.mxu0 0.0
    %2410 = vmatpush1.msra.mxu0 0.0
    %2411 = vmatprep.subr.mxu0 0.0
    %2412 = vmatpush1.msra.mxu0 0.0
    %2413 = vmatprep.subr.mxu0 0.0
    %2414 = vmatpush1.msra.mxu0 0.0
    %2415 = vmatprep.subr.mxu0 0.0
    %2416 = vmatpush1.msra.mxu0 0.0
    %2417 = vmatprep.subr.mxu0 0.0
    %2418 = vmatpush1.msra.mxu0 0.0
    %2419 = vmatprep.subr.mxu0 0.0
    %2420 = vmatpush1.msra.mxu0 0.0
    %2421 = vmatprep.subr.mxu0 0.0
    %2422 = vmatpush1.msra.mxu0 0.0
    %2423 = vmatprep.subr.mxu0 0.0
    %2424 = vmatpush1.msra.mxu0 0.0
    %2425 = vmatprep.subr.mxu0 0.0
    %2426 = vmatpush1.msra.mxu0 0.0
    %2427 = vmatprep.subr.mxu0 0.0
    %2428 = vmatpush1.msra.mxu0 0.0
    %2429 = vmatprep.subr.mxu0 0.0
    %2430 = vmatpush1.msra.mxu0 0.0
    %2431 = vmatprep.subr.mxu0 0.0
    %2432 = vmatpush1.msra.mxu0 0.0
    %2433 = vmatprep.subr.mxu0 0.0
    %2434 = vmatpush1.msra.mxu0 0.0
    %2435 = vmatprep.subr.mxu0 0.0
    %2436 = vmatpush1.msra.mxu0 0.0
    %2437 = vmatprep.subr.mxu0 0.0
    %2438 = vmatpush1.msra.mxu0 0.0
    %2439 = vmatprep.subr.mxu0 0.0
    %2440 = vmatpush1.msra.mxu0 0.0
    %2441 = vmatprep.subr.mxu0 0.0
    %2442 = vmatpush1.msra.mxu0 0.0
    %2443 = vmatprep.subr.mxu0 0.0
    %2444 = vmatpush1.msra.mxu0 0.0
    %2445 = vmatprep.mubr.f32.mxu0 0.0
    %v2446 = vand.u32 %v2375, 4294901760
    %v2447 = vsub.f32 %v2375, %v2446
    %v2448 = vand.u32 %v2447, 4294901760
    %v2449 = vsub.f32 %v2447, %v2448
    %v2450 = vand.u32 %v2449, 4294901760
    %2451 = vmatmul.mubr.f32.gmra.mrb[0].mxu0 %v2450
    %v2452 = vpop.f32.mrb[0].mxu0
    %v2453 = vadd.f32 %v823, %v2452
    %v2454 = vpop.f32.mrb[0].mxu0
    %2455 = vdwg.mxu0
    %2456 = vmatprep.subr.mxu0 0.0
    %v2457 = vand.u32 %v814, 4294901760
    %v2458 = vsub.f32 %v814, %v2457
    %v2459 = vand.u32 %v2458, 4294901760
    %v2460 = vsub.f32 %v2458, %v2459
    %v2461 = vand.u32 %v2460, 4294901760
    %2462 = vmatpush1.msra.mxu0 %v2461
    %2463 = vmatprep.subr.mxu0 0.0
    %v2464 = vand.u32 %v815, 4294901760
    %v2465 = vsub.f32 %v815, %v2464
    %v2466 = vand.u32 %v2465, 4294901760
    %v2467 = vsub.f32 %v2465, %v2466
    %v2468 = vand.u32 %v2467, 4294901760
    %2469 = vmatpush1.msra.mxu0 %v2468
    %2470 = vmatprep.subr.mxu0 0.0
    %v2471 = vand.u32 %v816, 4294901760
    %v2472 = vsub.f32 %v816, %v2471
    %v2473 = vand.u32 %v2472, 4294901760
    %v2474 = vsub.f32 %v2472, %v2473
    %v2475 = vand.u32 %v2474, 4294901760
    %2476 = vmatpush1.msra.mxu0 %v2475
    %2477 = vmatprep.subr.mxu0 0.0
    %v2478 = vand.u32 %v817, 4294901760
    %v2479 = vsub.f32 %v817, %v2478
    %v2480 = vand.u32 %v2479, 4294901760
    %v2481 = vsub.f32 %v2479, %v2480
    %v2482 = vand.u32 %v2481, 4294901760
    %2483 = vmatpush1.msra.mxu0 %v2482
    %2484 = vmatprep.subr.mxu0 0.0
    %2485 = vmatpush1.msra.mxu0 0.0
    %2486 = vmatprep.subr.mxu0 0.0
    %2487 = vmatpush1.msra.mxu0 0.0
    %2488 = vmatprep.subr.mxu0 0.0
    %2489 = vmatpush1.msra.mxu0 0.0
    %2490 = vmatprep.subr.mxu0 0.0
    %2491 = vmatpush1.msra.mxu0 0.0
    %2492 = vmatprep.subr.mxu0 0.0
    %2493 = vmatpush1.msra.mxu0 0.0
    %2494 = vmatprep.subr.mxu0 0.0
    %2495 = vmatpush1.msra.mxu0 0.0
    %2496 = vmatprep.subr.mxu0 0.0
    %2497 = vmatpush1.msra.mxu0 0.0
    %2498 = vmatprep.subr.mxu0 0.0
    %2499 = vmatpush1.msra.mxu0 0.0
    %2500 = vmatprep.subr.mxu0 0.0
    %2501 = vmatpush1.msra.mxu0 0.0
    %2502 = vmatprep.subr.mxu0 0.0
    %2503 = vmatpush1.msra.mxu0 0.0
    %2504 = vmatprep.subr.mxu0 0.0
    %2505 = vmatpush1.msra.mxu0 0.0
    %2506 = vmatprep.subr.mxu0 0.0
    %2507 = vmatpush1.msra.mxu0 0.0
    %2508 = vmatprep.subr.mxu0 0.0
    %2509 = vmatpush1.msra.mxu0 0.0
    %2510 = vmatprep.subr.mxu0 0.0
    %2511 = vmatpush1.msra.mxu0 0.0
    %2512 = vmatprep.subr.mxu0 0.0
    %2513 = vmatpush1.msra.mxu0 0.0
    %2514 = vmatprep.subr.mxu0 0.0
    %2515 = vmatpush1.msra.mxu0 0.0
    %2516 = vmatprep.subr.mxu0 0.0
    %2517 = vmatpush1.msra.mxu0 0.0
    %2518 = vmatprep.subr.mxu0 0.0
    %2519 = vmatpush1.msra.mxu0 0.0
    %2520 = vmatprep.subr.mxu0 0.0
    %2521 = vmatpush1.msra.mxu0 0.0
    %2522 = vmatprep.subr.mxu0 0.0
    %2523 = vmatpush1.msra.mxu0 0.0
    %2524 = vmatprep.subr.mxu0 0.0
    %2525 = vmatpush1.msra.mxu0 0.0
    %2526 = vmatprep.subr.mxu0 0.0
    %2527 = vmatpush1.msra.mxu0 0.0
    %2528 = vmatprep.subr.mxu0 0.0
    %2529 = vmatpush1.msra.mxu0 0.0
    %2530 = vmatprep.subr.mxu0 0.0
    %2531 = vmatpush1.msra.mxu0 0.0
    %2532 = vmatprep.subr.mxu0 0.0
    %2533 = vmatpush1.msra.mxu0 0.0
    %2534 = vmatprep.subr.mxu0 0.0
    %2535 = vmatpush1.msra.mxu0 0.0
    %2536 = vmatprep.subr.mxu0 0.0
    %2537 = vmatpush1.msra.mxu0 0.0
    %2538 = vmatprep.subr.mxu0 0.0
    %2539 = vmatpush1.msra.mxu0 0.0
    %2540 = vmatprep.mubr.f32.mxu0 0.0
    %v2541 = vand.u32 %v2375, 4294901760
    %2542 = vmatmul.mubr.f32.gmra.mrb[0].mxu0 %v2541
    %v2543 = vpop.f32.mrb[0].mxu0
    %v2544 = vadd.f32 %v2453, %v2543
    %v2545 = vpop.f32.mrb[0].mxu0
    %2546 = vdwg.mxu0
    %2547 = vmatprep.subr.mxu0 0.0
    %v2548 = vand.u32 %v814, 4294901760
    %v2549 = vsub.f32 %v814, %v2548
    %2550 = vmatpush1.msra.mxu0 %v2549
    %2551 = vmatprep.subr.mxu0 0.0
    %v2552 = vand.u32 %v815, 4294901760
    %v2553 = vsub.f32 %v815, %v2552
    %2554 = vmatpush1.msra.mxu0 %v2553
    %2555 = vmatprep.subr.mxu0 0.0
    %v2556 = vand.u32 %v816, 4294901760
    %v2557 = vsub.f32 %v816, %v2556
    %2558 = vmatpush1.msra.mxu0 %v2557
    %2559 = vmatprep.subr.mxu0 0.0
    %v2560 = vand.u32 %v817, 4294901760
    %v2561 = vsub.f32 %v817, %v2560
    %2562 = vmatpush1.msra.mxu0 %v2561
    %2563 = vmatprep.subr.mxu0 0.0
    %2564 = vmatpush1.msra.mxu0 0.0
    %2565 = vmatprep.subr.mxu0 0.0
    %2566 = vmatpush1.msra.mxu0 0.0
    %2567 = vmatprep.subr.mxu0 0.0
    %2568 = vmatpush1.msra.mxu0 0.0
    %2569 = vmatprep.subr.mxu0 0.0
    %2570 = vmatpush1.msra.mxu0 0.0
    %2571 = vmatprep.subr.mxu0 0.0
    %2572 = vmatpush1.msra.mxu0 0.0
    %2573 = vmatprep.subr.mxu0 0.0
    %2574 = vmatpush1.msra.mxu0 0.0
    %2575 = vmatprep.subr.mxu0 0.0
    %2576 = vmatpush1.msra.mxu0 0.0
    %2577 = vmatprep.subr.mxu0 0.0
    %2578 = vmatpush1.msra.mxu0 0.0
    %2579 = vmatprep.subr.mxu0 0.0
    %2580 = vmatpush1.msra.mxu0 0.0
    %2581 = vmatprep.subr.mxu0 0.0
    %2582 = vmatpush1.msra.mxu0 0.0
    %2583 = vmatprep.subr.mxu0 0.0
    %2584 = vmatpush1.msra.mxu0 0.0
    %2585 = vmatprep.subr.mxu0 0.0
    %2586 = vmatpush1.msra.mxu0 0.0
    %2587 = vmatprep.subr.mxu0 0.0
    %2588 = vmatpush1.msra.mxu0 0.0
    %2589 = vmatprep.subr.mxu0 0.0
    %2590 = vmatpush1.msra.mxu0 0.0
    %2591 = vmatprep.subr.mxu0 0.0
    %2592 = vmatpush1.msra.mxu0 0.0
    %2593 = vmatprep.subr.mxu0 0.0
    %2594 = vmatpush1.msra.mxu0 0.0
    %2595 = vmatprep.subr.mxu0 0.0
    %2596 = vmatpush1.msra.mxu0 0.0
    %2597 = vmatprep.subr.mxu0 0.0
    %2598 = vmatpush1.msra.mxu0 0.0
    %2599 = vmatprep.subr.mxu0 0.0
    %2600 = vmatpush1.msra.mxu0 0.0
    %2601 = vmatprep.subr.mxu0 0.0
    %2602 = vmatpush1.msra.mxu0 0.0
    %2603 = vmatprep.subr.mxu0 0.0
    %2604 = vmatpush1.msra.mxu0 0.0
    %2605 = vmatprep.subr.mxu0 0.0
    %2606 = vmatpush1.msra.mxu0 0.0
    %2607 = vmatprep.subr.mxu0 0.0
    %2608 = vmatpush1.msra.mxu0 0.0
    %2609 = vmatprep.subr.mxu0 0.0
    %2610 = vmatpush1.msra.mxu0 0.0
    %2611 = vmatprep.subr.mxu0 0.0
    %2612 = vmatpush1.msra.mxu0 0.0
    %2613 = vmatprep.subr.mxu0 0.0
    %2614 = vmatpush1.msra.mxu0 0.0
    %2615 = vmatprep.subr.mxu0 0.0
    %2616 = vmatpush1.msra.mxu0 0.0
    %2617 = vmatprep.subr.mxu0 0.0
    %2618 = vmatpush1.msra.mxu0 0.0
    %2619 = vmatprep.mubr.f32.mxu0 0.0
    %v2620 = vand.u32 %v2375, 4294901760
    %v2621 = vsub.f32 %v2375, %v2620
    %2622 = vmatmul.mubr.f32.gmra.mrb[0].mxu0 %v2621
    %v2623 = vpop.f32.mrb[0].mxu0
    %v2624 = vadd.f32 %v2544, %v2623
    %v2625 = vpop.f32.mrb[0].mxu0
    %2626 = vdwg.mxu0
    %2627 = vmatprep.subr.mxu0 0.0
    %v2628 = vand.u32 %v814, 4294901760
    %2629 = vmatpush1.msra.mxu0 %v2628
    %2630 = vmatprep.subr.mxu0 0.0
    %v2631 = vand.u32 %v815, 4294901760
    %2632 = vmatpush1.msra.mxu0 %v2631
    %2633 = vmatprep.subr.mxu0 0.0
    %v2634 = vand.u32 %v816, 4294901760
    %2635 = vmatpush1.msra.mxu0 %v2634
    %2636 = vmatprep.subr.mxu0 0.0
    %v2637 = vand.u32 %v817, 4294901760
    %2638 = vmatpush1.msra.mxu0 %v2637
    %2639 = vmatprep.subr.mxu0 0.0
    %2640 = vmatpush1.msra.mxu0 0.0
    %2641 = vmatprep.subr.mxu0 0.0
    %2642 = vmatpush1.msra.mxu0 0.0
    %2643 = vmatprep.subr.mxu0 0.0
    %2644 = vmatpush1.msra.mxu0 0.0
    %2645 = vmatprep.subr.mxu0 0.0
    %2646 = vmatpush1.msra.mxu0 0.0
    %2647 = vmatprep.subr.mxu0 0.0
    %2648 = vmatpush1.msra.mxu0 0.0
    %2649 = vmatprep.subr.mxu0 0.0
    %2650 = vmatpush1.msra.mxu0 0.0
    %2651 = vmatprep.subr.mxu0 0.0
    %2652 = vmatpush1.msra.mxu0 0.0
    %2653 = vmatprep.subr.mxu0 0.0
    %2654 = vmatpush1.msra.mxu0 0.0
    %2655 = vmatprep.subr.mxu0 0.0
    %2656 = vmatpush1.msra.mxu0 0.0
    %2657 = vmatprep.subr.mxu0 0.0
    %2658 = vmatpush1.msra.mxu0 0.0
    %2659 = vmatprep.subr.mxu0 0.0
    %2660 = vmatpush1.msra.mxu0 0.0
    %2661 = vmatprep.subr.mxu0 0.0
    %2662 = vmatpush1.msra.mxu0 0.0
    %2663 = vmatprep.subr.mxu0 0.0
    %2664 = vmatpush1.msra.mxu0 0.0
    %2665 = vmatprep.subr.mxu0 0.0
    %2666 = vmatpush1.msra.mxu0 0.0
    %2667 = vmatprep.subr.mxu0 0.0
    %2668 = vmatpush1.msra.mxu0 0.0
    %2669 = vmatprep.subr.mxu0 0.0
    %2670 = vmatpush1.msra.mxu0 0.0
    %2671 = vmatprep.subr.mxu0 0.0
    %2672 = vmatpush1.msra.mxu0 0.0
    %2673 = vmatprep.subr.mxu0 0.0
    %2674 = vmatpush1.msra.mxu0 0.0
    %2675 = vmatprep.subr.mxu0 0.0
    %2676 = vmatpush1.msra.mxu0 0.0
    %2677 = vmatprep.subr.mxu0 0.0
    %2678 = vmatpush1.msra.mxu0 0.0
    %2679 = vmatprep.subr.mxu0 0.0
    %2680 = vmatpush1.msra.mxu0 0.0
    %2681 = vmatprep.subr.mxu0 0.0
    %2682 = vmatpush1.msra.mxu0 0.0
    %2683 = vmatprep.subr.mxu0 0.0
    %2684 = vmatpush1.msra.mxu0 0.0
    %2685 = vmatprep.subr.mxu0 0.0
    %2686 = vmatpush1.msra.mxu0 0.0
    %2687 = vmatprep.subr.mxu0 0.0
    %2688 = vmatpush1.msra.mxu0 0.0
    %2689 = vmatprep.subr.mxu0 0.0
    %2690 = vmatpush1.msra.mxu0 0.0
    %2691 = vmatprep.subr.mxu0 0.0
    %2692 = vmatpush1.msra.mxu0 0.0
    %2693 = vmatprep.subr.mxu0 0.0
    %2694 = vmatpush1.msra.mxu0 0.0
    %2695 = vmatprep.mubr.f32.mxu0 0.0
    %v2696 = vand.u32 %v2375, 4294901760
    %v2697 = vsub.f32 %v2375, %v2696
    %v2698 = vand.u32 %v2697, 4294901760
    %2699 = vmatmul.mubr.f32.gmra.mrb[0].mxu0 %v2698
    %v2700 = vpop.f32.mrb[0].mxu0
    %v2701 = vadd.f32 %v2624, %v2700
    %v2702 = vpop.f32.mrb[0].mxu0
    %2703 = vdwg.mxu0
    %2704 = vmatprep.subr.mxu0 0.0
    %v2705 = vand.u32 %v814, 4294901760
    %v2706 = vsub.f32 %v814, %v2705
    %v2707 = vand.u32 %v2706, 4294901760
    %2708 = vmatpush1.msra.mxu0 %v2707
    %2709 = vmatprep.subr.mxu0 0.0
    %v2710 = vand.u32 %v815, 4294901760
    %v2711 = vsub.f32 %v815, %v2710
    %v2712 = vand.u32 %v2711, 4294901760
    %2713 = vmatpush1.msra.mxu0 %v2712
    %2714 = vmatprep.subr.mxu0 0.0
    %v2715 = vand.u32 %v816, 4294901760
    %v2716 = vsub.f32 %v816, %v2715
    %v2717 = vand.u32 %v2716, 4294901760
    %2718 = vmatpush1.msra.mxu0 %v2717
    %2719 = vmatprep.subr.mxu0 0.0
    %v2720 = vand.u32 %v817, 4294901760
    %v2721 = vsub.f32 %v817, %v2720
    %v2722 = vand.u32 %v2721, 4294901760
    %2723 = vmatpush1.msra.mxu0 %v2722
    %2724 = vmatprep.subr.mxu0 0.0
    %2725 = vmatpush1.msra.mxu0 0.0
    %2726 = vmatprep.subr.mxu0 0.0
    %2727 = vmatpush1.msra.mxu0 0.0
    %2728 = vmatprep.subr.mxu0 0.0
    %2729 = vmatpush1.msra.mxu0 0.0
    %2730 = vmatprep.subr.mxu0 0.0
    %2731 = vmatpush1.msra.mxu0 0.0
    %2732 = vmatprep.subr.mxu0 0.0
    %2733 = vmatpush1.msra.mxu0 0.0
    %2734 = vmatprep.subr.mxu0 0.0
    %2735 = vmatpush1.msra.mxu0 0.0
    %2736 = vmatprep.subr.mxu0 0.0
    %2737 = vmatpush1.msra.mxu0 0.0
    %2738 = vmatprep.subr.mxu0 0.0
    %2739 = vmatpush1.msra.mxu0 0.0
    %2740 = vmatprep.subr.mxu0 0.0
    %2741 = vmatpush1.msra.mxu0 0.0
    %2742 = vmatprep.subr.mxu0 0.0
    %2743 = vmatpush1.msra.mxu0 0.0
    %2744 = vmatprep.subr.mxu0 0.0
    %2745 = vmatpush1.msra.mxu0 0.0
    %2746 = vmatprep.subr.mxu0 0.0
    %2747 = vmatpush1.msra.mxu0 0.0
    %2748 = vmatprep.subr.mxu0 0.0
    %2749 = vmatpush1.msra.mxu0 0.0
    %2750 = vmatprep.subr.mxu0 0.0
    %2751 = vmatpush1.msra.mxu0 0.0
    %2752 = vmatprep.subr.mxu0 0.0
    %2753 = vmatpush1.msra.mxu0 0.0
    %2754 = vmatprep.subr.mxu0 0.0
    %2755 = vmatpush1.msra.mxu0 0.0
    %2756 = vmatprep.subr.mxu0 0.0
    %2757 = vmatpush1.msra.mxu0 0.0
    %2758 = vmatprep.subr.mxu0 0.0
    %2759 = vmatpush1.msra.mxu0 0.0
    %2760 = vmatprep.subr.mxu0 0.0
    %2761 = vmatpush1.msra.mxu0 0.0
    %2762 = vmatprep.subr.mxu0 0.0
    %2763 = vmatpush1.msra.mxu0 0.0
    %2764 = vmatprep.subr.mxu0 0.0
    %2765 = vmatpush1.msra.mxu0 0.0
    %2766 = vmatprep.subr.mxu0 0.0
    %2767 = vmatpush1.msra.mxu0 0.0
    %2768 = vmatprep.subr.mxu0 0.0
    %2769 = vmatpush1.msra.mxu0 0.0
    %2770 = vmatprep.subr.mxu0 0.0
    %2771 = vmatpush1.msra.mxu0 0.0
    %2772 = vmatprep.subr.mxu0 0.0
    %2773 = vmatpush1.msra.mxu0 0.0
    %2774 = vmatprep.subr.mxu0 0.0
    %2775 = vmatpush1.msra.mxu0 0.0
    %2776 = vmatprep.subr.mxu0 0.0
    %2777 = vmatpush1.msra.mxu0 0.0
    %2778 = vmatprep.subr.mxu0 0.0
    %2779 = vmatpush1.msra.mxu0 0.0
    %2780 = vmatprep.mubr.f32.mxu0 0.0
    %v2781 = vand.u32 %v2375, 4294901760
    %2782 = vmatmul.mubr.f32.gmra.mrb[0].mxu0 %v2781
    %v2783 = vpop.f32.mrb[0].mxu0
    %v2784 = vadd.f32 %v2701, %v2783
    %v2785 = vpop.f32.mrb[0].mxu0
    %2786 = vdwg.mxu0
    %2787 = vmatprep.subr.mxu0 0.0
    %v2788 = vand.u32 %v814, 4294901760
    %2789 = vmatpush1.msra.mxu0 %v2788
    %2790 = vmatprep.subr.mxu0 0.0
    %v2791 = vand.u32 %v815, 4294901760
    %2792 = vmatpush1.msra.mxu0 %v2791
    %2793 = vmatprep.subr.mxu0 0.0
    %v2794 = vand.u32 %v816, 4294901760
    %2795 = vmatpush1.msra.mxu0 %v2794
    %2796 = vmatprep.subr.mxu0 0.0
    %v2797 = vand.u32 %v817, 4294901760
    %2798 = vmatpush1.msra.mxu0 %v2797
    %2799 = vmatprep.subr.mxu0 0.0
    %2800 = vmatpush1.msra.mxu0 0.0
    %2801 = vmatprep.subr.mxu0 0.0
    %2802 = vmatpush1.msra.mxu0 0.0
    %2803 = vmatprep.subr.mxu0 0.0
    %2804 = vmatpush1.msra.mxu0 0.0
    %2805 = vmatprep.subr.mxu0 0.0
    %2806 = vmatpush1.msra.mxu0 0.0
    %2807 = vmatprep.subr.mxu0 0.0
    %2808 = vmatpush1.msra.mxu0 0.0
    %2809 = vmatprep.subr.mxu0 0.0
    %2810 = vmatpush1.msra.mxu0 0.0
    %2811 = vmatprep.subr.mxu0 0.0
    %2812 = vmatpush1.msra.mxu0 0.0
    %2813 = vmatprep.subr.mxu0 0.0
    %2814 = vmatpush1.msra.mxu0 0.0
    %2815 = vmatprep.subr.mxu0 0.0
    %2816 = vmatpush1.msra.mxu0 0.0
    %2817 = vmatprep.subr.mxu0 0.0
    %2818 = vmatpush1.msra.mxu0 0.0
    %2819 = vmatprep.subr.mxu0 0.0
    %2820 = vmatpush1.msra.mxu0 0.0
    %2821 = vmatprep.subr.mxu0 0.0
    %2822 = vmatpush1.msra.mxu0 0.0
    %2823 = vmatprep.subr.mxu0 0.0
    %2824 = vmatpush1.msra.mxu0 0.0
    %2825 = vmatprep.subr.mxu0 0.0
    %2826 = vmatpush1.msra.mxu0 0.0
    %2827 = vmatprep.subr.mxu0 0.0
    %2828 = vmatpush1.msra.mxu0 0.0
    %2829 = vmatprep.subr.mxu0 0.0
    %2830 = vmatpush1.msra.mxu0 0.0
    %2831 = vmatprep.subr.mxu0 0.0
    %2832 = vmatpush1.msra.mxu0 0.0
    %2833 = vmatprep.subr.mxu0 0.0
    %2834 = vmatpush1.msra.mxu0 0.0
    %2835 = vmatprep.subr.mxu0 0.0
    %2836 = vmatpush1.msra.mxu0 0.0
    %2837 = vmatprep.subr.mxu0 0.0
    %2838 = vmatpush1.msra.mxu0 0.0
    %2839 = vmatprep.subr.mxu0 0.0
    %2840 = vmatpush1.msra.mxu0 0.0
    %2841 = vmatprep.subr.mxu0 0.0
    %2842 = vmatpush1.msra.mxu0 0.0
    %2843 = vmatprep.subr.mxu0 0.0
    %2844 = vmatpush1.msra.mxu0 0.0
    %2845 = vmatprep.subr.mxu0 0.0
    %2846 = vmatpush1.msra.mxu0 0.0
    %2847 = vmatprep.subr.mxu0 0.0
    %2848 = vmatpush1.msra.mxu0 0.0
    %2849 = vmatprep.subr.mxu0 0.0
    %2850 = vmatpush1.msra.mxu0 0.0
    %2851 = vmatprep.subr.mxu0 0.0
    %2852 = vmatpush1.msra.mxu0 0.0
    %2853 = vmatprep.subr.mxu0 0.0
    %2854 = vmatpush1.msra.mxu0 0.0
    %2855 = vmatprep.mubr.f32.mxu0 0.0
    %v2856 = vand.u32 %v2375, 4294901760
    %2857 = vmatmul.mubr.f32.gmra.mrb[0].mxu0 %v2856
    %v2858 = vpop.f32.mrb[0].mxu0
    %v2859 = vadd.f32 %v2784, %v2858
    %v2860 = vpop.f32.mrb[0].mxu0
    %2861 = vdwg.mxu0
    %v2862 = vadd.f32 %v793, %v2859
    %v2863 = vxor.u32 %v2862, 2147483648
    %v2864 = vmul.f32 %v2863, 1.442695
    %v2865 = vpow.pop %v2864
    %v2866 = vadd.f32 %v2865, 1.0
    %v2867 = vrcp.pop %v2866
    %v2868 = vmul.f32 1.0, %v2867
    %2870 = vrot.lane.b32.xlu0 %v2859, 64
    %v2871 = vpop.permute.xlu0 %2870
    %v2873 = vmul.f32 %v2868, %v2871
    %2875 = vrot.lane.b32.xlu0 %v2873, 64
    %v2876 = vpop.permute.xlu0 %2875
    %v2878 = vadd.f32 %v793, %v2876
    %v2879 = vtanh.pop %v2878
    %v2880 = vsub.f32 1.0, %v2868
    %2882 = vrot.lane.b32.xlu0 %v2879, 96
    %v2883 = vpop.permute.xlu0 %2882
    %v2885 = vmul.f32 %v2880, %v2883
    %v2886 = vmul.f32 %v2868, %v2371
    %v2887 = vadd.f32 %v2885, %v2886
    %2889 = vrot.lane.b32.xlu0 %v2887, 96
    %v2890 = vpop.permute.xlu0 %2889
    %v2891 = vsel %vm825, %v2890, 0
    %2893 = vmatprep.subr.mxu0 0.0
    %v2894 = vand.u32 %v814, 4294901760
    %2895 = vmatpush1.msra.mxu0 %v2894
    %2896 = vmatprep.subr.mxu0 0.0
    %v2897 = vand.u32 %v815, 4294901760
    %2898 = vmatpush1.msra.mxu0 %v2897
    %2899 = vmatprep.subr.mxu0 0.0
    %v2900 = vand.u32 %v816, 4294901760
    %2901 = vmatpush1.msra.mxu0 %v2900
    %2902 = vmatprep.subr.mxu0 0.0
    %v2903 = vand.u32 %v817, 4294901760
    %2904 = vmatpush1.msra.mxu0 %v2903
    %2905 = vmatprep.subr.mxu0 0.0
    %2906 = vmatpush1.msra.mxu0 0.0
    %2907 = vmatprep.subr.mxu0 0.0
    %2908 = vmatpush1.msra.mxu0 0.0
    %2909 = vmatprep.subr.mxu0 0.0
    %2910 = vmatpush1.msra.mxu0 0.0
    %2911 = vmatprep.subr.mxu0 0.0
    %2912 = vmatpush1.msra.mxu0 0.0
    %2913 = vmatprep.subr.mxu0 0.0
    %2914 = vmatpush1.msra.mxu0 0.0
    %2915 = vmatprep.subr.mxu0 0.0
    %2916 = vmatpush1.msra.mxu0 0.0
    %2917 = vmatprep.subr.mxu0 0.0
    %2918 = vmatpush1.msra.mxu0 0.0
    %2919 = vmatprep.subr.mxu0 0.0
    %2920 = vmatpush1.msra.mxu0 0.0
    %2921 = vmatprep.subr.mxu0 0.0
    %2922 = vmatpush1.msra.mxu0 0.0
    %2923 = vmatprep.subr.mxu0 0.0
    %2924 = vmatpush1.msra.mxu0 0.0
    %2925 = vmatprep.subr.mxu0 0.0
    %2926 = vmatpush1.msra.mxu0 0.0
    %2927 = vmatprep.subr.mxu0 0.0
    %2928 = vmatpush1.msra.mxu0 0.0
    %2929 = vmatprep.subr.mxu0 0.0
    %2930 = vmatpush1.msra.mxu0 0.0
    %2931 = vmatprep.subr.mxu0 0.0
    %2932 = vmatpush1.msra.mxu0 0.0
    %2933 = vmatprep.subr.mxu0 0.0
    %2934 = vmatpush1.msra.mxu0 0.0
    %2935 = vmatprep.subr.mxu0 0.0
    %2936 = vmatpush1.msra.mxu0 0.0
    %2937 = vmatprep.subr.mxu0 0.0
    %2938 = vmatpush1.msra.mxu0 0.0
    %2939 = vmatprep.subr.mxu0 0.0
    %2940 = vmatpush1.msra.mxu0 0.0
    %2941 = vmatprep.subr.mxu0 0.0
    %2942 = vmatpush1.msra.mxu0 0.0
    %2943 = vmatprep.subr.mxu0 0.0
    %2944 = vmatpush1.msra.mxu0 0.0
    %2945 = vmatprep.subr.mxu0 0.0
    %2946 = vmatpush1.msra.mxu0 0.0
    %2947 = vmatprep.subr.mxu0 0.0
    %2948 = vmatpush1.msra.mxu0 0.0
    %2949 = vmatprep.subr.mxu0 0.0
    %2950 = vmatpush1.msra.mxu0 0.0
    %2951 = vmatprep.subr.mxu0 0.0
    %2952 = vmatpush1.msra.mxu0 0.0
    %2953 = vmatprep.subr.mxu0 0.0
    %2954 = vmatpush1.msra.mxu0 0.0
    %2955 = vmatprep.subr.mxu0 0.0
    %2956 = vmatpush1.msra.mxu0 0.0
    %2957 = vmatprep.subr.mxu0 0.0
    %2958 = vmatpush1.msra.mxu0 0.0
    %2959 = vmatprep.subr.mxu0 0.0
    %2960 = vmatpush1.msra.mxu0 0.0
    %2961 = vmatprep.mubr.f32.mxu0 0.0
    %v2962 = vand.u32 %v2891, 4294901760
    %v2963 = vsub.f32 %v2891, %v2962
    %v2964 = vand.u32 %v2963, 4294901760
    %v2965 = vsub.f32 %v2963, %v2964
    %v2966 = vand.u32 %v2965, 4294901760
    %2967 = vmatmul.mubr.f32.gmra.mrb[0].mxu0 %v2966
    %v2968 = vpop.f32.mrb[0].mxu0
    %v2969 = vadd.f32 %v823, %v2968
    %v2970 = vpop.f32.mrb[0].mxu0
    %2971 = vdwg.mxu0
    %2972 = vmatprep.subr.mxu0 0.0
    %v2973 = vand.u32 %v814, 4294901760
    %v2974 = vsub.f32 %v814, %v2973
    %v2975 = vand.u32 %v2974, 4294901760
    %v2976 = vsub.f32 %v2974, %v2975
    %v2977 = vand.u32 %v2976, 4294901760
    %2978 = vmatpush1.msra.mxu0 %v2977
    %2979 = vmatprep.subr.mxu0 0.0
    %v2980 = vand.u32 %v815, 4294901760
    %v2981 = vsub.f32 %v815, %v2980
    %v2982 = vand.u32 %v2981, 4294901760
    %v2983 = vsub.f32 %v2981, %v2982
    %v2984 = vand.u32 %v2983, 4294901760
    %2985 = vmatpush1.msra.mxu0 %v2984
    %2986 = vmatprep.subr.mxu0 0.0
    %v2987 = vand.u32 %v816, 4294901760
    %v2988 = vsub.f32 %v816, %v2987
    %v2989 = vand.u32 %v2988, 4294901760
    %v2990 = vsub.f32 %v2988, %v2989
    %v2991 = vand.u32 %v2990, 4294901760
    %2992 = vmatpush1.msra.mxu0 %v2991
    %2993 = vmatprep.subr.mxu0 0.0
    %v2994 = vand.u32 %v817, 4294901760
    %v2995 = vsub.f32 %v817, %v2994
    %v2996 = vand.u32 %v2995, 4294901760
    %v2997 = vsub.f32 %v2995, %v2996
    %v2998 = vand.u32 %v2997, 4294901760
    %2999 = vmatpush1.msra.mxu0 %v2998
    %3000 = vmatprep.subr.mxu0 0.0
    %3001 = vmatpush1.msra.mxu0 0.0
    %3002 = vmatprep.subr.mxu0 0.0
    %3003 = vmatpush1.msra.mxu0 0.0
    %3004 = vmatprep.subr.mxu0 0.0
    %3005 = vmatpush1.msra.mxu0 0.0
    %3006 = vmatprep.subr.mxu0 0.0
    %3007 = vmatpush1.msra.mxu0 0.0
    %3008 = vmatprep.subr.mxu0 0.0
    %3009 = vmatpush1.msra.mxu0 0.0
    %3010 = vmatprep.subr.mxu0 0.0
    %3011 = vmatpush1.msra.mxu0 0.0
    %3012 = vmatprep.subr.mxu0 0.0
    %3013 = vmatpush1.msra.mxu0 0.0
    %3014 = vmatprep.subr.mxu0 0.0
    %3015 = vmatpush1.msra.mxu0 0.0
    %3016 = vmatprep.subr.mxu0 0.0
    %3017 = vmatpush1.msra.mxu0 0.0
    %3018 = vmatprep.subr.mxu0 0.0
    %3019 = vmatpush1.msra.mxu0 0.0
    %3020 = vmatprep.subr.mxu0 0.0
    %3021 = vmatpush1.msra.mxu0 0.0
    %3022 = vmatprep.subr.mxu0 0.0
    %3023 = vmatpush1.msra.mxu0 0.0
    %3024 = vmatprep.subr.mxu0 0.0
    %3025 = vmatpush1.msra.mxu0 0.0
    %3026 = vmatprep.subr.mxu0 0.0
    %3027 = vmatpush1.msra.mxu0 0.0
    %3028 = vmatprep.subr.mxu0 0.0
    %3029 = vmatpush1.msra.mxu0 0.0
    %3030 = vmatprep.subr.mxu0 0.0
    %3031 = vmatpush1.msra.mxu0 0.0
    %3032 = vmatprep.subr.mxu0 0.0
    %3033 = vmatpush1.msra.mxu0 0.0
    %3034 = vmatprep.subr.mxu0 0.0
    %3035 = vmatpush1.msra.mxu0 0.0
    %3036 = vmatprep.subr.mxu0 0.0
    %3037 = vmatpush1.msra.mxu0 0.0
    %3038 = vmatprep.subr.mxu0 0.0
    %3039 = vmatpush1.msra.mxu0 0.0
    %3040 = vmatprep.subr.mxu0 0.0
    %3041 = vmatpush1.msra.mxu0 0.0
    %3042 = vmatprep.subr.mxu0 0.0
    %3043 = vmatpush1.msra.mxu0 0.0
    %3044 = vmatprep.subr.mxu0 0.0
    %3045 = vmatpush1.msra.mxu0 0.0
    %3046 = vmatprep.subr.mxu0 0.0
    %3047 = vmatpush1.msra.mxu0 0.0
    %3048 = vmatprep.subr.mxu0 0.0
    %3049 = vmatpush1.msra.mxu0 0.0
    %3050 = vmatprep.subr.mxu0 0.0
    %3051 = vmatpush1.msra.mxu0 0.0
    %3052 = vmatprep.subr.mxu0 0.0
    %3053 = vmatpush1.msra.mxu0 0.0
    %3054 = vmatprep.subr.mxu0 0.0
    %3055 = vmatpush1.msra.mxu0 0.0
    %3056 = vmatprep.mubr.f32.mxu0 0.0
    %v3057 = vand.u32 %v2891, 4294901760
    %3058 = vmatmul.mubr.f32.gmra.mrb[0].mxu0 %v3057
    %v3059 = vpop.f32.mrb[0].mxu0
    %v3060 = vadd.f32 %v2969, %v3059
    %v3061 = vpop.f32.mrb[0].mxu0
    %3062 = vdwg.mxu0
    %3063 = vmatprep.subr.mxu0 0.0
    %v3064 = vand.u32 %v814, 4294901760
    %v3065 = vsub.f32 %v814, %v3064
    %3066 = vmatpush1.msra.mxu0 %v3065
    %3067 = vmatprep.subr.mxu0 0.0
    %v3068 = vand.u32 %v815, 4294901760
    %v3069 = vsub.f32 %v815, %v3068
    %3070 = vmatpush1.msra.mxu0 %v3069
    %3071 = vmatprep.subr.mxu0 0.0
    %v3072 = vand.u32 %v816, 4294901760
    %v3073 = vsub.f32 %v816, %v3072
    %3074 = vmatpush1.msra.mxu0 %v3073
    %3075 = vmatprep.subr.mxu0 0.0
    %v3076 = vand.u32 %v817, 4294901760
    %v3077 = vsub.f32 %v817, %v3076
    %3078 = vmatpush1.msra.mxu0 %v3077
    %3079 = vmatprep.subr.mxu0 0.0
    %3080 = vmatpush1.msra.mxu0 0.0
    %3081 = vmatprep.subr.mxu0 0.0
    %3082 = vmatpush1.msra.mxu0 0.0
    %3083 = vmatprep.subr.mxu0 0.0
    %3084 = vmatpush1.msra.mxu0 0.0
    %3085 = vmatprep.subr.mxu0 0.0
    %3086 = vmatpush1.msra.mxu0 0.0
    %3087 = vmatprep.subr.mxu0 0.0
    %3088 = vmatpush1.msra.mxu0 0.0
    %3089 = vmatprep.subr.mxu0 0.0
    %3090 = vmatpush1.msra.mxu0 0.0
    %3091 = vmatprep.subr.mxu0 0.0
    %3092 = vmatpush1.msra.mxu0 0.0
    %3093 = vmatprep.subr.mxu0 0.0
    %3094 = vmatpush1.msra.mxu0 0.0
    %3095 = vmatprep.subr.mxu0 0.0
    %3096 = vmatpush1.msra.mxu0 0.0
    %3097 = vmatprep.subr.mxu0 0.0
    %3098 = vmatpush1.msra.mxu0 0.0
    %3099 = vmatprep.subr.mxu0 0.0
    %3100 = vmatpush1.msra.mxu0 0.0
    %3101 = vmatprep.subr.mxu0 0.0
    %3102 = vmatpush1.msra.mxu0 0.0
    %3103 = vmatprep.subr.mxu0 0.0
    %3104 = vmatpush1.msra.mxu0 0.0
    %3105 = vmatprep.subr.mxu0 0.0
    %3106 = vmatpush1.msra.mxu0 0.0
    %3107 = vmatprep.subr.mxu0 0.0
    %3108 = vmatpush1.msra.mxu0 0.0
    %3109 = vmatprep.subr.mxu0 0.0
    %3110 = vmatpush1.msra.mxu0 0.0
    %3111 = vmatprep.subr.mxu0 0.0
    %3112 = vmatpush1.msra.mxu0 0.0
    %3113 = vmatprep.subr.mxu0 0.0
    %3114 = vmatpush1.msra.mxu0 0.0
    %3115 = vmatprep.subr.mxu0 0.0
    %3116 = vmatpush1.msra.mxu0 0.0
    %3117 = vmatprep.subr.mxu0 0.0
    %3118 = vmatpush1.msra.mxu0 0.0
    %3119 = vmatprep.subr.mxu0 0.0
    %3120 = vmatpush1.msra.mxu0 0.0
    %3121 = vmatprep.subr.mxu0 0.0
    %3122 = vmatpush1.msra.mxu0 0.0
    %3123 = vmatprep.subr.mxu0 0.0
    %3124 = vmatpush1.msra.mxu0 0.0
    %3125 = vmatprep.subr.mxu0 0.0
    %3126 = vmatpush1.msra.mxu0 0.0
    %3127 = vmatprep.subr.mxu0 0.0
    %3128 = vmatpush1.msra.mxu0 0.0
    %3129 = vmatprep.subr.mxu0 0.0
    %3130 = vmatpush1.msra.mxu0 0.0
    %3131 = vmatprep.subr.mxu0 0.0
    %3132 = vmatpush1.msra.mxu0 0.0
    %3133 = vmatprep.subr.mxu0 0.0
    %3134 = vmatpush1.msra.mxu0 0.0
    %3135 = vmatprep.mubr.f32.mxu0 0.0
    %v3136 = vand.u32 %v2891, 4294901760
    %v3137 = vsub.f32 %v2891, %v3136
    %3138 = vmatmul.mubr.f32.gmra.mrb[0].mxu0 %v3137
    %v3139 = vpop.f32.mrb[0].mxu0
    %v3140 = vadd.f32 %v3060, %v3139
    %v3141 = vpop.f32.mrb[0].mxu0
    %3142 = vdwg.mxu0
    %3143 = vmatprep.subr.mxu0 0.0
    %v3144 = vand.u32 %v814, 4294901760
    %3145 = vmatpush1.msra.mxu0 %v3144
    %3146 = vmatprep.subr.mxu0 0.0
    %v3147 = vand.u32 %v815, 4294901760
    %3148 = vmatpush1.msra.mxu0 %v3147
    %3149 = vmatprep.subr.mxu0 0.0
    %v3150 = vand.u32 %v816, 4294901760
    %3151 = vmatpush1.msra.mxu0 %v3150
    %3152 = vmatprep.subr.mxu0 0.0
    %v3153 = vand.u32 %v817, 4294901760
    %3154 = vmatpush1.msra.mxu0 %v3153
    %3155 = vmatprep.subr.mxu0 0.0
    %3156 = vmatpush1.msra.mxu0 0.0
    %3157 = vmatprep.subr.mxu0 0.0
    %3158 = vmatpush1.msra.mxu0 0.0
    %3159 = vmatprep.subr.mxu0 0.0
    %3160 = vmatpush1.msra.mxu0 0.0
    %3161 = vmatprep.subr.mxu0 0.0
    %3162 = vmatpush1.msra.mxu0 0.0
    %3163 = vmatprep.subr.mxu0 0.0
    %3164 = vmatpush1.msra.mxu0 0.0
    %3165 = vmatprep.subr.mxu0 0.0
    %3166 = vmatpush1.msra.mxu0 0.0
    %3167 = vmatprep.subr.mxu0 0.0
    %3168 = vmatpush1.msra.mxu0 0.0
    %3169 = vmatprep.subr.mxu0 0.0
    %3170 = vmatpush1.msra.mxu0 0.0
    %3171 = vmatprep.subr.mxu0 0.0
    %3172 = vmatpush1.msra.mxu0 0.0
    %3173 = vmatprep.subr.mxu0 0.0
    %3174 = vmatpush1.msra.mxu0 0.0
    %3175 = vmatprep.subr.mxu0 0.0
    %3176 = vmatpush1.msra.mxu0 0.0
    %3177 = vmatprep.subr.mxu0 0.0
    %3178 = vmatpush1.msra.mxu0 0.0
    %3179 = vmatprep.subr.mxu0 0.0
    %3180 = vmatpush1.msra.mxu0 0.0
    %3181 = vmatprep.subr.mxu0 0.0
    %3182 = vmatpush1.msra.mxu0 0.0
    %3183 = vmatprep.subr.mxu0 0.0
    %3184 = vmatpush1.msra.mxu0 0.0
    %3185 = vmatprep.subr.mxu0 0.0
    %3186 = vmatpush1.msra.mxu0 0.0
    %3187 = vmatprep.subr.mxu0 0.0
    %3188 = vmatpush1.msra.mxu0 0.0
    %3189 = vmatprep.subr.mxu0 0.0
    %3190 = vmatpush1.msra.mxu0 0.0
    %3191 = vmatprep.subr.mxu0 0.0
    %3192 = vmatpush1.msra.mxu0 0.0
    %3193 = vmatprep.subr.mxu0 0.0
    %3194 = vmatpush1.msra.mxu0 0.0
    %3195 = vmatprep.subr.mxu0 0.0
    %3196 = vmatpush1.msra.mxu0 0.0
    %3197 = vmatprep.subr.mxu0 0.0
    %3198 = vmatpush1.msra.mxu0 0.0
    %3199 = vmatprep.subr.mxu0 0.0
    %3200 = vmatpush1.msra.mxu0 0.0
    %3201 = vmatprep.subr.mxu0 0.0
    %3202 = vmatpush1.msra.mxu0 0.0
    %3203 = vmatprep.subr.mxu0 0.0
    %3204 = vmatpush1.msra.mxu0 0.0
    %3205 = vmatprep.subr.mxu0 0.0
    %3206 = vmatpush1.msra.mxu0 0.0
    %3207 = vmatprep.subr.mxu0 0.0
    %3208 = vmatpush1.msra.mxu0 0.0
    %3209 = vmatprep.subr.mxu0 0.0
    %3210 = vmatpush1.msra.mxu0 0.0
    %3211 = vmatprep.mubr.f32.mxu0 0.0
    %v3212 = vand.u32 %v2891, 4294901760
    %v3213 = vsub.f32 %v2891, %v3212
    %v3214 = vand.u32 %v3213, 4294901760
    %3215 = vmatmul.mubr.f32.gmra.mrb[0].mxu0 %v3214
    %v3216 = vpop.f32.mrb[0].mxu0
    %v3217 = vadd.f32 %v3140, %v3216
    %v3218 = vpop.f32.mrb[0].mxu0
    %3219 = vdwg.mxu0
    %3220 = vmatprep.subr.mxu0 0.0
    %v3221 = vand.u32 %v814, 4294901760
    %v3222 = vsub.f32 %v814, %v3221
    %v3223 = vand.u32 %v3222, 4294901760
    %3224 = vmatpush1.msra.mxu0 %v3223
    %3225 = vmatprep.subr.mxu0 0.0
    %v3226 = vand.u32 %v815, 4294901760
    %v3227 = vsub.f32 %v815, %v3226
    %v3228 = vand.u32 %v3227, 4294901760
    %3229 = vmatpush1.msra.mxu0 %v3228
    %3230 = vmatprep.subr.mxu0 0.0
    %v3231 = vand.u32 %v816, 4294901760
    %v3232 = vsub.f32 %v816, %v3231
    %v3233 = vand.u32 %v3232, 4294901760
    %3234 = vmatpush1.msra.mxu0 %v3233
    %3235 = vmatprep.subr.mxu0 0.0
    %v3236 = vand.u32 %v817, 4294901760
    %v3237 = vsub.f32 %v817, %v3236
    %v3238 = vand.u32 %v3237, 4294901760
    %3239 = vmatpush1.msra.mxu0 %v3238
    %3240 = vmatprep.subr.mxu0 0.0
    %3241 = vmatpush1.msra.mxu0 0.0
    %3242 = vmatprep.subr.mxu0 0.0
    %3243 = vmatpush1.msra.mxu0 0.0
    %3244 = vmatprep.subr.mxu0 0.0
    %3245 = vmatpush1.msra.mxu0 0.0
    %3246 = vmatprep.subr.mxu0 0.0
    %3247 = vmatpush1.msra.mxu0 0.0
    %3248 = vmatprep.subr.mxu0 0.0
    %3249 = vmatpush1.msra.mxu0 0.0
    %3250 = vmatprep.subr.mxu0 0.0
    %3251 = vmatpush1.msra.mxu0 0.0
    %3252 = vmatprep.subr.mxu0 0.0
    %3253 = vmatpush1.msra.mxu0 0.0
    %3254 = vmatprep.subr.mxu0 0.0
    %3255 = vmatpush1.msra.mxu0 0.0
    %3256 = vmatprep.subr.mxu0 0.0
    %3257 = vmatpush1.msra.mxu0 0.0
    %3258 = vmatprep.subr.mxu0 0.0
    %3259 = vmatpush1.msra.mxu0 0.0
    %3260 = vmatprep.subr.mxu0 0.0
    %3261 = vmatpush1.msra.mxu0 0.0
    %3262 = vmatprep.subr.mxu0 0.0
    %3263 = vmatpush1.msra.mxu0 0.0
    %3264 = vmatprep.subr.mxu0 0.0
    %3265 = vmatpush1.msra.mxu0 0.0
    %3266 = vmatprep.subr.mxu0 0.0
    %3267 = vmatpush1.msra.mxu0 0.0
    %3268 = vmatprep.subr.mxu0 0.0
    %3269 = vmatpush1.msra.mxu0 0.0
    %3270 = vmatprep.subr.mxu0 0.0
    %3271 = vmatpush1.msra.mxu0 0.0
    %3272 = vmatprep.subr.mxu0 0.0
    %3273 = vmatpush1.msra.mxu0 0.0
    %3274 = vmatprep.subr.mxu0 0.0
    %3275 = vmatpush1.msra.mxu0 0.0
    %3276 = vmatprep.subr.mxu0 0.0
    %3277 = vmatpush1.msra.mxu0 0.0
    %3278 = vmatprep.subr.mxu0 0.0
    %3279 = vmatpush1.msra.mxu0 0.0
    %3280 = vmatprep.subr.mxu0 0.0
    %3281 = vmatpush1.msra.mxu0 0.0
    %3282 = vmatprep.subr.mxu0 0.0
    %3283 = vmatpush1.msra.mxu0 0.0
    %3284 = vmatprep.subr.mxu0 0.0
    %3285 = vmatpush1.msra.mxu0 0.0
    %3286 = vmatprep.subr.mxu0 0.0
    %3287 = vmatpush1.msra.mxu0 0.0
    %3288 = vmatprep.subr.mxu0 0.0
    %3289 = vmatpush1.msra.mxu0 0.0
    %3290 = vmatprep.subr.mxu0 0.0
    %3291 = vmatpush1.msra.mxu0 0.0
    %3292 = vmatprep.subr.mxu0 0.0
    %3293 = vmatpush1.msra.mxu0 0.0
    %3294 = vmatprep.subr.mxu0 0.0
    %3295 = vmatpush1.msra.mxu0 0.0
    %3296 = vmatprep.mubr.f32.mxu0 0.0
    %v3297 = vand.u32 %v2891, 4294901760
    %3298 = vmatmul.mubr.f32.gmra.mrb[0].mxu0 %v3297
    %v3299 = vpop.f32.mrb[0].mxu0
    %v3300 = vadd.f32 %v3217, %v3299
    %v3301 = vpop.f32.mrb[0].mxu0
    %3302 = vdwg.mxu0
    %3303 = vmatprep.subr.mxu0 0.0
    %v3304 = vand.u32 %v814, 4294901760
    %3305 = vmatpush1.msra.mxu0 %v3304
    %3306 = vmatprep.subr.mxu0 0.0
    %v3307 = vand.u32 %v815, 4294901760
    %3308 = vmatpush1.msra.mxu0 %v3307
    %3309 = vmatprep.subr.mxu0 0.0
    %v3310 = vand.u32 %v816, 4294901760
    %3311 = vmatpush1.msra.mxu0 %v3310
    %3312 = vmatprep.subr.mxu0 0.0
    %v3313 = vand.u32 %v817, 4294901760
    %3314 = vmatpush1.msra.mxu0 %v3313
    %3315 = vmatprep.subr.mxu0 0.0
    %3316 = vmatpush1.msra.mxu0 0.0
    %3317 = vmatprep.subr.mxu0 0.0
    %3318 = vmatpush1.msra.mxu0 0.0
    %3319 = vmatprep.subr.mxu0 0.0
    %3320 = vmatpush1.msra.mxu0 0.0
    %3321 = vmatprep.subr.mxu0 0.0
    %3322 = vmatpush1.msra.mxu0 0.0
    %3323 = vmatprep.subr.mxu0 0.0
    %3324 = vmatpush1.msra.mxu0 0.0
    %3325 = vmatprep.subr.mxu0 0.0
    %3326 = vmatpush1.msra.mxu0 0.0
    %3327 = vmatprep.subr.mxu0 0.0
    %3328 = vmatpush1.msra.mxu0 0.0
    %3329 = vmatprep.subr.mxu0 0.0
    %3330 = vmatpush1.msra.mxu0 0.0
    %3331 = vmatprep.subr.mxu0 0.0
    %3332 = vmatpush1.msra.mxu0 0.0
    %3333 = vmatprep.subr.mxu0 0.0
    %3334 = vmatpush1.msra.mxu0 0.0
    %3335 = vmatprep.subr.mxu0 0.0
    %3336 = vmatpush1.msra.mxu0 0.0
    %3337 = vmatprep.subr.mxu0 0.0
    %3338 = vmatpush1.msra.mxu0 0.0
    %3339 = vmatprep.subr.mxu0 0.0
    %3340 = vmatpush1.msra.mxu0 0.0
    %3341 = vmatprep.subr.mxu0 0.0
    %3342 = vmatpush1.msra.mxu0 0.0
    %3343 = vmatprep.subr.mxu0 0.0
    %3344 = vmatpush1.msra.mxu0 0.0
    %3345 = vmatprep.subr.mxu0 0.0
    %3346 = vmatpush1.msra.mxu0 0.0
    %3347 = vmatprep.subr.mxu0 0.0
    %3348 = vmatpush1.msra.mxu0 0.0
    %3349 = vmatprep.subr.mxu0 0.0
    %3350 = vmatpush1.msra.mxu0 0.0
    %3351 = vmatprep.subr.mxu0 0.0
    %3352 = vmatpush1.msra.mxu0 0.0
    %3353 = vmatprep.subr.mxu0 0.0
    %3354 = vmatpush1.msra.mxu0 0.0
    %3355 = vmatprep.subr.mxu0 0.0
    %3356 = vmatpush1.msra.mxu0 0.0
    %3357 = vmatprep.subr.mxu0 0.0
    %3358 = vmatpush1.msra.mxu0 0.0
    %3359 = vmatprep.subr.mxu0 0.0
    %3360 = vmatpush1.msra.mxu0 0.0
    %3361 = vmatprep.subr.mxu0 0.0
    %3362 = vmatpush1.msra.mxu0 0.0
    %3363 = vmatprep.subr.mxu0 0.0
    %3364 = vmatpush1.msra.mxu0 0.0
    %3365 = vmatprep.subr.mxu0 0.0
    %3366 = vmatpush1.msra.mxu0 0.0
    %3367 = vmatprep.subr.mxu0 0.0
    %3368 = vmatpush1.msra.mxu0 0.0
    %3369 = vmatprep.subr.mxu0 0.0
    %3370 = vmatpush1.msra.mxu0 0.0
    %3371 = vmatprep.mubr.f32.mxu0 0.0
    %v3372 = vand.u32 %v2891, 4294901760
    %3373 = vmatmul.mubr.f32.gmra.mrb[0].mxu0 %v3372
    %v3374 = vpop.f32.mrb[0].mxu0
    %v3375 = vadd.f32 %v3300, %v3374
    %v3376 = vpop.f32.mrb[0].mxu0
    %3377 = vdwg.mxu0
    %v3378 = vadd.f32 %v799, %v3375
    %v3379 = vxor.u32 %v3378, 2147483648
    %v3380 = vmul.f32 %v3379, 1.442695
    %v3381 = vpow.pop %v3380
    %v3382 = vadd.f32 %v3381, 1.0
    %v3383 = vrcp.pop %v3382
    %v3384 = vmul.f32 1.0, %v3383
    %3386 = vrot.lane.b32.xlu0 %v3375, 64
    %v3387 = vpop.permute.xlu0 %3386
    %v3389 = vmul.f32 %v3384, %v3387
    %3391 = vrot.lane.b32.xlu0 %v3389, 64
    %v3392 = vpop.permute.xlu0 %3391
    %v3394 = vadd.f32 %v799, %v3392
    %v3395 = vtanh.pop %v3394
    %v3396 = vsub.f32 1.0, %v3384
    %3398 = vrot.lane.b32.xlu0 %v3395, 96
    %v3399 = vpop.permute.xlu0 %3398
    %v3401 = vmul.f32 %v3396, %v3399
    %v3402 = vmul.f32 %v3384, %v2887
    %v3403 = vadd.f32 %v3401, %v3402
    %3405 = vrot.lane.b32.xlu0 %v3403, 96
    %v3406 = vpop.permute.xlu0 %3405
    %v3407 = vsel %vm825, %v3406, 0
    %3409 = vmatprep.subr.mxu0 0.0
    %v3410 = vand.u32 %v814, 4294901760
    %3411 = vmatpush1.msra.mxu0 %v3410
    %3412 = vmatprep.subr.mxu0 0.0
    %v3413 = vand.u32 %v815, 4294901760
    %3414 = vmatpush1.msra.mxu0 %v3413
    %3415 = vmatprep.subr.mxu0 0.0
    %v3416 = vand.u32 %v816, 4294901760
    %3417 = vmatpush1.msra.mxu0 %v3416
    %3418 = vmatprep.subr.mxu0 0.0
    %v3419 = vand.u32 %v817, 4294901760
    %3420 = vmatpush1.msra.mxu0 %v3419
    %3421 = vmatprep.subr.mxu0 0.0
    %3422 = vmatpush1.msra.mxu0 0.0
    %3423 = vmatprep.subr.mxu0 0.0
    %3424 = vmatpush1.msra.mxu0 0.0
    %3425 = vmatprep.subr.mxu0 0.0
    %3426 = vmatpush1.msra.mxu0 0.0
    %3427 = vmatprep.subr.mxu0 0.0
    %3428 = vmatpush1.msra.mxu0 0.0
    %3429 = vmatprep.subr.mxu0 0.0
    %3430 = vmatpush1.msra.mxu0 0.0
    %3431 = vmatprep.subr.mxu0 0.0
    %3432 = vmatpush1.msra.mxu0 0.0
    %3433 = vmatprep.subr.mxu0 0.0
    %3434 = vmatpush1.msra.mxu0 0.0
    %3435 = vmatprep.subr.mxu0 0.0
    %3436 = vmatpush1.msra.mxu0 0.0
    %3437 = vmatprep.subr.mxu0 0.0
    %3438 = vmatpush1.msra.mxu0 0.0
    %3439 = vmatprep.subr.mxu0 0.0
    %3440 = vmatpush1.msra.mxu0 0.0
    %3441 = vmatprep.subr.mxu0 0.0
    %3442 = vmatpush1.msra.mxu0 0.0
    %3443 = vmatprep.subr.mxu0 0.0
    %3444 = vmatpush1.msra.mxu0 0.0
    %3445 = vmatprep.subr.mxu0 0.0
    %3446 = vmatpush1.msra.mxu0 0.0
    %3447 = vmatprep.subr.mxu0 0.0
    %3448 = vmatpush1.msra.mxu0 0.0
    %3449 = vmatprep.subr.mxu0 0.0
    %3450 = vmatpush1.msra.mxu0 0.0
    %3451 = vmatprep.subr.mxu0 0.0
    %3452 = vmatpush1.msra.mxu0 0.0
    %3453 = vmatprep.subr.mxu0 0.0
    %3454 = vmatpush1.msra.mxu0 0.0
    %3455 = vmatprep.subr.mxu0 0.0
    %3456 = vmatpush1.msra.mxu0 0.0
    %3457 = vmatprep.subr.mxu0 0.0
    %3458 = vmatpush1.msra.mxu0 0.0
    %3459 = vmatprep.subr.mxu0 0.0
    %3460 = vmatpush1.msra.mxu0 0.0
    %3461 = vmatprep.subr.mxu0 0.0
    %3462 = vmatpush1.msra.mxu0 0.0
    %3463 = vmatprep.subr.mxu0 0.0
    %3464 = vmatpush1.msra.mxu0 0.0
    %3465 = vmatprep.subr.mxu0 0.0
    %3466 = vmatpush1.msra.mxu0 0.0
    %3467 = vmatprep.subr.mxu0 0.0
    %3468 = vmatpush1.msra.mxu0 0.0
    %3469 = vmatprep.subr.mxu0 0.0
    %3470 = vmatpush1.msra.mxu0 0.0
    %3471 = vmatprep.subr.mxu0 0.0
    %3472 = vmatpush1.msra.mxu0 0.0
    %3473 = vmatprep.subr.mxu0 0.0
    %3474 = vmatpush1.msra.mxu0 0.0
    %3475 = vmatprep.subr.mxu0 0.0
    %3476 = vmatpush1.msra.mxu0 0.0
    %3477 = vmatprep.mubr.f32.mxu0 0.0
    %v3478 = vand.u32 %v3407, 4294901760
    %v3479 = vsub.f32 %v3407, %v3478
    %v3480 = vand.u32 %v3479, 4294901760
    %v3481 = vsub.f32 %v3479, %v3480
    %v3482 = vand.u32 %v3481, 4294901760
    %3483 = vmatmul.mubr.f32.gmra.mrb[0].mxu0 %v3482
    %v3484 = vpop.f32.mrb[0].mxu0
    %v3485 = vadd.f32 %v823, %v3484
    %v3486 = vpop.f32.mrb[0].mxu0
    %3487 = vdwg.mxu0
    %3488 = vmatprep.subr.mxu0 0.0
    %v3489 = vand.u32 %v814, 4294901760
    %v3490 = vsub.f32 %v814, %v3489
    %v3491 = vand.u32 %v3490, 4294901760
    %v3492 = vsub.f32 %v3490, %v3491
    %v3493 = vand.u32 %v3492, 4294901760
    %3494 = vmatpush1.msra.mxu0 %v3493
    %3495 = vmatprep.subr.mxu0 0.0
    %v3496 = vand.u32 %v815, 4294901760
    %v3497 = vsub.f32 %v815, %v3496
    %v3498 = vand.u32 %v3497, 4294901760
    %v3499 = vsub.f32 %v3497, %v3498
    %v3500 = vand.u32 %v3499, 4294901760
    %3501 = vmatpush1.msra.mxu0 %v3500
    %3502 = vmatprep.subr.mxu0 0.0
    %v3503 = vand.u32 %v816, 4294901760
    %v3504 = vsub.f32 %v816, %v3503
    %v3505 = vand.u32 %v3504, 4294901760
    %v3506 = vsub.f32 %v3504, %v3505
    %v3507 = vand.u32 %v3506, 4294901760
    %3508 = vmatpush1.msra.mxu0 %v3507
    %3509 = vmatprep.subr.mxu0 0.0
    %v3510 = vand.u32 %v817, 4294901760
    %v3511 = vsub.f32 %v817, %v3510
    %v3512 = vand.u32 %v3511, 4294901760
    %v3513 = vsub.f32 %v3511, %v3512
    %v3514 = vand.u32 %v3513, 4294901760
    %3515 = vmatpush1.msra.mxu0 %v3514
    %3516 = vmatprep.subr.mxu0 0.0
    %3517 = vmatpush1.msra.mxu0 0.0
    %3518 = vmatprep.subr.mxu0 0.0
    %3519 = vmatpush1.msra.mxu0 0.0
    %3520 = vmatprep.subr.mxu0 0.0
    %3521 = vmatpush1.msra.mxu0 0.0
    %3522 = vmatprep.subr.mxu0 0.0
    %3523 = vmatpush1.msra.mxu0 0.0
    %3524 = vmatprep.subr.mxu0 0.0
    %3525 = vmatpush1.msra.mxu0 0.0
    %3526 = vmatprep.subr.mxu0 0.0
    %3527 = vmatpush1.msra.mxu0 0.0
    %3528 = vmatprep.subr.mxu0 0.0
    %3529 = vmatpush1.msra.mxu0 0.0
    %3530 = vmatprep.subr.mxu0 0.0
    %3531 = vmatpush1.msra.mxu0 0.0
    %3532 = vmatprep.subr.mxu0 0.0
    %3533 = vmatpush1.msra.mxu0 0.0
    %3534 = vmatprep.subr.mxu0 0.0
    %3535 = vmatpush1.msra.mxu0 0.0
    %3536 = vmatprep.subr.mxu0 0.0
    %3537 = vmatpush1.msra.mxu0 0.0
    %3538 = vmatprep.subr.mxu0 0.0
    %3539 = vmatpush1.msra.mxu0 0.0
    %3540 = vmatprep.subr.mxu0 0.0
    %3541 = vmatpush1.msra.mxu0 0.0
    %3542 = vmatprep.subr.mxu0 0.0
    %3543 = vmatpush1.msra.mxu0 0.0
    %3544 = vmatprep.subr.mxu0 0.0
    %3545 = vmatpush1.msra.mxu0 0.0
    %3546 = vmatprep.subr.mxu0 0.0
    %3547 = vmatpush1.msra.mxu0 0.0
    %3548 = vmatprep.subr.mxu0 0.0
    %3549 = vmatpush1.msra.mxu0 0.0
    %3550 = vmatprep.subr.mxu0 0.0
    %3551 = vmatpush1.msra.mxu0 0.0
    %3552 = vmatprep.subr.mxu0 0.0
    %3553 = vmatpush1.msra.mxu0 0.0
    %3554 = vmatprep.subr.mxu0 0.0
    %3555 = vmatpush1.msra.mxu0 0.0
    %3556 = vmatprep.subr.mxu0 0.0
    %3557 = vmatpush1.msra.mxu0 0.0
    %3558 = vmatprep.subr.mxu0 0.0
    %3559 = vmatpush1.msra.mxu0 0.0
    %3560 = vmatprep.subr.mxu0 0.0
    %3561 = vmatpush1.msra.mxu0 0.0
    %3562 = vmatprep.subr.mxu0 0.0
    %3563 = vmatpush1.msra.mxu0 0.0
    %3564 = vmatprep.subr.mxu0 0.0
    %3565 = vmatpush1.msra.mxu0 0.0
    %3566 = vmatprep.subr.mxu0 0.0
    %3567 = vmatpush1.msra.mxu0 0.0
    %3568 = vmatprep.subr.mxu0 0.0
    %3569 = vmatpush1.msra.mxu0 0.0
    %3570 = vmatprep.subr.mxu0 0.0
    %3571 = vmatpush1.msra.mxu0 0.0
    %3572 = vmatprep.mubr.f32.mxu0 0.0
    %v3573 = vand.u32 %v3407, 4294901760
    %3574 = vmatmul.mubr.f32.gmra.mrb[0].mxu0 %v3573
    %v3575 = vpop.f32.mrb[0].mxu0
    %v3576 = vadd.f32 %v3485, %v3575
    %v3577 = vpop.f32.mrb[0].mxu0
    %3578 = vdwg.mxu0
    %3579 = vmatprep.subr.mxu0 0.0
    %v3580 = vand.u32 %v814, 4294901760
    %v3581 = vsub.f32 %v814, %v3580
    %3582 = vmatpush1.msra.mxu0 %v3581
    %3583 = vmatprep.subr.mxu0 0.0
    %v3584 = vand.u32 %v815, 4294901760
    %v3585 = vsub.f32 %v815, %v3584
    %3586 = vmatpush1.msra.mxu0 %v3585
    %3587 = vmatprep.subr.mxu0 0.0
    %v3588 = vand.u32 %v816, 4294901760
    %v3589 = vsub.f32 %v816, %v3588
    %3590 = vmatpush1.msra.mxu0 %v3589
    %3591 = vmatprep.subr.mxu0 0.0
    %v3592 = vand.u32 %v817, 4294901760
    %v3593 = vsub.f32 %v817, %v3592
    %3594 = vmatpush1.msra.mxu0 %v3593
    %3595 = vmatprep.subr.mxu0 0.0
    %3596 = vmatpush1.msra.mxu0 0.0
    %3597 = vmatprep.subr.mxu0 0.0
    %3598 = vmatpush1.msra.mxu0 0.0
    %3599 = vmatprep.subr.mxu0 0.0
    %3600 = vmatpush1.msra.mxu0 0.0
    %3601 = vmatprep.subr.mxu0 0.0
    %3602 = vmatpush1.msra.mxu0 0.0
    %3603 = vmatprep.subr.mxu0 0.0
    %3604 = vmatpush1.msra.mxu0 0.0
    %3605 = vmatprep.subr.mxu0 0.0
    %3606 = vmatpush1.msra.mxu0 0.0
    %3607 = vmatprep.subr.mxu0 0.0
    %3608 = vmatpush1.msra.mxu0 0.0
    %3609 = vmatprep.subr.mxu0 0.0
    %3610 = vmatpush1.msra.mxu0 0.0
    %3611 = vmatprep.subr.mxu0 0.0
    %3612 = vmatpush1.msra.mxu0 0.0
    %3613 = vmatprep.subr.mxu0 0.0
    %3614 = vmatpush1.msra.mxu0 0.0
    %3615 = vmatprep.subr.mxu0 0.0
    %3616 = vmatpush1.msra.mxu0 0.0
    %3617 = vmatprep.subr.mxu0 0.0
    %3618 = vmatpush1.msra.mxu0 0.0
    %3619 = vmatprep.subr.mxu0 0.0
    %3620 = vmatpush1.msra.mxu0 0.0
    %3621 = vmatprep.subr.mxu0 0.0
    %3622 = vmatpush1.msra.mxu0 0.0
    %3623 = vmatprep.subr.mxu0 0.0
    %3624 = vmatpush1.msra.mxu0 0.0
    %3625 = vmatprep.subr.mxu0 0.0
    %3626 = vmatpush1.msra.mxu0 0.0
    %3627 = vmatprep.subr.mxu0 0.0
    %3628 = vmatpush1.msra.mxu0 0.0
    %3629 = vmatprep.subr.mxu0 0.0
    %3630 = vmatpush1.msra.mxu0 0.0
    %3631 = vmatprep.subr.mxu0 0.0
    %3632 = vmatpush1.msra.mxu0 0.0
    %3633 = vmatprep.subr.mxu0 0.0
    %3634 = vmatpush1.msra.mxu0 0.0
    %3635 = vmatprep.subr.mxu0 0.0
    %3636 = vmatpush1.msra.mxu0 0.0
    %3637 = vmatprep.subr.mxu0 0.0
    %3638 = vmatpush1.msra.mxu0 0.0
    %3639 = vmatprep.subr.mxu0 0.0
    %3640 = vmatpush1.msra.mxu0 0.0
    %3641 = vmatprep.subr.mxu0 0.0
    %3642 = vmatpush1.msra.mxu0 0.0
    %3643 = vmatprep.subr.mxu0 0.0
    %3644 = vmatpush1.msra.mxu0 0.0
    %3645 = vmatprep.subr.mxu0 0.0
    %3646 = vmatpush1.msra.mxu0 0.0
    %3647 = vmatprep.subr.mxu0 0.0
    %3648 = vmatpush1.msra.mxu0 0.0
    %3649 = vmatprep.subr.mxu0 0.0
    %3650 = vmatpush1.msra.mxu0 0.0
    %3651 = vmatprep.mubr.f32.mxu0 0.0
    %v3652 = vand.u32 %v3407, 4294901760
    %v3653 = vsub.f32 %v3407, %v3652
    %3654 = vmatmul.mubr.f32.gmra.mrb[0].mxu0 %v3653
    %v3655 = vpop.f32.mrb[0].mxu0
    %v3656 = vadd.f32 %v3576, %v3655
    %v3657 = vpop.f32.mrb[0].mxu0
    %3658 = vdwg.mxu0
    %3659 = vmatprep.subr.mxu0 0.0
    %v3660 = vand.u32 %v814, 4294901760
    %3661 = vmatpush1.msra.mxu0 %v3660
    %3662 = vmatprep.subr.mxu0 0.0
    %v3663 = vand.u32 %v815, 4294901760
    %3664 = vmatpush1.msra.mxu0 %v3663
    %3665 = vmatprep.subr.mxu0 0.0
    %v3666 = vand.u32 %v816, 4294901760
    %3667 = vmatpush1.msra.mxu0 %v3666
    %3668 = vmatprep.subr.mxu0 0.0
    %v3669 = vand.u32 %v817, 4294901760
    %3670 = vmatpush1.msra.mxu0 %v3669
    %3671 = vmatprep.subr.mxu0 0.0
    %3672 = vmatpush1.msra.mxu0 0.0
    %3673 = vmatprep.subr.mxu0 0.0
    %3674 = vmatpush1.msra.mxu0 0.0
    %3675 = vmatprep.subr.mxu0 0.0
    %3676 = vmatpush1.msra.mxu0 0.0
    %3677 = vmatprep.subr.mxu0 0.0
    %3678 = vmatpush1.msra.mxu0 0.0
    %3679 = vmatprep.subr.mxu0 0.0
    %3680 = vmatpush1.msra.mxu0 0.0
    %3681 = vmatprep.subr.mxu0 0.0
    %3682 = vmatpush1.msra.mxu0 0.0
    %3683 = vmatprep.subr.mxu0 0.0
    %3684 = vmatpush1.msra.mxu0 0.0
    %3685 = vmatprep.subr.mxu0 0.0
    %3686 = vmatpush1.msra.mxu0 0.0
    %3687 = vmatprep.subr.mxu0 0.0
    %3688 = vmatpush1.msra.mxu0 0.0
    %3689 = vmatprep.subr.mxu0 0.0
    %3690 = vmatpush1.msra.mxu0 0.0
    %3691 = vmatprep.subr.mxu0 0.0
    %3692 = vmatpush1.msra.mxu0 0.0
    %3693 = vmatprep.subr.mxu0 0.0
    %3694 = vmatpush1.msra.mxu0 0.0
    %3695 = vmatprep.subr.mxu0 0.0
    %3696 = vmatpush1.msra.mxu0 0.0
    %3697 = vmatprep.subr.mxu0 0.0
    %3698 = vmatpush1.msra.mxu0 0.0
    %3699 = vmatprep.subr.mxu0 0.0
    %3700 = vmatpush1.msra.mxu0 0.0
    %3701 = vmatprep.subr.mxu0 0.0
    %3702 = vmatpush1.msra.mxu0 0.0
    %3703 = vmatprep.subr.mxu0 0.0
    %3704 = vmatpush1.msra.mxu0 0.0
    %3705 = vmatprep.subr.mxu0 0.0
    %3706 = vmatpush1.msra.mxu0 0.0
    %3707 = vmatprep.subr.mxu0 0.0
    %3708 = vmatpush1.msra.mxu0 0.0
    %3709 = vmatprep.subr.mxu0 0.0
    %3710 = vmatpush1.msra.mxu0 0.0
    %3711 = vmatprep.subr.mxu0 0.0
    %3712 = vmatpush1.msra.mxu0 0.0
    %3713 = vmatprep.subr.mxu0 0.0
    %3714 = vmatpush1.msra.mxu0 0.0
    %3715 = vmatprep.subr.mxu0 0.0
    %3716 = vmatpush1.msra.mxu0 0.0
    %3717 = vmatprep.subr.mxu0 0.0
    %3718 = vmatpush1.msra.mxu0 0.0
    %3719 = vmatprep.subr.mxu0 0.0
    %3720 = vmatpush1.msra.mxu0 0.0
    %3721 = vmatprep.subr.mxu0 0.0
    %3722 = vmatpush1.msra.mxu0 0.0
    %3723 = vmatprep.subr.mxu0 0.0
    %3724 = vmatpush1.msra.mxu0 0.0
    %3725 = vmatprep.subr.mxu0 0.0
    %3726 = vmatpush1.msra.mxu0 0.0
    %3727 = vmatprep.mubr.f32.mxu0 0.0
    %v3728 = vand.u32 %v3407, 4294901760
    %v3729 = vsub.f32 %v3407, %v3728
    %v3730 = vand.u32 %v3729, 4294901760
    %3731 = vmatmul.mubr.f32.gmra.mrb[0].mxu0 %v3730
    %v3732 = vpop.f32.mrb[0].mxu0
    %v3733 = vadd.f32 %v3656, %v3732
    %v3734 = vpop.f32.mrb[0].mxu0
    %3735 = vdwg.mxu0
    %3736 = vmatprep.subr.mxu0 0.0
    %v3737 = vand.u32 %v814, 4294901760
    %v3738 = vsub.f32 %v814, %v3737
    %v3739 = vand.u32 %v3738, 4294901760
    %3740 = vmatpush1.msra.mxu0 %v3739
    %3741 = vmatprep.subr.mxu0 0.0
    %v3742 = vand.u32 %v815, 4294901760
    %v3743 = vsub.f32 %v815, %v3742
    %v3744 = vand.u32 %v3743, 4294901760
    %3745 = vmatpush1.msra.mxu0 %v3744
    %3746 = vmatprep.subr.mxu0 0.0
    %v3747 = vand.u32 %v816, 4294901760
    %v3748 = vsub.f32 %v816, %v3747
    %v3749 = vand.u32 %v3748, 4294901760
    %3750 = vmatpush1.msra.mxu0 %v3749
    %3751 = vmatprep.subr.mxu0 0.0
    %v3752 = vand.u32 %v817, 4294901760
    %v3753 = vsub.f32 %v817, %v3752
    %v3754 = vand.u32 %v3753, 4294901760
    %3755 = vmatpush1.msra.mxu0 %v3754
    %3756 = vmatprep.subr.mxu0 0.0
    %3757 = vmatpush1.msra.mxu0 0.0
    %3758 = vmatprep.subr.mxu0 0.0
    %3759 = vmatpush1.msra.mxu0 0.0
    %3760 = vmatprep.subr.mxu0 0.0
    %3761 = vmatpush1.msra.mxu0 0.0
    %3762 = vmatprep.subr.mxu0 0.0
    %3763 = vmatpush1.msra.mxu0 0.0
    %3764 = vmatprep.subr.mxu0 0.0
    %3765 = vmatpush1.msra.mxu0 0.0
    %3766 = vmatprep.subr.mxu0 0.0
    %3767 = vmatpush1.msra.mxu0 0.0
    %3768 = vmatprep.subr.mxu0 0.0
    %3769 = vmatpush1.msra.mxu0 0.0
    %3770 = vmatprep.subr.mxu0 0.0
    %3771 = vmatpush1.msra.mxu0 0.0
    %3772 = vmatprep.subr.mxu0 0.0
    %3773 = vmatpush1.msra.mxu0 0.0
    %3774 = vmatprep.subr.mxu0 0.0
    %3775 = vmatpush1.msra.mxu0 0.0
    %3776 = vmatprep.subr.mxu0 0.0
    %3777 = vmatpush1.msra.mxu0 0.0
    %3778 = vmatprep.subr.mxu0 0.0
    %3779 = vmatpush1.msra.mxu0 0.0
    %3780 = vmatprep.subr.mxu0 0.0
    %3781 = vmatpush1.msra.mxu0 0.0
    %3782 = vmatprep.subr.mxu0 0.0
    %3783 = vmatpush1.msra.mxu0 0.0
    %3784 = vmatprep.subr.mxu0 0.0
    %3785 = vmatpush1.msra.mxu0 0.0
    %3786 = vmatprep.subr.mxu0 0.0
    %3787 = vmatpush1.msra.mxu0 0.0
    %3788 = vmatprep.subr.mxu0 0.0
    %3789 = vmatpush1.msra.mxu0 0.0
    %3790 = vmatprep.subr.mxu0 0.0
    %3791 = vmatpush1.msra.mxu0 0.0
    %3792 = vmatprep.subr.mxu0 0.0
    %3793 = vmatpush1.msra.mxu0 0.0
    %3794 = vmatprep.subr.mxu0 0.0
    %3795 = vmatpush1.msra.mxu0 0.0
    %3796 = vmatprep.subr.mxu0 0.0
    %3797 = vmatpush1.msra.mxu0 0.0
    %3798 = vmatprep.subr.mxu0 0.0
    %3799 = vmatpush1.msra.mxu0 0.0
    %3800 = vmatprep.subr.mxu0 0.0
    %3801 = vmatpush1.msra.mxu0 0.0
    %3802 = vmatprep.subr.mxu0 0.0
    %3803 = vmatpush1.msra.mxu0 0.0
    %3804 = vmatprep.subr.mxu0 0.0
    %3805 = vmatpush1.msra.mxu0 0.0
    %3806 = vmatprep.subr.mxu0 0.0
    %3807 = vmatpush1.msra.mxu0 0.0
    %3808 = vmatprep.subr.mxu0 0.0
    %3809 = vmatpush1.msra.mxu0 0.0
    %3810 = vmatprep.subr.mxu0 0.0
    %3811 = vmatpush1.msra.mxu0 0.0
    %3812 = vmatprep.mubr.f32.mxu0 0.0
    %v3813 = vand.u32 %v3407, 4294901760
    %3814 = vmatmul.mubr.f32.gmra.mrb[0].mxu0 %v3813
    %v3815 = vpop.f32.mrb[0].mxu0
    %v3816 = vadd.f32 %v3733, %v3815
    %v3817 = vpop.f32.mrb[0].mxu0
    %3818 = vdwg.mxu0
    %3819 = vmatprep.subr.mxu0 0.0
    %v3820 = vand.u32 %v814, 4294901760
    %3821 = vmatpush1.msra.mxu0 %v3820
    %3822 = vmatprep.subr.mxu0 0.0
    %v3823 = vand.u32 %v815, 4294901760
    %3824 = vmatpush1.msra.mxu0 %v3823
    %3825 = vmatprep.subr.mxu0 0.0
    %v3826 = vand.u32 %v816, 4294901760
    %3827 = vmatpush1.msra.mxu0 %v3826
    %3828 = vmatprep.subr.mxu0 0.0
    %v3829 = vand.u32 %v817, 4294901760
    %3830 = vmatpush1.msra.mxu0 %v3829
    %3831 = vmatprep.subr.mxu0 0.0
    %3832 = vmatpush1.msra.mxu0 0.0
    %3833 = vmatprep.subr.mxu0 0.0
    %3834 = vmatpush1.msra.mxu0 0.0
    %3835 = vmatprep.subr.mxu0 0.0
    %3836 = vmatpush1.msra.mxu0 0.0
    %3837 = vmatprep.subr.mxu0 0.0
    %3838 = vmatpush1.msra.mxu0 0.0
    %3839 = vmatprep.subr.mxu0 0.0
    %3840 = vmatpush1.msra.mxu0 0.0
    %3841 = vmatprep.subr.mxu0 0.0
    %3842 = vmatpush1.msra.mxu0 0.0
    %3843 = vmatprep.subr.mxu0 0.0
    %3844 = vmatpush1.msra.mxu0 0.0
    %3845 = vmatprep.subr.mxu0 0.0
    %3846 = vmatpush1.msra.mxu0 0.0
    %3847 = vmatprep.subr.mxu0 0.0
    %3848 = vmatpush1.msra.mxu0 0.0
    %3849 = vmatprep.subr.mxu0 0.0
    %3850 = vmatpush1.msra.mxu0 0.0
    %3851 = vmatprep.subr.mxu0 0.0
    %3852 = vmatpush1.msra.mxu0 0.0
    %3853 = vmatprep.subr.mxu0 0.0
    %3854 = vmatpush1.msra.mxu0 0.0
    %3855 = vmatprep.subr.mxu0 0.0
    %3856 = vmatpush1.msra.mxu0 0.0
    %3857 = vmatprep.subr.mxu0 0.0
    %3858 = vmatpush1.msra.mxu0 0.0
    %3859 = vmatprep.subr.mxu0 0.0
    %3860 = vmatpush1.msra.mxu0 0.0
    %3861 = vmatprep.subr.mxu0 0.0
    %3862 = vmatpush1.msra.mxu0 0.0
    %3863 = vmatprep.subr.mxu0 0.0
    %3864 = vmatpush1.msra.mxu0 0.0
    %3865 = vmatprep.subr.mxu0 0.0
    %3866 = vmatpush1.msra.mxu0 0.0
    %3867 = vmatprep.subr.mxu0 0.0
    %3868 = vmatpush1.msra.mxu0 0.0
    %3869 = vmatprep.subr.mxu0 0.0
    %3870 = vmatpush1.msra.mxu0 0.0
    %3871 = vmatprep.subr.mxu0 0.0
    %3872 = vmatpush1.msra.mxu0 0.0
    %3873 = vmatprep.subr.mxu0 0.0
    %3874 = vmatpush1.msra.mxu0 0.0
    %3875 = vmatprep.subr.mxu0 0.0
    %3876 = vmatpush1.msra.mxu0 0.0
    %3877 = vmatprep.subr.mxu0 0.0
    %3878 = vmatpush1.msra.mxu0 0.0
    %3879 = vmatprep.subr.mxu0 0.0
    %3880 = vmatpush1.msra.mxu0 0.0
    %3881 = vmatprep.subr.mxu0 0.0
    %3882 = vmatpush1.msra.mxu0 0.0
    %3883 = vmatprep.subr.mxu0 0.0
    %3884 = vmatpush1.msra.mxu0 0.0
    %3885 = vmatprep.subr.mxu0 0.0
    %3886 = vmatpush1.msra.mxu0 0.0
    %3887 = vmatprep.mubr.f32.mxu0 0.0
    %v3888 = vand.u32 %v3407, 4294901760
    %3889 = vmatmul.mubr.f32.gmra.mrb[0].mxu0 %v3888
    %v3890 = vpop.f32.mrb[0].mxu0
    %v3891 = vadd.f32 %v3816, %v3890
    %v3892 = vpop.f32.mrb[0].mxu0
    %3893 = vdwg.mxu0
    %v3894 = vadd.f32 %v805, %v3891
    %v3895 = vxor.u32 %v3894, 2147483648
    %v3896 = vmul.f32 %v3895, 1.442695
    %v3897 = vpow.pop %v3896
    %v3898 = vadd.f32 %v3897, 1.0
    %v3899 = vrcp.pop %v3898
    %v3900 = vmul.f32 1.0, %v3899
    %3902 = vrot.lane.b32.xlu0 %v3891, 64
    %v3903 = vpop.permute.xlu0 %3902
    %v3905 = vmul.f32 %v3900, %v3903
    %3907 = vrot.lane.b32.xlu0 %v3905, 64
    %v3908 = vpop.permute.xlu0 %3907
    %v3910 = vadd.f32 %v805, %v3908
    %v3911 = vtanh.pop %v3910
    %v3912 = vsub.f32 1.0, %v3900
    %3914 = vrot.lane.b32.xlu0 %v3911, 96
    %v3915 = vpop.permute.xlu0 %3914
    %v3917 = vmul.f32 %v3912, %v3915
    %v3918 = vmul.f32 %v3900, %v3403
    %v3919 = vadd.f32 %v3917, %v3918
    %3921 = vrot.lane.b32.xlu0 %v3919, 96
    %v3922 = vpop.permute.xlu0 %3921
    %v3923 = vsel %vm825, %v3922, 0
    %3925 = vmatprep.subr.mxu0 0.0
    %v3926 = vand.u32 %v814, 4294901760
    %3927 = vmatpush1.msra.mxu0 %v3926
    %3928 = vmatprep.subr.mxu0 0.0
    %v3929 = vand.u32 %v815, 4294901760
    %3930 = vmatpush1.msra.mxu0 %v3929
    %3931 = vmatprep.subr.mxu0 0.0
    %v3932 = vand.u32 %v816, 4294901760
    %3933 = vmatpush1.msra.mxu0 %v3932
    %3934 = vmatprep.subr.mxu0 0.0
    %v3935 = vand.u32 %v817, 4294901760
    %3936 = vmatpush1.msra.mxu0 %v3935
    %3937 = vmatprep.subr.mxu0 0.0
    %3938 = vmatpush1.msra.mxu0 0.0
    %3939 = vmatprep.subr.mxu0 0.0
    %3940 = vmatpush1.msra.mxu0 0.0
    %3941 = vmatprep.subr.mxu0 0.0
    %3942 = vmatpush1.msra.mxu0 0.0
    %3943 = vmatprep.subr.mxu0 0.0
    %3944 = vmatpush1.msra.mxu0 0.0
    %3945 = vmatprep.subr.mxu0 0.0
    %3946 = vmatpush1.msra.mxu0 0.0
    %3947 = vmatprep.subr.mxu0 0.0
    %3948 = vmatpush1.msra.mxu0 0.0
    %3949 = vmatprep.subr.mxu0 0.0
    %3950 = vmatpush1.msra.mxu0 0.0
    %3951 = vmatprep.subr.mxu0 0.0
    %3952 = vmatpush1.msra.mxu0 0.0
    %3953 = vmatprep.subr.mxu0 0.0
    %3954 = vmatpush1.msra.mxu0 0.0
    %3955 = vmatprep.subr.mxu0 0.0
    %3956 = vmatpush1.msra.mxu0 0.0
    %3957 = vmatprep.subr.mxu0 0.0
    %3958 = vmatpush1.msra.mxu0 0.0
    %3959 = vmatprep.subr.mxu0 0.0
    %3960 = vmatpush1.msra.mxu0 0.0
    %3961 = vmatprep.subr.mxu0 0.0
    %3962 = vmatpush1.msra.mxu0 0.0
    %3963 = vmatprep.subr.mxu0 0.0
    %3964 = vmatpush1.msra.mxu0 0.0
    %3965 = vmatprep.subr.mxu0 0.0
    %3966 = vmatpush1.msra.mxu0 0.0
    %3967 = vmatprep.subr.mxu0 0.0
    %3968 = vmatpush1.msra.mxu0 0.0
    %3969 = vmatprep.subr.mxu0 0.0
    %3970 = vmatpush1.msra.mxu0 0.0
    %3971 = vmatprep.subr.mxu0 0.0
    %3972 = vmatpush1.msra.mxu0 0.0
    %3973 = vmatprep.subr.mxu0 0.0
    %3974 = vmatpush1.msra.mxu0 0.0
    %3975 = vmatprep.subr.mxu0 0.0
    %3976 = vmatpush1.msra.mxu0 0.0
    %3977 = vmatprep.subr.mxu0 0.0
    %3978 = vmatpush1.msra.mxu0 0.0
    %3979 = vmatprep.subr.mxu0 0.0
    %3980 = vmatpush1.msra.mxu0 0.0
    %3981 = vmatprep.subr.mxu0 0.0
    %3982 = vmatpush1.msra.mxu0 0.0
    %3983 = vmatprep.subr.mxu0 0.0
    %3984 = vmatpush1.msra.mxu0 0.0
    %3985 = vmatprep.subr.mxu0 0.0
    %3986 = vmatpush1.msra.mxu0 0.0
    %3987 = vmatprep.subr.mxu0 0.0
    %3988 = vmatpush1.msra.mxu0 0.0
    %3989 = vmatprep.subr.mxu0 0.0
    %3990 = vmatpush1.msra.mxu0 0.0
    %3991 = vmatprep.subr.mxu0 0.0
    %3992 = vmatpush1.msra.mxu0 0.0
    %3993 = vmatprep.mubr.f32.mxu0 0.0
    %v3994 = vand.u32 %v3923, 4294901760
    %v3995 = vsub.f32 %v3923, %v3994
    %v3996 = vand.u32 %v3995, 4294901760
    %v3997 = vsub.f32 %v3995, %v3996
    %v3998 = vand.u32 %v3997, 4294901760
    %3999 = vmatmul.mubr.f32.gmra.mrb[0].mxu0 %v3998
    %v4000 = vpop.f32.mrb[0].mxu0
    %v4001 = vadd.f32 %v823, %v4000
    %v4002 = vpop.f32.mrb[0].mxu0
    %4003 = vdwg.mxu0
    %4004 = vmatprep.subr.mxu0 0.0
    %v4005 = vand.u32 %v814, 4294901760
    %v4006 = vsub.f32 %v814, %v4005
    %v4007 = vand.u32 %v4006, 4294901760
    %v4008 = vsub.f32 %v4006, %v4007
    %v4009 = vand.u32 %v4008, 4294901760
    %4010 = vmatpush1.msra.mxu0 %v4009
    %4011 = vmatprep.subr.mxu0 0.0
    %v4012 = vand.u32 %v815, 4294901760
    %v4013 = vsub.f32 %v815, %v4012
    %v4014 = vand.u32 %v4013, 4294901760
    %v4015 = vsub.f32 %v4013, %v4014
    %v4016 = vand.u32 %v4015, 4294901760
    %4017 = vmatpush1.msra.mxu0 %v4016
    %4018 = vmatprep.subr.mxu0 0.0
    %v4019 = vand.u32 %v816, 4294901760
    %v4020 = vsub.f32 %v816, %v4019
    %v4021 = vand.u32 %v4020, 4294901760
    %v4022 = vsub.f32 %v4020, %v4021
    %v4023 = vand.u32 %v4022, 4294901760
    %4024 = vmatpush1.msra.mxu0 %v4023
    %4025 = vmatprep.subr.mxu0 0.0
    %v4026 = vand.u32 %v817, 4294901760
    %v4027 = vsub.f32 %v817, %v4026
    %v4028 = vand.u32 %v4027, 4294901760
    %v4029 = vsub.f32 %v4027, %v4028
    %v4030 = vand.u32 %v4029, 4294901760
    %4031 = vmatpush1.msra.mxu0 %v4030
    %4032 = vmatprep.subr.mxu0 0.0
    %4033 = vmatpush1.msra.mxu0 0.0
    %4034 = vmatprep.subr.mxu0 0.0
    %4035 = vmatpush1.msra.mxu0 0.0
    %4036 = vmatprep.subr.mxu0 0.0
    %4037 = vmatpush1.msra.mxu0 0.0
    %4038 = vmatprep.subr.mxu0 0.0
    %4039 = vmatpush1.msra.mxu0 0.0
    %4040 = vmatprep.subr.mxu0 0.0
    %4041 = vmatpush1.msra.mxu0 0.0
    %4042 = vmatprep.subr.mxu0 0.0
    %4043 = vmatpush1.msra.mxu0 0.0
    %4044 = vmatprep.subr.mxu0 0.0
    %4045 = vmatpush1.msra.mxu0 0.0
    %4046 = vmatprep.subr.mxu0 0.0
    %4047 = vmatpush1.msra.mxu0 0.0
    %4048 = vmatprep.subr.mxu0 0.0
    %4049 = vmatpush1.msra.mxu0 0.0
    %4050 = vmatprep.subr.mxu0 0.0
    %4051 = vmatpush1.msra.mxu0 0.0
    %4052 = vmatprep.subr.mxu0 0.0
    %4053 = vmatpush1.msra.mxu0 0.0
    %4054 = vmatprep.subr.mxu0 0.0
    %4055 = vmatpush1.msra.mxu0 0.0
    %4056 = vmatprep.subr.mxu0 0.0
    %4057 = vmatpush1.msra.mxu0 0.0
    %4058 = vmatprep.subr.mxu0 0.0
    %4059 = vmatpush1.msra.mxu0 0.0
    %4060 = vmatprep.subr.mxu0 0.0
    %4061 = vmatpush1.msra.mxu0 0.0
    %4062 = vmatprep.subr.mxu0 0.0
    %4063 = vmatpush1.msra.mxu0 0.0
    %4064 = vmatprep.subr.mxu0 0.0
    %4065 = vmatpush1.msra.mxu0 0.0
    %4066 = vmatprep.subr.mxu0 0.0
    %4067 = vmatpush1.msra.mxu0 0.0
    %4068 = vmatprep.subr.mxu0 0.0
    %4069 = vmatpush1.msra.mxu0 0.0
    %4070 = vmatprep.subr.mxu0 0.0
    %4071 = vmatpush1.msra.mxu0 0.0
    %4072 = vmatprep.subr.mxu0 0.0
    %4073 = vmatpush1.msra.mxu0 0.0
    %4074 = vmatprep.subr.mxu0 0.0
    %4075 = vmatpush1.msra.mxu0 0.0
    %4076 = vmatprep.subr.mxu0 0.0
    %4077 = vmatpush1.msra.mxu0 0.0
    %4078 = vmatprep.subr.mxu0 0.0
    %4079 = vmatpush1.msra.mxu0 0.0
    %4080 = vmatprep.subr.mxu0 0.0
    %4081 = vmatpush1.msra.mxu0 0.0
    %4082 = vmatprep.subr.mxu0 0.0
    %4083 = vmatpush1.msra.mxu0 0.0
    %4084 = vmatprep.subr.mxu0 0.0
    %4085 = vmatpush1.msra.mxu0 0.0
    %4086 = vmatprep.subr.mxu0 0.0
    %4087 = vmatpush1.msra.mxu0 0.0
    %4088 = vmatprep.mubr.f32.mxu0 0.0
    %v4089 = vand.u32 %v3923, 4294901760
    %4090 = vmatmul.mubr.f32.gmra.mrb[0].mxu0 %v4089
    %v4091 = vpop.f32.mrb[0].mxu0
    %v4092 = vadd.f32 %v4001, %v4091
    %v4093 = vpop.f32.mrb[0].mxu0
    %4094 = vdwg.mxu0
    %4095 = vmatprep.subr.mxu0 0.0
    %v4096 = vand.u32 %v814, 4294901760
    %v4097 = vsub.f32 %v814, %v4096
    %4098 = vmatpush1.msra.mxu0 %v4097
    %4099 = vmatprep.subr.mxu0 0.0
    %v4100 = vand.u32 %v815, 4294901760
    %v4101 = vsub.f32 %v815, %v4100
    %4102 = vmatpush1.msra.mxu0 %v4101
    %4103 = vmatprep.subr.mxu0 0.0
    %v4104 = vand.u32 %v816, 4294901760
    %v4105 = vsub.f32 %v816, %v4104
    %4106 = vmatpush1.msra.mxu0 %v4105
    %4107 = vmatprep.subr.mxu0 0.0
    %v4108 = vand.u32 %v817, 4294901760
    %v4109 = vsub.f32 %v817, %v4108
    %4110 = vmatpush1.msra.mxu0 %v4109
    %4111 = vmatprep.subr.mxu0 0.0
    %4112 = vmatpush1.msra.mxu0 0.0
    %4113 = vmatprep.subr.mxu0 0.0
    %4114 = vmatpush1.msra.mxu0 0.0
    %4115 = vmatprep.subr.mxu0 0.0
    %4116 = vmatpush1.msra.mxu0 0.0
    %4117 = vmatprep.subr.mxu0 0.0
    %4118 = vmatpush1.msra.mxu0 0.0
    %4119 = vmatprep.subr.mxu0 0.0
    %4120 = vmatpush1.msra.mxu0 0.0
    %4121 = vmatprep.subr.mxu0 0.0
    %4122 = vmatpush1.msra.mxu0 0.0
    %4123 = vmatprep.subr.mxu0 0.0
    %4124 = vmatpush1.msra.mxu0 0.0
    %4125 = vmatprep.subr.mxu0 0.0
    %4126 = vmatpush1.msra.mxu0 0.0
    %4127 = vmatprep.subr.mxu0 0.0
    %4128 = vmatpush1.msra.mxu0 0.0
    %4129 = vmatprep.subr.mxu0 0.0
    %4130 = vmatpush1.msra.mxu0 0.0
    %4131 = vmatprep.subr.mxu0 0.0
    %4132 = vmatpush1.msra.mxu0 0.0
    %4133 = vmatprep.subr.mxu0 0.0
    %4134 = vmatpush1.msra.mxu0 0.0
    %4135 = vmatprep.subr.mxu0 0.0
    %4136 = vmatpush1.msra.mxu0 0.0
    %4137 = vmatprep.subr.mxu0 0.0
    %4138 = vmatpush1.msra.mxu0 0.0
    %4139 = vmatprep.subr.mxu0 0.0
    %4140 = vmatpush1.msra.mxu0 0.0
    %4141 = vmatprep.subr.mxu0 0.0
    %4142 = vmatpush1.msra.mxu0 0.0
    %4143 = vmatprep.subr.mxu0 0.0
    %4144 = vmatpush1.msra.mxu0 0.0
    %4145 = vmatprep.subr.mxu0 0.0
    %4146 = vmatpush1.msra.mxu0 0.0
    %4147 = vmatprep.subr.mxu0 0.0
    %4148 = vmatpush1.msra.mxu0 0.0
    %4149 = vmatprep.subr.mxu0 0.0
    %4150 = vmatpush1.msra.mxu0 0.0
    %4151 = vmatprep.subr.mxu0 0.0
    %4152 = vmatpush1.msra.mxu0 0.0
    %4153 = vmatprep.subr.mxu0 0.0
    %4154 = vmatpush1.msra.mxu0 0.0
    %4155 = vmatprep.subr.mxu0 0.0
    %4156 = vmatpush1.msra.mxu0 0.0
    %4157 = vmatprep.subr.mxu0 0.0
    %4158 = vmatpush1.msra.mxu0 0.0
    %4159 = vmatprep.subr.mxu0 0.0
    %4160 = vmatpush1.msra.mxu0 0.0
    %4161 = vmatprep.subr.mxu0 0.0
    %4162 = vmatpush1.msra.mxu0 0.0
    %4163 = vmatprep.subr.mxu0 0.0
    %4164 = vmatpush1.msra.mxu0 0.0
    %4165 = vmatprep.subr.mxu0 0.0
    %4166 = vmatpush1.msra.mxu0 0.0
    %4167 = vmatprep.mubr.f32.mxu0 0.0
    %v4168 = vand.u32 %v3923, 4294901760
    %v4169 = vsub.f32 %v3923, %v4168
    %4170 = vmatmul.mubr.f32.gmra.mrb[0].mxu0 %v4169
    %v4171 = vpop.f32.mrb[0].mxu0
    %v4172 = vadd.f32 %v4092, %v4171
    %v4173 = vpop.f32.mrb[0].mxu0
    %4174 = vdwg.mxu0
    %4175 = vmatprep.subr.mxu0 0.0
    %v4176 = vand.u32 %v814, 4294901760
    %4177 = vmatpush1.msra.mxu0 %v4176
    %4178 = vmatprep.subr.mxu0 0.0
    %v4179 = vand.u32 %v815, 4294901760
    %4180 = vmatpush1.msra.mxu0 %v4179
    %4181 = vmatprep.subr.mxu0 0.0
    %v4182 = vand.u32 %v816, 4294901760
    %4183 = vmatpush1.msra.mxu0 %v4182
    %4184 = vmatprep.subr.mxu0 0.0
    %v4185 = vand.u32 %v817, 4294901760
    %4186 = vmatpush1.msra.mxu0 %v4185
    %4187 = vmatprep.subr.mxu0 0.0
    %4188 = vmatpush1.msra.mxu0 0.0
    %4189 = vmatprep.subr.mxu0 0.0
    %4190 = vmatpush1.msra.mxu0 0.0
    %4191 = vmatprep.subr.mxu0 0.0
    %4192 = vmatpush1.msra.mxu0 0.0
    %4193 = vmatprep.subr.mxu0 0.0
    %4194 = vmatpush1.msra.mxu0 0.0
    %4195 = vmatprep.subr.mxu0 0.0
    %4196 = vmatpush1.msra.mxu0 0.0
    %4197 = vmatprep.subr.mxu0 0.0
    %4198 = vmatpush1.msra.mxu0 0.0
    %4199 = vmatprep.subr.mxu0 0.0
    %4200 = vmatpush1.msra.mxu0 0.0
    %4201 = vmatprep.subr.mxu0 0.0
    %4202 = vmatpush1.msra.mxu0 0.0
    %4203 = vmatprep.subr.mxu0 0.0
    %4204 = vmatpush1.msra.mxu0 0.0
    %4205 = vmatprep.subr.mxu0 0.0
    %4206 = vmatpush1.msra.mxu0 0.0
    %4207 = vmatprep.subr.mxu0 0.0
    %4208 = vmatpush1.msra.mxu0 0.0
    %4209 = vmatprep.subr.mxu0 0.0
    %4210 = vmatpush1.msra.mxu0 0.0
    %4211 = vmatprep.subr.mxu0 0.0
    %4212 = vmatpush1.msra.mxu0 0.0
    %4213 = vmatprep.subr.mxu0 0.0
    %4214 = vmatpush1.msra.mxu0 0.0
    %4215 = vmatprep.subr.mxu0 0.0
    %4216 = vmatpush1.msra.mxu0 0.0
    %4217 = vmatprep.subr.mxu0 0.0
    %4218 = vmatpush1.msra.mxu0 0.0
    %4219 = vmatprep.subr.mxu0 0.0
    %4220 = vmatpush1.msra.mxu0 0.0
    %4221 = vmatprep.subr.mxu0 0.0
    %4222 = vmatpush1.msra.mxu0 0.0
    %4223 = vmatprep.subr.mxu0 0.0
    %4224 = vmatpush1.msra.mxu0 0.0
    %4225 = vmatprep.subr.mxu0 0.0
    %4226 = vmatpush1.msra.mxu0 0.0
    %4227 = vmatprep.subr.mxu0 0.0
    %4228 = vmatpush1.msra.mxu0 0.0
    %4229 = vmatprep.subr.mxu0 0.0
    %4230 = vmatpush1.msra.mxu0 0.0
    %4231 = vmatprep.subr.mxu0 0.0
    %4232 = vmatpush1.msra.mxu0 0.0
    %4233 = vmatprep.subr.mxu0 0.0
    %4234 = vmatpush1.msra.mxu0 0.0
    %4235 = vmatprep.subr.mxu0 0.0
    %4236 = vmatpush1.msra.mxu0 0.0
    %4237 = vmatprep.subr.mxu0 0.0
    %4238 = vmatpush1.msra.mxu0 0.0
    %4239 = vmatprep.subr.mxu0 0.0
    %4240 = vmatpush1.msra.mxu0 0.0
    %4241 = vmatprep.subr.mxu0 0.0
    %4242 = vmatpush1.msra.mxu0 0.0
    %4243 = vmatprep.mubr.f32.mxu0 0.0
    %v4244 = vand.u32 %v3923, 4294901760
    %v4245 = vsub.f32 %v3923, %v4244
    %v4246 = vand.u32 %v4245, 4294901760
    %4247 = vmatmul.mubr.f32.gmra.mrb[0].mxu0 %v4246
    %v4248 = vpop.f32.mrb[0].mxu0
    %v4249 = vadd.f32 %v4172, %v4248
    %v4250 = vpop.f32.mrb[0].mxu0
    %4251 = vdwg.mxu0
    %4252 = vmatprep.subr.mxu0 0.0
    %v4253 = vand.u32 %v814, 4294901760
    %v4254 = vsub.f32 %v814, %v4253
    %v4255 = vand.u32 %v4254, 4294901760
    %4256 = vmatpush1.msra.mxu0 %v4255
    %4257 = vmatprep.subr.mxu0 0.0
    %v4258 = vand.u32 %v815, 4294901760
    %v4259 = vsub.f32 %v815, %v4258
    %v4260 = vand.u32 %v4259, 4294901760
    %4261 = vmatpush1.msra.mxu0 %v4260
    %4262 = vmatprep.subr.mxu0 0.0
    %v4263 = vand.u32 %v816, 4294901760
    %v4264 = vsub.f32 %v816, %v4263
    %v4265 = vand.u32 %v4264, 4294901760
    %4266 = vmatpush1.msra.mxu0 %v4265
    %4267 = vmatprep.subr.mxu0 0.0
    %v4268 = vand.u32 %v817, 4294901760
    %v4269 = vsub.f32 %v817, %v4268
    %v4270 = vand.u32 %v4269, 4294901760
    %4271 = vmatpush1.msra.mxu0 %v4270
    %4272 = vmatprep.subr.mxu0 0.0
    %4273 = vmatpush1.msra.mxu0 0.0
    %4274 = vmatprep.subr.mxu0 0.0
    %4275 = vmatpush1.msra.mxu0 0.0
    %4276 = vmatprep.subr.mxu0 0.0
    %4277 = vmatpush1.msra.mxu0 0.0
    %4278 = vmatprep.subr.mxu0 0.0
    %4279 = vmatpush1.msra.mxu0 0.0
    %4280 = vmatprep.subr.mxu0 0.0
    %4281 = vmatpush1.msra.mxu0 0.0
    %4282 = vmatprep.subr.mxu0 0.0
    %4283 = vmatpush1.msra.mxu0 0.0
    %4284 = vmatprep.subr.mxu0 0.0
    %4285 = vmatpush1.msra.mxu0 0.0
    %4286 = vmatprep.subr.mxu0 0.0
    %4287 = vmatpush1.msra.mxu0 0.0
    %4288 = vmatprep.subr.mxu0 0.0
    %4289 = vmatpush1.msra.mxu0 0.0
    %4290 = vmatprep.subr.mxu0 0.0
    %4291 = vmatpush1.msra.mxu0 0.0
    %4292 = vmatprep.subr.mxu0 0.0
    %4293 = vmatpush1.msra.mxu0 0.0
    %4294 = vmatprep.subr.mxu0 0.0
    %4295 = vmatpush1.msra.mxu0 0.0
    %4296 = vmatprep.subr.mxu0 0.0
    %4297 = vmatpush1.msra.mxu0 0.0
    %4298 = vmatprep.subr.mxu0 0.0
    %4299 = vmatpush1.msra.mxu0 0.0
    %4300 = vmatprep.subr.mxu0 0.0
    %4301 = vmatpush1.msra.mxu0 0.0
    %4302 = vmatprep.subr.mxu0 0.0
    %4303 = vmatpush1.msra.mxu0 0.0
    %4304 = vmatprep.subr.mxu0 0.0
    %4305 = vmatpush1.msra.mxu0 0.0
    %4306 = vmatprep.subr.mxu0 0.0
    %4307 = vmatpush1.msra.mxu0 0.0
    %4308 = vmatprep.subr.mxu0 0.0
    %4309 = vmatpush1.msra.mxu0 0.0
    %4310 = vmatprep.subr.mxu0 0.0
    %4311 = vmatpush1.msra.mxu0 0.0
    %4312 = vmatprep.subr.mxu0 0.0
    %4313 = vmatpush1.msra.mxu0 0.0
    %4314 = vmatprep.subr.mxu0 0.0
    %4315 = vmatpush1.msra.mxu0 0.0
    %4316 = vmatprep.subr.mxu0 0.0
    %4317 = vmatpush1.msra.mxu0 0.0
    %4318 = vmatprep.subr.mxu0 0.0
    %4319 = vmatpush1.msra.mxu0 0.0
    %4320 = vmatprep.subr.mxu0 0.0
    %4321 = vmatpush1.msra.mxu0 0.0
    %4322 = vmatprep.subr.mxu0 0.0
    %4323 = vmatpush1.msra.mxu0 0.0
    %4324 = vmatprep.subr.mxu0 0.0
    %4325 = vmatpush1.msra.mxu0 0.0
    %4326 = vmatprep.subr.mxu0 0.0
    %4327 = vmatpush1.msra.mxu0 0.0
    %4328 = vmatprep.mubr.f32.mxu0 0.0
    %v4329 = vand.u32 %v3923, 4294901760
    %4330 = vmatmul.mubr.f32.gmra.mrb[0].mxu0 %v4329
    %v4331 = vpop.f32.mrb[0].mxu0
    %v4332 = vadd.f32 %v4249, %v4331
    %v4333 = vpop.f32.mrb[0].mxu0
    %4334 = vdwg.mxu0
    %4335 = vmatprep.subr.mxu0 0.0
    %v4336 = vand.u32 %v814, 4294901760
    %4337 = vmatpush1.msra.mxu0 %v4336
    %4338 = vmatprep.subr.mxu0 0.0
    %v4339 = vand.u32 %v815, 4294901760
    %4340 = vmatpush1.msra.mxu0 %v4339
    %4341 = vmatprep.subr.mxu0 0.0
    %v4342 = vand.u32 %v816, 4294901760
    %4343 = vmatpush1.msra.mxu0 %v4342
    %4344 = vmatprep.subr.mxu0 0.0
    %v4345 = vand.u32 %v817, 4294901760
    %4346 = vmatpush1.msra.mxu0 %v4345
    %4347 = vmatprep.subr.mxu0 0.0
    %4348 = vmatpush1.msra.mxu0 0.0
    %4349 = vmatprep.subr.mxu0 0.0
    %4350 = vmatpush1.msra.mxu0 0.0
    %4351 = vmatprep.subr.mxu0 0.0
    %4352 = vmatpush1.msra.mxu0 0.0
    %4353 = vmatprep.subr.mxu0 0.0
    %4354 = vmatpush1.msra.mxu0 0.0
    %4355 = vmatprep.subr.mxu0 0.0
    %4356 = vmatpush1.msra.mxu0 0.0
    %4357 = vmatprep.subr.mxu0 0.0
    %4358 = vmatpush1.msra.mxu0 0.0
    %4359 = vmatprep.subr.mxu0 0.0
    %4360 = vmatpush1.msra.mxu0 0.0
    %4361 = vmatprep.subr.mxu0 0.0
    %4362 = vmatpush1.msra.mxu0 0.0
    %4363 = vmatprep.subr.mxu0 0.0
    %4364 = vmatpush1.msra.mxu0 0.0
    %4365 = vmatprep.subr.mxu0 0.0
    %4366 = vmatpush1.msra.mxu0 0.0
    %4367 = vmatprep.subr.mxu0 0.0
    %4368 = vmatpush1.msra.mxu0 0.0
    %4369 = vmatprep.subr.mxu0 0.0
    %4370 = vmatpush1.msra.mxu0 0.0
    %4371 = vmatprep.subr.mxu0 0.0
    %4372 = vmatpush1.msra.mxu0 0.0
    %4373 = vmatprep.subr.mxu0 0.0
    %4374 = vmatpush1.msra.mxu0 0.0
    %4375 = vmatprep.subr.mxu0 0.0
    %4376 = vmatpush1.msra.mxu0 0.0
    %4377 = vmatprep.subr.mxu0 0.0
    %4378 = vmatpush1.msra.mxu0 0.0
    %4379 = vmatprep.subr.mxu0 0.0
    %4380 = vmatpush1.msra.mxu0 0.0
    %4381 = vmatprep.subr.mxu0 0.0
    %4382 = vmatpush1.msra.mxu0 0.0
    %4383 = vmatprep.subr.mxu0 0.0
    %4384 = vmatpush1.msra.mxu0 0.0
    %4385 = vmatprep.subr.mxu0 0.0
    %4386 = vmatpush1.msra.mxu0 0.0
    %4387 = vmatprep.subr.mxu0 0.0
    %4388 = vmatpush1.msra.mxu0 0.0
    %4389 = vmatprep.subr.mxu0 0.0
    %4390 = vmatpush1.msra.mxu0 0.0
    %4391 = vmatprep.subr.mxu0 0.0
    %4392 = vmatpush1.msra.mxu0 0.0
    %4393 = vmatprep.subr.mxu0 0.0
    %4394 = vmatpush1.msra.mxu0 0.0
    %4395 = vmatprep.subr.mxu0 0.0
    %4396 = vmatpush1.msra.mxu0 0.0
    %4397 = vmatprep.subr.mxu0 0.0
    %4398 = vmatpush1.msra.mxu0 0.0
    %4399 = vmatprep.subr.mxu0 0.0
    %4400 = vmatpush1.msra.mxu0 0.0
    %4401 = vmatprep.subr.mxu0 0.0
    %4402 = vmatpush1.msra.mxu0 0.0
    %4403 = vmatprep.mubr.f32.mxu0 0.0
    %v4404 = vand.u32 %v3923, 4294901760
    %4405 = vmatmul.mubr.f32.gmra.mrb[0].mxu0 %v4404
    %v4406 = vpop.f32.mrb[0].mxu0
    %v4407 = vadd.f32 %v4332, %v4406
    %v4408 = vpop.f32.mrb[0].mxu0
    %4409 = vdwg.mxu0
    %v4410 = vadd.f32 %v811, %v4407
    %v4411 = vxor.u32 %v4410, 2147483648
    %v4412 = vmul.f32 %v4411, 1.442695
    %v4413 = vpow.pop %v4412
    %v4414 = vadd.f32 %v4413, 1.0
    %v4415 = vrcp.pop %v4414
    %v4416 = vmul.f32 1.0, %v4415
    %4418 = vrot.lane.b32.xlu0 %v4407, 64
    %v4419 = vpop.permute.xlu0 %4418
    %v4421 = vmul.f32 %v4416, %v4419
    %4423 = vrot.lane.b32.xlu0 %v4421, 64
    %v4424 = vpop.permute.xlu0 %4423
    %v4426 = vadd.f32 %v811, %v4424
    %v4427 = vtanh.pop %v4426
    %v4428 = vsub.f32 1.0, %v4416
    %4430 = vrot.lane.b32.xlu0 %v4427, 96
    %v4431 = vpop.permute.xlu0 %4430
    %v4433 = vmul.f32 %v4428, %v4431
    %v4434 = vmul.f32 %v4416, %v3919
    %v4435 = vadd.f32 %v4433, %v4434
    %v4436 = vld [vmem:[%s5] sm:$0xff]
    %v4437 = vld [vmem:[%s5 + $0x8] sm:$0xff]
    %v4438 = vld [vmem:[%s5 + $0x10] sm:$0xff]
    %v4439 = vld [vmem:[%s5 + $0x18] sm:$0xff]
    %v4440 = vld [vmem:[#allocation5] sm:$0x1]
    %v4442 = vlaneseq
    %v4443 = vshrl.u32 %v4442, 7
    %v4444 = vsub.s32 0, %v4443
    %v4445 = vrot.slane %v4440, %v4444
    %4448 = vrot.lane.b32.xlu0 %v4435, 96
    %v4449 = vpop.permute.xlu0 %4448
    %v4450 = vsel %vm825, %v4449, 0
    %4452 = vmatprep.subr.mxu0 0.0
    %v4453 = vand.u32 %v4436, 4294901760
    %4454 = vmatpush1.msra.mxu0 %v4453
    %4455 = vmatprep.subr.mxu0 0.0
    %v4456 = vand.u32 %v4437, 4294901760
    %4457 = vmatpush1.msra.mxu0 %v4456
    %4458 = vmatprep.subr.mxu0 0.0
    %v4459 = vand.u32 %v4438, 4294901760
    %4460 = vmatpush1.msra.mxu0 %v4459
    %4461 = vmatprep.subr.mxu0 0.0
    %v4462 = vand.u32 %v4439, 4294901760
    %4463 = vmatpush1.msra.mxu0 %v4462
    %4464 = vmatprep.subr.mxu0 0.0
    %4465 = vmatpush1.msra.mxu0 0.0
    %4466 = vmatprep.subr.mxu0 0.0
    %4467 = vmatpush1.msra.mxu0 0.0
    %4468 = vmatprep.subr.mxu0 0.0
    %4469 = vmatpush1.msra.mxu0 0.0
    %4470 = vmatprep.subr.mxu0 0.0
    %4471 = vmatpush1.msra.mxu0 0.0
    %4472 = vmatprep.subr.mxu0 0.0
    %4473 = vmatpush1.msra.mxu0 0.0
    %4474 = vmatprep.subr.mxu0 0.0
    %4475 = vmatpush1.msra.mxu0 0.0
    %4476 = vmatprep.subr.mxu0 0.0
    %4477 = vmatpush1.msra.mxu0 0.0
    %4478 = vmatprep.subr.mxu0 0.0
    %4479 = vmatpush1.msra.mxu0 0.0
    %4480 = vmatprep.subr.mxu0 0.0
    %4481 = vmatpush1.msra.mxu0 0.0
    %4482 = vmatprep.subr.mxu0 0.0
    %4483 = vmatpush1.msra.mxu0 0.0
    %4484 = vmatprep.subr.mxu0 0.0
    %4485 = vmatpush1.msra.mxu0 0.0
    %4486 = vmatprep.subr.mxu0 0.0
    %4487 = vmatpush1.msra.mxu0 0.0
    %4488 = vmatprep.subr.mxu0 0.0
    %4489 = vmatpush1.msra.mxu0 0.0
    %4490 = vmatprep.subr.mxu0 0.0
    %4491 = vmatpush1.msra.mxu0 0.0
    %4492 = vmatprep.subr.mxu0 0.0
    %4493 = vmatpush1.msra.mxu0 0.0
    %4494 = vmatprep.subr.mxu0 0.0
    %4495 = vmatpush1.msra.mxu0 0.0
    %4496 = vmatprep.subr.mxu0 0.0
    %4497 = vmatpush1.msra.mxu0 0.0
    %4498 = vmatprep.subr.mxu0 0.0
    %4499 = vmatpush1.msra.mxu0 0.0
    %4500 = vmatprep.subr.mxu0 0.0
    %4501 = vmatpush1.msra.mxu0 0.0
    %4502 = vmatprep.subr.mxu0 0.0
    %4503 = vmatpush1.msra.mxu0 0.0
    %4504 = vmatprep.subr.mxu0 0.0
    %4505 = vmatpush1.msra.mxu0 0.0
    %4506 = vmatprep.subr.mxu0 0.0
    %4507 = vmatpush1.msra.mxu0 0.0
    %4508 = vmatprep.subr.mxu0 0.0
    %4509 = vmatpush1.msra.mxu0 0.0
    %4510 = vmatprep.subr.mxu0 0.0
    %4511 = vmatpush1.msra.mxu0 0.0
    %4512 = vmatprep.subr.mxu0 0.0
    %4513 = vmatpush1.msra.mxu0 0.0
    %4514 = vmatprep.subr.mxu0 0.0
    %4515 = vmatpush1.msra.mxu0 0.0
    %4516 = vmatprep.subr.mxu0 0.0
    %4517 = vmatpush1.msra.mxu0 0.0
    %4518 = vmatprep.subr.mxu0 0.0
    %4519 = vmatpush1.msra.mxu0 0.0
    %4520 = vmatprep.mubr.f32.mxu0 0.0
    %v4521 = vand.u32 %v4450, 4294901760
    %v4522 = vsub.f32 %v4450, %v4521
    %v4523 = vand.u32 %v4522, 4294901760
    %v4524 = vsub.f32 %v4522, %v4523
    %v4525 = vand.u32 %v4524, 4294901760
    %4526 = vmatmul.mubr.f32.gmra.mrb[0].mxu0 %v4525
    %v4527 = vpop.f32.mrb[0].mxu0
    %v4528 = vadd.f32 %v4445, %v4527
    %v4529 = vpop.f32.mrb[0].mxu0
    %4530 = vdwg.mxu0
    %4531 = vmatprep.subr.mxu0 0.0
    %v4532 = vand.u32 %v4436, 4294901760
    %v4533 = vsub.f32 %v4436, %v4532
    %v4534 = vand.u32 %v4533, 4294901760
    %v4535 = vsub.f32 %v4533, %v4534
    %v4536 = vand.u32 %v4535, 4294901760
    %4537 = vmatpush1.msra.mxu0 %v4536
    %4538 = vmatprep.subr.mxu0 0.0
    %v4539 = vand.u32 %v4437, 4294901760
    %v4540 = vsub.f32 %v4437, %v4539
    %v4541 = vand.u32 %v4540, 4294901760
    %v4542 = vsub.f32 %v4540, %v4541
    %v4543 = vand.u32 %v4542, 4294901760
    %4544 = vmatpush1.msra.mxu0 %v4543
    %4545 = vmatprep.subr.mxu0 0.0
    %v4546 = vand.u32 %v4438, 4294901760
    %v4547 = vsub.f32 %v4438, %v4546
    %v4548 = vand.u32 %v4547, 4294901760
    %v4549 = vsub.f32 %v4547, %v4548
    %v4550 = vand.u32 %v4549, 4294901760
    %4551 = vmatpush1.msra.mxu0 %v4550
    %4552 = vmatprep.subr.mxu0 0.0
    %v4553 = vand.u32 %v4439, 4294901760
    %v4554 = vsub.f32 %v4439, %v4553
    %v4555 = vand.u32 %v4554, 4294901760
    %v4556 = vsub.f32 %v4554, %v4555
    %v4557 = vand.u32 %v4556, 4294901760
    %4558 = vmatpush1.msra.mxu0 %v4557
    %4559 = vmatprep.subr.mxu0 0.0
    %4560 = vmatpush1.msra.mxu0 0.0
    %4561 = vmatprep.subr.mxu0 0.0
    %4562 = vmatpush1.msra.mxu0 0.0
    %4563 = vmatprep.subr.mxu0 0.0
    %4564 = vmatpush1.msra.mxu0 0.0
    %4565 = vmatprep.subr.mxu0 0.0
    %4566 = vmatpush1.msra.mxu0 0.0
    %4567 = vmatprep.subr.mxu0 0.0
    %4568 = vmatpush1.msra.mxu0 0.0
    %4569 = vmatprep.subr.mxu0 0.0
    %4570 = vmatpush1.msra.mxu0 0.0
    %4571 = vmatprep.subr.mxu0 0.0
    %4572 = vmatpush1.msra.mxu0 0.0
    %4573 = vmatprep.subr.mxu0 0.0
    %4574 = vmatpush1.msra.mxu0 0.0
    %4575 = vmatprep.subr.mxu0 0.0
    %4576 = vmatpush1.msra.mxu0 0.0
    %4577 = vmatprep.subr.mxu0 0.0
    %4578 = vmatpush1.msra.mxu0 0.0
    %4579 = vmatprep.subr.mxu0 0.0
    %4580 = vmatpush1.msra.mxu0 0.0
    %4581 = vmatprep.subr.mxu0 0.0
    %4582 = vmatpush1.msra.mxu0 0.0
    %4583 = vmatprep.subr.mxu0 0.0
    %4584 = vmatpush1.msra.mxu0 0.0
    %4585 = vmatprep.subr.mxu0 0.0
    %4586 = vmatpush1.msra.mxu0 0.0
    %4587 = vmatprep.subr.mxu0 0.0
    %4588 = vmatpush1.msra.mxu0 0.0
    %4589 = vmatprep.subr.mxu0 0.0
    %4590 = vmatpush1.msra.mxu0 0.0
    %4591 = vmatprep.subr.mxu0 0.0
    %4592 = vmatpush1.msra.mxu0 0.0
    %4593 = vmatprep.subr.mxu0 0.0
    %4594 = vmatpush1.msra.mxu0 0.0
    %4595 = vmatprep.subr.mxu0 0.0
    %4596 = vmatpush1.msra.mxu0 0.0
    %4597 = vmatprep.subr.mxu0 0.0
    %4598 = vmatpush1.msra.mxu0 0.0
    %4599 = vmatprep.subr.mxu0 0.0
    %4600 = vmatpush1.msra.mxu0 0.0
    %4601 = vmatprep.subr.mxu0 0.0
    %4602 = vmatpush1.msra.mxu0 0.0
    %4603 = vmatprep.subr.mxu0 0.0
    %4604 = vmatpush1.msra.mxu0 0.0
    %4605 = vmatprep.subr.mxu0 0.0
    %4606 = vmatpush1.msra.mxu0 0.0
    %4607 = vmatprep.subr.mxu0 0.0
    %4608 = vmatpush1.msra.mxu0 0.0
    %4609 = vmatprep.subr.mxu0 0.0
    %4610 = vmatpush1.msra.mxu0 0.0
    %4611 = vmatprep.subr.mxu0 0.0
    %4612 = vmatpush1.msra.mxu0 0.0
    %4613 = vmatprep.subr.mxu0 0.0
    %4614 = vmatpush1.msra.mxu0 0.0
    %4615 = vmatprep.mubr.f32.mxu0 0.0
    %v4616 = vand.u32 %v4450, 4294901760
    %4617 = vmatmul.mubr.f32.gmra.mrb[0].mxu0 %v4616
    %v4618 = vpop.f32.mrb[0].mxu0
    %v4619 = vadd.f32 %v4528, %v4618
    %v4620 = vpop.f32.mrb[0].mxu0
    %4621 = vdwg.mxu0
    %4622 = vmatprep.subr.mxu0 0.0
    %v4623 = vand.u32 %v4436, 4294901760
    %v4624 = vsub.f32 %v4436, %v4623
    %4625 = vmatpush1.msra.mxu0 %v4624
    %4626 = vmatprep.subr.mxu0 0.0
    %v4627 = vand.u32 %v4437, 4294901760
    %v4628 = vsub.f32 %v4437, %v4627
    %4629 = vmatpush1.msra.mxu0 %v4628
    %4630 = vmatprep.subr.mxu0 0.0
    %v4631 = vand.u32 %v4438, 4294901760
    %v4632 = vsub.f32 %v4438, %v4631
    %4633 = vmatpush1.msra.mxu0 %v4632
    %4634 = vmatprep.subr.mxu0 0.0
    %v4635 = vand.u32 %v4439, 4294901760
    %v4636 = vsub.f32 %v4439, %v4635
    %4637 = vmatpush1.msra.mxu0 %v4636
    %4638 = vmatprep.subr.mxu0 0.0
    %4639 = vmatpush1.msra.mxu0 0.0
    %4640 = vmatprep.subr.mxu0 0.0
    %4641 = vmatpush1.msra.mxu0 0.0
    %4642 = vmatprep.subr.mxu0 0.0
    %4643 = vmatpush1.msra.mxu0 0.0
    %4644 = vmatprep.subr.mxu0 0.0
    %4645 = vmatpush1.msra.mxu0 0.0
    %4646 = vmatprep.subr.mxu0 0.0
    %4647 = vmatpush1.msra.mxu0 0.0
    %4648 = vmatprep.subr.mxu0 0.0
    %4649 = vmatpush1.msra.mxu0 0.0
    %4650 = vmatprep.subr.mxu0 0.0
    %4651 = vmatpush1.msra.mxu0 0.0
    %4652 = vmatprep.subr.mxu0 0.0
    %4653 = vmatpush1.msra.mxu0 0.0
    %4654 = vmatprep.subr.mxu0 0.0
    %4655 = vmatpush1.msra.mxu0 0.0
    %4656 = vmatprep.subr.mxu0 0.0
    %4657 = vmatpush1.msra.mxu0 0.0
    %4658 = vmatprep.subr.mxu0 0.0
    %4659 = vmatpush1.msra.mxu0 0.0
    %4660 = vmatprep.subr.mxu0 0.0
    %4661 = vmatpush1.msra.mxu0 0.0
    %4662 = vmatprep.subr.mxu0 0.0
    %4663 = vmatpush1.msra.mxu0 0.0
    %4664 = vmatprep.subr.mxu0 0.0
    %4665 = vmatpush1.msra.mxu0 0.0
    %4666 = vmatprep.subr.mxu0 0.0
    %4667 = vmatpush1.msra.mxu0 0.0
    %4668 = vmatprep.subr.mxu0 0.0
    %4669 = vmatpush1.msra.mxu0 0.0
    %4670 = vmatprep.subr.mxu0 0.0
    %4671 = vmatpush1.msra.mxu0 0.0
    %4672 = vmatprep.subr.mxu0 0.0
    %4673 = vmatpush1.msra.mxu0 0.0
    %4674 = vmatprep.subr.mxu0 0.0
    %4675 = vmatpush1.msra.mxu0 0.0
    %4676 = vmatprep.subr.mxu0 0.0
    %4677 = vmatpush1.msra.mxu0 0.0
    %4678 = vmatprep.subr.mxu0 0.0
    %4679 = vmatpush1.msra.mxu0 0.0
    %4680 = vmatprep.subr.mxu0 0.0
    %4681 = vmatpush1.msra.mxu0 0.0
    %4682 = vmatprep.subr.mxu0 0.0
    %4683 = vmatpush1.msra.mxu0 0.0
    %4684 = vmatprep.subr.mxu0 0.0
    %4685 = vmatpush1.msra.mxu0 0.0
    %4686 = vmatprep.subr.mxu0 0.0
    %4687 = vmatpush1.msra.mxu0 0.0
    %4688 = vmatprep.subr.mxu0 0.0
    %4689 = vmatpush1.msra.mxu0 0.0
    %4690 = vmatprep.subr.mxu0 0.0
    %4691 = vmatpush1.msra.mxu0 0.0
    %4692 = vmatprep.subr.mxu0 0.0
    %4693 = vmatpush1.msra.mxu0 0.0
    %4694 = vmatprep.mubr.f32.mxu0 0.0
    %v4695 = vand.u32 %v4450, 4294901760
    %v4696 = vsub.f32 %v4450, %v4695
    %4697 = vmatmul.mubr.f32.gmra.mrb[0].mxu0 %v4696
    %v4698 = vpop.f32.mrb[0].mxu0
    %v4699 = vadd.f32 %v4619, %v4698
    %v4700 = vpop.f32.mrb[0].mxu0
    %4701 = vdwg.mxu0
    %4702 = vmatprep.subr.mxu0 0.0
    %v4703 = vand.u32 %v4436, 4294901760
    %4704 = vmatpush1.msra.mxu0 %v4703
    %4705 = vmatprep.subr.mxu0 0.0
    %v4706 = vand.u32 %v4437, 4294901760
    %4707 = vmatpush1.msra.mxu0 %v4706
    %4708 = vmatprep.subr.mxu0 0.0
    %v4709 = vand.u32 %v4438, 4294901760
    %4710 = vmatpush1.msra.mxu0 %v4709
    %4711 = vmatprep.subr.mxu0 0.0
    %v4712 = vand.u32 %v4439, 4294901760
    %4713 = vmatpush1.msra.mxu0 %v4712
    %4714 = vmatprep.subr.mxu0 0.0
    %4715 = vmatpush1.msra.mxu0 0.0
    %4716 = vmatprep.subr.mxu0 0.0
    %4717 = vmatpush1.msra.mxu0 0.0
    %4718 = vmatprep.subr.mxu0 0.0
    %4719 = vmatpush1.msra.mxu0 0.0
    %4720 = vmatprep.subr.mxu0 0.0
    %4721 = vmatpush1.msra.mxu0 0.0
    %4722 = vmatprep.subr.mxu0 0.0
    %4723 = vmatpush1.msra.mxu0 0.0
    %4724 = vmatprep.subr.mxu0 0.0
    %4725 = vmatpush1.msra.mxu0 0.0
    %4726 = vmatprep.subr.mxu0 0.0
    %4727 = vmatpush1.msra.mxu0 0.0
    %4728 = vmatprep.subr.mxu0 0.0
    %4729 = vmatpush1.msra.mxu0 0.0
    %4730 = vmatprep.subr.mxu0 0.0
    %4731 = vmatpush1.msra.mxu0 0.0
    %4732 = vmatprep.subr.mxu0 0.0
    %4733 = vmatpush1.msra.mxu0 0.0
    %4734 = vmatprep.subr.mxu0 0.0
    %4735 = vmatpush1.msra.mxu0 0.0
    %4736 = vmatprep.subr.mxu0 0.0
    %4737 = vmatpush1.msra.mxu0 0.0
    %4738 = vmatprep.subr.mxu0 0.0
    %4739 = vmatpush1.msra.mxu0 0.0
    %4740 = vmatprep.subr.mxu0 0.0
    %4741 = vmatpush1.msra.mxu0 0.0
    %4742 = vmatprep.subr.mxu0 0.0
    %4743 = vmatpush1.msra.mxu0 0.0
    %4744 = vmatprep.subr.mxu0 0.0
    %4745 = vmatpush1.msra.mxu0 0.0
    %4746 = vmatprep.subr.mxu0 0.0
    %4747 = vmatpush1.msra.mxu0 0.0
    %4748 = vmatprep.subr.mxu0 0.0
    %4749 = vmatpush1.msra.mxu0 0.0
    %4750 = vmatprep.subr.mxu0 0.0
    %4751 = vmatpush1.msra.mxu0 0.0
    %4752 = vmatprep.subr.mxu0 0.0
    %4753 = vmatpush1.msra.mxu0 0.0
    %4754 = vmatprep.subr.mxu0 0.0
    %4755 = vmatpush1.msra.mxu0 0.0
    %4756 = vmatprep.subr.mxu0 0.0
    %4757 = vmatpush1.msra.mxu0 0.0
    %4758 = vmatprep.subr.mxu0 0.0
    %4759 = vmatpush1.msra.mxu0 0.0
    %4760 = vmatprep.subr.mxu0 0.0
    %4761 = vmatpush1.msra.mxu0 0.0
    %4762 = vmatprep.subr.mxu0 0.0
    %4763 = vmatpush1.msra.mxu0 0.0
    %4764 = vmatprep.subr.mxu0 0.0
    %4765 = vmatpush1.msra.mxu0 0.0
    %4766 = vmatprep.subr.mxu0 0.0
    %4767 = vmatpush1.msra.mxu0 0.0
    %4768 = vmatprep.subr.mxu0 0.0
    %4769 = vmatpush1.msra.mxu0 0.0
    %4770 = vmatprep.mubr.f32.mxu0 0.0
    %v4771 = vand.u32 %v4450, 4294901760
    %v4772 = vsub.f32 %v4450, %v4771
    %v4773 = vand.u32 %v4772, 4294901760
    %4774 = vmatmul.mubr.f32.gmra.mrb[0].mxu0 %v4773
    %v4775 = vpop.f32.mrb[0].mxu0
    %v4776 = vadd.f32 %v4699, %v4775
    %v4777 = vpop.f32.mrb[0].mxu0
    %4778 = vdwg.mxu0
    %4779 = vmatprep.subr.mxu0 0.0
    %v4780 = vand.u32 %v4436, 4294901760
    %v4781 = vsub.f32 %v4436, %v4780
    %v4782 = vand.u32 %v4781, 4294901760
    %4783 = vmatpush1.msra.mxu0 %v4782
    %4784 = vmatprep.subr.mxu0 0.0
    %v4785 = vand.u32 %v4437, 4294901760
    %v4786 = vsub.f32 %v4437, %v4785
    %v4787 = vand.u32 %v4786, 4294901760
    %4788 = vmatpush1.msra.mxu0 %v4787
    %4789 = vmatprep.subr.mxu0 0.0
    %v4790 = vand.u32 %v4438, 4294901760
    %v4791 = vsub.f32 %v4438, %v4790
    %v4792 = vand.u32 %v4791, 4294901760
    %4793 = vmatpush1.msra.mxu0 %v4792
    %4794 = vmatprep.subr.mxu0 0.0
    %v4795 = vand.u32 %v4439, 4294901760
    %v4796 = vsub.f32 %v4439, %v4795
    %v4797 = vand.u32 %v4796, 4294901760
    %4798 = vmatpush1.msra.mxu0 %v4797
    %4799 = vmatprep.subr.mxu0 0.0
    %4800 = vmatpush1.msra.mxu0 0.0
    %4801 = vmatprep.subr.mxu0 0.0
    %4802 = vmatpush1.msra.mxu0 0.0
    %4803 = vmatprep.subr.mxu0 0.0
    %4804 = vmatpush1.msra.mxu0 0.0
    %4805 = vmatprep.subr.mxu0 0.0
    %4806 = vmatpush1.msra.mxu0 0.0
    %4807 = vmatprep.subr.mxu0 0.0
    %4808 = vmatpush1.msra.mxu0 0.0
    %4809 = vmatprep.subr.mxu0 0.0
    %4810 = vmatpush1.msra.mxu0 0.0
    %4811 = vmatprep.subr.mxu0 0.0
    %4812 = vmatpush1.msra.mxu0 0.0
    %4813 = vmatprep.subr.mxu0 0.0
    %4814 = vmatpush1.msra.mxu0 0.0
    %4815 = vmatprep.subr.mxu0 0.0
    %4816 = vmatpush1.msra.mxu0 0.0
    %4817 = vmatprep.subr.mxu0 0.0
    %4818 = vmatpush1.msra.mxu0 0.0
    %4819 = vmatprep.subr.mxu0 0.0
    %4820 = vmatpush1.msra.mxu0 0.0
    %4821 = vmatprep.subr.mxu0 0.0
    %4822 = vmatpush1.msra.mxu0 0.0
    %4823 = vmatprep.subr.mxu0 0.0
    %4824 = vmatpush1.msra.mxu0 0.0
    %4825 = vmatprep.subr.mxu0 0.0
    %4826 = vmatpush1.msra.mxu0 0.0
    %4827 = vmatprep.subr.mxu0 0.0
    %4828 = vmatpush1.msra.mxu0 0.0
    %4829 = vmatprep.subr.mxu0 0.0
    %4830 = vmatpush1.msra.mxu0 0.0
    %4831 = vmatprep.subr.mxu0 0.0
    %4832 = vmatpush1.msra.mxu0 0.0
    %4833 = vmatprep.subr.mxu0 0.0
    %4834 = vmatpush1.msra.mxu0 0.0
    %4835 = vmatprep.subr.mxu0 0.0
    %4836 = vmatpush1.msra.mxu0 0.0
    %4837 = vmatprep.subr.mxu0 0.0
    %4838 = vmatpush1.msra.mxu0 0.0
    %4839 = vmatprep.subr.mxu0 0.0
    %4840 = vmatpush1.msra.mxu0 0.0
    %4841 = vmatprep.subr.mxu0 0.0
    %4842 = vmatpush1.msra.mxu0 0.0
    %4843 = vmatprep.subr.mxu0 0.0
    %4844 = vmatpush1.msra.mxu0 0.0
    %4845 = vmatprep.subr.mxu0 0.0
    %4846 = vmatpush1.msra.mxu0 0.0
    %4847 = vmatprep.subr.mxu0 0.0
    %4848 = vmatpush1.msra.mxu0 0.0
    %4849 = vmatprep.subr.mxu0 0.0
    %4850 = vmatpush1.msra.mxu0 0.0
    %4851 = vmatprep.subr.mxu0 0.0
    %4852 = vmatpush1.msra.mxu0 0.0
    %4853 = vmatprep.subr.mxu0 0.0
    %4854 = vmatpush1.msra.mxu0 0.0
    %4855 = vmatprep.mubr.f32.mxu0 0.0
    %v4856 = vand.u32 %v4450, 4294901760
    %4857 = vmatmul.mubr.f32.gmra.mrb[0].mxu0 %v4856
    %v4858 = vpop.f32.mrb[0].mxu0
    %v4859 = vadd.f32 %v4776, %v4858
    %v4860 = vpop.f32.mrb[0].mxu0
    %4861 = vdwg.mxu0
    %4862 = vmatprep.subr.mxu0 0.0
    %v4863 = vand.u32 %v4436, 4294901760
    %4864 = vmatpush1.msra.mxu0 %v4863
    %4865 = vmatprep.subr.mxu0 0.0
    %v4866 = vand.u32 %v4437, 4294901760
    %4867 = vmatpush1.msra.mxu0 %v4866
    %4868 = vmatprep.subr.mxu0 0.0
    %v4869 = vand.u32 %v4438, 4294901760
    %4870 = vmatpush1.msra.mxu0 %v4869
    %4871 = vmatprep.subr.mxu0 0.0
    %v4872 = vand.u32 %v4439, 4294901760
    %4873 = vmatpush1.msra.mxu0 %v4872
    %4874 = vmatprep.subr.mxu0 0.0
    %4875 = vmatpush1.msra.mxu0 0.0
    %4876 = vmatprep.subr.mxu0 0.0
    %4877 = vmatpush1.msra.mxu0 0.0
    %4878 = vmatprep.subr.mxu0 0.0
    %4879 = vmatpush1.msra.mxu0 0.0
    %4880 = vmatprep.subr.mxu0 0.0
    %4881 = vmatpush1.msra.mxu0 0.0
    %4882 = vmatprep.subr.mxu0 0.0
    %4883 = vmatpush1.msra.mxu0 0.0
    %4884 = vmatprep.subr.mxu0 0.0
    %4885 = vmatpush1.msra.mxu0 0.0
    %4886 = vmatprep.subr.mxu0 0.0
    %4887 = vmatpush1.msra.mxu0 0.0
    %4888 = vmatprep.subr.mxu0 0.0
    %4889 = vmatpush1.msra.mxu0 0.0
    %4890 = vmatprep.subr.mxu0 0.0
    %4891 = vmatpush1.msra.mxu0 0.0
    %4892 = vmatprep.subr.mxu0 0.0
    %4893 = vmatpush1.msra.mxu0 0.0
    %4894 = vmatprep.subr.mxu0 0.0
    %4895 = vmatpush1.msra.mxu0 0.0
    %4896 = vmatprep.subr.mxu0 0.0
    %4897 = vmatpush1.msra.mxu0 0.0
    %4898 = vmatprep.subr.mxu0 0.0
    %4899 = vmatpush1.msra.mxu0 0.0
    %4900 = vmatprep.subr.mxu0 0.0
    %4901 = vmatpush1.msra.mxu0 0.0
    %4902 = vmatprep.subr.mxu0 0.0
    %4903 = vmatpush1.msra.mxu0 0.0
    %4904 = vmatprep.subr.mxu0 0.0
    %4905 = vmatpush1.msra.mxu0 0.0
    %4906 = vmatprep.subr.mxu0 0.0
    %4907 = vmatpush1.msra.mxu0 0.0
    %4908 = vmatprep.subr.mxu0 0.0
    %4909 = vmatpush1.msra.mxu0 0.0
    %4910 = vmatprep.subr.mxu0 0.0
    %4911 = vmatpush1.msra.mxu0 0.0
    %4912 = vmatprep.subr.mxu0 0.0
    %4913 = vmatpush1.msra.mxu0 0.0
    %4914 = vmatprep.subr.mxu0 0.0
    %4915 = vmatpush1.msra.mxu0 0.0
    %4916 = vmatprep.subr.mxu0 0.0
    %4917 = vmatpush1.msra.mxu0 0.0
    %4918 = vmatprep.subr.mxu0 0.0
    %4919 = vmatpush1.msra.mxu0 0.0
    %4920 = vmatprep.subr.mxu0 0.0
    %4921 = vmatpush1.msra.mxu0 0.0
    %4922 = vmatprep.subr.mxu0 0.0
    %4923 = vmatpush1.msra.mxu0 0.0
    %4924 = vmatprep.subr.mxu0 0.0
    %4925 = vmatpush1.msra.mxu0 0.0
    %4926 = vmatprep.subr.mxu0 0.0
    %4927 = vmatpush1.msra.mxu0 0.0
    %4928 = vmatprep.subr.mxu0 0.0
    %4929 = vmatpush1.msra.mxu0 0.0
    %4930 = vmatprep.mubr.f32.mxu0 0.0
    %v4931 = vand.u32 %v4450, 4294901760
    %4932 = vmatmul.mubr.f32.gmra.mrb[0].mxu0 %v4931
    %v4933 = vpop.f32.mrb[0].mxu0
    %v4934 = vadd.f32 %v4859, %v4933
    %v4935 = vpop.f32.mrb[0].mxu0
    %4936 = vdwg.mxu0
    %v4937 = vxor.u32 %v4934, 2147483648
    %v4938 = vmul.f32 %v4937, 1.442695
    %v4939 = vpow.pop %v4938
    %v4940 = vadd.f32 %v4939, 1.0
    %v4941 = vrcp.pop %v4940
    %v4942 = vmul.f32 1.0, %v4941
    %4944 = vrot.lane.b32.xlu0 %v4934, 32
    %v4945 = vpop.permute.xlu0 %4944
    %v4947 = vmul.f32 %v4942, %v4945
    %4949 = vrot.lane.b32.xlu0 %v4947, 64
    %v4950 = vpop.permute.xlu0 %4949
    %v4952 = vadd.f32 %v4934, %v4950
    %v4953 = vtanh.pop %v4952
    %v4954 = vsub.f32 1.0, %v4942
    %4956 = vrot.lane.b32.xlu0 %v4953, 96
    %v4957 = vpop.permute.xlu0 %4956
    %v4959 = vmul.f32 %v4954, %v4957
    %v4960 = vmul.f32 %v4942, %v4435
    %v4961 = vadd.f32 %v4959, %v4960
    %4963 = vrot.lane.b32.xlu0 %v4961, 96
    %v4964 = vpop.permute.xlu0 %4963
    %v4965 = vsel %vm825, %v4964, 0
    %4967 = vmatprep.subr.mxu0 0.0
    %v4968 = vand.u32 %v4436, 4294901760
    %4969 = vmatpush1.msra.mxu0 %v4968
    %4970 = vmatprep.subr.mxu0 0.0
    %v4971 = vand.u32 %v4437, 4294901760
    %4972 = vmatpush1.msra.mxu0 %v4971
    %4973 = vmatprep.subr.mxu0 0.0
    %v4974 = vand.u32 %v4438, 4294901760
    %4975 = vmatpush1.msra.mxu0 %v4974
    %4976 = vmatprep.subr.mxu0 0.0
    %v4977 = vand.u32 %v4439, 4294901760
    %4978 = vmatpush1.msra.mxu0 %v4977
    %4979 = vmatprep.subr.mxu0 0.0
    %4980 = vmatpush1.msra.mxu0 0.0
    %4981 = vmatprep.subr.mxu0 0.0
    %4982 = vmatpush1.msra.mxu0 0.0
    %4983 = vmatprep.subr.mxu0 0.0
    %4984 = vmatpush1.msra.mxu0 0.0
    %4985 = vmatprep.subr.mxu0 0.0
    %4986 = vmatpush1.msra.mxu0 0.0
    %4987 = vmatprep.subr.mxu0 0.0
    %4988 = vmatpush1.msra.mxu0 0.0
    %4989 = vmatprep.subr.mxu0 0.0
    %4990 = vmatpush1.msra.mxu0 0.0
    %4991 = vmatprep.subr.mxu0 0.0
    %4992 = vmatpush1.msra.mxu0 0.0
    %4993 = vmatprep.subr.mxu0 0.0
    %4994 = vmatpush1.msra.mxu0 0.0
    %4995 = vmatprep.subr.mxu0 0.0
    %4996 = vmatpush1.msra.mxu0 0.0
    %4997 = vmatprep.subr.mxu0 0.0
    %4998 = vmatpush1.msra.mxu0 0.0
    %4999 = vmatprep.subr.mxu0 0.0
    %5000 = vmatpush1.msra.mxu0 0.0
    %5001 = vmatprep.subr.mxu0 0.0
    %5002 = vmatpush1.msra.mxu0 0.0
    %5003 = vmatprep.subr.mxu0 0.0
    %5004 = vmatpush1.msra.mxu0 0.0
    %5005 = vmatprep.subr.mxu0 0.0
    %5006 = vmatpush1.msra.mxu0 0.0
    %5007 = vmatprep.subr.mxu0 0.0
    %5008 = vmatpush1.msra.mxu0 0.0
    %5009 = vmatprep.subr.mxu0 0.0
    %5010 = vmatpush1.msra.mxu0 0.0
    %5011 = vmatprep.subr.mxu0 0.0
    %5012 = vmatpush1.msra.mxu0 0.0
    %5013 = vmatprep.subr.mxu0 0.0
    %5014 = vmatpush1.msra.mxu0 0.0
    %5015 = vmatprep.subr.mxu0 0.0
    %5016 = vmatpush1.msra.mxu0 0.0
    %5017 = vmatprep.subr.mxu0 0.0
    %5018 = vmatpush1.msra.mxu0 0.0
    %5019 = vmatprep.subr.mxu0 0.0
    %5020 = vmatpush1.msra.mxu0 0.0
    %5021 = vmatprep.subr.mxu0 0.0
    %5022 = vmatpush1.msra.mxu0 0.0
    %5023 = vmatprep.subr.mxu0 0.0
    %5024 = vmatpush1.msra.mxu0 0.0
    %5025 = vmatprep.subr.mxu0 0.0
    %5026 = vmatpush1.msra.mxu0 0.0
    %5027 = vmatprep.subr.mxu0 0.0
    %5028 = vmatpush1.msra.mxu0 0.0
    %5029 = vmatprep.subr.mxu0 0.0
    %5030 = vmatpush1.msra.mxu0 0.0
    %5031 = vmatprep.subr.mxu0 0.0
    %5032 = vmatpush1.msra.mxu0 0.0
    %5033 = vmatprep.subr.mxu0 0.0
    %5034 = vmatpush1.msra.mxu0 0.0
    %5035 = vmatprep.mubr.f32.mxu0 0.0
    %v5036 = vand.u32 %v4965, 4294901760
    %v5037 = vsub.f32 %v4965, %v5036
    %v5038 = vand.u32 %v5037, 4294901760
    %v5039 = vsub.f32 %v5037, %v5038
    %v5040 = vand.u32 %v5039, 4294901760
    %5041 = vmatmul.mubr.f32.gmra.mrb[0].mxu0 %v5040
    %v5042 = vpop.f32.mrb[0].mxu0
    %v5043 = vadd.f32 %v4445, %v5042
    %v5044 = vpop.f32.mrb[0].mxu0
    %5045 = vdwg.mxu0
    %5046 = vmatprep.subr.mxu0 0.0
    %v5047 = vand.u32 %v4436, 4294901760
    %v5048 = vsub.f32 %v4436, %v5047
    %v5049 = vand.u32 %v5048, 4294901760
    %v5050 = vsub.f32 %v5048, %v5049
    %v5051 = vand.u32 %v5050, 4294901760
    %5052 = vmatpush1.msra.mxu0 %v5051
    %5053 = vmatprep.subr.mxu0 0.0
    %v5054 = vand.u32 %v4437, 4294901760
    %v5055 = vsub.f32 %v4437, %v5054
    %v5056 = vand.u32 %v5055, 4294901760
    %v5057 = vsub.f32 %v5055, %v5056
    %v5058 = vand.u32 %v5057, 4294901760
    %5059 = vmatpush1.msra.mxu0 %v5058
    %5060 = vmatprep.subr.mxu0 0.0
    %v5061 = vand.u32 %v4438, 4294901760
    %v5062 = vsub.f32 %v4438, %v5061
    %v5063 = vand.u32 %v5062, 4294901760
    %v5064 = vsub.f32 %v5062, %v5063
    %v5065 = vand.u32 %v5064, 4294901760
    %5066 = vmatpush1.msra.mxu0 %v5065
    %5067 = vmatprep.subr.mxu0 0.0
    %v5068 = vand.u32 %v4439, 4294901760
    %v5069 = vsub.f32 %v4439, %v5068
    %v5070 = vand.u32 %v5069, 4294901760
    %v5071 = vsub.f32 %v5069, %v5070
    %v5072 = vand.u32 %v5071, 4294901760
    %5073 = vmatpush1.msra.mxu0 %v5072
    %5074 = vmatprep.subr.mxu0 0.0
    %5075 = vmatpush1.msra.mxu0 0.0
    %5076 = vmatprep.subr.mxu0 0.0
    %5077 = vmatpush1.msra.mxu0 0.0
    %5078 = vmatprep.subr.mxu0 0.0
    %5079 = vmatpush1.msra.mxu0 0.0
    %5080 = vmatprep.subr.mxu0 0.0
    %5081 = vmatpush1.msra.mxu0 0.0
    %5082 = vmatprep.subr.mxu0 0.0
    %5083 = vmatpush1.msra.mxu0 0.0
    %5084 = vmatprep.subr.mxu0 0.0
    %5085 = vmatpush1.msra.mxu0 0.0
    %5086 = vmatprep.subr.mxu0 0.0
    %5087 = vmatpush1.msra.mxu0 0.0
    %5088 = vmatprep.subr.mxu0 0.0
    %5089 = vmatpush1.msra.mxu0 0.0
    %5090 = vmatprep.subr.mxu0 0.0
    %5091 = vmatpush1.msra.mxu0 0.0
    %5092 = vmatprep.subr.mxu0 0.0
    %5093 = vmatpush1.msra.mxu0 0.0
    %5094 = vmatprep.subr.mxu0 0.0
    %5095 = vmatpush1.msra.mxu0 0.0
    %5096 = vmatprep.subr.mxu0 0.0
    %5097 = vmatpush1.msra.mxu0 0.0
    %5098 = vmatprep.subr.mxu0 0.0
    %5099 = vmatpush1.msra.mxu0 0.0
    %5100 = vmatprep.subr.mxu0 0.0
    %5101 = vmatpush1.msra.mxu0 0.0
    %5102 = vmatprep.subr.mxu0 0.0
    %5103 = vmatpush1.msra.mxu0 0.0
    %5104 = vmatprep.subr.mxu0 0.0
    %5105 = vmatpush1.msra.mxu0 0.0
    %5106 = vmatprep.subr.mxu0 0.0
    %5107 = vmatpush1.msra.mxu0 0.0
    %5108 = vmatprep.subr.mxu0 0.0
    %5109 = vmatpush1.msra.mxu0 0.0
    %5110 = vmatprep.subr.mxu0 0.0
    %5111 = vmatpush1.msra.mxu0 0.0
    %5112 = vmatprep.subr.mxu0 0.0
    %5113 = vmatpush1.msra.mxu0 0.0
    %5114 = vmatprep.subr.mxu0 0.0
    %5115 = vmatpush1.msra.mxu0 0.0
    %5116 = vmatprep.subr.mxu0 0.0
    %5117 = vmatpush1.msra.mxu0 0.0
    %5118 = vmatprep.subr.mxu0 0.0
    %5119 = vmatpush1.msra.mxu0 0.0
    %5120 = vmatprep.subr.mxu0 0.0
    %5121 = vmatpush1.msra.mxu0 0.0
    %5122 = vmatprep.subr.mxu0 0.0
    %5123 = vmatpush1.msra.mxu0 0.0
    %5124 = vmatprep.subr.mxu0 0.0
    %5125 = vmatpush1.msra.mxu0 0.0
    %5126 = vmatprep.subr.mxu0 0.0
    %5127 = vmatpush1.msra.mxu0 0.0
    %5128 = vmatprep.subr.mxu0 0.0
    %5129 = vmatpush1.msra.mxu0 0.0
    %5130 = vmatprep.mubr.f32.mxu0 0.0
    %v5131 = vand.u32 %v4965, 4294901760
    %5132 = vmatmul.mubr.f32.gmra.mrb[0].mxu0 %v5131
    %v5133 = vpop.f32.mrb[0].mxu0
    %v5134 = vadd.f32 %v5043, %v5133
    %v5135 = vpop.f32.mrb[0].mxu0
    %5136 = vdwg.mxu0
    %5137 = vmatprep.subr.mxu0 0.0
    %v5138 = vand.u32 %v4436, 4294901760
    %v5139 = vsub.f32 %v4436, %v5138
    %5140 = vmatpush1.msra.mxu0 %v5139
    %5141 = vmatprep.subr.mxu0 0.0
    %v5142 = vand.u32 %v4437, 4294901760
    %v5143 = vsub.f32 %v4437, %v5142
    %5144 = vmatpush1.msra.mxu0 %v5143
    %5145 = vmatprep.subr.mxu0 0.0
    %v5146 = vand.u32 %v4438, 4294901760
    %v5147 = vsub.f32 %v4438, %v5146
    %5148 = vmatpush1.msra.mxu0 %v5147
    %5149 = vmatprep.subr.mxu0 0.0
    %v5150 = vand.u32 %v4439, 4294901760
    %v5151 = vsub.f32 %v4439, %v5150
    %5152 = vmatpush1.msra.mxu0 %v5151
    %5153 = vmatprep.subr.mxu0 0.0
    %5154 = vmatpush1.msra.mxu0 0.0
    %5155 = vmatprep.subr.mxu0 0.0
    %5156 = vmatpush1.msra.mxu0 0.0
    %5157 = vmatprep.subr.mxu0 0.0
    %5158 = vmatpush1.msra.mxu0 0.0
    %5159 = vmatprep.subr.mxu0 0.0
    %5160 = vmatpush1.msra.mxu0 0.0
    %5161 = vmatprep.subr.mxu0 0.0
    %5162 = vmatpush1.msra.mxu0 0.0
    %5163 = vmatprep.subr.mxu0 0.0
    %5164 = vmatpush1.msra.mxu0 0.0
    %5165 = vmatprep.subr.mxu0 0.0
    %5166 = vmatpush1.msra.mxu0 0.0
    %5167 = vmatprep.subr.mxu0 0.0
    %5168 = vmatpush1.msra.mxu0 0.0
    %5169 = vmatprep.subr.mxu0 0.0
    %5170 = vmatpush1.msra.mxu0 0.0
    %5171 = vmatprep.subr.mxu0 0.0
    %5172 = vmatpush1.msra.mxu0 0.0
    %5173 = vmatprep.subr.mxu0 0.0
    %5174 = vmatpush1.msra.mxu0 0.0
    %5175 = vmatprep.subr.mxu0 0.0
    %5176 = vmatpush1.msra.mxu0 0.0
    %5177 = vmatprep.subr.mxu0 0.0
    %5178 = vmatpush1.msra.mxu0 0.0
    %5179 = vmatprep.subr.mxu0 0.0
    %5180 = vmatpush1.msra.mxu0 0.0
    %5181 = vmatprep.subr.mxu0 0.0
    %5182 = vmatpush1.msra.mxu0 0.0
    %5183 = vmatprep.subr.mxu0 0.0
    %5184 = vmatpush1.msra.mxu0 0.0
    %5185 = vmatprep.subr.mxu0 0.0
    %5186 = vmatpush1.msra.mxu0 0.0
    %5187 = vmatprep.subr.mxu0 0.0
    %5188 = vmatpush1.msra.mxu0 0.0
    %5189 = vmatprep.subr.mxu0 0.0
    %5190 = vmatpush1.msra.mxu0 0.0
    %5191 = vmatprep.subr.mxu0 0.0
    %5192 = vmatpush1.msra.mxu0 0.0
    %5193 = vmatprep.subr.mxu0 0.0
    %5194 = vmatpush1.msra.mxu0 0.0
    %5195 = vmatprep.subr.mxu0 0.0
    %5196 = vmatpush1.msra.mxu0 0.0
    %5197 = vmatprep.subr.mxu0 0.0
    %5198 = vmatpush1.msra.mxu0 0.0
    %5199 = vmatprep.subr.mxu0 0.0
    %5200 = vmatpush1.msra.mxu0 0.0
    %5201 = vmatprep.subr.mxu0 0.0
    %5202 = vmatpush1.msra.mxu0 0.0
    %5203 = vmatprep.subr.mxu0 0.0
    %5204 = vmatpush1.msra.mxu0 0.0
    %5205 = vmatprep.subr.mxu0 0.0
    %5206 = vmatpush1.msra.mxu0 0.0
    %5207 = vmatprep.subr.mxu0 0.0
    %5208 = vmatpush1.msra.mxu0 0.0
    %5209 = vmatprep.mubr.f32.mxu0 0.0
    %v5210 = vand.u32 %v4965, 4294901760
    %v5211 = vsub.f32 %v4965, %v5210
    %5212 = vmatmul.mubr.f32.gmra.mrb[0].mxu0 %v5211
    %v5213 = vpop.f32.mrb[0].mxu0
    %v5214 = vadd.f32 %v5134, %v5213
    %v5215 = vpop.f32.mrb[0].mxu0
    %5216 = vdwg.mxu0
    %5217 = vmatprep.subr.mxu0 0.0
    %v5218 = vand.u32 %v4436, 4294901760
    %5219 = vmatpush1.msra.mxu0 %v5218
    %5220 = vmatprep.subr.mxu0 0.0
    %v5221 = vand.u32 %v4437, 4294901760
    %5222 = vmatpush1.msra.mxu0 %v5221
    %5223 = vmatprep.subr.mxu0 0.0
    %v5224 = vand.u32 %v4438, 4294901760
    %5225 = vmatpush1.msra.mxu0 %v5224
    %5226 = vmatprep.subr.mxu0 0.0
    %v5227 = vand.u32 %v4439, 4294901760
    %5228 = vmatpush1.msra.mxu0 %v5227
    %5229 = vmatprep.subr.mxu0 0.0
    %5230 = vmatpush1.msra.mxu0 0.0
    %5231 = vmatprep.subr.mxu0 0.0
    %5232 = vmatpush1.msra.mxu0 0.0
    %5233 = vmatprep.subr.mxu0 0.0
    %5234 = vmatpush1.msra.mxu0 0.0
    %5235 = vmatprep.subr.mxu0 0.0
    %5236 = vmatpush1.msra.mxu0 0.0
    %5237 = vmatprep.subr.mxu0 0.0
    %5238 = vmatpush1.msra.mxu0 0.0
    %5239 = vmatprep.subr.mxu0 0.0
    %5240 = vmatpush1.msra.mxu0 0.0
    %5241 = vmatprep.subr.mxu0 0.0
    %5242 = vmatpush1.msra.mxu0 0.0
    %5243 = vmatprep.subr.mxu0 0.0
    %5244 = vmatpush1.msra.mxu0 0.0
    %5245 = vmatprep.subr.mxu0 0.0
    %5246 = vmatpush1.msra.mxu0 0.0
    %5247 = vmatprep.subr.mxu0 0.0
    %5248 = vmatpush1.msra.mxu0 0.0
    %5249 = vmatprep.subr.mxu0 0.0
    %5250 = vmatpush1.msra.mxu0 0.0
    %5251 = vmatprep.subr.mxu0 0.0
    %5252 = vmatpush1.msra.mxu0 0.0
    %5253 = vmatprep.subr.mxu0 0.0
    %5254 = vmatpush1.msra.mxu0 0.0
    %5255 = vmatprep.subr.mxu0 0.0
    %5256 = vmatpush1.msra.mxu0 0.0
    %5257 = vmatprep.subr.mxu0 0.0
    %5258 = vmatpush1.msra.mxu0 0.0
    %5259 = vmatprep.subr.mxu0 0.0
    %5260 = vmatpush1.msra.mxu0 0.0
    %5261 = vmatprep.subr.mxu0 0.0
    %5262 = vmatpush1.msra.mxu0 0.0
    %5263 = vmatprep.subr.mxu0 0.0
    %5264 = vmatpush1.msra.mxu0 0.0
    %5265 = vmatprep.subr.mxu0 0.0
    %5266 = vmatpush1.msra.mxu0 0.0
    %5267 = vmatprep.subr.mxu0 0.0
    %5268 = vmatpush1.msra.mxu0 0.0
    %5269 = vmatprep.subr.mxu0 0.0
    %5270 = vmatpush1.msra.mxu0 0.0
    %5271 = vmatprep.subr.mxu0 0.0
    %5272 = vmatpush1.msra.mxu0 0.0
    %5273 = vmatprep.subr.mxu0 0.0
    %5274 = vmatpush1.msra.mxu0 0.0
    %5275 = vmatprep.subr.mxu0 0.0
    %5276 = vmatpush1.msra.mxu0 0.0
    %5277 = vmatprep.subr.mxu0 0.0
    %5278 = vmatpush1.msra.mxu0 0.0
    %5279 = vmatprep.subr.mxu0 0.0
    %5280 = vmatpush1.msra.mxu0 0.0
    %5281 = vmatprep.subr.mxu0 0.0
    %5282 = vmatpush1.msra.mxu0 0.0
    %5283 = vmatprep.subr.mxu0 0.0
    %5284 = vmatpush1.msra.mxu0 0.0
    %5285 = vmatprep.mubr.f32.mxu0 0.0
    %v5286 = vand.u32 %v4965, 4294901760
    %v5287 = vsub.f32 %v4965, %v5286
    %v5288 = vand.u32 %v5287, 4294901760
    %5289 = vmatmul.mubr.f32.gmra.mrb[0].mxu0 %v5288
    %v5290 = vpop.f32.mrb[0].mxu0
    %v5291 = vadd.f32 %v5214, %v5290
    %v5292 = vpop.f32.mrb[0].mxu0
    %5293 = vdwg.mxu0
    %5294 = vmatprep.subr.mxu0 0.0
    %v5295 = vand.u32 %v4436, 4294901760
    %v5296 = vsub.f32 %v4436, %v5295
    %v5297 = vand.u32 %v5296, 4294901760
    %5298 = vmatpush1.msra.mxu0 %v5297
    %5299 = vmatprep.subr.mxu0 0.0
    %v5300 = vand.u32 %v4437, 4294901760
    %v5301 = vsub.f32 %v4437, %v5300
    %v5302 = vand.u32 %v5301, 4294901760
    %5303 = vmatpush1.msra.mxu0 %v5302
    %5304 = vmatprep.subr.mxu0 0.0
    %v5305 = vand.u32 %v4438, 4294901760
    %v5306 = vsub.f32 %v4438, %v5305
    %v5307 = vand.u32 %v5306, 4294901760
    %5308 = vmatpush1.msra.mxu0 %v5307
    %5309 = vmatprep.subr.mxu0 0.0
    %v5310 = vand.u32 %v4439, 4294901760
    %v5311 = vsub.f32 %v4439, %v5310
    %v5312 = vand.u32 %v5311, 4294901760
    %5313 = vmatpush1.msra.mxu0 %v5312
    %5314 = vmatprep.subr.mxu0 0.0
    %5315 = vmatpush1.msra.mxu0 0.0
    %5316 = vmatprep.subr.mxu0 0.0
    %5317 = vmatpush1.msra.mxu0 0.0
    %5318 = vmatprep.subr.mxu0 0.0
    %5319 = vmatpush1.msra.mxu0 0.0
    %5320 = vmatprep.subr.mxu0 0.0
    %5321 = vmatpush1.msra.mxu0 0.0
    %5322 = vmatprep.subr.mxu0 0.0
    %5323 = vmatpush1.msra.mxu0 0.0
    %5324 = vmatprep.subr.mxu0 0.0
    %5325 = vmatpush1.msra.mxu0 0.0
    %5326 = vmatprep.subr.mxu0 0.0
    %5327 = vmatpush1.msra.mxu0 0.0
    %5328 = vmatprep.subr.mxu0 0.0
    %5329 = vmatpush1.msra.mxu0 0.0
    %5330 = vmatprep.subr.mxu0 0.0
    %5331 = vmatpush1.msra.mxu0 0.0
    %5332 = vmatprep.subr.mxu0 0.0
    %5333 = vmatpush1.msra.mxu0 0.0
    %5334 = vmatprep.subr.mxu0 0.0
    %5335 = vmatpush1.msra.mxu0 0.0
    %5336 = vmatprep.subr.mxu0 0.0
    %5337 = vmatpush1.msra.mxu0 0.0
    %5338 = vmatprep.subr.mxu0 0.0
    %5339 = vmatpush1.msra.mxu0 0.0
    %5340 = vmatprep.subr.mxu0 0.0
    %5341 = vmatpush1.msra.mxu0 0.0
    %5342 = vmatprep.subr.mxu0 0.0
    %5343 = vmatpush1.msra.mxu0 0.0
    %5344 = vmatprep.subr.mxu0 0.0
    %5345 = vmatpush1.msra.mxu0 0.0
    %5346 = vmatprep.subr.mxu0 0.0
    %5347 = vmatpush1.msra.mxu0 0.0
    %5348 = vmatprep.subr.mxu0 0.0
    %5349 = vmatpush1.msra.mxu0 0.0
    %5350 = vmatprep.subr.mxu0 0.0
    %5351 = vmatpush1.msra.mxu0 0.0
    %5352 = vmatprep.subr.mxu0 0.0
    %5353 = vmatpush1.msra.mxu0 0.0
    %5354 = vmatprep.subr.mxu0 0.0
    %5355 = vmatpush1.msra.mxu0 0.0
    %5356 = vmatprep.subr.mxu0 0.0
    %5357 = vmatpush1.msra.mxu0 0.0
    %5358 = vmatprep.subr.mxu0 0.0
    %5359 = vmatpush1.msra.mxu0 0.0
    %5360 = vmatprep.subr.mxu0 0.0
    %5361 = vmatpush1.msra.mxu0 0.0
    %5362 = vmatprep.subr.mxu0 0.0
    %5363 = vmatpush1.msra.mxu0 0.0
    %5364 = vmatprep.subr.mxu0 0.0
    %5365 = vmatpush1.msra.mxu0 0.0
    %5366 = vmatprep.subr.mxu0 0.0
    %5367 = vmatpush1.msra.mxu0 0.0
    %5368 = vmatprep.subr.mxu0 0.0
    %5369 = vmatpush1.msra.mxu0 0.0
    %5370 = vmatprep.mubr.f32.mxu0 0.0
    %v5371 = vand.u32 %v4965, 4294901760
    %5372 = vmatmul.mubr.f32.gmra.mrb[0].mxu0 %v5371
    %v5373 = vpop.f32.mrb[0].mxu0
    %v5374 = vadd.f32 %v5291, %v5373
    %v5375 = vpop.f32.mrb[0].mxu0
    %5376 = vdwg.mxu0
    %5377 = vmatprep.subr.mxu0 0.0
    %v5378 = vand.u32 %v4436, 4294901760
    %5379 = vmatpush1.msra.mxu0 %v5378
    %5380 = vmatprep.subr.mxu0 0.0
    %v5381 = vand.u32 %v4437, 4294901760
    %5382 = vmatpush1.msra.mxu0 %v5381
    %5383 = vmatprep.subr.mxu0 0.0
    %v5384 = vand.u32 %v4438, 4294901760
    %5385 = vmatpush1.msra.mxu0 %v5384
    %5386 = vmatprep.subr.mxu0 0.0
    %v5387 = vand.u32 %v4439, 4294901760
    %5388 = vmatpush1.msra.mxu0 %v5387
    %5389 = vmatprep.subr.mxu0 0.0
    %5390 = vmatpush1.msra.mxu0 0.0
    %5391 = vmatprep.subr.mxu0 0.0
    %5392 = vmatpush1.msra.mxu0 0.0
    %5393 = vmatprep.subr.mxu0 0.0
    %5394 = vmatpush1.msra.mxu0 0.0
    %5395 = vmatprep.subr.mxu0 0.0
    %5396 = vmatpush1.msra.mxu0 0.0
    %5397 = vmatprep.subr.mxu0 0.0
    %5398 = vmatpush1.msra.mxu0 0.0
    %5399 = vmatprep.subr.mxu0 0.0
    %5400 = vmatpush1.msra.mxu0 0.0
    %5401 = vmatprep.subr.mxu0 0.0
    %5402 = vmatpush1.msra.mxu0 0.0
    %5403 = vmatprep.subr.mxu0 0.0
    %5404 = vmatpush1.msra.mxu0 0.0
    %5405 = vmatprep.subr.mxu0 0.0
    %5406 = vmatpush1.msra.mxu0 0.0
    %5407 = vmatprep.subr.mxu0 0.0
    %5408 = vmatpush1.msra.mxu0 0.0
    %5409 = vmatprep.subr.mxu0 0.0
    %5410 = vmatpush1.msra.mxu0 0.0
    %5411 = vmatprep.subr.mxu0 0.0
    %5412 = vmatpush1.msra.mxu0 0.0
    %5413 = vmatprep.subr.mxu0 0.0
    %5414 = vmatpush1.msra.mxu0 0.0
    %5415 = vmatprep.subr.mxu0 0.0
    %5416 = vmatpush1.msra.mxu0 0.0
    %5417 = vmatprep.subr.mxu0 0.0
    %5418 = vmatpush1.msra.mxu0 0.0
    %5419 = vmatprep.subr.mxu0 0.0
    %5420 = vmatpush1.msra.mxu0 0.0
    %5421 = vmatprep.subr.mxu0 0.0
    %5422 = vmatpush1.msra.mxu0 0.0
    %5423 = vmatprep.subr.mxu0 0.0
    %5424 = vmatpush1.msra.mxu0 0.0
    %5425 = vmatprep.subr.mxu0 0.0
    %5426 = vmatpush1.msra.mxu0 0.0
    %5427 = vmatprep.subr.mxu0 0.0
    %5428 = vmatpush1.msra.mxu0 0.0
    %5429 = vmatprep.subr.mxu0 0.0
    %5430 = vmatpush1.msra.mxu0 0.0
    %5431 = vmatprep.subr.mxu0 0.0
    %5432 = vmatpush1.msra.mxu0 0.0
    %5433 = vmatprep.subr.mxu0 0.0
    %5434 = vmatpush1.msra.mxu0 0.0
    %5435 = vmatprep.subr.mxu0 0.0
    %5436 = vmatpush1.msra.mxu0 0.0
    %5437 = vmatprep.subr.mxu0 0.0
    %5438 = vmatpush1.msra.mxu0 0.0
    %5439 = vmatprep.subr.mxu0 0.0
    %5440 = vmatpush1.msra.mxu0 0.0
    %5441 = vmatprep.subr.mxu0 0.0
    %5442 = vmatpush1.msra.mxu0 0.0
    %5443 = vmatprep.subr.mxu0 0.0
    %5444 = vmatpush1.msra.mxu0 0.0
    %5445 = vmatprep.mubr.f32.mxu0 0.0
    %v5446 = vand.u32 %v4965, 4294901760
    %5447 = vmatmul.mubr.f32.gmra.mrb[0].mxu0 %v5446
    %v5448 = vpop.f32.mrb[0].mxu0
    %v5449 = vadd.f32 %v5374, %v5448
    %v5450 = vpop.f32.mrb[0].mxu0
    %5451 = vdwg.mxu0
    %v5452 = vxor.u32 %v5449, 2147483648
    %v5453 = vmul.f32 %v5452, 1.442695
    %v5454 = vpow.pop %v5453
    %v5455 = vadd.f32 %v5454, 1.0
    %v5456 = vrcp.pop %v5455
    %v5457 = vmul.f32 1.0, %v5456
    %5459 = vrot.lane.b32.xlu0 %v5449, 32
    %v5460 = vpop.permute.xlu0 %5459
    %v5462 = vmul.f32 %v5457, %v5460
    %5464 = vrot.lane.b32.xlu0 %v5462, 64
    %v5465 = vpop.permute.xlu0 %5464
    %v5467 = vadd.f32 %v5449, %v5465
    %v5468 = vtanh.pop %v5467
    %v5469 = vsub.f32 1.0, %v5457
    %5471 = vrot.lane.b32.xlu0 %v5468, 96
    %v5472 = vpop.permute.xlu0 %5471
    %v5474 = vmul.f32 %v5469, %v5472
    %v5475 = vmul.f32 %v5457, %v4961
    %v5476 = vadd.f32 %v5474, %v5475
    %5478 = vrot.lane.b32.xlu0 %v5476, 96
    %v5479 = vpop.permute.xlu0 %5478
    %v5480 = vsel %vm825, %v5479, 0
    %5482 = vmatprep.subr.mxu0 0.0
    %v5483 = vand.u32 %v4436, 4294901760
    %5484 = vmatpush1.msra.mxu0 %v5483
    %5485 = vmatprep.subr.mxu0 0.0
    %v5486 = vand.u32 %v4437, 4294901760
    %5487 = vmatpush1.msra.mxu0 %v5486
    %5488 = vmatprep.subr.mxu0 0.0
    %v5489 = vand.u32 %v4438, 4294901760
    %5490 = vmatpush1.msra.mxu0 %v5489
    %5491 = vmatprep.subr.mxu0 0.0
    %v5492 = vand.u32 %v4439, 4294901760
    %5493 = vmatpush1.msra.mxu0 %v5492
    %5494 = vmatprep.subr.mxu0 0.0
    %5495 = vmatpush1.msra.mxu0 0.0
    %5496 = vmatprep.subr.mxu0 0.0
    %5497 = vmatpush1.msra.mxu0 0.0
    %5498 = vmatprep.subr.mxu0 0.0
    %5499 = vmatpush1.msra.mxu0 0.0
    %5500 = vmatprep.subr.mxu0 0.0
    %5501 = vmatpush1.msra.mxu0 0.0
    %5502 = vmatprep.subr.mxu0 0.0
    %5503 = vmatpush1.msra.mxu0 0.0
    %5504 = vmatprep.subr.mxu0 0.0
    %5505 = vmatpush1.msra.mxu0 0.0
    %5506 = vmatprep.subr.mxu0 0.0
    %5507 = vmatpush1.msra.mxu0 0.0
    %5508 = vmatprep.subr.mxu0 0.0
    %5509 = vmatpush1.msra.mxu0 0.0
    %5510 = vmatprep.subr.mxu0 0.0
    %5511 = vmatpush1.msra.mxu0 0.0
    %5512 = vmatprep.subr.mxu0 0.0
    %5513 = vmatpush1.msra.mxu0 0.0
    %5514 = vmatprep.subr.mxu0 0.0
    %5515 = vmatpush1.msra.mxu0 0.0
    %5516 = vmatprep.subr.mxu0 0.0
    %5517 = vmatpush1.msra.mxu0 0.0
    %5518 = vmatprep.subr.mxu0 0.0
    %5519 = vmatpush1.msra.mxu0 0.0
    %5520 = vmatprep.subr.mxu0 0.0
    %5521 = vmatpush1.msra.mxu0 0.0
    %5522 = vmatprep.subr.mxu0 0.0
    %5523 = vmatpush1.msra.mxu0 0.0
    %5524 = vmatprep.subr.mxu0 0.0
    %5525 = vmatpush1.msra.mxu0 0.0
    %5526 = vmatprep.subr.mxu0 0.0
    %5527 = vmatpush1.msra.mxu0 0.0
    %5528 = vmatprep.subr.mxu0 0.0
    %5529 = vmatpush1.msra.mxu0 0.0
    %5530 = vmatprep.subr.mxu0 0.0
    %5531 = vmatpush1.msra.mxu0 0.0
    %5532 = vmatprep.subr.mxu0 0.0
    %5533 = vmatpush1.msra.mxu0 0.0
    %5534 = vmatprep.subr.mxu0 0.0
    %5535 = vmatpush1.msra.mxu0 0.0
    %5536 = vmatprep.subr.mxu0 0.0
    %5537 = vmatpush1.msra.mxu0 0.0
    %5538 = vmatprep.subr.mxu0 0.0
    %5539 = vmatpush1.msra.mxu0 0.0
    %5540 = vmatprep.subr.mxu0 0.0
    %5541 = vmatpush1.msra.mxu0 0.0
    %5542 = vmatprep.subr.mxu0 0.0
    %5543 = vmatpush1.msra.mxu0 0.0
    %5544 = vmatprep.subr.mxu0 0.0
    %5545 = vmatpush1.msra.mxu0 0.0
    %5546 = vmatprep.subr.mxu0 0.0
    %5547 = vmatpush1.msra.mxu0 0.0
    %5548 = vmatprep.subr.mxu0 0.0
    %5549 = vmatpush1.msra.mxu0 0.0
    %5550 = vmatprep.mubr.f32.mxu0 0.0
    %v5551 = vand.u32 %v5480, 4294901760
    %v5552 = vsub.f32 %v5480, %v5551
    %v5553 = vand.u32 %v5552, 4294901760
    %v5554 = vsub.f32 %v5552, %v5553
    %v5555 = vand.u32 %v5554, 4294901760
    %5556 = vmatmul.mubr.f32.gmra.mrb[0].mxu0 %v5555
    %v5557 = vpop.f32.mrb[0].mxu0
    %v5558 = vadd.f32 %v4445, %v5557
    %v5559 = vpop.f32.mrb[0].mxu0
    %5560 = vdwg.mxu0
    %5561 = vmatprep.subr.mxu0 0.0
    %v5562 = vand.u32 %v4436, 4294901760
    %v5563 = vsub.f32 %v4436, %v5562
    %v5564 = vand.u32 %v5563, 4294901760
    %v5565 = vsub.f32 %v5563, %v5564
    %v5566 = vand.u32 %v5565, 4294901760
    %5567 = vmatpush1.msra.mxu0 %v5566
    %5568 = vmatprep.subr.mxu0 0.0
    %v5569 = vand.u32 %v4437, 4294901760
    %v5570 = vsub.f32 %v4437, %v5569
    %v5571 = vand.u32 %v5570, 4294901760
    %v5572 = vsub.f32 %v5570, %v5571
    %v5573 = vand.u32 %v5572, 4294901760
    %5574 = vmatpush1.msra.mxu0 %v5573
    %5575 = vmatprep.subr.mxu0 0.0
    %v5576 = vand.u32 %v4438, 4294901760
    %v5577 = vsub.f32 %v4438, %v5576
    %v5578 = vand.u32 %v5577, 4294901760
    %v5579 = vsub.f32 %v5577, %v5578
    %v5580 = vand.u32 %v5579, 4294901760
    %5581 = vmatpush1.msra.mxu0 %v5580
    %5582 = vmatprep.subr.mxu0 0.0
    %v5583 = vand.u32 %v4439, 4294901760
    %v5584 = vsub.f32 %v4439, %v5583
    %v5585 = vand.u32 %v5584, 4294901760
    %v5586 = vsub.f32 %v5584, %v5585
    %v5587 = vand.u32 %v5586, 4294901760
    %5588 = vmatpush1.msra.mxu0 %v5587
    %5589 = vmatprep.subr.mxu0 0.0
    %5590 = vmatpush1.msra.mxu0 0.0
    %5591 = vmatprep.subr.mxu0 0.0
    %5592 = vmatpush1.msra.mxu0 0.0
    %5593 = vmatprep.subr.mxu0 0.0
    %5594 = vmatpush1.msra.mxu0 0.0
    %5595 = vmatprep.subr.mxu0 0.0
    %5596 = vmatpush1.msra.mxu0 0.0
    %5597 = vmatprep.subr.mxu0 0.0
    %5598 = vmatpush1.msra.mxu0 0.0
    %5599 = vmatprep.subr.mxu0 0.0
    %5600 = vmatpush1.msra.mxu0 0.0
    %5601 = vmatprep.subr.mxu0 0.0
    %5602 = vmatpush1.msra.mxu0 0.0
    %5603 = vmatprep.subr.mxu0 0.0
    %5604 = vmatpush1.msra.mxu0 0.0
    %5605 = vmatprep.subr.mxu0 0.0
    %5606 = vmatpush1.msra.mxu0 0.0
    %5607 = vmatprep.subr.mxu0 0.0
    %5608 = vmatpush1.msra.mxu0 0.0
    %5609 = vmatprep.subr.mxu0 0.0
    %5610 = vmatpush1.msra.mxu0 0.0
    %5611 = vmatprep.subr.mxu0 0.0
    %5612 = vmatpush1.msra.mxu0 0.0
    %5613 = vmatprep.subr.mxu0 0.0
    %5614 = vmatpush1.msra.mxu0 0.0
    %5615 = vmatprep.subr.mxu0 0.0
    %5616 = vmatpush1.msra.mxu0 0.0
    %5617 = vmatprep.subr.mxu0 0.0
    %5618 = vmatpush1.msra.mxu0 0.0
    %5619 = vmatprep.subr.mxu0 0.0
    %5620 = vmatpush1.msra.mxu0 0.0
    %5621 = vmatprep.subr.mxu0 0.0
    %5622 = vmatpush1.msra.mxu0 0.0
    %5623 = vmatprep.subr.mxu0 0.0
    %5624 = vmatpush1.msra.mxu0 0.0
    %5625 = vmatprep.subr.mxu0 0.0
    %5626 = vmatpush1.msra.mxu0 0.0
    %5627 = vmatprep.subr.mxu0 0.0
    %5628 = vmatpush1.msra.mxu0 0.0
    %5629 = vmatprep.subr.mxu0 0.0
    %5630 = vmatpush1.msra.mxu0 0.0
    %5631 = vmatprep.subr.mxu0 0.0
    %5632 = vmatpush1.msra.mxu0 0.0
    %5633 = vmatprep.subr.mxu0 0.0
    %5634 = vmatpush1.msra.mxu0 0.0
    %5635 = vmatprep.subr.mxu0 0.0
    %5636 = vmatpush1.msra.mxu0 0.0
    %5637 = vmatprep.subr.mxu0 0.0
    %5638 = vmatpush1.msra.mxu0 0.0
    %5639 = vmatprep.subr.mxu0 0.0
    %5640 = vmatpush1.msra.mxu0 0.0
    %5641 = vmatprep.subr.mxu0 0.0
    %5642 = vmatpush1.msra.mxu0 0.0
    %5643 = vmatprep.subr.mxu0 0.0
    %5644 = vmatpush1.msra.mxu0 0.0
    %5645 = vmatprep.mubr.f32.mxu0 0.0
    %v5646 = vand.u32 %v5480, 4294901760
    %5647 = vmatmul.mubr.f32.gmra.mrb[0].mxu0 %v5646
    %v5648 = vpop.f32.mrb[0].mxu0
    %v5649 = vadd.f32 %v5558, %v5648
    %v5650 = vpop.f32.mrb[0].mxu0
    %5651 = vdwg.mxu0
    %5652 = vmatprep.subr.mxu0 0.0
    %v5653 = vand.u32 %v4436, 4294901760
    %v5654 = vsub.f32 %v4436, %v5653
    %5655 = vmatpush1.msra.mxu0 %v5654
    %5656 = vmatprep.subr.mxu0 0.0
    %v5657 = vand.u32 %v4437, 4294901760
    %v5658 = vsub.f32 %v4437, %v5657
    %5659 = vmatpush1.msra.mxu0 %v5658
    %5660 = vmatprep.subr.mxu0 0.0
    %v5661 = vand.u32 %v4438, 4294901760
    %v5662 = vsub.f32 %v4438, %v5661
    %5663 = vmatpush1.msra.mxu0 %v5662
    %5664 = vmatprep.subr.mxu0 0.0
    %v5665 = vand.u32 %v4439, 4294901760
    %v5666 = vsub.f32 %v4439, %v5665
    %5667 = vmatpush1.msra.mxu0 %v5666
    %5668 = vmatprep.subr.mxu0 0.0
    %5669 = vmatpush1.msra.mxu0 0.0
    %5670 = vmatprep.subr.mxu0 0.0
    %5671 = vmatpush1.msra.mxu0 0.0
    %5672 = vmatprep.subr.mxu0 0.0
    %5673 = vmatpush1.msra.mxu0 0.0
    %5674 = vmatprep.subr.mxu0 0.0
    %5675 = vmatpush1.msra.mxu0 0.0
    %5676 = vmatprep.subr.mxu0 0.0
    %5677 = vmatpush1.msra.mxu0 0.0
    %5678 = vmatprep.subr.mxu0 0.0
    %5679 = vmatpush1.msra.mxu0 0.0
    %5680 = vmatprep.subr.mxu0 0.0
    %5681 = vmatpush1.msra.mxu0 0.0
    %5682 = vmatprep.subr.mxu0 0.0
    %5683 = vmatpush1.msra.mxu0 0.0
    %5684 = vmatprep.subr.mxu0 0.0
    %5685 = vmatpush1.msra.mxu0 0.0
    %5686 = vmatprep.subr.mxu0 0.0
    %5687 = vmatpush1.msra.mxu0 0.0
    %5688 = vmatprep.subr.mxu0 0.0
    %5689 = vmatpush1.msra.mxu0 0.0
    %5690 = vmatprep.subr.mxu0 0.0
    %5691 = vmatpush1.msra.mxu0 0.0
    %5692 = vmatprep.subr.mxu0 0.0
    %5693 = vmatpush1.msra.mxu0 0.0
    %5694 = vmatprep.subr.mxu0 0.0
    %5695 = vmatpush1.msra.mxu0 0.0
    %5696 = vmatprep.subr.mxu0 0.0
    %5697 = vmatpush1.msra.mxu0 0.0
    %5698 = vmatprep.subr.mxu0 0.0
    %5699 = vmatpush1.msra.mxu0 0.0
    %5700 = vmatprep.subr.mxu0 0.0
    %5701 = vmatpush1.msra.mxu0 0.0
    %5702 = vmatprep.subr.mxu0 0.0
    %5703 = vmatpush1.msra.mxu0 0.0
    %5704 = vmatprep.subr.mxu0 0.0
    %5705 = vmatpush1.msra.mxu0 0.0
    %5706 = vmatprep.subr.mxu0 0.0
    %5707 = vmatpush1.msra.mxu0 0.0
    %5708 = vmatprep.subr.mxu0 0.0
    %5709 = vmatpush1.msra.mxu0 0.0
    %5710 = vmatprep.subr.mxu0 0.0
    %5711 = vmatpush1.msra.mxu0 0.0
    %5712 = vmatprep.subr.mxu0 0.0
    %5713 = vmatpush1.msra.mxu0 0.0
    %5714 = vmatprep.subr.mxu0 0.0
    %5715 = vmatpush1.msra.mxu0 0.0
    %5716 = vmatprep.subr.mxu0 0.0
    %5717 = vmatpush1.msra.mxu0 0.0
    %5718 = vmatprep.subr.mxu0 0.0
    %5719 = vmatpush1.msra.mxu0 0.0
    %5720 = vmatprep.subr.mxu0 0.0
    %5721 = vmatpush1.msra.mxu0 0.0
    %5722 = vmatprep.subr.mxu0 0.0
    %5723 = vmatpush1.msra.mxu0 0.0
    %5724 = vmatprep.mubr.f32.mxu0 0.0
    %v5725 = vand.u32 %v5480, 4294901760
    %v5726 = vsub.f32 %v5480, %v5725
    %5727 = vmatmul.mubr.f32.gmra.mrb[0].mxu0 %v5726
    %v5728 = vpop.f32.mrb[0].mxu0
    %v5729 = vadd.f32 %v5649, %v5728
    %v5730 = vpop.f32.mrb[0].mxu0
    %5731 = vdwg.mxu0
    %5732 = vmatprep.subr.mxu0 0.0
    %v5733 = vand.u32 %v4436, 4294901760
    %5734 = vmatpush1.msra.mxu0 %v5733
    %5735 = vmatprep.subr.mxu0 0.0
    %v5736 = vand.u32 %v4437, 4294901760
    %5737 = vmatpush1.msra.mxu0 %v5736
    %5738 = vmatprep.subr.mxu0 0.0
    %v5739 = vand.u32 %v4438, 4294901760
    %5740 = vmatpush1.msra.mxu0 %v5739
    %5741 = vmatprep.subr.mxu0 0.0
    %v5742 = vand.u32 %v4439, 4294901760
    %5743 = vmatpush1.msra.mxu0 %v5742
    %5744 = vmatprep.subr.mxu0 0.0
    %5745 = vmatpush1.msra.mxu0 0.0
    %5746 = vmatprep.subr.mxu0 0.0
    %5747 = vmatpush1.msra.mxu0 0.0
    %5748 = vmatprep.subr.mxu0 0.0
    %5749 = vmatpush1.msra.mxu0 0.0
    %5750 = vmatprep.subr.mxu0 0.0
    %5751 = vmatpush1.msra.mxu0 0.0
    %5752 = vmatprep.subr.mxu0 0.0
    %5753 = vmatpush1.msra.mxu0 0.0
    %5754 = vmatprep.subr.mxu0 0.0
    %5755 = vmatpush1.msra.mxu0 0.0
    %5756 = vmatprep.subr.mxu0 0.0
    %5757 = vmatpush1.msra.mxu0 0.0
    %5758 = vmatprep.subr.mxu0 0.0
    %5759 = vmatpush1.msra.mxu0 0.0
    %5760 = vmatprep.subr.mxu0 0.0
    %5761 = vmatpush1.msra.mxu0 0.0
    %5762 = vmatprep.subr.mxu0 0.0
    %5763 = vmatpush1.msra.mxu0 0.0
    %5764 = vmatprep.subr.mxu0 0.0
    %5765 = vmatpush1.msra.mxu0 0.0
    %5766 = vmatprep.subr.mxu0 0.0
    %5767 = vmatpush1.msra.mxu0 0.0
    %5768 = vmatprep.subr.mxu0 0.0
    %5769 = vmatpush1.msra.mxu0 0.0
    %5770 = vmatprep.subr.mxu0 0.0
    %5771 = vmatpush1.msra.mxu0 0.0
    %5772 = vmatprep.subr.mxu0 0.0
    %5773 = vmatpush1.msra.mxu0 0.0
    %5774 = vmatprep.subr.mxu0 0.0
    %5775 = vmatpush1.msra.mxu0 0.0
    %5776 = vmatprep.subr.mxu0 0.0
    %5777 = vmatpush1.msra.mxu0 0.0
    %5778 = vmatprep.subr.mxu0 0.0
    %5779 = vmatpush1.msra.mxu0 0.0
    %5780 = vmatprep.subr.mxu0 0.0
    %5781 = vmatpush1.msra.mxu0 0.0
    %5782 = vmatprep.subr.mxu0 0.0
    %5783 = vmatpush1.msra.mxu0 0.0
    %5784 = vmatprep.subr.mxu0 0.0
    %5785 = vmatpush1.msra.mxu0 0.0
    %5786 = vmatprep.subr.mxu0 0.0
    %5787 = vmatpush1.msra.mxu0 0.0
    %5788 = vmatprep.subr.mxu0 0.0
    %5789 = vmatpush1.msra.mxu0 0.0
    %5790 = vmatprep.subr.mxu0 0.0
    %5791 = vmatpush1.msra.mxu0 0.0
    %5792 = vmatprep.subr.mxu0 0.0
    %5793 = vmatpush1.msra.mxu0 0.0
    %5794 = vmatprep.subr.mxu0 0.0
    %5795 = vmatpush1.msra.mxu0 0.0
    %5796 = vmatprep.subr.mxu0 0.0
    %5797 = vmatpush1.msra.mxu0 0.0
    %5798 = vmatprep.subr.mxu0 0.0
    %5799 = vmatpush1.msra.mxu0 0.0
    %5800 = vmatprep.mubr.f32.mxu0 0.0
    %v5801 = vand.u32 %v5480, 4294901760
    %v5802 = vsub.f32 %v5480, %v5801
    %v5803 = vand.u32 %v5802, 4294901760
    %5804 = vmatmul.mubr.f32.gmra.mrb[0].mxu0 %v5803
    %v5805 = vpop.f32.mrb[0].mxu0
    %v5806 = vadd.f32 %v5729, %v5805
    %v5807 = vpop.f32.mrb[0].mxu0
    %5808 = vdwg.mxu0
    %5809 = vmatprep.subr.mxu0 0.0
    %v5810 = vand.u32 %v4436, 4294901760
    %v5811 = vsub.f32 %v4436, %v5810
    %v5812 = vand.u32 %v5811, 4294901760
    %5813 = vmatpush1.msra.mxu0 %v5812
    %5814 = vmatprep.subr.mxu0 0.0
    %v5815 = vand.u32 %v4437, 4294901760
    %v5816 = vsub.f32 %v4437, %v5815
    %v5817 = vand.u32 %v5816, 4294901760
    %5818 = vmatpush1.msra.mxu0 %v5817
    %5819 = vmatprep.subr.mxu0 0.0
    %v5820 = vand.u32 %v4438, 4294901760
    %v5821 = vsub.f32 %v4438, %v5820
    %v5822 = vand.u32 %v5821, 4294901760
    %5823 = vmatpush1.msra.mxu0 %v5822
    %5824 = vmatprep.subr.mxu0 0.0
    %v5825 = vand.u32 %v4439, 4294901760
    %v5826 = vsub.f32 %v4439, %v5825
    %v5827 = vand.u32 %v5826, 4294901760
    %5828 = vmatpush1.msra.mxu0 %v5827
    %5829 = vmatprep.subr.mxu0 0.0
    %5830 = vmatpush1.msra.mxu0 0.0
    %5831 = vmatprep.subr.mxu0 0.0
    %5832 = vmatpush1.msra.mxu0 0.0
    %5833 = vmatprep.subr.mxu0 0.0
    %5834 = vmatpush1.msra.mxu0 0.0
    %5835 = vmatprep.subr.mxu0 0.0
    %5836 = vmatpush1.msra.mxu0 0.0
    %5837 = vmatprep.subr.mxu0 0.0
    %5838 = vmatpush1.msra.mxu0 0.0
    %5839 = vmatprep.subr.mxu0 0.0
    %5840 = vmatpush1.msra.mxu0 0.0
    %5841 = vmatprep.subr.mxu0 0.0
    %5842 = vmatpush1.msra.mxu0 0.0
    %5843 = vmatprep.subr.mxu0 0.0
    %5844 = vmatpush1.msra.mxu0 0.0
    %5845 = vmatprep.subr.mxu0 0.0
    %5846 = vmatpush1.msra.mxu0 0.0
    %5847 = vmatprep.subr.mxu0 0.0
    %5848 = vmatpush1.msra.mxu0 0.0
    %5849 = vmatprep.subr.mxu0 0.0
    %5850 = vmatpush1.msra.mxu0 0.0
    %5851 = vmatprep.subr.mxu0 0.0
    %5852 = vmatpush1.msra.mxu0 0.0
    %5853 = vmatprep.subr.mxu0 0.0
    %5854 = vmatpush1.msra.mxu0 0.0
    %5855 = vmatprep.subr.mxu0 0.0
    %5856 = vmatpush1.msra.mxu0 0.0
    %5857 = vmatprep.subr.mxu0 0.0
    %5858 = vmatpush1.msra.mxu0 0.0
    %5859 = vmatprep.subr.mxu0 0.0
    %5860 = vmatpush1.msra.mxu0 0.0
    %5861 = vmatprep.subr.mxu0 0.0
    %5862 = vmatpush1.msra.mxu0 0.0
    %5863 = vmatprep.subr.mxu0 0.0
    %5864 = vmatpush1.msra.mxu0 0.0
    %5865 = vmatprep.subr.mxu0 0.0
    %5866 = vmatpush1.msra.mxu0 0.0
    %5867 = vmatprep.subr.mxu0 0.0
    %5868 = vmatpush1.msra.mxu0 0.0
    %5869 = vmatprep.subr.mxu0 0.0
    %5870 = vmatpush1.msra.mxu0 0.0
    %5871 = vmatprep.subr.mxu0 0.0
    %5872 = vmatpush1.msra.mxu0 0.0
    %5873 = vmatprep.subr.mxu0 0.0
    %5874 = vmatpush1.msra.mxu0 0.0
    %5875 = vmatprep.subr.mxu0 0.0
    %5876 = vmatpush1.msra.mxu0 0.0
    %5877 = vmatprep.subr.mxu0 0.0
    %5878 = vmatpush1.msra.mxu0 0.0
    %5879 = vmatprep.subr.mxu0 0.0
    %5880 = vmatpush1.msra.mxu0 0.0
    %5881 = vmatprep.subr.mxu0 0.0
    %5882 = vmatpush1.msra.mxu0 0.0
    %5883 = vmatprep.subr.mxu0 0.0
    %5884 = vmatpush1.msra.mxu0 0.0
    %5885 = vmatprep.mubr.f32.mxu0 0.0
    %v5886 = vand.u32 %v5480, 4294901760
    %5887 = vmatmul.mubr.f32.gmra.mrb[0].mxu0 %v5886
    %v5888 = vpop.f32.mrb[0].mxu0
    %v5889 = vadd.f32 %v5806, %v5888
    %v5890 = vpop.f32.mrb[0].mxu0
    %5891 = vdwg.mxu0
    %5892 = vmatprep.subr.mxu0 0.0
    %v5893 = vand.u32 %v4436, 4294901760
    %5894 = vmatpush1.msra.mxu0 %v5893
    %5895 = vmatprep.subr.mxu0 0.0
    %v5896 = vand.u32 %v4437, 4294901760
    %5897 = vmatpush1.msra.mxu0 %v5896
    %5898 = vmatprep.subr.mxu0 0.0
    %v5899 = vand.u32 %v4438, 4294901760
    %5900 = vmatpush1.msra.mxu0 %v5899
    %5901 = vmatprep.subr.mxu0 0.0
    %v5902 = vand.u32 %v4439, 4294901760
    %5903 = vmatpush1.msra.mxu0 %v5902
    %5904 = vmatprep.subr.mxu0 0.0
    %5905 = vmatpush1.msra.mxu0 0.0
    %5906 = vmatprep.subr.mxu0 0.0
    %5907 = vmatpush1.msra.mxu0 0.0
    %5908 = vmatprep.subr.mxu0 0.0
    %5909 = vmatpush1.msra.mxu0 0.0
    %5910 = vmatprep.subr.mxu0 0.0
    %5911 = vmatpush1.msra.mxu0 0.0
    %5912 = vmatprep.subr.mxu0 0.0
    %5913 = vmatpush1.msra.mxu0 0.0
    %5914 = vmatprep.subr.mxu0 0.0
    %5915 = vmatpush1.msra.mxu0 0.0
    %5916 = vmatprep.subr.mxu0 0.0
    %5917 = vmatpush1.msra.mxu0 0.0
    %5918 = vmatprep.subr.mxu0 0.0
    %5919 = vmatpush1.msra.mxu0 0.0
    %5920 = vmatprep.subr.mxu0 0.0
    %5921 = vmatpush1.msra.mxu0 0.0
    %5922 = vmatprep.subr.mxu0 0.0
    %5923 = vmatpush1.msra.mxu0 0.0
    %5924 = vmatprep.subr.mxu0 0.0
    %5925 = vmatpush1.msra.mxu0 0.0
    %5926 = vmatprep.subr.mxu0 0.0
    %5927 = vmatpush1.msra.mxu0 0.0
    %5928 = vmatprep.subr.mxu0 0.0
    %5929 = vmatpush1.msra.mxu0 0.0
    %5930 = vmatprep.subr.mxu0 0.0
    %5931 = vmatpush1.msra.mxu0 0.0
    %5932 = vmatprep.subr.mxu0 0.0
    %5933 = vmatpush1.msra.mxu0 0.0
    %5934 = vmatprep.subr.mxu0 0.0
    %5935 = vmatpush1.msra.mxu0 0.0
    %5936 = vmatprep.subr.mxu0 0.0
    %5937 = vmatpush1.msra.mxu0 0.0
    %5938 = vmatprep.subr.mxu0 0.0
    %5939 = vmatpush1.msra.mxu0 0.0
    %5940 = vmatprep.subr.mxu0 0.0
    %5941 = vmatpush1.msra.mxu0 0.0
    %5942 = vmatprep.subr.mxu0 0.0
    %5943 = vmatpush1.msra.mxu0 0.0
    %5944 = vmatprep.subr.mxu0 0.0
    %5945 = vmatpush1.msra.mxu0 0.0
    %5946 = vmatprep.subr.mxu0 0.0
    %5947 = vmatpush1.msra.mxu0 0.0
    %5948 = vmatprep.subr.mxu0 0.0
    %5949 = vmatpush1.msra.mxu0 0.0
    %5950 = vmatprep.subr.mxu0 0.0
    %5951 = vmatpush1.msra.mxu0 0.0
    %5952 = vmatprep.subr.mxu0 0.0
    %5953 = vmatpush1.msra.mxu0 0.0
    %5954 = vmatprep.subr.mxu0 0.0
    %5955 = vmatpush1.msra.mxu0 0.0
    %5956 = vmatprep.subr.mxu0 0.0
    %5957 = vmatpush1.msra.mxu0 0.0
    %5958 = vmatprep.subr.mxu0 0.0
    %5959 = vmatpush1.msra.mxu0 0.0
    %5960 = vmatprep.mubr.f32.mxu0 0.0
    %v5961 = vand.u32 %v5480, 4294901760
    %5962 = vmatmul.mubr.f32.gmra.mrb[0].mxu0 %v5961
    %v5963 = vpop.f32.mrb[0].mxu0
    %v5964 = vadd.f32 %v5889, %v5963
    %v5965 = vpop.f32.mrb[0].mxu0
    %5966 = vdwg.mxu0
    %v5967 = vxor.u32 %v5964, 2147483648
    %v5968 = vmul.f32 %v5967, 1.442695
    %v5969 = vpow.pop %v5968
    %v5970 = vadd.f32 %v5969, 1.0
    %v5971 = vrcp.pop %v5970
    %v5972 = vmul.f32 1.0, %v5971
    %5974 = vrot.lane.b32.xlu0 %v5964, 32
    %v5975 = vpop.permute.xlu0 %5974
    %v5977 = vmul.f32 %v5972, %v5975
    %5979 = vrot.lane.b32.xlu0 %v5977, 64
    %v5980 = vpop.permute.xlu0 %5979
    %v5982 = vadd.f32 %v5964, %v5980
    %v5983 = vtanh.pop %v5982
    %v5984 = vsub.f32 1.0, %v5972
    %5986 = vrot.lane.b32.xlu0 %v5983, 96
    %v5987 = vpop.permute.xlu0 %5986
    %v5989 = vmul.f32 %v5984, %v5987
    %v5990 = vmul.f32 %v5972, %v5476
    %v5991 = vadd.f32 %v5989, %v5990
    %5993 = vrot.lane.b32.xlu0 %v5991, 96
    %v5994 = vpop.permute.xlu0 %5993
    %v5995 = vsel %vm825, %v5994, 0
    %5997 = vmatprep.subr.mxu0 0.0
    %v5998 = vand.u32 %v4436, 4294901760
    %5999 = vmatpush1.msra.mxu0 %v5998
    %6000 = vmatprep.subr.mxu0 0.0
    %v6001 = vand.u32 %v4437, 4294901760
    %6002 = vmatpush1.msra.mxu0 %v6001
    %6003 = vmatprep.subr.mxu0 0.0
    %v6004 = vand.u32 %v4438, 4294901760
    %6005 = vmatpush1.msra.mxu0 %v6004
    %6006 = vmatprep.subr.mxu0 0.0
    %v6007 = vand.u32 %v4439, 4294901760
    %6008 = vmatpush1.msra.mxu0 %v6007
    %6009 = vmatprep.subr.mxu0 0.0
    %6010 = vmatpush1.msra.mxu0 0.0
    %6011 = vmatprep.subr.mxu0 0.0
    %6012 = vmatpush1.msra.mxu0 0.0
    %6013 = vmatprep.subr.mxu0 0.0
    %6014 = vmatpush1.msra.mxu0 0.0
    %6015 = vmatprep.subr.mxu0 0.0
    %6016 = vmatpush1.msra.mxu0 0.0
    %6017 = vmatprep.subr.mxu0 0.0
    %6018 = vmatpush1.msra.mxu0 0.0
    %6019 = vmatprep.subr.mxu0 0.0
    %6020 = vmatpush1.msra.mxu0 0.0
    %6021 = vmatprep.subr.mxu0 0.0
    %6022 = vmatpush1.msra.mxu0 0.0
    %6023 = vmatprep.subr.mxu0 0.0
    %6024 = vmatpush1.msra.mxu0 0.0
    %6025 = vmatprep.subr.mxu0 0.0
    %6026 = vmatpush1.msra.mxu0 0.0
    %6027 = vmatprep.subr.mxu0 0.0
    %6028 = vmatpush1.msra.mxu0 0.0
    %6029 = vmatprep.subr.mxu0 0.0
    %6030 = vmatpush1.msra.mxu0 0.0
    %6031 = vmatprep.subr.mxu0 0.0
    %6032 = vmatpush1.msra.mxu0 0.0
    %6033 = vmatprep.subr.mxu0 0.0
    %6034 = vmatpush1.msra.mxu0 0.0
    %6035 = vmatprep.subr.mxu0 0.0
    %6036 = vmatpush1.msra.mxu0 0.0
    %6037 = vmatprep.subr.mxu0 0.0
    %6038 = vmatpush1.msra.mxu0 0.0
    %6039 = vmatprep.subr.mxu0 0.0
    %6040 = vmatpush1.msra.mxu0 0.0
    %6041 = vmatprep.subr.mxu0 0.0
    %6042 = vmatpush1.msra.mxu0 0.0
    %6043 = vmatprep.subr.mxu0 0.0
    %6044 = vmatpush1.msra.mxu0 0.0
    %6045 = vmatprep.subr.mxu0 0.0
    %6046 = vmatpush1.msra.mxu0 0.0
    %6047 = vmatprep.subr.mxu0 0.0
    %6048 = vmatpush1.msra.mxu0 0.0
    %6049 = vmatprep.subr.mxu0 0.0
    %6050 = vmatpush1.msra.mxu0 0.0
    %6051 = vmatprep.subr.mxu0 0.0
    %6052 = vmatpush1.msra.mxu0 0.0
    %6053 = vmatprep.subr.mxu0 0.0
    %6054 = vmatpush1.msra.mxu0 0.0
    %6055 = vmatprep.subr.mxu0 0.0
    %6056 = vmatpush1.msra.mxu0 0.0
    %6057 = vmatprep.subr.mxu0 0.0
    %6058 = vmatpush1.msra.mxu0 0.0
    %6059 = vmatprep.subr.mxu0 0.0
    %6060 = vmatpush1.msra.mxu0 0.0
    %6061 = vmatprep.subr.mxu0 0.0
    %6062 = vmatpush1.msra.mxu0 0.0
    %6063 = vmatprep.subr.mxu0 0.0
    %6064 = vmatpush1.msra.mxu0 0.0
    %6065 = vmatprep.mubr.f32.mxu0 0.0
    %v6066 = vand.u32 %v5995, 4294901760
    %v6067 = vsub.f32 %v5995, %v6066
    %v6068 = vand.u32 %v6067, 4294901760
    %v6069 = vsub.f32 %v6067, %v6068
    %v6070 = vand.u32 %v6069, 4294901760
    %6071 = vmatmul.mubr.f32.gmra.mrb[0].mxu0 %v6070
    %v6072 = vpop.f32.mrb[0].mxu0
    %v6073 = vadd.f32 %v4445, %v6072
    %v6074 = vpop.f32.mrb[0].mxu0
    %6075 = vdwg.mxu0
    %6076 = vmatprep.subr.mxu0 0.0
    %v6077 = vand.u32 %v4436, 4294901760
    %v6078 = vsub.f32 %v4436, %v6077
    %v6079 = vand.u32 %v6078, 4294901760
    %v6080 = vsub.f32 %v6078, %v6079
    %v6081 = vand.u32 %v6080, 4294901760
    %6082 = vmatpush1.msra.mxu0 %v6081
    %6083 = vmatprep.subr.mxu0 0.0
    %v6084 = vand.u32 %v4437, 4294901760
    %v6085 = vsub.f32 %v4437, %v6084
    %v6086 = vand.u32 %v6085, 4294901760
    %v6087 = vsub.f32 %v6085, %v6086
    %v6088 = vand.u32 %v6087, 4294901760
    %6089 = vmatpush1.msra.mxu0 %v6088
    %6090 = vmatprep.subr.mxu0 0.0
    %v6091 = vand.u32 %v4438, 4294901760
    %v6092 = vsub.f32 %v4438, %v6091
    %v6093 = vand.u32 %v6092, 4294901760
    %v6094 = vsub.f32 %v6092, %v6093
    %v6095 = vand.u32 %v6094, 4294901760
    %6096 = vmatpush1.msra.mxu0 %v6095
    %6097 = vmatprep.subr.mxu0 0.0
    %v6098 = vand.u32 %v4439, 4294901760
    %v6099 = vsub.f32 %v4439, %v6098
    %v6100 = vand.u32 %v6099, 4294901760
    %v6101 = vsub.f32 %v6099, %v6100
    %v6102 = vand.u32 %v6101, 4294901760
    %6103 = vmatpush1.msra.mxu0 %v6102
    %6104 = vmatprep.subr.mxu0 0.0
    %6105 = vmatpush1.msra.mxu0 0.0
    %6106 = vmatprep.subr.mxu0 0.0
    %6107 = vmatpush1.msra.mxu0 0.0
    %6108 = vmatprep.subr.mxu0 0.0
    %6109 = vmatpush1.msra.mxu0 0.0
    %6110 = vmatprep.subr.mxu0 0.0
    %6111 = vmatpush1.msra.mxu0 0.0
    %6112 = vmatprep.subr.mxu0 0.0
    %6113 = vmatpush1.msra.mxu0 0.0
    %6114 = vmatprep.subr.mxu0 0.0
    %6115 = vmatpush1.msra.mxu0 0.0
    %6116 = vmatprep.subr.mxu0 0.0
    %6117 = vmatpush1.msra.mxu0 0.0
    %6118 = vmatprep.subr.mxu0 0.0
    %6119 = vmatpush1.msra.mxu0 0.0
    %6120 = vmatprep.subr.mxu0 0.0
    %6121 = vmatpush1.msra.mxu0 0.0
    %6122 = vmatprep.subr.mxu0 0.0
    %6123 = vmatpush1.msra.mxu0 0.0
    %6124 = vmatprep.subr.mxu0 0.0
    %6125 = vmatpush1.msra.mxu0 0.0
    %6126 = vmatprep.subr.mxu0 0.0
    %6127 = vmatpush1.msra.mxu0 0.0
    %6128 = vmatprep.subr.mxu0 0.0
    %6129 = vmatpush1.msra.mxu0 0.0
    %6130 = vmatprep.subr.mxu0 0.0
    %6131 = vmatpush1.msra.mxu0 0.0
    %6132 = vmatprep.subr.mxu0 0.0
    %6133 = vmatpush1.msra.mxu0 0.0
    %6134 = vmatprep.subr.mxu0 0.0
    %6135 = vmatpush1.msra.mxu0 0.0
    %6136 = vmatprep.subr.mxu0 0.0
    %6137 = vmatpush1.msra.mxu0 0.0
    %6138 = vmatprep.subr.mxu0 0.0
    %6139 = vmatpush1.msra.mxu0 0.0
    %6140 = vmatprep.subr.mxu0 0.0
    %6141 = vmatpush1.msra.mxu0 0.0
    %6142 = vmatprep.subr.mxu0 0.0
    %6143 = vmatpush1.msra.mxu0 0.0
    %6144 = vmatprep.subr.mxu0 0.0
    %6145 = vmatpush1.msra.mxu0 0.0
    %6146 = vmatprep.subr.mxu0 0.0
    %6147 = vmatpush1.msra.mxu0 0.0
    %6148 = vmatprep.subr.mxu0 0.0
    %6149 = vmatpush1.msra.mxu0 0.0
    %6150 = vmatprep.subr.mxu0 0.0
    %6151 = vmatpush1.msra.mxu0 0.0
    %6152 = vmatprep.subr.mxu0 0.0
    %6153 = vmatpush1.msra.mxu0 0.0
    %6154 = vmatprep.subr.mxu0 0.0
    %6155 = vmatpush1.msra.mxu0 0.0
    %6156 = vmatprep.subr.mxu0 0.0
    %6157 = vmatpush1.msra.mxu0 0.0
    %6158 = vmatprep.subr.mxu0 0.0
    %6159 = vmatpush1.msra.mxu0 0.0
    %6160 = vmatprep.mubr.f32.mxu0 0.0
    %v6161 = vand.u32 %v5995, 4294901760
    %6162 = vmatmul.mubr.f32.gmra.mrb[0].mxu0 %v6161
    %v6163 = vpop.f32.mrb[0].mxu0
    %v6164 = vadd.f32 %v6073, %v6163
    %v6165 = vpop.f32.mrb[0].mxu0
    %6166 = vdwg.mxu0
    %6167 = vmatprep.subr.mxu0 0.0
    %v6168 = vand.u32 %v4436, 4294901760
    %v6169 = vsub.f32 %v4436, %v6168
    %6170 = vmatpush1.msra.mxu0 %v6169
    %6171 = vmatprep.subr.mxu0 0.0
    %v6172 = vand.u32 %v4437, 4294901760
    %v6173 = vsub.f32 %v4437, %v6172
    %6174 = vmatpush1.msra.mxu0 %v6173
    %6175 = vmatprep.subr.mxu0 0.0
    %v6176 = vand.u32 %v4438, 4294901760
    %v6177 = vsub.f32 %v4438, %v6176
    %6178 = vmatpush1.msra.mxu0 %v6177
    %6179 = vmatprep.subr.mxu0 0.0
    %v6180 = vand.u32 %v4439, 4294901760
    %v6181 = vsub.f32 %v4439, %v6180
    %6182 = vmatpush1.msra.mxu0 %v6181
    %6183 = vmatprep.subr.mxu0 0.0
    %6184 = vmatpush1.msra.mxu0 0.0
    %6185 = vmatprep.subr.mxu0 0.0
    %6186 = vmatpush1.msra.mxu0 0.0
    %6187 = vmatprep.subr.mxu0 0.0
    %6188 = vmatpush1.msra.mxu0 0.0
    %6189 = vmatprep.subr.mxu0 0.0
    %6190 = vmatpush1.msra.mxu0 0.0
    %6191 = vmatprep.subr.mxu0 0.0
    %6192 = vmatpush1.msra.mxu0 0.0
    %6193 = vmatprep.subr.mxu0 0.0
    %6194 = vmatpush1.msra.mxu0 0.0
    %6195 = vmatprep.subr.mxu0 0.0
    %6196 = vmatpush1.msra.mxu0 0.0
    %6197 = vmatprep.subr.mxu0 0.0
    %6198 = vmatpush1.msra.mxu0 0.0
    %6199 = vmatprep.subr.mxu0 0.0
    %6200 = vmatpush1.msra.mxu0 0.0
    %6201 = vmatprep.subr.mxu0 0.0
    %6202 = vmatpush1.msra.mxu0 0.0
    %6203 = vmatprep.subr.mxu0 0.0
    %6204 = vmatpush1.msra.mxu0 0.0
    %6205 = vmatprep.subr.mxu0 0.0
    %6206 = vmatpush1.msra.mxu0 0.0
    %6207 = vmatprep.subr.mxu0 0.0
    %6208 = vmatpush1.msra.mxu0 0.0
    %6209 = vmatprep.subr.mxu0 0.0
    %6210 = vmatpush1.msra.mxu0 0.0
    %6211 = vmatprep.subr.mxu0 0.0
    %6212 = vmatpush1.msra.mxu0 0.0
    %6213 = vmatprep.subr.mxu0 0.0
    %6214 = vmatpush1.msra.mxu0 0.0
    %6215 = vmatprep.subr.mxu0 0.0
    %6216 = vmatpush1.msra.mxu0 0.0
    %6217 = vmatprep.subr.mxu0 0.0
    %6218 = vmatpush1.msra.mxu0 0.0
    %6219 = vmatprep.subr.mxu0 0.0
    %6220 = vmatpush1.msra.mxu0 0.0
    %6221 = vmatprep.subr.mxu0 0.0
    %6222 = vmatpush1.msra.mxu0 0.0
    %6223 = vmatprep.subr.mxu0 0.0
    %6224 = vmatpush1.msra.mxu0 0.0
    %6225 = vmatprep.subr.mxu0 0.0
    %6226 = vmatpush1.msra.mxu0 0.0
    %6227 = vmatprep.subr.mxu0 0.0
    %6228 = vmatpush1.msra.mxu0 0.0
    %6229 = vmatprep.subr.mxu0 0.0
    %6230 = vmatpush1.msra.mxu0 0.0
    %6231 = vmatprep.subr.mxu0 0.0
    %6232 = vmatpush1.msra.mxu0 0.0
    %6233 = vmatprep.subr.mxu0 0.0
    %6234 = vmatpush1.msra.mxu0 0.0
    %6235 = vmatprep.subr.mxu0 0.0
    %6236 = vmatpush1.msra.mxu0 0.0
    %6237 = vmatprep.subr.mxu0 0.0
    %6238 = vmatpush1.msra.mxu0 0.0
    %6239 = vmatprep.mubr.f32.mxu0 0.0
    %v6240 = vand.u32 %v5995, 4294901760
    %v6241 = vsub.f32 %v5995, %v6240
    %6242 = vmatmul.mubr.f32.gmra.mrb[0].mxu0 %v6241
    %v6243 = vpop.f32.mrb[0].mxu0
    %v6244 = vadd.f32 %v6164, %v6243
    %v6245 = vpop.f32.mrb[0].mxu0
    %6246 = vdwg.mxu0
    %6247 = vmatprep.subr.mxu0 0.0
    %v6248 = vand.u32 %v4436, 4294901760
    %6249 = vmatpush1.msra.mxu0 %v6248
    %6250 = vmatprep.subr.mxu0 0.0
    %v6251 = vand.u32 %v4437, 4294901760
    %6252 = vmatpush1.msra.mxu0 %v6251
    %6253 = vmatprep.subr.mxu0 0.0
    %v6254 = vand.u32 %v4438, 4294901760
    %6255 = vmatpush1.msra.mxu0 %v6254
    %6256 = vmatprep.subr.mxu0 0.0
    %v6257 = vand.u32 %v4439, 4294901760
    %6258 = vmatpush1.msra.mxu0 %v6257
    %6259 = vmatprep.subr.mxu0 0.0
    %6260 = vmatpush1.msra.mxu0 0.0
    %6261 = vmatprep.subr.mxu0 0.0
    %6262 = vmatpush1.msra.mxu0 0.0
    %6263 = vmatprep.subr.mxu0 0.0
    %6264 = vmatpush1.msra.mxu0 0.0
    %6265 = vmatprep.subr.mxu0 0.0
    %6266 = vmatpush1.msra.mxu0 0.0
    %6267 = vmatprep.subr.mxu0 0.0
    %6268 = vmatpush1.msra.mxu0 0.0
    %6269 = vmatprep.subr.mxu0 0.0
    %6270 = vmatpush1.msra.mxu0 0.0
    %6271 = vmatprep.subr.mxu0 0.0
    %6272 = vmatpush1.msra.mxu0 0.0
    %6273 = vmatprep.subr.mxu0 0.0
    %6274 = vmatpush1.msra.mxu0 0.0
    %6275 = vmatprep.subr.mxu0 0.0
    %6276 = vmatpush1.msra.mxu0 0.0
    %6277 = vmatprep.subr.mxu0 0.0
    %6278 = vmatpush1.msra.mxu0 0.0
    %6279 = vmatprep.subr.mxu0 0.0
    %6280 = vmatpush1.msra.mxu0 0.0
    %6281 = vmatprep.subr.mxu0 0.0
    %6282 = vmatpush1.msra.mxu0 0.0
    %6283 = vmatprep.subr.mxu0 0.0
    %6284 = vmatpush1.msra.mxu0 0.0
    %6285 = vmatprep.subr.mxu0 0.0
    %6286 = vmatpush1.msra.mxu0 0.0
    %6287 = vmatprep.subr.mxu0 0.0
    %6288 = vmatpush1.msra.mxu0 0.0
    %6289 = vmatprep.subr.mxu0 0.0
    %6290 = vmatpush1.msra.mxu0 0.0
    %6291 = vmatprep.subr.mxu0 0.0
    %6292 = vmatpush1.msra.mxu0 0.0
    %6293 = vmatprep.subr.mxu0 0.0
    %6294 = vmatpush1.msra.mxu0 0.0
    %6295 = vmatprep.subr.mxu0 0.0
    %6296 = vmatpush1.msra.mxu0 0.0
    %6297 = vmatprep.subr.mxu0 0.0
    %6298 = vmatpush1.msra.mxu0 0.0
    %6299 = vmatprep.subr.mxu0 0.0
    %6300 = vmatpush1.msra.mxu0 0.0
    %6301 = vmatprep.subr.mxu0 0.0
    %6302 = vmatpush1.msra.mxu0 0.0
    %6303 = vmatprep.subr.mxu0 0.0
    %6304 = vmatpush1.msra.mxu0 0.0
    %6305 = vmatprep.subr.mxu0 0.0
    %6306 = vmatpush1.msra.mxu0 0.0
    %6307 = vmatprep.subr.mxu0 0.0
    %6308 = vmatpush1.msra.mxu0 0.0
    %6309 = vmatprep.subr.mxu0 0.0
    %6310 = vmatpush1.msra.mxu0 0.0
    %6311 = vmatprep.subr.mxu0 0.0
    %6312 = vmatpush1.msra.mxu0 0.0
    %6313 = vmatprep.subr.mxu0 0.0
    %6314 = vmatpush1.msra.mxu0 0.0
    %6315 = vmatprep.mubr.f32.mxu0 0.0
    %v6316 = vand.u32 %v5995, 4294901760
    %v6317 = vsub.f32 %v5995, %v6316
    %v6318 = vand.u32 %v6317, 4294901760
    %6319 = vmatmul.mubr.f32.gmra.mrb[0].mxu0 %v6318
    %v6320 = vpop.f32.mrb[0].mxu0
    %v6321 = vadd.f32 %v6244, %v6320
    %v6322 = vpop.f32.mrb[0].mxu0
    %6323 = vdwg.mxu0
    %6324 = vmatprep.subr.mxu0 0.0
    %v6325 = vand.u32 %v4436, 4294901760
    %v6326 = vsub.f32 %v4436, %v6325
    %v6327 = vand.u32 %v6326, 4294901760
    %6328 = vmatpush1.msra.mxu0 %v6327
    %6329 = vmatprep.subr.mxu0 0.0
    %v6330 = vand.u32 %v4437, 4294901760
    %v6331 = vsub.f32 %v4437, %v6330
    %v6332 = vand.u32 %v6331, 4294901760
    %6333 = vmatpush1.msra.mxu0 %v6332
    %6334 = vmatprep.subr.mxu0 0.0
    %v6335 = vand.u32 %v4438, 4294901760
    %v6336 = vsub.f32 %v4438, %v6335
    %v6337 = vand.u32 %v6336, 4294901760
    %6338 = vmatpush1.msra.mxu0 %v6337
    %6339 = vmatprep.subr.mxu0 0.0
    %v6340 = vand.u32 %v4439, 4294901760
    %v6341 = vsub.f32 %v4439, %v6340
    %v6342 = vand.u32 %v6341, 4294901760
    %6343 = vmatpush1.msra.mxu0 %v6342
    %6344 = vmatprep.subr.mxu0 0.0
    %6345 = vmatpush1.msra.mxu0 0.0
    %6346 = vmatprep.subr.mxu0 0.0
    %6347 = vmatpush1.msra.mxu0 0.0
    %6348 = vmatprep.subr.mxu0 0.0
    %6349 = vmatpush1.msra.mxu0 0.0
    %6350 = vmatprep.subr.mxu0 0.0
    %6351 = vmatpush1.msra.mxu0 0.0
    %6352 = vmatprep.subr.mxu0 0.0
    %6353 = vmatpush1.msra.mxu0 0.0
    %6354 = vmatprep.subr.mxu0 0.0
    %6355 = vmatpush1.msra.mxu0 0.0
    %6356 = vmatprep.subr.mxu0 0.0
    %6357 = vmatpush1.msra.mxu0 0.0
    %6358 = vmatprep.subr.mxu0 0.0
    %6359 = vmatpush1.msra.mxu0 0.0
    %6360 = vmatprep.subr.mxu0 0.0
    %6361 = vmatpush1.msra.mxu0 0.0
    %6362 = vmatprep.subr.mxu0 0.0
    %6363 = vmatpush1.msra.mxu0 0.0
    %6364 = vmatprep.subr.mxu0 0.0
    %6365 = vmatpush1.msra.mxu0 0.0
    %6366 = vmatprep.subr.mxu0 0.0
    %6367 = vmatpush1.msra.mxu0 0.0
    %6368 = vmatprep.subr.mxu0 0.0
    %6369 = vmatpush1.msra.mxu0 0.0
    %6370 = vmatprep.subr.mxu0 0.0
    %6371 = vmatpush1.msra.mxu0 0.0
    %6372 = vmatprep.subr.mxu0 0.0
    %6373 = vmatpush1.msra.mxu0 0.0
    %6374 = vmatprep.subr.mxu0 0.0
    %6375 = vmatpush1.msra.mxu0 0.0
    %6376 = vmatprep.subr.mxu0 0.0
    %6377 = vmatpush1.msra.mxu0 0.0
    %6378 = vmatprep.subr.mxu0 0.0
    %6379 = vmatpush1.msra.mxu0 0.0
    %6380 = vmatprep.subr.mxu0 0.0
    %6381 = vmatpush1.msra.mxu0 0.0
    %6382 = vmatprep.subr.mxu0 0.0
    %6383 = vmatpush1.msra.mxu0 0.0
    %6384 = vmatprep.subr.mxu0 0.0
    %6385 = vmatpush1.msra.mxu0 0.0
    %6386 = vmatprep.subr.mxu0 0.0
    %6387 = vmatpush1.msra.mxu0 0.0
    %6388 = vmatprep.subr.mxu0 0.0
    %6389 = vmatpush1.msra.mxu0 0.0
    %6390 = vmatprep.subr.mxu0 0.0
    %6391 = vmatpush1.msra.mxu0 0.0
    %6392 = vmatprep.subr.mxu0 0.0
    %6393 = vmatpush1.msra.mxu0 0.0
    %6394 = vmatprep.subr.mxu0 0.0
    %6395 = vmatpush1.msra.mxu0 0.0
    %6396 = vmatprep.subr.mxu0 0.0
    %6397 = vmatpush1.msra.mxu0 0.0
    %6398 = vmatprep.subr.mxu0 0.0
    %6399 = vmatpush1.msra.mxu0 0.0
    %6400 = vmatprep.mubr.f32.mxu0 0.0
    %v6401 = vand.u32 %v5995, 4294901760
    %6402 = vmatmul.mubr.f32.gmra.mrb[0].mxu0 %v6401
    %v6403 = vpop.f32.mrb[0].mxu0
    %v6404 = vadd.f32 %v6321, %v6403
    %v6405 = vpop.f32.mrb[0].mxu0
    %6406 = vdwg.mxu0
    %6407 = vmatprep.subr.mxu0 0.0
    %v6408 = vand.u32 %v4436, 4294901760
    %6409 = vmatpush1.msra.mxu0 %v6408
    %6410 = vmatprep.subr.mxu0 0.0
    %v6411 = vand.u32 %v4437, 4294901760
    %6412 = vmatpush1.msra.mxu0 %v6411
    %6413 = vmatprep.subr.mxu0 0.0
    %v6414 = vand.u32 %v4438, 4294901760
    %6415 = vmatpush1.msra.mxu0 %v6414
    %6416 = vmatprep.subr.mxu0 0.0
    %v6417 = vand.u32 %v4439, 4294901760
    %6418 = vmatpush1.msra.mxu0 %v6417
    %6419 = vmatprep.subr.mxu0 0.0
    %6420 = vmatpush1.msra.mxu0 0.0
    %6421 = vmatprep.subr.mxu0 0.0
    %6422 = vmatpush1.msra.mxu0 0.0
    %6423 = vmatprep.subr.mxu0 0.0
    %6424 = vmatpush1.msra.mxu0 0.0
    %6425 = vmatprep.subr.mxu0 0.0
    %6426 = vmatpush1.msra.mxu0 0.0
    %6427 = vmatprep.subr.mxu0 0.0
    %6428 = vmatpush1.msra.mxu0 0.0
    %6429 = vmatprep.subr.mxu0 0.0
    %6430 = vmatpush1.msra.mxu0 0.0
    %6431 = vmatprep.subr.mxu0 0.0
    %6432 = vmatpush1.msra.mxu0 0.0
    %6433 = vmatprep.subr.mxu0 0.0
    %6434 = vmatpush1.msra.mxu0 0.0
    %6435 = vmatprep.subr.mxu0 0.0
    %6436 = vmatpush1.msra.mxu0 0.0
    %6437 = vmatprep.subr.mxu0 0.0
    %6438 = vmatpush1.msra.mxu0 0.0
    %6439 = vmatprep.subr.mxu0 0.0
    %6440 = vmatpush1.msra.mxu0 0.0
    %6441 = vmatprep.subr.mxu0 0.0
    %6442 = vmatpush1.msra.mxu0 0.0
    %6443 = vmatprep.subr.mxu0 0.0
    %6444 = vmatpush1.msra.mxu0 0.0
    %6445 = vmatprep.subr.mxu0 0.0
    %6446 = vmatpush1.msra.mxu0 0.0
    %6447 = vmatprep.subr.mxu0 0.0
    %6448 = vmatpush1.msra.mxu0 0.0
    %6449 = vmatprep.subr.mxu0 0.0
    %6450 = vmatpush1.msra.mxu0 0.0
    %6451 = vmatprep.subr.mxu0 0.0
    %6452 = vmatpush1.msra.mxu0 0.0
    %6453 = vmatprep.subr.mxu0 0.0
    %6454 = vmatpush1.msra.mxu0 0.0
    %6455 = vmatprep.subr.mxu0 0.0
    %6456 = vmatpush1.msra.mxu0 0.0
    %6457 = vmatprep.subr.mxu0 0.0
    %6458 = vmatpush1.msra.mxu0 0.0
    %6459 = vmatprep.subr.mxu0 0.0
    %6460 = vmatpush1.msra.mxu0 0.0
    %6461 = vmatprep.subr.mxu0 0.0
    %6462 = vmatpush1.msra.mxu0 0.0
    %6463 = vmatprep.subr.mxu0 0.0
    %6464 = vmatpush1.msra.mxu0 0.0
    %6465 = vmatprep.subr.mxu0 0.0
    %6466 = vmatpush1.msra.mxu0 0.0
    %6467 = vmatprep.subr.mxu0 0.0
    %6468 = vmatpush1.msra.mxu0 0.0
    %6469 = vmatprep.subr.mxu0 0.0
    %6470 = vmatpush1.msra.mxu0 0.0
    %6471 = vmatprep.subr.mxu0 0.0
    %6472 = vmatpush1.msra.mxu0 0.0
    %6473 = vmatprep.subr.mxu0 0.0
    %6474 = vmatpush1.msra.mxu0 0.0
    %6475 = vmatprep.mubr.f32.mxu0 0.0
    %v6476 = vand.u32 %v5995, 4294901760
    %6477 = vmatmul.mubr.f32.gmra.mrb[0].mxu0 %v6476
    %v6478 = vpop.f32.mrb[0].mxu0
    %v6479 = vadd.f32 %v6404, %v6478
    %v6480 = vpop.f32.mrb[0].mxu0
    %6481 = vdwg.mxu0
    %v6482 = vxor.u32 %v6479, 2147483648
    %v6483 = vmul.f32 %v6482, 1.442695
    %v6484 = vpow.pop %v6483
    %v6485 = vadd.f32 %v6484, 1.0
    %v6486 = vrcp.pop %v6485
    %v6487 = vmul.f32 1.0, %v6486
    %6489 = vrot.lane.b32.xlu0 %v6479, 32
    %v6490 = vpop.permute.xlu0 %6489
    %v6492 = vmul.f32 %v6487, %v6490
    %6494 = vrot.lane.b32.xlu0 %v6492, 64
    %v6495 = vpop.permute.xlu0 %6494
    %v6497 = vadd.f32 %v6479, %v6495
    %v6498 = vtanh.pop %v6497
    %v6499 = vsub.f32 1.0, %v6487
    %6501 = vrot.lane.b32.xlu0 %v6498, 96
    %v6502 = vpop.permute.xlu0 %6501
    %v6504 = vmul.f32 %v6499, %v6502
    %v6505 = vmul.f32 %v6487, %v5991
    %v6506 = vadd.f32 %v6504, %v6505
    %6508 = vrot.lane.b32.xlu0 %v6506, 96
    %v6509 = vpop.permute.xlu0 %6508
    %v6510 = vsel %vm825, %v6509, 0
    %6512 = vmatprep.subr.mxu0 0.0
    %v6513 = vand.u32 %v4436, 4294901760
    %6514 = vmatpush1.msra.mxu0 %v6513
    %6515 = vmatprep.subr.mxu0 0.0
    %v6516 = vand.u32 %v4437, 4294901760
    %6517 = vmatpush1.msra.mxu0 %v6516
    %6518 = vmatprep.subr.mxu0 0.0
    %v6519 = vand.u32 %v4438, 4294901760
    %6520 = vmatpush1.msra.mxu0 %v6519
    %6521 = vmatprep.subr.mxu0 0.0
    %v6522 = vand.u32 %v4439, 4294901760
    %6523 = vmatpush1.msra.mxu0 %v6522
    %6524 = vmatprep.subr.mxu0 0.0
    %6525 = vmatpush1.msra.mxu0 0.0
    %6526 = vmatprep.subr.mxu0 0.0
    %6527 = vmatpush1.msra.mxu0 0.0
    %6528 = vmatprep.subr.mxu0 0.0
    %6529 = vmatpush1.msra.mxu0 0.0
    %6530 = vmatprep.subr.mxu0 0.0
    %6531 = vmatpush1.msra.mxu0 0.0
    %6532 = vmatprep.subr.mxu0 0.0
    %6533 = vmatpush1.msra.mxu0 0.0
    %6534 = vmatprep.subr.mxu0 0.0
    %6535 = vmatpush1.msra.mxu0 0.0
    %6536 = vmatprep.subr.mxu0 0.0
    %6537 = vmatpush1.msra.mxu0 0.0
    %6538 = vmatprep.subr.mxu0 0.0
    %6539 = vmatpush1.msra.mxu0 0.0
    %6540 = vmatprep.subr.mxu0 0.0
    %6541 = vmatpush1.msra.mxu0 0.0
    %6542 = vmatprep.subr.mxu0 0.0
    %6543 = vmatpush1.msra.mxu0 0.0
    %6544 = vmatprep.subr.mxu0 0.0
    %6545 = vmatpush1.msra.mxu0 0.0
    %6546 = vmatprep.subr.mxu0 0.0
    %6547 = vmatpush1.msra.mxu0 0.0
    %6548 = vmatprep.subr.mxu0 0.0
    %6549 = vmatpush1.msra.mxu0 0.0
    %6550 = vmatprep.subr.mxu0 0.0
    %6551 = vmatpush1.msra.mxu0 0.0
    %6552 = vmatprep.subr.mxu0 0.0
    %6553 = vmatpush1.msra.mxu0 0.0
    %6554 = vmatprep.subr.mxu0 0.0
    %6555 = vmatpush1.msra.mxu0 0.0
    %6556 = vmatprep.subr.mxu0 0.0
    %6557 = vmatpush1.msra.mxu0 0.0
    %6558 = vmatprep.subr.mxu0 0.0
    %6559 = vmatpush1.msra.mxu0 0.0
    %6560 = vmatprep.subr.mxu0 0.0
    %6561 = vmatpush1.msra.mxu0 0.0
    %6562 = vmatprep.subr.mxu0 0.0
    %6563 = vmatpush1.msra.mxu0 0.0
    %6564 = vmatprep.subr.mxu0 0.0
    %6565 = vmatpush1.msra.mxu0 0.0
    %6566 = vmatprep.subr.mxu0 0.0
    %6567 = vmatpush1.msra.mxu0 0.0
    %6568 = vmatprep.subr.mxu0 0.0
    %6569 = vmatpush1.msra.mxu0 0.0
    %6570 = vmatprep.subr.mxu0 0.0
    %6571 = vmatpush1.msra.mxu0 0.0
    %6572 = vmatprep.subr.mxu0 0.0
    %6573 = vmatpush1.msra.mxu0 0.0
    %6574 = vmatprep.subr.mxu0 0.0
    %6575 = vmatpush1.msra.mxu0 0.0
    %6576 = vmatprep.subr.mxu0 0.0
    %6577 = vmatpush1.msra.mxu0 0.0
    %6578 = vmatprep.subr.mxu0 0.0
    %6579 = vmatpush1.msra.mxu0 0.0
    %6580 = vmatprep.mubr.f32.mxu0 0.0
    %v6581 = vand.u32 %v6510, 4294901760
    %v6582 = vsub.f32 %v6510, %v6581
    %v6583 = vand.u32 %v6582, 4294901760
    %v6584 = vsub.f32 %v6582, %v6583
    %v6585 = vand.u32 %v6584, 4294901760
    %6586 = vmatmul.mubr.f32.gmra.mrb[0].mxu0 %v6585
    %v6587 = vpop.f32.mrb[0].mxu0
    %v6588 = vadd.f32 %v4445, %v6587
    %v6589 = vpop.f32.mrb[0].mxu0
    %6590 = vdwg.mxu0
    %6591 = vmatprep.subr.mxu0 0.0
    %v6592 = vand.u32 %v4436, 4294901760
    %v6593 = vsub.f32 %v4436, %v6592
    %v6594 = vand.u32 %v6593, 4294901760
    %v6595 = vsub.f32 %v6593, %v6594
    %v6596 = vand.u32 %v6595, 4294901760
    %6597 = vmatpush1.msra.mxu0 %v6596
    %6598 = vmatprep.subr.mxu0 0.0
    %v6599 = vand.u32 %v4437, 4294901760
    %v6600 = vsub.f32 %v4437, %v6599
    %v6601 = vand.u32 %v6600, 4294901760
    %v6602 = vsub.f32 %v6600, %v6601
    %v6603 = vand.u32 %v6602, 4294901760
    %6604 = vmatpush1.msra.mxu0 %v6603
    %6605 = vmatprep.subr.mxu0 0.0
    %v6606 = vand.u32 %v4438, 4294901760
    %v6607 = vsub.f32 %v4438, %v6606
    %v6608 = vand.u32 %v6607, 4294901760
    %v6609 = vsub.f32 %v6607, %v6608
    %v6610 = vand.u32 %v6609, 4294901760
    %6611 = vmatpush1.msra.mxu0 %v6610
    %6612 = vmatprep.subr.mxu0 0.0
    %v6613 = vand.u32 %v4439, 4294901760
    %v6614 = vsub.f32 %v4439, %v6613
    %v6615 = vand.u32 %v6614, 4294901760
    %v6616 = vsub.f32 %v6614, %v6615
    %v6617 = vand.u32 %v6616, 4294901760
    %6618 = vmatpush1.msra.mxu0 %v6617
    %6619 = vmatprep.subr.mxu0 0.0
    %6620 = vmatpush1.msra.mxu0 0.0
    %6621 = vmatprep.subr.mxu0 0.0
    %6622 = vmatpush1.msra.mxu0 0.0
    %6623 = vmatprep.subr.mxu0 0.0
    %6624 = vmatpush1.msra.mxu0 0.0
    %6625 = vmatprep.subr.mxu0 0.0
    %6626 = vmatpush1.msra.mxu0 0.0
    %6627 = vmatprep.subr.mxu0 0.0
    %6628 = vmatpush1.msra.mxu0 0.0
    %6629 = vmatprep.subr.mxu0 0.0
    %6630 = vmatpush1.msra.mxu0 0.0
    %6631 = vmatprep.subr.mxu0 0.0
    %6632 = vmatpush1.msra.mxu0 0.0
    %6633 = vmatprep.subr.mxu0 0.0
    %6634 = vmatpush1.msra.mxu0 0.0
    %6635 = vmatprep.subr.mxu0 0.0
    %6636 = vmatpush1.msra.mxu0 0.0
    %6637 = vmatprep.subr.mxu0 0.0
    %6638 = vmatpush1.msra.mxu0 0.0
    %6639 = vmatprep.subr.mxu0 0.0
    %6640 = vmatpush1.msra.mxu0 0.0
    %6641 = vmatprep.subr.mxu0 0.0
    %6642 = vmatpush1.msra.mxu0 0.0
    %6643 = vmatprep.subr.mxu0 0.0
    %6644 = vmatpush1.msra.mxu0 0.0
    %6645 = vmatprep.subr.mxu0 0.0
    %6646 = vmatpush1.msra.mxu0 0.0
    %6647 = vmatprep.subr.mxu0 0.0
    %6648 = vmatpush1.msra.mxu0 0.0
    %6649 = vmatprep.subr.mxu0 0.0
    %6650 = vmatpush1.msra.mxu0 0.0
    %6651 = vmatprep.subr.mxu0 0.0
    %6652 = vmatpush1.msra.mxu0 0.0
    %6653 = vmatprep.subr.mxu0 0.0
    %6654 = vmatpush1.msra.mxu0 0.0
    %6655 = vmatprep.subr.mxu0 0.0
    %6656 = vmatpush1.msra.mxu0 0.0
    %6657 = vmatprep.subr.mxu0 0.0
    %6658 = vmatpush1.msra.mxu0 0.0
    %6659 = vmatprep.subr.mxu0 0.0
    %6660 = vmatpush1.msra.mxu0 0.0
    %6661 = vmatprep.subr.mxu0 0.0
    %6662 = vmatpush1.msra.mxu0 0.0
    %6663 = vmatprep.subr.mxu0 0.0
    %6664 = vmatpush1.msra.mxu0 0.0
    %6665 = vmatprep.subr.mxu0 0.0
    %6666 = vmatpush1.msra.mxu0 0.0
    %6667 = vmatprep.subr.mxu0 0.0
    %6668 = vmatpush1.msra.mxu0 0.0
    %6669 = vmatprep.subr.mxu0 0.0
    %6670 = vmatpush1.msra.mxu0 0.0
    %6671 = vmatprep.subr.mxu0 0.0
    %6672 = vmatpush1.msra.mxu0 0.0
    %6673 = vmatprep.subr.mxu0 0.0
    %6674 = vmatpush1.msra.mxu0 0.0
    %6675 = vmatprep.mubr.f32.mxu0 0.0
    %v6676 = vand.u32 %v6510, 4294901760
    %6677 = vmatmul.mubr.f32.gmra.mrb[0].mxu0 %v6676
    %v6678 = vpop.f32.mrb[0].mxu0
    %v6679 = vadd.f32 %v6588, %v6678
    %v6680 = vpop.f32.mrb[0].mxu0
    %6681 = vdwg.mxu0
    %6682 = vmatprep.subr.mxu0 0.0
    %v6683 = vand.u32 %v4436, 4294901760
    %v6684 = vsub.f32 %v4436, %v6683
    %6685 = vmatpush1.msra.mxu0 %v6684
    %6686 = vmatprep.subr.mxu0 0.0
    %v6687 = vand.u32 %v4437, 4294901760
    %v6688 = vsub.f32 %v4437, %v6687
    %6689 = vmatpush1.msra.mxu0 %v6688
    %6690 = vmatprep.subr.mxu0 0.0
    %v6691 = vand.u32 %v4438, 4294901760
    %v6692 = vsub.f32 %v4438, %v6691
    %6693 = vmatpush1.msra.mxu0 %v6692
    %6694 = vmatprep.subr.mxu0 0.0
    %v6695 = vand.u32 %v4439, 4294901760
    %v6696 = vsub.f32 %v4439, %v6695
    %6697 = vmatpush1.msra.mxu0 %v6696
    %6698 = vmatprep.subr.mxu0 0.0
    %6699 = vmatpush1.msra.mxu0 0.0
    %6700 = vmatprep.subr.mxu0 0.0
    %6701 = vmatpush1.msra.mxu0 0.0
    %6702 = vmatprep.subr.mxu0 0.0
    %6703 = vmatpush1.msra.mxu0 0.0
    %6704 = vmatprep.subr.mxu0 0.0
    %6705 = vmatpush1.msra.mxu0 0.0
    %6706 = vmatprep.subr.mxu0 0.0
    %6707 = vmatpush1.msra.mxu0 0.0
    %6708 = vmatprep.subr.mxu0 0.0
    %6709 = vmatpush1.msra.mxu0 0.0
    %6710 = vmatprep.subr.mxu0 0.0
    %6711 = vmatpush1.msra.mxu0 0.0
    %6712 = vmatprep.subr.mxu0 0.0
    %6713 = vmatpush1.msra.mxu0 0.0
    %6714 = vmatprep.subr.mxu0 0.0
    %6715 = vmatpush1.msra.mxu0 0.0
    %6716 = vmatprep.subr.mxu0 0.0
    %6717 = vmatpush1.msra.mxu0 0.0
    %6718 = vmatprep.subr.mxu0 0.0
    %6719 = vmatpush1.msra.mxu0 0.0
    %6720 = vmatprep.subr.mxu0 0.0
    %6721 = vmatpush1.msra.mxu0 0.0
    %6722 = vmatprep.subr.mxu0 0.0
    %6723 = vmatpush1.msra.mxu0 0.0
    %6724 = vmatprep.subr.mxu0 0.0
    %6725 = vmatpush1.msra.mxu0 0.0
    %6726 = vmatprep.subr.mxu0 0.0
    %6727 = vmatpush1.msra.mxu0 0.0
    %6728 = vmatprep.subr.mxu0 0.0
    %6729 = vmatpush1.msra.mxu0 0.0
    %6730 = vmatprep.subr.mxu0 0.0
    %6731 = vmatpush1.msra.mxu0 0.0
    %6732 = vmatprep.subr.mxu0 0.0
    %6733 = vmatpush1.msra.mxu0 0.0
    %6734 = vmatprep.subr.mxu0 0.0
    %6735 = vmatpush1.msra.mxu0 0.0
    %6736 = vmatprep.subr.mxu0 0.0
    %6737 = vmatpush1.msra.mxu0 0.0
    %6738 = vmatprep.subr.mxu0 0.0
    %6739 = vmatpush1.msra.mxu0 0.0
    %6740 = vmatprep.subr.mxu0 0.0
    %6741 = vmatpush1.msra.mxu0 0.0
    %6742 = vmatprep.subr.mxu0 0.0
    %6743 = vmatpush1.msra.mxu0 0.0
    %6744 = vmatprep.subr.mxu0 0.0
    %6745 = vmatpush1.msra.mxu0 0.0
    %6746 = vmatprep.subr.mxu0 0.0
    %6747 = vmatpush1.msra.mxu0 0.0
    %6748 = vmatprep.subr.mxu0 0.0
    %6749 = vmatpush1.msra.mxu0 0.0
    %6750 = vmatprep.subr.mxu0 0.0
    %6751 = vmatpush1.msra.mxu0 0.0
    %6752 = vmatprep.subr.mxu0 0.0
    %6753 = vmatpush1.msra.mxu0 0.0
    %6754 = vmatprep.mubr.f32.mxu0 0.0
    %v6755 = vand.u32 %v6510, 4294901760
    %v6756 = vsub.f32 %v6510, %v6755
    %6757 = vmatmul.mubr.f32.gmra.mrb[0].mxu0 %v6756
    %v6758 = vpop.f32.mrb[0].mxu0
    %v6759 = vadd.f32 %v6679, %v6758
    %v6760 = vpop.f32.mrb[0].mxu0
    %6761 = vdwg.mxu0
    %6762 = vmatprep.subr.mxu0 0.0
    %v6763 = vand.u32 %v4436, 4294901760
    %6764 = vmatpush1.msra.mxu0 %v6763
    %6765 = vmatprep.subr.mxu0 0.0
    %v6766 = vand.u32 %v4437, 4294901760
    %6767 = vmatpush1.msra.mxu0 %v6766
    %6768 = vmatprep.subr.mxu0 0.0
    %v6769 = vand.u32 %v4438, 4294901760
    %6770 = vmatpush1.msra.mxu0 %v6769
    %6771 = vmatprep.subr.mxu0 0.0
    %v6772 = vand.u32 %v4439, 4294901760
    %6773 = vmatpush1.msra.mxu0 %v6772
    %6774 = vmatprep.subr.mxu0 0.0
    %6775 = vmatpush1.msra.mxu0 0.0
    %6776 = vmatprep.subr.mxu0 0.0
    %6777 = vmatpush1.msra.mxu0 0.0
    %6778 = vmatprep.subr.mxu0 0.0
    %6779 = vmatpush1.msra.mxu0 0.0
    %6780 = vmatprep.subr.mxu0 0.0
    %6781 = vmatpush1.msra.mxu0 0.0
    %6782 = vmatprep.subr.mxu0 0.0
    %6783 = vmatpush1.msra.mxu0 0.0
    %6784 = vmatprep.subr.mxu0 0.0
    %6785 = vmatpush1.msra.mxu0 0.0
    %6786 = vmatprep.subr.mxu0 0.0
    %6787 = vmatpush1.msra.mxu0 0.0
    %6788 = vmatprep.subr.mxu0 0.0
    %6789 = vmatpush1.msra.mxu0 0.0
    %6790 = vmatprep.subr.mxu0 0.0
    %6791 = vmatpush1.msra.mxu0 0.0
    %6792 = vmatprep.subr.mxu0 0.0
    %6793 = vmatpush1.msra.mxu0 0.0
    %6794 = vmatprep.subr.mxu0 0.0
    %6795 = vmatpush1.msra.mxu0 0.0
    %6796 = vmatprep.subr.mxu0 0.0
    %6797 = vmatpush1.msra.mxu0 0.0
    %6798 = vmatprep.subr.mxu0 0.0
    %6799 = vmatpush1.msra.mxu0 0.0
    %6800 = vmatprep.subr.mxu0 0.0
    %6801 = vmatpush1.msra.mxu0 0.0
    %6802 = vmatprep.subr.mxu0 0.0
    %6803 = vmatpush1.msra.mxu0 0.0
    %6804 = vmatprep.subr.mxu0 0.0
    %6805 = vmatpush1.msra.mxu0 0.0
    %6806 = vmatprep.subr.mxu0 0.0
    %6807 = vmatpush1.msra.mxu0 0.0
    %6808 = vmatprep.subr.mxu0 0.0
    %6809 = vmatpush1.msra.mxu0 0.0
    %6810 = vmatprep.subr.mxu0 0.0
    %6811 = vmatpush1.msra.mxu0 0.0
    %6812 = vmatprep.subr.mxu0 0.0
    %6813 = vmatpush1.msra.mxu0 0.0
    %6814 = vmatprep.subr.mxu0 0.0
    %6815 = vmatpush1.msra.mxu0 0.0
    %6816 = vmatprep.subr.mxu0 0.0
    %6817 = vmatpush1.msra.mxu0 0.0
    %6818 = vmatprep.subr.mxu0 0.0
    %6819 = vmatpush1.msra.mxu0 0.0
    %6820 = vmatprep.subr.mxu0 0.0
    %6821 = vmatpush1.msra.mxu0 0.0
    %6822 = vmatprep.subr.mxu0 0.0
    %6823 = vmatpush1.msra.mxu0 0.0
    %6824 = vmatprep.subr.mxu0 0.0
    %6825 = vmatpush1.msra.mxu0 0.0
    %6826 = vmatprep.subr.mxu0 0.0
    %6827 = vmatpush1.msra.mxu0 0.0
    %6828 = vmatprep.subr.mxu0 0.0
    %6829 = vmatpush1.msra.mxu0 0.0
    %6830 = vmatprep.mubr.f32.mxu0 0.0
    %v6831 = vand.u32 %v6510, 4294901760
    %v6832 = vsub.f32 %v6510, %v6831
    %v6833 = vand.u32 %v6832, 4294901760
    %6834 = vmatmul.mubr.f32.gmra.mrb[0].mxu0 %v6833
    %v6835 = vpop.f32.mrb[0].mxu0
    %v6836 = vadd.f32 %v6759, %v6835
    %v6837 = vpop.f32.mrb[0].mxu0
    %6838 = vdwg.mxu0
    %6839 = vmatprep.subr.mxu0 0.0
    %v6840 = vand.u32 %v4436, 4294901760
    %v6841 = vsub.f32 %v4436, %v6840
    %v6842 = vand.u32 %v6841, 4294901760
    %6843 = vmatpush1.msra.mxu0 %v6842
    %6844 = vmatprep.subr.mxu0 0.0
    %v6845 = vand.u32 %v4437, 4294901760
    %v6846 = vsub.f32 %v4437, %v6845
    %v6847 = vand.u32 %v6846, 4294901760
    %6848 = vmatpush1.msra.mxu0 %v6847
    %6849 = vmatprep.subr.mxu0 0.0
    %v6850 = vand.u32 %v4438, 4294901760
    %v6851 = vsub.f32 %v4438, %v6850
    %v6852 = vand.u32 %v6851, 4294901760
    %6853 = vmatpush1.msra.mxu0 %v6852
    %6854 = vmatprep.subr.mxu0 0.0
    %v6855 = vand.u32 %v4439, 4294901760
    %v6856 = vsub.f32 %v4439, %v6855
    %v6857 = vand.u32 %v6856, 4294901760
    %6858 = vmatpush1.msra.mxu0 %v6857
    %6859 = vmatprep.subr.mxu0 0.0
    %6860 = vmatpush1.msra.mxu0 0.0
    %6861 = vmatprep.subr.mxu0 0.0
    %6862 = vmatpush1.msra.mxu0 0.0
    %6863 = vmatprep.subr.mxu0 0.0
    %6864 = vmatpush1.msra.mxu0 0.0
    %6865 = vmatprep.subr.mxu0 0.0
    %6866 = vmatpush1.msra.mxu0 0.0
    %6867 = vmatprep.subr.mxu0 0.0
    %6868 = vmatpush1.msra.mxu0 0.0
    %6869 = vmatprep.subr.mxu0 0.0
    %6870 = vmatpush1.msra.mxu0 0.0
    %6871 = vmatprep.subr.mxu0 0.0
    %6872 = vmatpush1.msra.mxu0 0.0
    %6873 = vmatprep.subr.mxu0 0.0
    %6874 = vmatpush1.msra.mxu0 0.0
    %6875 = vmatprep.subr.mxu0 0.0
    %6876 = vmatpush1.msra.mxu0 0.0
    %6877 = vmatprep.subr.mxu0 0.0
    %6878 = vmatpush1.msra.mxu0 0.0
    %6879 = vmatprep.subr.mxu0 0.0
    %6880 = vmatpush1.msra.mxu0 0.0
    %6881 = vmatprep.subr.mxu0 0.0
    %6882 = vmatpush1.msra.mxu0 0.0
    %6883 = vmatprep.subr.mxu0 0.0
    %6884 = vmatpush1.msra.mxu0 0.0
    %6885 = vmatprep.subr.mxu0 0.0
    %6886 = vmatpush1.msra.mxu0 0.0
    %6887 = vmatprep.subr.mxu0 0.0
    %6888 = vmatpush1.msra.mxu0 0.0
    %6889 = vmatprep.subr.mxu0 0.0
    %6890 = vmatpush1.msra.mxu0 0.0
    %6891 = vmatprep.subr.mxu0 0.0
    %6892 = vmatpush1.msra.mxu0 0.0
    %6893 = vmatprep.subr.mxu0 0.0
    %6894 = vmatpush1.msra.mxu0 0.0
    %6895 = vmatprep.subr.mxu0 0.0
    %6896 = vmatpush1.msra.mxu0 0.0
    %6897 = vmatprep.subr.mxu0 0.0
    %6898 = vmatpush1.msra.mxu0 0.0
    %6899 = vmatprep.subr.mxu0 0.0
    %6900 = vmatpush1.msra.mxu0 0.0
    %6901 = vmatprep.subr.mxu0 0.0
    %6902 = vmatpush1.msra.mxu0 0.0
    %6903 = vmatprep.subr.mxu0 0.0
    %6904 = vmatpush1.msra.mxu0 0.0
    %6905 = vmatprep.subr.mxu0 0.0
    %6906 = vmatpush1.msra.mxu0 0.0
    %6907 = vmatprep.subr.mxu0 0.0
    %6908 = vmatpush1.msra.mxu0 0.0
    %6909 = vmatprep.subr.mxu0 0.0
    %6910 = vmatpush1.msra.mxu0 0.0
    %6911 = vmatprep.subr.mxu0 0.0
    %6912 = vmatpush1.msra.mxu0 0.0
    %6913 = vmatprep.subr.mxu0 0.0
    %6914 = vmatpush1.msra.mxu0 0.0
    %6915 = vmatprep.mubr.f32.mxu0 0.0
    %v6916 = vand.u32 %v6510, 4294901760
    %6917 = vmatmul.mubr.f32.gmra.mrb[0].mxu0 %v6916
    %v6918 = vpop.f32.mrb[0].mxu0
    %v6919 = vadd.f32 %v6836, %v6918
    %v6920 = vpop.f32.mrb[0].mxu0
    %6921 = vdwg.mxu0
    %6922 = vmatprep.subr.mxu0 0.0
    %v6923 = vand.u32 %v4436, 4294901760
    %6924 = vmatpush1.msra.mxu0 %v6923
    %6925 = vmatprep.subr.mxu0 0.0
    %v6926 = vand.u32 %v4437, 4294901760
    %6927 = vmatpush1.msra.mxu0 %v6926
    %6928 = vmatprep.subr.mxu0 0.0
    %v6929 = vand.u32 %v4438, 4294901760
    %6930 = vmatpush1.msra.mxu0 %v6929
    %6931 = vmatprep.subr.mxu0 0.0
    %v6932 = vand.u32 %v4439, 4294901760
    %6933 = vmatpush1.msra.mxu0 %v6932
    %6934 = vmatprep.subr.mxu0 0.0
    %6935 = vmatpush1.msra.mxu0 0.0
    %6936 = vmatprep.subr.mxu0 0.0
    %6937 = vmatpush1.msra.mxu0 0.0
    %6938 = vmatprep.subr.mxu0 0.0
    %6939 = vmatpush1.msra.mxu0 0.0
    %6940 = vmatprep.subr.mxu0 0.0
    %6941 = vmatpush1.msra.mxu0 0.0
    %6942 = vmatprep.subr.mxu0 0.0
    %6943 = vmatpush1.msra.mxu0 0.0
    %6944 = vmatprep.subr.mxu0 0.0
    %6945 = vmatpush1.msra.mxu0 0.0
    %6946 = vmatprep.subr.mxu0 0.0
    %6947 = vmatpush1.msra.mxu0 0.0
    %6948 = vmatprep.subr.mxu0 0.0
    %6949 = vmatpush1.msra.mxu0 0.0
    %6950 = vmatprep.subr.mxu0 0.0
    %6951 = vmatpush1.msra.mxu0 0.0
    %6952 = vmatprep.subr.mxu0 0.0
    %6953 = vmatpush1.msra.mxu0 0.0
    %6954 = vmatprep.subr.mxu0 0.0
    %6955 = vmatpush1.msra.mxu0 0.0
    %6956 = vmatprep.subr.mxu0 0.0
    %6957 = vmatpush1.msra.mxu0 0.0
    %6958 = vmatprep.subr.mxu0 0.0
    %6959 = vmatpush1.msra.mxu0 0.0
    %6960 = vmatprep.subr.mxu0 0.0
    %6961 = vmatpush1.msra.mxu0 0.0
    %6962 = vmatprep.subr.mxu0 0.0
    %6963 = vmatpush1.msra.mxu0 0.0
    %6964 = vmatprep.subr.mxu0 0.0
    %6965 = vmatpush1.msra.mxu0 0.0
    %6966 = vmatprep.subr.mxu0 0.0
    %6967 = vmatpush1.msra.mxu0 0.0
    %6968 = vmatprep.subr.mxu0 0.0
    %6969 = vmatpush1.msra.mxu0 0.0
    %6970 = vmatprep.subr.mxu0 0.0
    %6971 = vmatpush1.msra.mxu0 0.0
    %6972 = vmatprep.subr.mxu0 0.0
    %6973 = vmatpush1.msra.mxu0 0.0
    %6974 = vmatprep.subr.mxu0 0.0
    %6975 = vmatpush1.msra.mxu0 0.0
    %6976 = vmatprep.subr.mxu0 0.0
    %6977 = vmatpush1.msra.mxu0 0.0
    %6978 = vmatprep.subr.mxu0 0.0
    %6979 = vmatpush1.msra.mxu0 0.0
    %6980 = vmatprep.subr.mxu0 0.0
    %6981 = vmatpush1.msra.mxu0 0.0
    %6982 = vmatprep.subr.mxu0 0.0
    %6983 = vmatpush1.msra.mxu0 0.0
    %6984 = vmatprep.subr.mxu0 0.0
    %6985 = vmatpush1.msra.mxu0 0.0
    %6986 = vmatprep.subr.mxu0 0.0
    %6987 = vmatpush1.msra.mxu0 0.0
    %6988 = vmatprep.subr.mxu0 0.0
    %6989 = vmatpush1.msra.mxu0 0.0
    %6990 = vmatprep.mubr.f32.mxu0 0.0
    %v6991 = vand.u32 %v6510, 4294901760
    %6992 = vmatmul.mubr.f32.gmra.mrb[0].mxu0 %v6991
    %v6993 = vpop.f32.mrb[0].mxu0
    %v6994 = vadd.f32 %v6919, %v6993
    %v6995 = vpop.f32.mrb[0].mxu0
    %6996 = vdwg.mxu0
    %v6997 = vxor.u32 %v6994, 2147483648
    %v6998 = vmul.f32 %v6997, 1.442695
    %v6999 = vpow.pop %v6998
    %v7000 = vadd.f32 %v6999, 1.0
    %v7001 = vrcp.pop %v7000
    %v7002 = vmul.f32 1.0, %v7001
    %7004 = vrot.lane.b32.xlu0 %v6994, 32
    %v7005 = vpop.permute.xlu0 %7004
    %v7007 = vmul.f32 %v7002, %v7005
    %7009 = vrot.lane.b32.xlu0 %v7007, 64
    %v7010 = vpop.permute.xlu0 %7009
    %v7012 = vadd.f32 %v6994, %v7010
    %v7013 = vtanh.pop %v7012
    %v7014 = vsub.f32 1.0, %v7002
    %7016 = vrot.lane.b32.xlu0 %v7013, 96
    %v7017 = vpop.permute.xlu0 %7016
    %v7019 = vmul.f32 %v7014, %v7017
    %v7020 = vmul.f32 %v7002, %v6506
    %v7021 = vadd.f32 %v7019, %v7020
    %7023 = vrot.lane.b32.xlu0 %v7021, 96
    %v7024 = vpop.permute.xlu0 %7023
    %v7025 = vsel %vm825, %v7024, 0
    %7027 = vmatprep.subr.mxu0 0.0
    %v7028 = vand.u32 %v4436, 4294901760
    %7029 = vmatpush1.msra.mxu0 %v7028
    %7030 = vmatprep.subr.mxu0 0.0
    %v7031 = vand.u32 %v4437, 4294901760
    %7032 = vmatpush1.msra.mxu0 %v7031
    %7033 = vmatprep.subr.mxu0 0.0
    %v7034 = vand.u32 %v4438, 4294901760
    %7035 = vmatpush1.msra.mxu0 %v7034
    %7036 = vmatprep.subr.mxu0 0.0
    %v7037 = vand.u32 %v4439, 4294901760
    %7038 = vmatpush1.msra.mxu0 %v7037
    %7039 = vmatprep.subr.mxu0 0.0
    %7040 = vmatpush1.msra.mxu0 0.0
    %7041 = vmatprep.subr.mxu0 0.0
    %7042 = vmatpush1.msra.mxu0 0.0
    %7043 = vmatprep.subr.mxu0 0.0
    %7044 = vmatpush1.msra.mxu0 0.0
    %7045 = vmatprep.subr.mxu0 0.0
    %7046 = vmatpush1.msra.mxu0 0.0
    %7047 = vmatprep.subr.mxu0 0.0
    %7048 = vmatpush1.msra.mxu0 0.0
    %7049 = vmatprep.subr.mxu0 0.0
    %7050 = vmatpush1.msra.mxu0 0.0
    %7051 = vmatprep.subr.mxu0 0.0
    %7052 = vmatpush1.msra.mxu0 0.0
    %7053 = vmatprep.subr.mxu0 0.0
    %7054 = vmatpush1.msra.mxu0 0.0
    %7055 = vmatprep.subr.mxu0 0.0
    %7056 = vmatpush1.msra.mxu0 0.0
    %7057 = vmatprep.subr.mxu0 0.0
    %7058 = vmatpush1.msra.mxu0 0.0
    %7059 = vmatprep.subr.mxu0 0.0
    %7060 = vmatpush1.msra.mxu0 0.0
    %7061 = vmatprep.subr.mxu0 0.0
    %7062 = vmatpush1.msra.mxu0 0.0
    %7063 = vmatprep.subr.mxu0 0.0
    %7064 = vmatpush1.msra.mxu0 0.0
    %7065 = vmatprep.subr.mxu0 0.0
    %7066 = vmatpush1.msra.mxu0 0.0
    %7067 = vmatprep.subr.mxu0 0.0
    %7068 = vmatpush1.msra.mxu0 0.0
    %7069 = vmatprep.subr.mxu0 0.0
    %7070 = vmatpush1.msra.mxu0 0.0
    %7071 = vmatprep.subr.mxu0 0.0
    %7072 = vmatpush1.msra.mxu0 0.0
    %7073 = vmatprep.subr.mxu0 0.0
    %7074 = vmatpush1.msra.mxu0 0.0
    %7075 = vmatprep.subr.mxu0 0.0
    %7076 = vmatpush1.msra.mxu0 0.0
    %7077 = vmatprep.subr.mxu0 0.0
    %7078 = vmatpush1.msra.mxu0 0.0
    %7079 = vmatprep.subr.mxu0 0.0
    %7080 = vmatpush1.msra.mxu0 0.0
    %7081 = vmatprep.subr.mxu0 0.0
    %7082 = vmatpush1.msra.mxu0 0.0
    %7083 = vmatprep.subr.mxu0 0.0
    %7084 = vmatpush1.msra.mxu0 0.0
    %7085 = vmatprep.subr.mxu0 0.0
    %7086 = vmatpush1.msra.mxu0 0.0
    %7087 = vmatprep.subr.mxu0 0.0
    %7088 = vmatpush1.msra.mxu0 0.0
    %7089 = vmatprep.subr.mxu0 0.0
    %7090 = vmatpush1.msra.mxu0 0.0
    %7091 = vmatprep.subr.mxu0 0.0
    %7092 = vmatpush1.msra.mxu0 0.0
    %7093 = vmatprep.subr.mxu0 0.0
    %7094 = vmatpush1.msra.mxu0 0.0
    %7095 = vmatprep.mubr.f32.mxu0 0.0
    %v7096 = vand.u32 %v7025, 4294901760
    %v7097 = vsub.f32 %v7025, %v7096
    %v7098 = vand.u32 %v7097, 4294901760
    %v7099 = vsub.f32 %v7097, %v7098
    %v7100 = vand.u32 %v7099, 4294901760
    %7101 = vmatmul.mubr.f32.gmra.mrb[0].mxu0 %v7100
    %v7102 = vpop.f32.mrb[0].mxu0
    %v7103 = vadd.f32 %v4445, %v7102
    %v7104 = vpop.f32.mrb[0].mxu0
    %7105 = vdwg.mxu0
    %7106 = vmatprep.subr.mxu0 0.0
    %v7107 = vand.u32 %v4436, 4294901760
    %v7108 = vsub.f32 %v4436, %v7107
    %v7109 = vand.u32 %v7108, 4294901760
    %v7110 = vsub.f32 %v7108, %v7109
    %v7111 = vand.u32 %v7110, 4294901760
    %7112 = vmatpush1.msra.mxu0 %v7111
    %7113 = vmatprep.subr.mxu0 0.0
    %v7114 = vand.u32 %v4437, 4294901760
    %v7115 = vsub.f32 %v4437, %v7114
    %v7116 = vand.u32 %v7115, 4294901760
    %v7117 = vsub.f32 %v7115, %v7116
    %v7118 = vand.u32 %v7117, 4294901760
    %7119 = vmatpush1.msra.mxu0 %v7118
    %7120 = vmatprep.subr.mxu0 0.0
    %v7121 = vand.u32 %v4438, 4294901760
    %v7122 = vsub.f32 %v4438, %v7121
    %v7123 = vand.u32 %v7122, 4294901760
    %v7124 = vsub.f32 %v7122, %v7123
    %v7125 = vand.u32 %v7124, 4294901760
    %7126 = vmatpush1.msra.mxu0 %v7125
    %7127 = vmatprep.subr.mxu0 0.0
    %v7128 = vand.u32 %v4439, 4294901760
    %v7129 = vsub.f32 %v4439, %v7128
    %v7130 = vand.u32 %v7129, 4294901760
    %v7131 = vsub.f32 %v7129, %v7130
    %v7132 = vand.u32 %v7131, 4294901760
    %7133 = vmatpush1.msra.mxu0 %v7132
    %7134 = vmatprep.subr.mxu0 0.0
    %7135 = vmatpush1.msra.mxu0 0.0
    %7136 = vmatprep.subr.mxu0 0.0
    %7137 = vmatpush1.msra.mxu0 0.0
    %7138 = vmatprep.subr.mxu0 0.0
    %7139 = vmatpush1.msra.mxu0 0.0
    %7140 = vmatprep.subr.mxu0 0.0
    %7141 = vmatpush1.msra.mxu0 0.0
    %7142 = vmatprep.subr.mxu0 0.0
    %7143 = vmatpush1.msra.mxu0 0.0
    %7144 = vmatprep.subr.mxu0 0.0
    %7145 = vmatpush1.msra.mxu0 0.0
    %7146 = vmatprep.subr.mxu0 0.0
    %7147 = vmatpush1.msra.mxu0 0.0
    %7148 = vmatprep.subr.mxu0 0.0
    %7149 = vmatpush1.msra.mxu0 0.0
    %7150 = vmatprep.subr.mxu0 0.0
    %7151 = vmatpush1.msra.mxu0 0.0
    %7152 = vmatprep.subr.mxu0 0.0
    %7153 = vmatpush1.msra.mxu0 0.0
    %7154 = vmatprep.subr.mxu0 0.0
    %7155 = vmatpush1.msra.mxu0 0.0
    %7156 = vmatprep.subr.mxu0 0.0
    %7157 = vmatpush1.msra.mxu0 0.0
    %7158 = vmatprep.subr.mxu0 0.0
    %7159 = vmatpush1.msra.mxu0 0.0
    %7160 = vmatprep.subr.mxu0 0.0
    %7161 = vmatpush1.msra.mxu0 0.0
    %7162 = vmatprep.subr.mxu0 0.0
    %7163 = vmatpush1.msra.mxu0 0.0
    %7164 = vmatprep.subr.mxu0 0.0
    %7165 = vmatpush1.msra.mxu0 0.0
    %7166 = vmatprep.subr.mxu0 0.0
    %7167 = vmatpush1.msra.mxu0 0.0
    %7168 = vmatprep.subr.mxu0 0.0
    %7169 = vmatpush1.msra.mxu0 0.0
    %7170 = vmatprep.subr.mxu0 0.0
    %7171 = vmatpush1.msra.mxu0 0.0
    %7172 = vmatprep.subr.mxu0 0.0
    %7173 = vmatpush1.msra.mxu0 0.0
    %7174 = vmatprep.subr.mxu0 0.0
    %7175 = vmatpush1.msra.mxu0 0.0
    %7176 = vmatprep.subr.mxu0 0.0
    %7177 = vmatpush1.msra.mxu0 0.0
    %7178 = vmatprep.subr.mxu0 0.0
    %7179 = vmatpush1.msra.mxu0 0.0
    %7180 = vmatprep.subr.mxu0 0.0
    %7181 = vmatpush1.msra.mxu0 0.0
    %7182 = vmatprep.subr.mxu0 0.0
    %7183 = vmatpush1.msra.mxu0 0.0
    %7184 = vmatprep.subr.mxu0 0.0
    %7185 = vmatpush1.msra.mxu0 0.0
    %7186 = vmatprep.subr.mxu0 0.0
    %7187 = vmatpush1.msra.mxu0 0.0
    %7188 = vmatprep.subr.mxu0 0.0
    %7189 = vmatpush1.msra.mxu0 0.0
    %7190 = vmatprep.mubr.f32.mxu0 0.0
    %v7191 = vand.u32 %v7025, 4294901760
    %7192 = vmatmul.mubr.f32.gmra.mrb[0].mxu0 %v7191
    %v7193 = vpop.f32.mrb[0].mxu0
    %v7194 = vadd.f32 %v7103, %v7193
    %v7195 = vpop.f32.mrb[0].mxu0
    %7196 = vdwg.mxu0
    %7197 = vmatprep.subr.mxu0 0.0
    %v7198 = vand.u32 %v4436, 4294901760
    %v7199 = vsub.f32 %v4436, %v7198
    %7200 = vmatpush1.msra.mxu0 %v7199
    %7201 = vmatprep.subr.mxu0 0.0
    %v7202 = vand.u32 %v4437, 4294901760
    %v7203 = vsub.f32 %v4437, %v7202
    %7204 = vmatpush1.msra.mxu0 %v7203
    %7205 = vmatprep.subr.mxu0 0.0
    %v7206 = vand.u32 %v4438, 4294901760
    %v7207 = vsub.f32 %v4438, %v7206
    %7208 = vmatpush1.msra.mxu0 %v7207
    %7209 = vmatprep.subr.mxu0 0.0
    %v7210 = vand.u32 %v4439, 4294901760
    %v7211 = vsub.f32 %v4439, %v7210
    %7212 = vmatpush1.msra.mxu0 %v7211
    %7213 = vmatprep.subr.mxu0 0.0
    %7214 = vmatpush1.msra.mxu0 0.0
    %7215 = vmatprep.subr.mxu0 0.0
    %7216 = vmatpush1.msra.mxu0 0.0
    %7217 = vmatprep.subr.mxu0 0.0
    %7218 = vmatpush1.msra.mxu0 0.0
    %7219 = vmatprep.subr.mxu0 0.0
    %7220 = vmatpush1.msra.mxu0 0.0
    %7221 = vmatprep.subr.mxu0 0.0
    %7222 = vmatpush1.msra.mxu0 0.0
    %7223 = vmatprep.subr.mxu0 0.0
    %7224 = vmatpush1.msra.mxu0 0.0
    %7225 = vmatprep.subr.mxu0 0.0
    %7226 = vmatpush1.msra.mxu0 0.0
    %7227 = vmatprep.subr.mxu0 0.0
    %7228 = vmatpush1.msra.mxu0 0.0
    %7229 = vmatprep.subr.mxu0 0.0
    %7230 = vmatpush1.msra.mxu0 0.0
    %7231 = vmatprep.subr.mxu0 0.0
    %7232 = vmatpush1.msra.mxu0 0.0
    %7233 = vmatprep.subr.mxu0 0.0
    %7234 = vmatpush1.msra.mxu0 0.0
    %7235 = vmatprep.subr.mxu0 0.0
    %7236 = vmatpush1.msra.mxu0 0.0
    %7237 = vmatprep.subr.mxu0 0.0
    %7238 = vmatpush1.msra.mxu0 0.0
    %7239 = vmatprep.subr.mxu0 0.0
    %7240 = vmatpush1.msra.mxu0 0.0
    %7241 = vmatprep.subr.mxu0 0.0
    %7242 = vmatpush1.msra.mxu0 0.0
    %7243 = vmatprep.subr.mxu0 0.0
    %7244 = vmatpush1.msra.mxu0 0.0
    %7245 = vmatprep.subr.mxu0 0.0
    %7246 = vmatpush1.msra.mxu0 0.0
    %7247 = vmatprep.subr.mxu0 0.0
    %7248 = vmatpush1.msra.mxu0 0.0
    %7249 = vmatprep.subr.mxu0 0.0
    %7250 = vmatpush1.msra.mxu0 0.0
    %7251 = vmatprep.subr.mxu0 0.0
    %7252 = vmatpush1.msra.mxu0 0.0
    %7253 = vmatprep.subr.mxu0 0.0
    %7254 = vmatpush1.msra.mxu0 0.0
    %7255 = vmatprep.subr.mxu0 0.0
    %7256 = vmatpush1.msra.mxu0 0.0
    %7257 = vmatprep.subr.mxu0 0.0
    %7258 = vmatpush1.msra.mxu0 0.0
    %7259 = vmatprep.subr.mxu0 0.0
    %7260 = vmatpush1.msra.mxu0 0.0
    %7261 = vmatprep.subr.mxu0 0.0
    %7262 = vmatpush1.msra.mxu0 0.0
    %7263 = vmatprep.subr.mxu0 0.0
    %7264 = vmatpush1.msra.mxu0 0.0
    %7265 = vmatprep.subr.mxu0 0.0
    %7266 = vmatpush1.msra.mxu0 0.0
    %7267 = vmatprep.subr.mxu0 0.0
    %7268 = vmatpush1.msra.mxu0 0.0
    %7269 = vmatprep.mubr.f32.mxu0 0.0
    %v7270 = vand.u32 %v7025, 4294901760
    %v7271 = vsub.f32 %v7025, %v7270
    %7272 = vmatmul.mubr.f32.gmra.mrb[0].mxu0 %v7271
    %v7273 = vpop.f32.mrb[0].mxu0
    %v7274 = vadd.f32 %v7194, %v7273
    %v7275 = vpop.f32.mrb[0].mxu0
    %7276 = vdwg.mxu0
    %7277 = vmatprep.subr.mxu0 0.0
    %v7278 = vand.u32 %v4436, 4294901760
    %7279 = vmatpush1.msra.mxu0 %v7278
    %7280 = vmatprep.subr.mxu0 0.0
    %v7281 = vand.u32 %v4437, 4294901760
    %7282 = vmatpush1.msra.mxu0 %v7281
    %7283 = vmatprep.subr.mxu0 0.0
    %v7284 = vand.u32 %v4438, 4294901760
    %7285 = vmatpush1.msra.mxu0 %v7284
    %7286 = vmatprep.subr.mxu0 0.0
    %v7287 = vand.u32 %v4439, 4294901760
    %7288 = vmatpush1.msra.mxu0 %v7287
    %7289 = vmatprep.subr.mxu0 0.0
    %7290 = vmatpush1.msra.mxu0 0.0
    %7291 = vmatprep.subr.mxu0 0.0
    %7292 = vmatpush1.msra.mxu0 0.0
    %7293 = vmatprep.subr.mxu0 0.0
    %7294 = vmatpush1.msra.mxu0 0.0
    %7295 = vmatprep.subr.mxu0 0.0
    %7296 = vmatpush1.msra.mxu0 0.0
    %7297 = vmatprep.subr.mxu0 0.0
    %7298 = vmatpush1.msra.mxu0 0.0
    %7299 = vmatprep.subr.mxu0 0.0
    %7300 = vmatpush1.msra.mxu0 0.0
    %7301 = vmatprep.subr.mxu0 0.0
    %7302 = vmatpush1.msra.mxu0 0.0
    %7303 = vmatprep.subr.mxu0 0.0
    %7304 = vmatpush1.msra.mxu0 0.0
    %7305 = vmatprep.subr.mxu0 0.0
    %7306 = vmatpush1.msra.mxu0 0.0
    %7307 = vmatprep.subr.mxu0 0.0
    %7308 = vmatpush1.msra.mxu0 0.0
    %7309 = vmatprep.subr.mxu0 0.0
    %7310 = vmatpush1.msra.mxu0 0.0
    %7311 = vmatprep.subr.mxu0 0.0
    %7312 = vmatpush1.msra.mxu0 0.0
    %7313 = vmatprep.subr.mxu0 0.0
    %7314 = vmatpush1.msra.mxu0 0.0
    %7315 = vmatprep.subr.mxu0 0.0
    %7316 = vmatpush1.msra.mxu0 0.0
    %7317 = vmatprep.subr.mxu0 0.0
    %7318 = vmatpush1.msra.mxu0 0.0
    %7319 = vmatprep.subr.mxu0 0.0
    %7320 = vmatpush1.msra.mxu0 0.0
    %7321 = vmatprep.subr.mxu0 0.0
    %7322 = vmatpush1.msra.mxu0 0.0
    %7323 = vmatprep.subr.mxu0 0.0
    %7324 = vmatpush1.msra.mxu0 0.0
    %7325 = vmatprep.subr.mxu0 0.0
    %7326 = vmatpush1.msra.mxu0 0.0
    %7327 = vmatprep.subr.mxu0 0.0
    %7328 = vmatpush1.msra.mxu0 0.0
    %7329 = vmatprep.subr.mxu0 0.0
    %7330 = vmatpush1.msra.mxu0 0.0
    %7331 = vmatprep.subr.mxu0 0.0
    %7332 = vmatpush1.msra.mxu0 0.0
    %7333 = vmatprep.subr.mxu0 0.0
    %7334 = vmatpush1.msra.mxu0 0.0
    %7335 = vmatprep.subr.mxu0 0.0
    %7336 = vmatpush1.msra.mxu0 0.0
    %7337 = vmatprep.subr.mxu0 0.0
    %7338 = vmatpush1.msra.mxu0 0.0
    %7339 = vmatprep.subr.mxu0 0.0
    %7340 = vmatpush1.msra.mxu0 0.0
    %7341 = vmatprep.subr.mxu0 0.0
    %7342 = vmatpush1.msra.mxu0 0.0
    %7343 = vmatprep.subr.mxu0 0.0
    %7344 = vmatpush1.msra.mxu0 0.0
    %7345 = vmatprep.mubr.f32.mxu0 0.0
    %v7346 = vand.u32 %v7025, 4294901760
    %v7347 = vsub.f32 %v7025, %v7346
    %v7348 = vand.u32 %v7347, 4294901760
    %7349 = vmatmul.mubr.f32.gmra.mrb[0].mxu0 %v7348
    %v7350 = vpop.f32.mrb[0].mxu0
    %v7351 = vadd.f32 %v7274, %v7350
    %v7352 = vpop.f32.mrb[0].mxu0
    %7353 = vdwg.mxu0
    %7354 = vmatprep.subr.mxu0 0.0
    %v7355 = vand.u32 %v4436, 4294901760
    %v7356 = vsub.f32 %v4436, %v7355
    %v7357 = vand.u32 %v7356, 4294901760
    %7358 = vmatpush1.msra.mxu0 %v7357
    %7359 = vmatprep.subr.mxu0 0.0
    %v7360 = vand.u32 %v4437, 4294901760
    %v7361 = vsub.f32 %v4437, %v7360
    %v7362 = vand.u32 %v7361, 4294901760
    %7363 = vmatpush1.msra.mxu0 %v7362
    %7364 = vmatprep.subr.mxu0 0.0
    %v7365 = vand.u32 %v4438, 4294901760
    %v7366 = vsub.f32 %v4438, %v7365
    %v7367 = vand.u32 %v7366, 4294901760
    %7368 = vmatpush1.msra.mxu0 %v7367
    %7369 = vmatprep.subr.mxu0 0.0
    %v7370 = vand.u32 %v4439, 4294901760
    %v7371 = vsub.f32 %v4439, %v7370
    %v7372 = vand.u32 %v7371, 4294901760
    %7373 = vmatpush1.msra.mxu0 %v7372
    %7374 = vmatprep.subr.mxu0 0.0
    %7375 = vmatpush1.msra.mxu0 0.0
    %7376 = vmatprep.subr.mxu0 0.0
    %7377 = vmatpush1.msra.mxu0 0.0
    %7378 = vmatprep.subr.mxu0 0.0
    %7379 = vmatpush1.msra.mxu0 0.0
    %7380 = vmatprep.subr.mxu0 0.0
    %7381 = vmatpush1.msra.mxu0 0.0
    %7382 = vmatprep.subr.mxu0 0.0
    %7383 = vmatpush1.msra.mxu0 0.0
    %7384 = vmatprep.subr.mxu0 0.0
    %7385 = vmatpush1.msra.mxu0 0.0
    %7386 = vmatprep.subr.mxu0 0.0
    %7387 = vmatpush1.msra.mxu0 0.0
    %7388 = vmatprep.subr.mxu0 0.0
    %7389 = vmatpush1.msra.mxu0 0.0
    %7390 = vmatprep.subr.mxu0 0.0
    %7391 = vmatpush1.msra.mxu0 0.0
    %7392 = vmatprep.subr.mxu0 0.0
    %7393 = vmatpush1.msra.mxu0 0.0
    %7394 = vmatprep.subr.mxu0 0.0
    %7395 = vmatpush1.msra.mxu0 0.0
    %7396 = vmatprep.subr.mxu0 0.0
    %7397 = vmatpush1.msra.mxu0 0.0
    %7398 = vmatprep.subr.mxu0 0.0
    %7399 = vmatpush1.msra.mxu0 0.0
    %7400 = vmatprep.subr.mxu0 0.0
    %7401 = vmatpush1.msra.mxu0 0.0
    %7402 = vmatprep.subr.mxu0 0.0
    %7403 = vmatpush1.msra.mxu0 0.0
    %7404 = vmatprep.subr.mxu0 0.0
    %7405 = vmatpush1.msra.mxu0 0.0
    %7406 = vmatprep.subr.mxu0 0.0
    %7407 = vmatpush1.msra.mxu0 0.0
    %7408 = vmatprep.subr.mxu0 0.0
    %7409 = vmatpush1.msra.mxu0 0.0
    %7410 = vmatprep.subr.mxu0 0.0
    %7411 = vmatpush1.msra.mxu0 0.0
    %7412 = vmatprep.subr.mxu0 0.0
    %7413 = vmatpush1.msra.mxu0 0.0
    %7414 = vmatprep.subr.mxu0 0.0
    %7415 = vmatpush1.msra.mxu0 0.0
    %7416 = vmatprep.subr.mxu0 0.0
    %7417 = vmatpush1.msra.mxu0 0.0
    %7418 = vmatprep.subr.mxu0 0.0
    %7419 = vmatpush1.msra.mxu0 0.0
    %7420 = vmatprep.subr.mxu0 0.0
    %7421 = vmatpush1.msra.mxu0 0.0
    %7422 = vmatprep.subr.mxu0 0.0
    %7423 = vmatpush1.msra.mxu0 0.0
    %7424 = vmatprep.subr.mxu0 0.0
    %7425 = vmatpush1.msra.mxu0 0.0
    %7426 = vmatprep.subr.mxu0 0.0
    %7427 = vmatpush1.msra.mxu0 0.0
    %7428 = vmatprep.subr.mxu0 0.0
    %7429 = vmatpush1.msra.mxu0 0.0
    %7430 = vmatprep.mubr.f32.mxu0 0.0
    %v7431 = vand.u32 %v7025, 4294901760
    %7432 = vmatmul.mubr.f32.gmra.mrb[0].mxu0 %v7431
    %v7433 = vpop.f32.mrb[0].mxu0
    %v7434 = vadd.f32 %v7351, %v7433
    %v7435 = vpop.f32.mrb[0].mxu0
    %7436 = vdwg.mxu0
    %7437 = vmatprep.subr.mxu0 0.0
    %v7438 = vand.u32 %v4436, 4294901760
    %7439 = vmatpush1.msra.mxu0 %v7438
    %7440 = vmatprep.subr.mxu0 0.0
    %v7441 = vand.u32 %v4437, 4294901760
    %7442 = vmatpush1.msra.mxu0 %v7441
    %7443 = vmatprep.subr.mxu0 0.0
    %v7444 = vand.u32 %v4438, 4294901760
    %7445 = vmatpush1.msra.mxu0 %v7444
    %7446 = vmatprep.subr.mxu0 0.0
    %v7447 = vand.u32 %v4439, 4294901760
    %7448 = vmatpush1.msra.mxu0 %v7447
    %7449 = vmatprep.subr.mxu0 0.0
    %7450 = vmatpush1.msra.mxu0 0.0
    %7451 = vmatprep.subr.mxu0 0.0
    %7452 = vmatpush1.msra.mxu0 0.0
    %7453 = vmatprep.subr.mxu0 0.0
    %7454 = vmatpush1.msra.mxu0 0.0
    %7455 = vmatprep.subr.mxu0 0.0
    %7456 = vmatpush1.msra.mxu0 0.0
    %7457 = vmatprep.subr.mxu0 0.0
    %7458 = vmatpush1.msra.mxu0 0.0
    %7459 = vmatprep.subr.mxu0 0.0
    %7460 = vmatpush1.msra.mxu0 0.0
    %7461 = vmatprep.subr.mxu0 0.0
    %7462 = vmatpush1.msra.mxu0 0.0
    %7463 = vmatprep.subr.mxu0 0.0
    %7464 = vmatpush1.msra.mxu0 0.0
    %7465 = vmatprep.subr.mxu0 0.0
    %7466 = vmatpush1.msra.mxu0 0.0
    %7467 = vmatprep.subr.mxu0 0.0
    %7468 = vmatpush1.msra.mxu0 0.0
    %7469 = vmatprep.subr.mxu0 0.0
    %7470 = vmatpush1.msra.mxu0 0.0
    %7471 = vmatprep.subr.mxu0 0.0
    %7472 = vmatpush1.msra.mxu0 0.0
    %7473 = vmatprep.subr.mxu0 0.0
    %7474 = vmatpush1.msra.mxu0 0.0
    %7475 = vmatprep.subr.mxu0 0.0
    %7476 = vmatpush1.msra.mxu0 0.0
    %7477 = vmatprep.subr.mxu0 0.0
    %7478 = vmatpush1.msra.mxu0 0.0
    %7479 = vmatprep.subr.mxu0 0.0
    %7480 = vmatpush1.msra.mxu0 0.0
    %7481 = vmatprep.subr.mxu0 0.0
    %7482 = vmatpush1.msra.mxu0 0.0
    %7483 = vmatprep.subr.mxu0 0.0
    %7484 = vmatpush1.msra.mxu0 0.0
    %7485 = vmatprep.subr.mxu0 0.0
    %7486 = vmatpush1.msra.mxu0 0.0
    %7487 = vmatprep.subr.mxu0 0.0
    %7488 = vmatpush1.msra.mxu0 0.0
    %7489 = vmatprep.subr.mxu0 0.0
    %7490 = vmatpush1.msra.mxu0 0.0
    %7491 = vmatprep.subr.mxu0 0.0
    %7492 = vmatpush1.msra.mxu0 0.0
    %7493 = vmatprep.subr.mxu0 0.0
    %7494 = vmatpush1.msra.mxu0 0.0
    %7495 = vmatprep.subr.mxu0 0.0
    %7496 = vmatpush1.msra.mxu0 0.0
    %7497 = vmatprep.subr.mxu0 0.0
    %7498 = vmatpush1.msra.mxu0 0.0
    %7499 = vmatprep.subr.mxu0 0.0
    %7500 = vmatpush1.msra.mxu0 0.0
    %7501 = vmatprep.subr.mxu0 0.0
    %7502 = vmatpush1.msra.mxu0 0.0
    %7503 = vmatprep.subr.mxu0 0.0
    %7504 = vmatpush1.msra.mxu0 0.0
    %7505 = vmatprep.mubr.f32.mxu0 0.0
    %v7506 = vand.u32 %v7025, 4294901760
    %7507 = vmatmul.mubr.f32.gmra.mrb[0].mxu0 %v7506
    %v7508 = vpop.f32.mrb[0].mxu0
    %v7509 = vadd.f32 %v7434, %v7508
    %v7510 = vpop.f32.mrb[0].mxu0
    %7511 = vdwg.mxu0
    %v7512 = vxor.u32 %v7509, 2147483648
    %v7513 = vmul.f32 %v7512, 1.442695
    %v7514 = vpow.pop %v7513
    %v7515 = vadd.f32 %v7514, 1.0
    %v7516 = vrcp.pop %v7515
    %v7517 = vmul.f32 1.0, %v7516
    %7519 = vrot.lane.b32.xlu0 %v7509, 32
    %v7520 = vpop.permute.xlu0 %7519
    %v7522 = vmul.f32 %v7517, %v7520
    %7524 = vrot.lane.b32.xlu0 %v7522, 64
    %v7525 = vpop.permute.xlu0 %7524
    %v7527 = vadd.f32 %v7509, %v7525
    %v7528 = vtanh.pop %v7527
    %v7529 = vsub.f32 1.0, %v7517
    %7531 = vrot.lane.b32.xlu0 %v7528, 96
    %v7532 = vpop.permute.xlu0 %7531
    %v7534 = vmul.f32 %v7529, %v7532
    %v7535 = vmul.f32 %v7517, %v7021
    %v7536 = vadd.f32 %v7534, %v7535
    %7538 = vrot.lane.b32.xlu0 %v7536, 96
    %v7539 = vpop.permute.xlu0 %7538
    %v7540 = vsel %vm825, %v7539, 0
    %7542 = vmatprep.subr.mxu0 0.0
    %v7543 = vand.u32 %v4436, 4294901760
    %7544 = vmatpush1.msra.mxu0 %v7543
    %7545 = vmatprep.subr.mxu0 0.0
    %v7546 = vand.u32 %v4437, 4294901760
    %7547 = vmatpush1.msra.mxu0 %v7546
    %7548 = vmatprep.subr.mxu0 0.0
    %v7549 = vand.u32 %v4438, 4294901760
    %7550 = vmatpush1.msra.mxu0 %v7549
    %7551 = vmatprep.subr.mxu0 0.0
    %v7552 = vand.u32 %v4439, 4294901760
    %7553 = vmatpush1.msra.mxu0 %v7552
    %7554 = vmatprep.subr.mxu0 0.0
    %7555 = vmatpush1.msra.mxu0 0.0
    %7556 = vmatprep.subr.mxu0 0.0
    %7557 = vmatpush1.msra.mxu0 0.0
    %7558 = vmatprep.subr.mxu0 0.0
    %7559 = vmatpush1.msra.mxu0 0.0
    %7560 = vmatprep.subr.mxu0 0.0
    %7561 = vmatpush1.msra.mxu0 0.0
    %7562 = vmatprep.subr.mxu0 0.0
    %7563 = vmatpush1.msra.mxu0 0.0
    %7564 = vmatprep.subr.mxu0 0.0
    %7565 = vmatpush1.msra.mxu0 0.0
    %7566 = vmatprep.subr.mxu0 0.0
    %7567 = vmatpush1.msra.mxu0 0.0
    %7568 = vmatprep.subr.mxu0 0.0
    %7569 = vmatpush1.msra.mxu0 0.0
    %7570 = vmatprep.subr.mxu0 0.0
    %7571 = vmatpush1.msra.mxu0 0.0
    %7572 = vmatprep.subr.mxu0 0.0
    %7573 = vmatpush1.msra.mxu0 0.0
    %7574 = vmatprep.subr.mxu0 0.0
    %7575 = vmatpush1.msra.mxu0 0.0
    %7576 = vmatprep.subr.mxu0 0.0
    %7577 = vmatpush1.msra.mxu0 0.0
    %7578 = vmatprep.subr.mxu0 0.0
    %7579 = vmatpush1.msra.mxu0 0.0
    %7580 = vmatprep.subr.mxu0 0.0
    %7581 = vmatpush1.msra.mxu0 0.0
    %7582 = vmatprep.subr.mxu0 0.0
    %7583 = vmatpush1.msra.mxu0 0.0
    %7584 = vmatprep.subr.mxu0 0.0
    %7585 = vmatpush1.msra.mxu0 0.0
    %7586 = vmatprep.subr.mxu0 0.0
    %7587 = vmatpush1.msra.mxu0 0.0
    %7588 = vmatprep.subr.mxu0 0.0
    %7589 = vmatpush1.msra.mxu0 0.0
    %7590 = vmatprep.subr.mxu0 0.0
    %7591 = vmatpush1.msra.mxu0 0.0
    %7592 = vmatprep.subr.mxu0 0.0
    %7593 = vmatpush1.msra.mxu0 0.0
    %7594 = vmatprep.subr.mxu0 0.0
    %7595 = vmatpush1.msra.mxu0 0.0
    %7596 = vmatprep.subr.mxu0 0.0
    %7597 = vmatpush1.msra.mxu0 0.0
    %7598 = vmatprep.subr.mxu0 0.0
    %7599 = vmatpush1.msra.mxu0 0.0
    %7600 = vmatprep.subr.mxu0 0.0
    %7601 = vmatpush1.msra.mxu0 0.0
    %7602 = vmatprep.subr.mxu0 0.0
    %7603 = vmatpush1.msra.mxu0 0.0
    %7604 = vmatprep.subr.mxu0 0.0
    %7605 = vmatpush1.msra.mxu0 0.0
    %7606 = vmatprep.subr.mxu0 0.0
    %7607 = vmatpush1.msra.mxu0 0.0
    %7608 = vmatprep.subr.mxu0 0.0
    %7609 = vmatpush1.msra.mxu0 0.0
    %7610 = vmatprep.mubr.f32.mxu0 0.0
    %v7611 = vand.u32 %v7540, 4294901760
    %v7612 = vsub.f32 %v7540, %v7611
    %v7613 = vand.u32 %v7612, 4294901760
    %v7614 = vsub.f32 %v7612, %v7613
    %v7615 = vand.u32 %v7614, 4294901760
    %7616 = vmatmul.mubr.f32.gmra.mrb[0].mxu0 %v7615
    %v7617 = vpop.f32.mrb[0].mxu0
    %v7618 = vadd.f32 %v4445, %v7617
    %v7619 = vpop.f32.mrb[0].mxu0
    %7620 = vdwg.mxu0
    %7621 = vmatprep.subr.mxu0 0.0
    %v7622 = vand.u32 %v4436, 4294901760
    %v7623 = vsub.f32 %v4436, %v7622
    %v7624 = vand.u32 %v7623, 4294901760
    %v7625 = vsub.f32 %v7623, %v7624
    %v7626 = vand.u32 %v7625, 4294901760
    %7627 = vmatpush1.msra.mxu0 %v7626
    %7628 = vmatprep.subr.mxu0 0.0
    %v7629 = vand.u32 %v4437, 4294901760
    %v7630 = vsub.f32 %v4437, %v7629
    %v7631 = vand.u32 %v7630, 4294901760
    %v7632 = vsub.f32 %v7630, %v7631
    %v7633 = vand.u32 %v7632, 4294901760
    %7634 = vmatpush1.msra.mxu0 %v7633
    %7635 = vmatprep.subr.mxu0 0.0
    %v7636 = vand.u32 %v4438, 4294901760
    %v7637 = vsub.f32 %v4438, %v7636
    %v7638 = vand.u32 %v7637, 4294901760
    %v7639 = vsub.f32 %v7637, %v7638
    %v7640 = vand.u32 %v7639, 4294901760
    %7641 = vmatpush1.msra.mxu0 %v7640
    %7642 = vmatprep.subr.mxu0 0.0
    %v7643 = vand.u32 %v4439, 4294901760
    %v7644 = vsub.f32 %v4439, %v7643
    %v7645 = vand.u32 %v7644, 4294901760
    %v7646 = vsub.f32 %v7644, %v7645
    %v7647 = vand.u32 %v7646, 4294901760
    %7648 = vmatpush1.msra.mxu0 %v7647
    %7649 = vmatprep.subr.mxu0 0.0
    %7650 = vmatpush1.msra.mxu0 0.0
    %7651 = vmatprep.subr.mxu0 0.0
    %7652 = vmatpush1.msra.mxu0 0.0
    %7653 = vmatprep.subr.mxu0 0.0
    %7654 = vmatpush1.msra.mxu0 0.0
    %7655 = vmatprep.subr.mxu0 0.0
    %7656 = vmatpush1.msra.mxu0 0.0
    %7657 = vmatprep.subr.mxu0 0.0
    %7658 = vmatpush1.msra.mxu0 0.0
    %7659 = vmatprep.subr.mxu0 0.0
    %7660 = vmatpush1.msra.mxu0 0.0
    %7661 = vmatprep.subr.mxu0 0.0
    %7662 = vmatpush1.msra.mxu0 0.0
    %7663 = vmatprep.subr.mxu0 0.0
    %7664 = vmatpush1.msra.mxu0 0.0
    %7665 = vmatprep.subr.mxu0 0.0
    %7666 = vmatpush1.msra.mxu0 0.0
    %7667 = vmatprep.subr.mxu0 0.0
    %7668 = vmatpush1.msra.mxu0 0.0
    %7669 = vmatprep.subr.mxu0 0.0
    %7670 = vmatpush1.msra.mxu0 0.0
    %7671 = vmatprep.subr.mxu0 0.0
    %7672 = vmatpush1.msra.mxu0 0.0
    %7673 = vmatprep.subr.mxu0 0.0
    %7674 = vmatpush1.msra.mxu0 0.0
    %7675 = vmatprep.subr.mxu0 0.0
    %7676 = vmatpush1.msra.mxu0 0.0
    %7677 = vmatprep.subr.mxu0 0.0
    %7678 = vmatpush1.msra.mxu0 0.0
    %7679 = vmatprep.subr.mxu0 0.0
    %7680 = vmatpush1.msra.mxu0 0.0
    %7681 = vmatprep.subr.mxu0 0.0
    %7682 = vmatpush1.msra.mxu0 0.0
    %7683 = vmatprep.subr.mxu0 0.0
    %7684 = vmatpush1.msra.mxu0 0.0
    %7685 = vmatprep.subr.mxu0 0.0
    %7686 = vmatpush1.msra.mxu0 0.0
    %7687 = vmatprep.subr.mxu0 0.0
    %7688 = vmatpush1.msra.mxu0 0.0
    %7689 = vmatprep.subr.mxu0 0.0
    %7690 = vmatpush1.msra.mxu0 0.0
    %7691 = vmatprep.subr.mxu0 0.0
    %7692 = vmatpush1.msra.mxu0 0.0
    %7693 = vmatprep.subr.mxu0 0.0
    %7694 = vmatpush1.msra.mxu0 0.0
    %7695 = vmatprep.subr.mxu0 0.0
    %7696 = vmatpush1.msra.mxu0 0.0
    %7697 = vmatprep.subr.mxu0 0.0
    %7698 = vmatpush1.msra.mxu0 0.0
    %7699 = vmatprep.subr.mxu0 0.0
    %7700 = vmatpush1.msra.mxu0 0.0
    %7701 = vmatprep.subr.mxu0 0.0
    %7702 = vmatpush1.msra.mxu0 0.0
    %7703 = vmatprep.subr.mxu0 0.0
    %7704 = vmatpush1.msra.mxu0 0.0
    %7705 = vmatprep.mubr.f32.mxu0 0.0
    %v7706 = vand.u32 %v7540, 4294901760
    %7707 = vmatmul.mubr.f32.gmra.mrb[0].mxu0 %v7706
    %v7708 = vpop.f32.mrb[0].mxu0
    %v7709 = vadd.f32 %v7618, %v7708
    %v7710 = vpop.f32.mrb[0].mxu0
    %7711 = vdwg.mxu0
    %7712 = vmatprep.subr.mxu0 0.0
    %v7713 = vand.u32 %v4436, 4294901760
    %v7714 = vsub.f32 %v4436, %v7713
    %7715 = vmatpush1.msra.mxu0 %v7714
    %7716 = vmatprep.subr.mxu0 0.0
    %v7717 = vand.u32 %v4437, 4294901760
    %v7718 = vsub.f32 %v4437, %v7717
    %7719 = vmatpush1.msra.mxu0 %v7718
    %7720 = vmatprep.subr.mxu0 0.0
    %v7721 = vand.u32 %v4438, 4294901760
    %v7722 = vsub.f32 %v4438, %v7721
    %7723 = vmatpush1.msra.mxu0 %v7722
    %7724 = vmatprep.subr.mxu0 0.0
    %v7725 = vand.u32 %v4439, 4294901760
    %v7726 = vsub.f32 %v4439, %v7725
    %7727 = vmatpush1.msra.mxu0 %v7726
    %7728 = vmatprep.subr.mxu0 0.0
    %7729 = vmatpush1.msra.mxu0 0.0
    %7730 = vmatprep.subr.mxu0 0.0
    %7731 = vmatpush1.msra.mxu0 0.0
    %7732 = vmatprep.subr.mxu0 0.0
    %7733 = vmatpush1.msra.mxu0 0.0
    %7734 = vmatprep.subr.mxu0 0.0
    %7735 = vmatpush1.msra.mxu0 0.0
    %7736 = vmatprep.subr.mxu0 0.0
    %7737 = vmatpush1.msra.mxu0 0.0
    %7738 = vmatprep.subr.mxu0 0.0
    %7739 = vmatpush1.msra.mxu0 0.0
    %7740 = vmatprep.subr.mxu0 0.0
    %7741 = vmatpush1.msra.mxu0 0.0
    %7742 = vmatprep.subr.mxu0 0.0
    %7743 = vmatpush1.msra.mxu0 0.0
    %7744 = vmatprep.subr.mxu0 0.0
    %7745 = vmatpush1.msra.mxu0 0.0
    %7746 = vmatprep.subr.mxu0 0.0
    %7747 = vmatpush1.msra.mxu0 0.0
    %7748 = vmatprep.subr.mxu0 0.0
    %7749 = vmatpush1.msra.mxu0 0.0
    %7750 = vmatprep.subr.mxu0 0.0
    %7751 = vmatpush1.msra.mxu0 0.0
    %7752 = vmatprep.subr.mxu0 0.0
    %7753 = vmatpush1.msra.mxu0 0.0
    %7754 = vmatprep.subr.mxu0 0.0
    %7755 = vmatpush1.msra.mxu0 0.0
    %7756 = vmatprep.subr.mxu0 0.0
    %7757 = vmatpush1.msra.mxu0 0.0
    %7758 = vmatprep.subr.mxu0 0.0
    %7759 = vmatpush1.msra.mxu0 0.0
    %7760 = vmatprep.subr.mxu0 0.0
    %7761 = vmatpush1.msra.mxu0 0.0
    %7762 = vmatprep.subr.mxu0 0.0
    %7763 = vmatpush1.msra.mxu0 0.0
    %7764 = vmatprep.subr.mxu0 0.0
    %7765 = vmatpush1.msra.mxu0 0.0
    %7766 = vmatprep.subr.mxu0 0.0
    %7767 = vmatpush1.msra.mxu0 0.0
    %7768 = vmatprep.subr.mxu0 0.0
    %7769 = vmatpush1.msra.mxu0 0.0
    %7770 = vmatprep.subr.mxu0 0.0
    %7771 = vmatpush1.msra.mxu0 0.0
    %7772 = vmatprep.subr.mxu0 0.0
    %7773 = vmatpush1.msra.mxu0 0.0
    %7774 = vmatprep.subr.mxu0 0.0
    %7775 = vmatpush1.msra.mxu0 0.0
    %7776 = vmatprep.subr.mxu0 0.0
    %7777 = vmatpush1.msra.mxu0 0.0
    %7778 = vmatprep.subr.mxu0 0.0
    %7779 = vmatpush1.msra.mxu0 0.0
    %7780 = vmatprep.subr.mxu0 0.0
    %7781 = vmatpush1.msra.mxu0 0.0
    %7782 = vmatprep.subr.mxu0 0.0
    %7783 = vmatpush1.msra.mxu0 0.0
    %7784 = vmatprep.mubr.f32.mxu0 0.0
    %v7785 = vand.u32 %v7540, 4294901760
    %v7786 = vsub.f32 %v7540, %v7785
    %7787 = vmatmul.mubr.f32.gmra.mrb[0].mxu0 %v7786
    %v7788 = vpop.f32.mrb[0].mxu0
    %v7789 = vadd.f32 %v7709, %v7788
    %v7790 = vpop.f32.mrb[0].mxu0
    %7791 = vdwg.mxu0
    %7792 = vmatprep.subr.mxu0 0.0
    %v7793 = vand.u32 %v4436, 4294901760
    %7794 = vmatpush1.msra.mxu0 %v7793
    %7795 = vmatprep.subr.mxu0 0.0
    %v7796 = vand.u32 %v4437, 4294901760
    %7797 = vmatpush1.msra.mxu0 %v7796
    %7798 = vmatprep.subr.mxu0 0.0
    %v7799 = vand.u32 %v4438, 4294901760
    %7800 = vmatpush1.msra.mxu0 %v7799
    %7801 = vmatprep.subr.mxu0 0.0
    %v7802 = vand.u32 %v4439, 4294901760
    %7803 = vmatpush1.msra.mxu0 %v7802
    %7804 = vmatprep.subr.mxu0 0.0
    %7805 = vmatpush1.msra.mxu0 0.0
    %7806 = vmatprep.subr.mxu0 0.0
    %7807 = vmatpush1.msra.mxu0 0.0
    %7808 = vmatprep.subr.mxu0 0.0
    %7809 = vmatpush1.msra.mxu0 0.0
    %7810 = vmatprep.subr.mxu0 0.0
    %7811 = vmatpush1.msra.mxu0 0.0
    %7812 = vmatprep.subr.mxu0 0.0
    %7813 = vmatpush1.msra.mxu0 0.0
    %7814 = vmatprep.subr.mxu0 0.0
    %7815 = vmatpush1.msra.mxu0 0.0
    %7816 = vmatprep.subr.mxu0 0.0
    %7817 = vmatpush1.msra.mxu0 0.0
    %7818 = vmatprep.subr.mxu0 0.0
    %7819 = vmatpush1.msra.mxu0 0.0
    %7820 = vmatprep.subr.mxu0 0.0
    %7821 = vmatpush1.msra.mxu0 0.0
    %7822 = vmatprep.subr.mxu0 0.0
    %7823 = vmatpush1.msra.mxu0 0.0
    %7824 = vmatprep.subr.mxu0 0.0
    %7825 = vmatpush1.msra.mxu0 0.0
    %7826 = vmatprep.subr.mxu0 0.0
    %7827 = vmatpush1.msra.mxu0 0.0
    %7828 = vmatprep.subr.mxu0 0.0
    %7829 = vmatpush1.msra.mxu0 0.0
    %7830 = vmatprep.subr.mxu0 0.0
    %7831 = vmatpush1.msra.mxu0 0.0
    %7832 = vmatprep.subr.mxu0 0.0
    %7833 = vmatpush1.msra.mxu0 0.0
    %7834 = vmatprep.subr.mxu0 0.0
    %7835 = vmatpush1.msra.mxu0 0.0
    %7836 = vmatprep.subr.mxu0 0.0
    %7837 = vmatpush1.msra.mxu0 0.0
    %7838 = vmatprep.subr.mxu0 0.0
    %7839 = vmatpush1.msra.mxu0 0.0
    %7840 = vmatprep.subr.mxu0 0.0
    %7841 = vmatpush1.msra.mxu0 0.0
    %7842 = vmatprep.subr.mxu0 0.0
    %7843 = vmatpush1.msra.mxu0 0.0
    %7844 = vmatprep.subr.mxu0 0.0
    %7845 = vmatpush1.msra.mxu0 0.0
    %7846 = vmatprep.subr.mxu0 0.0
    %7847 = vmatpush1.msra.mxu0 0.0
    %7848 = vmatprep.subr.mxu0 0.0
    %7849 = vmatpush1.msra.mxu0 0.0
    %7850 = vmatprep.subr.mxu0 0.0
    %7851 = vmatpush1.msra.mxu0 0.0
    %7852 = vmatprep.subr.mxu0 0.0
    %7853 = vmatpush1.msra.mxu0 0.0
    %7854 = vmatprep.subr.mxu0 0.0
    %7855 = vmatpush1.msra.mxu0 0.0
    %7856 = vmatprep.subr.mxu0 0.0
    %7857 = vmatpush1.msra.mxu0 0.0
    %7858 = vmatprep.subr.mxu0 0.0
    %7859 = vmatpush1.msra.mxu0 0.0
    %7860 = vmatprep.mubr.f32.mxu0 0.0
    %v7861 = vand.u32 %v7540, 4294901760
    %v7862 = vsub.f32 %v7540, %v7861
    %v7863 = vand.u32 %v7862, 4294901760
    %7864 = vmatmul.mubr.f32.gmra.mrb[0].mxu0 %v7863
    %v7865 = vpop.f32.mrb[0].mxu0
    %v7866 = vadd.f32 %v7789, %v7865
    %v7867 = vpop.f32.mrb[0].mxu0
    %7868 = vdwg.mxu0
    %7869 = vmatprep.subr.mxu0 0.0
    %v7870 = vand.u32 %v4436, 4294901760
    %v7871 = vsub.f32 %v4436, %v7870
    %v7872 = vand.u32 %v7871, 4294901760
    %7873 = vmatpush1.msra.mxu0 %v7872
    %7874 = vmatprep.subr.mxu0 0.0
    %v7875 = vand.u32 %v4437, 4294901760
    %v7876 = vsub.f32 %v4437, %v7875
    %v7877 = vand.u32 %v7876, 4294901760
    %7878 = vmatpush1.msra.mxu0 %v7877
    %7879 = vmatprep.subr.mxu0 0.0
    %v7880 = vand.u32 %v4438, 4294901760
    %v7881 = vsub.f32 %v4438, %v7880
    %v7882 = vand.u32 %v7881, 4294901760
    %7883 = vmatpush1.msra.mxu0 %v7882
    %7884 = vmatprep.subr.mxu0 0.0
    %v7885 = vand.u32 %v4439, 4294901760
    %v7886 = vsub.f32 %v4439, %v7885
    %v7887 = vand.u32 %v7886, 4294901760
    %7888 = vmatpush1.msra.mxu0 %v7887
    %7889 = vmatprep.subr.mxu0 0.0
    %7890 = vmatpush1.msra.mxu0 0.0
    %7891 = vmatprep.subr.mxu0 0.0
    %7892 = vmatpush1.msra.mxu0 0.0
    %7893 = vmatprep.subr.mxu0 0.0
    %7894 = vmatpush1.msra.mxu0 0.0
    %7895 = vmatprep.subr.mxu0 0.0
    %7896 = vmatpush1.msra.mxu0 0.0
    %7897 = vmatprep.subr.mxu0 0.0
    %7898 = vmatpush1.msra.mxu0 0.0
    %7899 = vmatprep.subr.mxu0 0.0
    %7900 = vmatpush1.msra.mxu0 0.0
    %7901 = vmatprep.subr.mxu0 0.0
    %7902 = vmatpush1.msra.mxu0 0.0
    %7903 = vmatprep.subr.mxu0 0.0
    %7904 = vmatpush1.msra.mxu0 0.0
    %7905 = vmatprep.subr.mxu0 0.0
    %7906 = vmatpush1.msra.mxu0 0.0
    %7907 = vmatprep.subr.mxu0 0.0
    %7908 = vmatpush1.msra.mxu0 0.0
    %7909 = vmatprep.subr.mxu0 0.0
    %7910 = vmatpush1.msra.mxu0 0.0
    %7911 = vmatprep.subr.mxu0 0.0
    %7912 = vmatpush1.msra.mxu0 0.0
    %7913 = vmatprep.subr.mxu0 0.0
    %7914 = vmatpush1.msra.mxu0 0.0
    %7915 = vmatprep.subr.mxu0 0.0
    %7916 = vmatpush1.msra.mxu0 0.0
    %7917 = vmatprep.subr.mxu0 0.0
    %7918 = vmatpush1.msra.mxu0 0.0
    %7919 = vmatprep.subr.mxu0 0.0
    %7920 = vmatpush1.msra.mxu0 0.0
    %7921 = vmatprep.subr.mxu0 0.0
    %7922 = vmatpush1.msra.mxu0 0.0
    %7923 = vmatprep.subr.mxu0 0.0
    %7924 = vmatpush1.msra.mxu0 0.0
    %7925 = vmatprep.subr.mxu0 0.0
    %7926 = vmatpush1.msra.mxu0 0.0
    %7927 = vmatprep.subr.mxu0 0.0
    %7928 = vmatpush1.msra.mxu0 0.0
    %7929 = vmatprep.subr.mxu0 0.0
    %7930 = vmatpush1.msra.mxu0 0.0
    %7931 = vmatprep.subr.mxu0 0.0
    %7932 = vmatpush1.msra.mxu0 0.0
    %7933 = vmatprep.subr.mxu0 0.0
    %7934 = vmatpush1.msra.mxu0 0.0
    %7935 = vmatprep.subr.mxu0 0.0
    %7936 = vmatpush1.msra.mxu0 0.0
    %7937 = vmatprep.subr.mxu0 0.0
    %7938 = vmatpush1.msra.mxu0 0.0
    %7939 = vmatprep.subr.mxu0 0.0
    %7940 = vmatpush1.msra.mxu0 0.0
    %7941 = vmatprep.subr.mxu0 0.0
    %7942 = vmatpush1.msra.mxu0 0.0
    %7943 = vmatprep.subr.mxu0 0.0
    %7944 = vmatpush1.msra.mxu0 0.0
    %7945 = vmatprep.mubr.f32.mxu0 0.0
    %v7946 = vand.u32 %v7540, 4294901760
    %7947 = vmatmul.mubr.f32.gmra.mrb[0].mxu0 %v7946
    %v7948 = vpop.f32.mrb[0].mxu0
    %v7949 = vadd.f32 %v7866, %v7948
    %v7950 = vpop.f32.mrb[0].mxu0
    %7951 = vdwg.mxu0
    %7952 = vmatprep.subr.mxu0 0.0
    %v7953 = vand.u32 %v4436, 4294901760
    %7954 = vmatpush1.msra.mxu0 %v7953
    %7955 = vmatprep.subr.mxu0 0.0
    %v7956 = vand.u32 %v4437, 4294901760
    %7957 = vmatpush1.msra.mxu0 %v7956
    %7958 = vmatprep.subr.mxu0 0.0
    %v7959 = vand.u32 %v4438, 4294901760
    %7960 = vmatpush1.msra.mxu0 %v7959
    %7961 = vmatprep.subr.mxu0 0.0
    %v7962 = vand.u32 %v4439, 4294901760
    %7963 = vmatpush1.msra.mxu0 %v7962
    %7964 = vmatprep.subr.mxu0 0.0
    %7965 = vmatpush1.msra.mxu0 0.0
    %7966 = vmatprep.subr.mxu0 0.0
    %7967 = vmatpush1.msra.mxu0 0.0
    %7968 = vmatprep.subr.mxu0 0.0
    %7969 = vmatpush1.msra.mxu0 0.0
    %7970 = vmatprep.subr.mxu0 0.0
    %7971 = vmatpush1.msra.mxu0 0.0
    %7972 = vmatprep.subr.mxu0 0.0
    %7973 = vmatpush1.msra.mxu0 0.0
    %7974 = vmatprep.subr.mxu0 0.0
    %7975 = vmatpush1.msra.mxu0 0.0
    %7976 = vmatprep.subr.mxu0 0.0
    %7977 = vmatpush1.msra.mxu0 0.0
    %7978 = vmatprep.subr.mxu0 0.0
    %7979 = vmatpush1.msra.mxu0 0.0
    %7980 = vmatprep.subr.mxu0 0.0
    %7981 = vmatpush1.msra.mxu0 0.0
    %7982 = vmatprep.subr.mxu0 0.0
    %7983 = vmatpush1.msra.mxu0 0.0
    %7984 = vmatprep.subr.mxu0 0.0
    %7985 = vmatpush1.msra.mxu0 0.0
    %7986 = vmatprep.subr.mxu0 0.0
    %7987 = vmatpush1.msra.mxu0 0.0
    %7988 = vmatprep.subr.mxu0 0.0
    %7989 = vmatpush1.msra.mxu0 0.0
    %7990 = vmatprep.subr.mxu0 0.0
    %7991 = vmatpush1.msra.mxu0 0.0
    %7992 = vmatprep.subr.mxu0 0.0
    %7993 = vmatpush1.msra.mxu0 0.0
    %7994 = vmatprep.subr.mxu0 0.0
    %7995 = vmatpush1.msra.mxu0 0.0
    %7996 = vmatprep.subr.mxu0 0.0
    %7997 = vmatpush1.msra.mxu0 0.0
    %7998 = vmatprep.subr.mxu0 0.0
    %7999 = vmatpush1.msra.mxu0 0.0
    %8000 = vmatprep.subr.mxu0 0.0
    %8001 = vmatpush1.msra.mxu0 0.0
    %8002 = vmatprep.subr.mxu0 0.0
    %8003 = vmatpush1.msra.mxu0 0.0
    %8004 = vmatprep.subr.mxu0 0.0
    %8005 = vmatpush1.msra.mxu0 0.0
    %8006 = vmatprep.subr.mxu0 0.0
    %8007 = vmatpush1.msra.mxu0 0.0
    %8008 = vmatprep.subr.mxu0 0.0
    %8009 = vmatpush1.msra.mxu0 0.0
    %8010 = vmatprep.subr.mxu0 0.0
    %8011 = vmatpush1.msra.mxu0 0.0
    %8012 = vmatprep.subr.mxu0 0.0
    %8013 = vmatpush1.msra.mxu0 0.0
    %8014 = vmatprep.subr.mxu0 0.0
    %8015 = vmatpush1.msra.mxu0 0.0
    %8016 = vmatprep.subr.mxu0 0.0
    %8017 = vmatpush1.msra.mxu0 0.0
    %8018 = vmatprep.subr.mxu0 0.0
    %8019 = vmatpush1.msra.mxu0 0.0
    %8020 = vmatprep.mubr.f32.mxu0 0.0
    %v8021 = vand.u32 %v7540, 4294901760
    %8022 = vmatmul.mubr.f32.gmra.mrb[0].mxu0 %v8021
    %v8023 = vpop.f32.mrb[0].mxu0
    %v8024 = vadd.f32 %v7949, %v8023
    %v8025 = vpop.f32.mrb[0].mxu0
    %8026 = vdwg.mxu0
    %v8027 = vxor.u32 %v8024, 2147483648
    %v8028 = vmul.f32 %v8027, 1.442695
    %v8029 = vpow.pop %v8028
    %v8030 = vadd.f32 %v8029, 1.0
    %v8031 = vrcp.pop %v8030
    %v8032 = vmul.f32 1.0, %v8031
    %8034 = vrot.lane.b32.xlu0 %v8024, 32
    %v8035 = vpop.permute.xlu0 %8034
    %v8037 = vmul.f32 %v8032, %v8035
    %8039 = vrot.lane.b32.xlu0 %v8037, 64
    %v8040 = vpop.permute.xlu0 %8039
    %v8042 = vadd.f32 %v8024, %v8040
    %v8043 = vtanh.pop %v8042
    %v8044 = vsub.f32 1.0, %v8032
    %8046 = vrot.lane.b32.xlu0 %v8043, 96
    %v8047 = vpop.permute.xlu0 %8046
    %v8049 = vmul.f32 %v8044, %v8047
    %v8050 = vmul.f32 %v8032, %v7536
    %v8051 = vadd.f32 %v8049, %v8050
    %8053 = vrot.lane.b32.xlu0 %v8051, 96
    %v8054 = vpop.permute.xlu0 %8053
    %v8055 = vsel %vm825, %v8054, 0
    %8057 = vmatprep.subr.mxu0 0.0
    %v8058 = vand.u32 %v4436, 4294901760
    %8059 = vmatpush1.msra.mxu0 %v8058
    %8060 = vmatprep.subr.mxu0 0.0
    %v8061 = vand.u32 %v4437, 4294901760
    %8062 = vmatpush1.msra.mxu0 %v8061
    %8063 = vmatprep.subr.mxu0 0.0
    %v8064 = vand.u32 %v4438, 4294901760
    %8065 = vmatpush1.msra.mxu0 %v8064
    %8066 = vmatprep.subr.mxu0 0.0
    %v8067 = vand.u32 %v4439, 4294901760
    %8068 = vmatpush1.msra.mxu0 %v8067
    %8069 = vmatprep.subr.mxu0 0.0
    %8070 = vmatpush1.msra.mxu0 0.0
    %8071 = vmatprep.subr.mxu0 0.0
    %8072 = vmatpush1.msra.mxu0 0.0
    %8073 = vmatprep.subr.mxu0 0.0
    %8074 = vmatpush1.msra.mxu0 0.0
    %8075 = vmatprep.subr.mxu0 0.0
    %8076 = vmatpush1.msra.mxu0 0.0
    %8077 = vmatprep.subr.mxu0 0.0
    %8078 = vmatpush1.msra.mxu0 0.0
    %8079 = vmatprep.subr.mxu0 0.0
    %8080 = vmatpush1.msra.mxu0 0.0
    %8081 = vmatprep.subr.mxu0 0.0
    %8082 = vmatpush1.msra.mxu0 0.0
    %8083 = vmatprep.subr.mxu0 0.0
    %8084 = vmatpush1.msra.mxu0 0.0
    %8085 = vmatprep.subr.mxu0 0.0
    %8086 = vmatpush1.msra.mxu0 0.0
    %8087 = vmatprep.subr.mxu0 0.0
    %8088 = vmatpush1.msra.mxu0 0.0
    %8089 = vmatprep.subr.mxu0 0.0
    %8090 = vmatpush1.msra.mxu0 0.0
    %8091 = vmatprep.subr.mxu0 0.0
    %8092 = vmatpush1.msra.mxu0 0.0
    %8093 = vmatprep.subr.mxu0 0.0
    %8094 = vmatpush1.msra.mxu0 0.0
    %8095 = vmatprep.subr.mxu0 0.0
    %8096 = vmatpush1.msra.mxu0 0.0
    %8097 = vmatprep.subr.mxu0 0.0
    %8098 = vmatpush1.msra.mxu0 0.0
    %8099 = vmatprep.subr.mxu0 0.0
    %8100 = vmatpush1.msra.mxu0 0.0
    %8101 = vmatprep.subr.mxu0 0.0
    %8102 = vmatpush1.msra.mxu0 0.0
    %8103 = vmatprep.subr.mxu0 0.0
    %8104 = vmatpush1.msra.mxu0 0.0
    %8105 = vmatprep.subr.mxu0 0.0
    %8106 = vmatpush1.msra.mxu0 0.0
    %8107 = vmatprep.subr.mxu0 0.0
    %8108 = vmatpush1.msra.mxu0 0.0
    %8109 = vmatprep.subr.mxu0 0.0
    %8110 = vmatpush1.msra.mxu0 0.0
    %8111 = vmatprep.subr.mxu0 0.0
    %8112 = vmatpush1.msra.mxu0 0.0
    %8113 = vmatprep.subr.mxu0 0.0
    %8114 = vmatpush1.msra.mxu0 0.0
    %8115 = vmatprep.subr.mxu0 0.0
    %8116 = vmatpush1.msra.mxu0 0.0
    %8117 = vmatprep.subr.mxu0 0.0
    %8118 = vmatpush1.msra.mxu0 0.0
    %8119 = vmatprep.subr.mxu0 0.0
    %8120 = vmatpush1.msra.mxu0 0.0
    %8121 = vmatprep.subr.mxu0 0.0
    %8122 = vmatpush1.msra.mxu0 0.0
    %8123 = vmatprep.subr.mxu0 0.0
    %8124 = vmatpush1.msra.mxu0 0.0
    %8125 = vmatprep.mubr.f32.mxu0 0.0
    %v8126 = vand.u32 %v8055, 4294901760
    %v8127 = vsub.f32 %v8055, %v8126
    %v8128 = vand.u32 %v8127, 4294901760
    %v8129 = vsub.f32 %v8127, %v8128
    %v8130 = vand.u32 %v8129, 4294901760
    %8131 = vmatmul.mubr.f32.gmra.mrb[0].mxu0 %v8130
    %v8132 = vpop.f32.mrb[0].mxu0
    %v8133 = vadd.f32 %v4445, %v8132
    %v8134 = vpop.f32.mrb[0].mxu0
    %8135 = vdwg.mxu0
    %8136 = vmatprep.subr.mxu0 0.0
    %v8137 = vand.u32 %v4436, 4294901760
    %v8138 = vsub.f32 %v4436, %v8137
    %v8139 = vand.u32 %v8138, 4294901760
    %v8140 = vsub.f32 %v8138, %v8139
    %v8141 = vand.u32 %v8140, 4294901760
    %8142 = vmatpush1.msra.mxu0 %v8141
    %8143 = vmatprep.subr.mxu0 0.0
    %v8144 = vand.u32 %v4437, 4294901760
    %v8145 = vsub.f32 %v4437, %v8144
    %v8146 = vand.u32 %v8145, 4294901760
    %v8147 = vsub.f32 %v8145, %v8146
    %v8148 = vand.u32 %v8147, 4294901760
    %8149 = vmatpush1.msra.mxu0 %v8148
    %8150 = vmatprep.subr.mxu0 0.0
    %v8151 = vand.u32 %v4438, 4294901760
    %v8152 = vsub.f32 %v4438, %v8151
    %v8153 = vand.u32 %v8152, 4294901760
    %v8154 = vsub.f32 %v8152, %v8153
    %v8155 = vand.u32 %v8154, 4294901760
    %8156 = vmatpush1.msra.mxu0 %v8155
    %8157 = vmatprep.subr.mxu0 0.0
    %v8158 = vand.u32 %v4439, 4294901760
    %v8159 = vsub.f32 %v4439, %v8158
    %v8160 = vand.u32 %v8159, 4294901760
    %v8161 = vsub.f32 %v8159, %v8160
    %v8162 = vand.u32 %v8161, 4294901760
    %8163 = vmatpush1.msra.mxu0 %v8162
    %8164 = vmatprep.subr.mxu0 0.0
    %8165 = vmatpush1.msra.mxu0 0.0
    %8166 = vmatprep.subr.mxu0 0.0
    %8167 = vmatpush1.msra.mxu0 0.0
    %8168 = vmatprep.subr.mxu0 0.0
    %8169 = vmatpush1.msra.mxu0 0.0
    %8170 = vmatprep.subr.mxu0 0.0
    %8171 = vmatpush1.msra.mxu0 0.0
    %8172 = vmatprep.subr.mxu0 0.0
    %8173 = vmatpush1.msra.mxu0 0.0
    %8174 = vmatprep.subr.mxu0 0.0
    %8175 = vmatpush1.msra.mxu0 0.0
    %8176 = vmatprep.subr.mxu0 0.0
    %8177 = vmatpush1.msra.mxu0 0.0
    %8178 = vmatprep.subr.mxu0 0.0
    %8179 = vmatpush1.msra.mxu0 0.0
    %8180 = vmatprep.subr.mxu0 0.0
    %8181 = vmatpush1.msra.mxu0 0.0
    %8182 = vmatprep.subr.mxu0 0.0
    %8183 = vmatpush1.msra.mxu0 0.0
    %8184 = vmatprep.subr.mxu0 0.0
    %8185 = vmatpush1.msra.mxu0 0.0
    %8186 = vmatprep.subr.mxu0 0.0
    %8187 = vmatpush1.msra.mxu0 0.0
    %8188 = vmatprep.subr.mxu0 0.0
    %8189 = vmatpush1.msra.mxu0 0.0
    %8190 = vmatprep.subr.mxu0 0.0
    %8191 = vmatpush1.msra.mxu0 0.0
    %8192 = vmatprep.subr.mxu0 0.0
    %8193 = vmatpush1.msra.mxu0 0.0
    %8194 = vmatprep.subr.mxu0 0.0
    %8195 = vmatpush1.msra.mxu0 0.0
    %8196 = vmatprep.subr.mxu0 0.0
    %8197 = vmatpush1.msra.mxu0 0.0
    %8198 = vmatprep.subr.mxu0 0.0
    %8199 = vmatpush1.msra.mxu0 0.0
    %8200 = vmatprep.subr.mxu0 0.0
    %8201 = vmatpush1.msra.mxu0 0.0
    %8202 = vmatprep.subr.mxu0 0.0
    %8203 = vmatpush1.msra.mxu0 0.0
    %8204 = vmatprep.subr.mxu0 0.0
    %8205 = vmatpush1.msra.mxu0 0.0
    %8206 = vmatprep.subr.mxu0 0.0
    %8207 = vmatpush1.msra.mxu0 0.0
    %8208 = vmatprep.subr.mxu0 0.0
    %8209 = vmatpush1.msra.mxu0 0.0
    %8210 = vmatprep.subr.mxu0 0.0
    %8211 = vmatpush1.msra.mxu0 0.0
    %8212 = vmatprep.subr.mxu0 0.0
    %8213 = vmatpush1.msra.mxu0 0.0
    %8214 = vmatprep.subr.mxu0 0.0
    %8215 = vmatpush1.msra.mxu0 0.0
    %8216 = vmatprep.subr.mxu0 0.0
    %8217 = vmatpush1.msra.mxu0 0.0
    %8218 = vmatprep.subr.mxu0 0.0
    %8219 = vmatpush1.msra.mxu0 0.0
    %8220 = vmatprep.mubr.f32.mxu0 0.0
    %v8221 = vand.u32 %v8055, 4294901760
    %8222 = vmatmul.mubr.f32.gmra.mrb[0].mxu0 %v8221
    %v8223 = vpop.f32.mrb[0].mxu0
    %v8224 = vadd.f32 %v8133, %v8223
    %v8225 = vpop.f32.mrb[0].mxu0
    %8226 = vdwg.mxu0
    %8227 = vmatprep.subr.mxu0 0.0
    %v8228 = vand.u32 %v4436, 4294901760
    %v8229 = vsub.f32 %v4436, %v8228
    %8230 = vmatpush1.msra.mxu0 %v8229
    %8231 = vmatprep.subr.mxu0 0.0
    %v8232 = vand.u32 %v4437, 4294901760
    %v8233 = vsub.f32 %v4437, %v8232
    %8234 = vmatpush1.msra.mxu0 %v8233
    %8235 = vmatprep.subr.mxu0 0.0
    %v8236 = vand.u32 %v4438, 4294901760
    %v8237 = vsub.f32 %v4438, %v8236
    %8238 = vmatpush1.msra.mxu0 %v8237
    %8239 = vmatprep.subr.mxu0 0.0
    %v8240 = vand.u32 %v4439, 4294901760
    %v8241 = vsub.f32 %v4439, %v8240
    %8242 = vmatpush1.msra.mxu0 %v8241
    %8243 = vmatprep.subr.mxu0 0.0
    %8244 = vmatpush1.msra.mxu0 0.0
    %8245 = vmatprep.subr.mxu0 0.0
    %8246 = vmatpush1.msra.mxu0 0.0
    %8247 = vmatprep.subr.mxu0 0.0
    %8248 = vmatpush1.msra.mxu0 0.0
    %8249 = vmatprep.subr.mxu0 0.0
    %8250 = vmatpush1.msra.mxu0 0.0
    %8251 = vmatprep.subr.mxu0 0.0
    %8252 = vmatpush1.msra.mxu0 0.0
    %8253 = vmatprep.subr.mxu0 0.0
    %8254 = vmatpush1.msra.mxu0 0.0
    %8255 = vmatprep.subr.mxu0 0.0
    %8256 = vmatpush1.msra.mxu0 0.0
    %8257 = vmatprep.subr.mxu0 0.0
    %8258 = vmatpush1.msra.mxu0 0.0
    %8259 = vmatprep.subr.mxu0 0.0
    %8260 = vmatpush1.msra.mxu0 0.0
    %8261 = vmatprep.subr.mxu0 0.0
    %8262 = vmatpush1.msra.mxu0 0.0
    %8263 = vmatprep.subr.mxu0 0.0
    %8264 = vmatpush1.msra.mxu0 0.0
    %8265 = vmatprep.subr.mxu0 0.0
    %8266 = vmatpush1.msra.mxu0 0.0
    %8267 = vmatprep.subr.mxu0 0.0
    %8268 = vmatpush1.msra.mxu0 0.0
    %8269 = vmatprep.subr.mxu0 0.0
    %8270 = vmatpush1.msra.mxu0 0.0
    %8271 = vmatprep.subr.mxu0 0.0
    %8272 = vmatpush1.msra.mxu0 0.0
    %8273 = vmatprep.subr.mxu0 0.0
    %8274 = vmatpush1.msra.mxu0 0.0
    %8275 = vmatprep.subr.mxu0 0.0
    %8276 = vmatpush1.msra.mxu0 0.0
    %8277 = vmatprep.subr.mxu0 0.0
    %8278 = vmatpush1.msra.mxu0 0.0
    %8279 = vmatprep.subr.mxu0 0.0
    %8280 = vmatpush1.msra.mxu0 0.0
    %8281 = vmatprep.subr.mxu0 0.0
    %8282 = vmatpush1.msra.mxu0 0.0
    %8283 = vmatprep.subr.mxu0 0.0
    %8284 = vmatpush1.msra.mxu0 0.0
    %8285 = vmatprep.subr.mxu0 0.0
    %8286 = vmatpush1.msra.mxu0 0.0
    %8287 = vmatprep.subr.mxu0 0.0
    %8288 = vmatpush1.msra.mxu0 0.0
    %8289 = vmatprep.subr.mxu0 0.0
    %8290 = vmatpush1.msra.mxu0 0.0
    %8291 = vmatprep.subr.mxu0 0.0
    %8292 = vmatpush1.msra.mxu0 0.0
    %8293 = vmatprep.subr.mxu0 0.0
    %8294 = vmatpush1.msra.mxu0 0.0
    %8295 = vmatprep.subr.mxu0 0.0
    %8296 = vmatpush1.msra.mxu0 0.0
    %8297 = vmatprep.subr.mxu0 0.0
    %8298 = vmatpush1.msra.mxu0 0.0
    %8299 = vmatprep.mubr.f32.mxu0 0.0
    %v8300 = vand.u32 %v8055, 4294901760
    %v8301 = vsub.f32 %v8055, %v8300
    %8302 = vmatmul.mubr.f32.gmra.mrb[0].mxu0 %v8301
    %v8303 = vpop.f32.mrb[0].mxu0
    %v8304 = vadd.f32 %v8224, %v8303
    %v8305 = vpop.f32.mrb[0].mxu0
    %8306 = vdwg.mxu0
    %8307 = vmatprep.subr.mxu0 0.0
    %v8308 = vand.u32 %v4436, 4294901760
    %8309 = vmatpush1.msra.mxu0 %v8308
    %8310 = vmatprep.subr.mxu0 0.0
    %v8311 = vand.u32 %v4437, 4294901760
    %8312 = vmatpush1.msra.mxu0 %v8311
    %8313 = vmatprep.subr.mxu0 0.0
    %v8314 = vand.u32 %v4438, 4294901760
    %8315 = vmatpush1.msra.mxu0 %v8314
    %8316 = vmatprep.subr.mxu0 0.0
    %v8317 = vand.u32 %v4439, 4294901760
    %8318 = vmatpush1.msra.mxu0 %v8317
    %8319 = vmatprep.subr.mxu0 0.0
    %8320 = vmatpush1.msra.mxu0 0.0
    %8321 = vmatprep.subr.mxu0 0.0
    %8322 = vmatpush1.msra.mxu0 0.0
    %8323 = vmatprep.subr.mxu0 0.0
    %8324 = vmatpush1.msra.mxu0 0.0
    %8325 = vmatprep.subr.mxu0 0.0
    %8326 = vmatpush1.msra.mxu0 0.0
    %8327 = vmatprep.subr.mxu0 0.0
    %8328 = vmatpush1.msra.mxu0 0.0
    %8329 = vmatprep.subr.mxu0 0.0
    %8330 = vmatpush1.msra.mxu0 0.0
    %8331 = vmatprep.subr.mxu0 0.0
    %8332 = vmatpush1.msra.mxu0 0.0
    %8333 = vmatprep.subr.mxu0 0.0
    %8334 = vmatpush1.msra.mxu0 0.0
    %8335 = vmatprep.subr.mxu0 0.0
    %8336 = vmatpush1.msra.mxu0 0.0
    %8337 = vmatprep.subr.mxu0 0.0
    %8338 = vmatpush1.msra.mxu0 0.0
    %8339 = vmatprep.subr.mxu0 0.0
    %8340 = vmatpush1.msra.mxu0 0.0
    %8341 = vmatprep.subr.mxu0 0.0
    %8342 = vmatpush1.msra.mxu0 0.0
    %8343 = vmatprep.subr.mxu0 0.0
    %8344 = vmatpush1.msra.mxu0 0.0
    %8345 = vmatprep.subr.mxu0 0.0
    %8346 = vmatpush1.msra.mxu0 0.0
    %8347 = vmatprep.subr.mxu0 0.0
    %8348 = vmatpush1.msra.mxu0 0.0
    %8349 = vmatprep.subr.mxu0 0.0
    %8350 = vmatpush1.msra.mxu0 0.0
    %8351 = vmatprep.subr.mxu0 0.0
    %8352 = vmatpush1.msra.mxu0 0.0
    %8353 = vmatprep.subr.mxu0 0.0
    %8354 = vmatpush1.msra.mxu0 0.0
    %8355 = vmatprep.subr.mxu0 0.0
    %8356 = vmatpush1.msra.mxu0 0.0
    %8357 = vmatprep.subr.mxu0 0.0
    %8358 = vmatpush1.msra.mxu0 0.0
    %8359 = vmatprep.subr.mxu0 0.0
    %8360 = vmatpush1.msra.mxu0 0.0
    %8361 = vmatprep.subr.mxu0 0.0
    %8362 = vmatpush1.msra.mxu0 0.0
    %8363 = vmatprep.subr.mxu0 0.0
    %8364 = vmatpush1.msra.mxu0 0.0
    %8365 = vmatprep.subr.mxu0 0.0
    %8366 = vmatpush1.msra.mxu0 0.0
    %8367 = vmatprep.subr.mxu0 0.0
    %8368 = vmatpush1.msra.mxu0 0.0
    %8369 = vmatprep.subr.mxu0 0.0
    %8370 = vmatpush1.msra.mxu0 0.0
    %8371 = vmatprep.subr.mxu0 0.0
    %8372 = vmatpush1.msra.mxu0 0.0
    %8373 = vmatprep.subr.mxu0 0.0
    %8374 = vmatpush1.msra.mxu0 0.0
    %8375 = vmatprep.mubr.f32.mxu0 0.0
    %v8376 = vand.u32 %v8055, 4294901760
    %v8377 = vsub.f32 %v8055, %v8376
    %v8378 = vand.u32 %v8377, 4294901760
    %8379 = vmatmul.mubr.f32.gmra.mrb[0].mxu0 %v8378
    %v8380 = vpop.f32.mrb[0].mxu0
    %v8381 = vadd.f32 %v8304, %v8380
    %v8382 = vpop.f32.mrb[0].mxu0
    %8383 = vdwg.mxu0
    %8384 = vmatprep.subr.mxu0 0.0
    %v8385 = vand.u32 %v4436, 4294901760
    %v8386 = vsub.f32 %v4436, %v8385
    %v8387 = vand.u32 %v8386, 4294901760
    %8388 = vmatpush1.msra.mxu0 %v8387
    %8389 = vmatprep.subr.mxu0 0.0
    %v8390 = vand.u32 %v4437, 4294901760
    %v8391 = vsub.f32 %v4437, %v8390
    %v8392 = vand.u32 %v8391, 4294901760
    %8393 = vmatpush1.msra.mxu0 %v8392
    %8394 = vmatprep.subr.mxu0 0.0
    %v8395 = vand.u32 %v4438, 4294901760
    %v8396 = vsub.f32 %v4438, %v8395
    %v8397 = vand.u32 %v8396, 4294901760
    %8398 = vmatpush1.msra.mxu0 %v8397
    %8399 = vmatprep.subr.mxu0 0.0
    %v8400 = vand.u32 %v4439, 4294901760
    %v8401 = vsub.f32 %v4439, %v8400
    %v8402 = vand.u32 %v8401, 4294901760
    %8403 = vmatpush1.msra.mxu0 %v8402
    %8404 = vmatprep.subr.mxu0 0.0
    %8405 = vmatpush1.msra.mxu0 0.0
    %8406 = vmatprep.subr.mxu0 0.0
    %8407 = vmatpush1.msra.mxu0 0.0
    %8408 = vmatprep.subr.mxu0 0.0
    %8409 = vmatpush1.msra.mxu0 0.0
    %8410 = vmatprep.subr.mxu0 0.0
    %8411 = vmatpush1.msra.mxu0 0.0
    %8412 = vmatprep.subr.mxu0 0.0
    %8413 = vmatpush1.msra.mxu0 0.0
    %8414 = vmatprep.subr.mxu0 0.0
    %8415 = vmatpush1.msra.mxu0 0.0
    %8416 = vmatprep.subr.mxu0 0.0
    %8417 = vmatpush1.msra.mxu0 0.0
    %8418 = vmatprep.subr.mxu0 0.0
    %8419 = vmatpush1.msra.mxu0 0.0
    %8420 = vmatprep.subr.mxu0 0.0
    %8421 = vmatpush1.msra.mxu0 0.0
    %8422 = vmatprep.subr.mxu0 0.0
    %8423 = vmatpush1.msra.mxu0 0.0
    %8424 = vmatprep.subr.mxu0 0.0
    %8425 = vmatpush1.msra.mxu0 0.0
    %8426 = vmatprep.subr.mxu0 0.0
    %8427 = vmatpush1.msra.mxu0 0.0
    %8428 = vmatprep.subr.mxu0 0.0
    %8429 = vmatpush1.msra.mxu0 0.0
    %8430 = vmatprep.subr.mxu0 0.0
    %8431 = vmatpush1.msra.mxu0 0.0
    %8432 = vmatprep.subr.mxu0 0.0
    %8433 = vmatpush1.msra.mxu0 0.0
    %8434 = vmatprep.subr.mxu0 0.0
    %8435 = vmatpush1.msra.mxu0 0.0
    %8436 = vmatprep.subr.mxu0 0.0
    %8437 = vmatpush1.msra.mxu0 0.0
    %8438 = vmatprep.subr.mxu0 0.0
    %8439 = vmatpush1.msra.mxu0 0.0
    %8440 = vmatprep.subr.mxu0 0.0
    %8441 = vmatpush1.msra.mxu0 0.0
    %8442 = vmatprep.subr.mxu0 0.0
    %8443 = vmatpush1.msra.mxu0 0.0
    %8444 = vmatprep.subr.mxu0 0.0
    %8445 = vmatpush1.msra.mxu0 0.0
    %8446 = vmatprep.subr.mxu0 0.0
    %8447 = vmatpush1.msra.mxu0 0.0
    %8448 = vmatprep.subr.mxu0 0.0
    %8449 = vmatpush1.msra.mxu0 0.0
    %8450 = vmatprep.subr.mxu0 0.0
    %8451 = vmatpush1.msra.mxu0 0.0
    %8452 = vmatprep.subr.mxu0 0.0
    %8453 = vmatpush1.msra.mxu0 0.0
    %8454 = vmatprep.subr.mxu0 0.0
    %8455 = vmatpush1.msra.mxu0 0.0
    %8456 = vmatprep.subr.mxu0 0.0
    %8457 = vmatpush1.msra.mxu0 0.0
    %8458 = vmatprep.subr.mxu0 0.0
    %8459 = vmatpush1.msra.mxu0 0.0
    %8460 = vmatprep.mubr.f32.mxu0 0.0
    %v8461 = vand.u32 %v8055, 4294901760
    %8462 = vmatmul.mubr.f32.gmra.mrb[0].mxu0 %v8461
    %v8463 = vpop.f32.mrb[0].mxu0
    %v8464 = vadd.f32 %v8381, %v8463
    %v8465 = vpop.f32.mrb[0].mxu0
    %8466 = vdwg.mxu0
    %8467 = vmatprep.subr.mxu0 0.0
    %v8468 = vand.u32 %v4436, 4294901760
    %8469 = vmatpush1.msra.mxu0 %v8468
    %8470 = vmatprep.subr.mxu0 0.0
    %v8471 = vand.u32 %v4437, 4294901760
    %8472 = vmatpush1.msra.mxu0 %v8471
    %8473 = vmatprep.subr.mxu0 0.0
    %v8474 = vand.u32 %v4438, 4294901760
    %8475 = vmatpush1.msra.mxu0 %v8474
    %8476 = vmatprep.subr.mxu0 0.0
    %v8477 = vand.u32 %v4439, 4294901760
    %8478 = vmatpush1.msra.mxu0 %v8477
    %8479 = vmatprep.subr.mxu0 0.0
    %8480 = vmatpush1.msra.mxu0 0.0
    %8481 = vmatprep.subr.mxu0 0.0
    %8482 = vmatpush1.msra.mxu0 0.0
    %8483 = vmatprep.subr.mxu0 0.0
    %8484 = vmatpush1.msra.mxu0 0.0
    %8485 = vmatprep.subr.mxu0 0.0
    %8486 = vmatpush1.msra.mxu0 0.0
    %8487 = vmatprep.subr.mxu0 0.0
    %8488 = vmatpush1.msra.mxu0 0.0
    %8489 = vmatprep.subr.mxu0 0.0
    %8490 = vmatpush1.msra.mxu0 0.0
    %8491 = vmatprep.subr.mxu0 0.0
    %8492 = vmatpush1.msra.mxu0 0.0
    %8493 = vmatprep.subr.mxu0 0.0
    %8494 = vmatpush1.msra.mxu0 0.0
    %8495 = vmatprep.subr.mxu0 0.0
    %8496 = vmatpush1.msra.mxu0 0.0
    %8497 = vmatprep.subr.mxu0 0.0
    %8498 = vmatpush1.msra.mxu0 0.0
    %8499 = vmatprep.subr.mxu0 0.0
    %8500 = vmatpush1.msra.mxu0 0.0
    %8501 = vmatprep.subr.mxu0 0.0
    %8502 = vmatpush1.msra.mxu0 0.0
    %8503 = vmatprep.subr.mxu0 0.0
    %8504 = vmatpush1.msra.mxu0 0.0
    %8505 = vmatprep.subr.mxu0 0.0
    %8506 = vmatpush1.msra.mxu0 0.0
    %8507 = vmatprep.subr.mxu0 0.0
    %8508 = vmatpush1.msra.mxu0 0.0
    %8509 = vmatprep.subr.mxu0 0.0
    %8510 = vmatpush1.msra.mxu0 0.0
    %8511 = vmatprep.subr.mxu0 0.0
    %8512 = vmatpush1.msra.mxu0 0.0
    %8513 = vmatprep.subr.mxu0 0.0
    %8514 = vmatpush1.msra.mxu0 0.0
    %8515 = vmatprep.subr.mxu0 0.0
    %8516 = vmatpush1.msra.mxu0 0.0
    %8517 = vmatprep.subr.mxu0 0.0
    %8518 = vmatpush1.msra.mxu0 0.0
    %8519 = vmatprep.subr.mxu0 0.0
    %8520 = vmatpush1.msra.mxu0 0.0
    %8521 = vmatprep.subr.mxu0 0.0
    %8522 = vmatpush1.msra.mxu0 0.0
    %8523 = vmatprep.subr.mxu0 0.0
    %8524 = vmatpush1.msra.mxu0 0.0
    %8525 = vmatprep.subr.mxu0 0.0
    %8526 = vmatpush1.msra.mxu0 0.0
    %8527 = vmatprep.subr.mxu0 0.0
    %8528 = vmatpush1.msra.mxu0 0.0
    %8529 = vmatprep.subr.mxu0 0.0
    %8530 = vmatpush1.msra.mxu0 0.0
    %8531 = vmatprep.subr.mxu0 0.0
    %8532 = vmatpush1.msra.mxu0 0.0
    %8533 = vmatprep.subr.mxu0 0.0
    %8534 = vmatpush1.msra.mxu0 0.0
    %8535 = vmatprep.mubr.f32.mxu0 0.0
    %v8536 = vand.u32 %v8055, 4294901760
    %8537 = vmatmul.mubr.f32.gmra.mrb[0].mxu0 %v8536
    %v8538 = vpop.f32.mrb[0].mxu0
    %v8539 = vadd.f32 %v8464, %v8538
    %v8540 = vpop.f32.mrb[0].mxu0
    %8541 = vdwg.mxu0
    %v8542 = vxor.u32 %v8539, 2147483648
    %v8543 = vmul.f32 %v8542, 1.442695
    %v8544 = vpow.pop %v8543
    %v8545 = vadd.f32 %v8544, 1.0
    %v8546 = vrcp.pop %v8545
    %v8547 = vmul.f32 1.0, %v8546
    %8549 = vrot.lane.b32.xlu0 %v8539, 32
    %v8550 = vpop.permute.xlu0 %8549
    %v8552 = vmul.f32 %v8547, %v8550
    %8554 = vrot.lane.b32.xlu0 %v8552, 64
    %v8555 = vpop.permute.xlu0 %8554
    %v8557 = vadd.f32 %v8539, %v8555
    %v8558 = vtanh.pop %v8557
    %v8559 = vsub.f32 1.0, %v8547
    %8561 = vrot.lane.b32.xlu0 %v8558, 96
    %v8562 = vpop.permute.xlu0 %8561
    %v8564 = vmul.f32 %v8559, %v8562
    %v8565 = vmul.f32 %v8547, %v8051
    %v8566 = vadd.f32 %v8564, %v8565
    %v8567 = vld [vmem:[%s7] sm:$0xff]
    %v8568 = vld [vmem:[%s7 + $0x8] sm:$0xff]
    %v8569 = vld [vmem:[%s7 + $0x10] sm:$0xff]
    %v8570 = vld [vmem:[%s7 + $0x18] sm:$0xff]
    %v8571 = vld [vmem:[%s8] sm:$0x1]
    %v8573 = vlaneseq
    %v8574 = vshrl.u32 %v8573, 7
    %v8575 = vsub.s32 0, %v8574
    %v8576 = vrot.slane %v8571, %v8575
    %8579 = vrot.lane.b32.xlu0 %v8566, 96
    %v8580 = vpop.permute.xlu0 %8579
    %v8581 = vsel %vm825, %v8580, 0
    %8583 = vmatprep.subr.mxu0 0.0
    %v8584 = vand.u32 %v8567, 4294901760
    %8585 = vmatpush1.msra.mxu0 %v8584
    %8586 = vmatprep.subr.mxu0 0.0
    %v8587 = vand.u32 %v8568, 4294901760
    %8588 = vmatpush1.msra.mxu0 %v8587
    %8589 = vmatprep.subr.mxu0 0.0
    %v8590 = vand.u32 %v8569, 4294901760
    %8591 = vmatpush1.msra.mxu0 %v8590
    %8592 = vmatprep.subr.mxu0 0.0
    %v8593 = vand.u32 %v8570, 4294901760
    %8594 = vmatpush1.msra.mxu0 %v8593
    %8595 = vmatprep.subr.mxu0 0.0
    %8596 = vmatpush1.msra.mxu0 0.0
    %8597 = vmatprep.subr.mxu0 0.0
    %8598 = vmatpush1.msra.mxu0 0.0
    %8599 = vmatprep.subr.mxu0 0.0
    %8600 = vmatpush1.msra.mxu0 0.0
    %8601 = vmatprep.subr.mxu0 0.0
    %8602 = vmatpush1.msra.mxu0 0.0
    %8603 = vmatprep.subr.mxu0 0.0
    %8604 = vmatpush1.msra.mxu0 0.0
    %8605 = vmatprep.subr.mxu0 0.0
    %8606 = vmatpush1.msra.mxu0 0.0
    %8607 = vmatprep.subr.mxu0 0.0
    %8608 = vmatpush1.msra.mxu0 0.0
    %8609 = vmatprep.subr.mxu0 0.0
    %8610 = vmatpush1.msra.mxu0 0.0
    %8611 = vmatprep.subr.mxu0 0.0
    %8612 = vmatpush1.msra.mxu0 0.0
    %8613 = vmatprep.subr.mxu0 0.0
    %8614 = vmatpush1.msra.mxu0 0.0
    %8615 = vmatprep.subr.mxu0 0.0
    %8616 = vmatpush1.msra.mxu0 0.0
    %8617 = vmatprep.subr.mxu0 0.0
    %8618 = vmatpush1.msra.mxu0 0.0
    %8619 = vmatprep.subr.mxu0 0.0
    %8620 = vmatpush1.msra.mxu0 0.0
    %8621 = vmatprep.subr.mxu0 0.0
    %8622 = vmatpush1.msra.mxu0 0.0
    %8623 = vmatprep.subr.mxu0 0.0
    %8624 = vmatpush1.msra.mxu0 0.0
    %8625 = vmatprep.subr.mxu0 0.0
    %8626 = vmatpush1.msra.mxu0 0.0
    %8627 = vmatprep.subr.mxu0 0.0
    %8628 = vmatpush1.msra.mxu0 0.0
    %8629 = vmatprep.subr.mxu0 0.0
    %8630 = vmatpush1.msra.mxu0 0.0
    %8631 = vmatprep.subr.mxu0 0.0
    %8632 = vmatpush1.msra.mxu0 0.0
    %8633 = vmatprep.subr.mxu0 0.0
    %8634 = vmatpush1.msra.mxu0 0.0
    %8635 = vmatprep.subr.mxu0 0.0
    %8636 = vmatpush1.msra.mxu0 0.0
    %8637 = vmatprep.subr.mxu0 0.0
    %8638 = vmatpush1.msra.mxu0 0.0
    %8639 = vmatprep.subr.mxu0 0.0
    %8640 = vmatpush1.msra.mxu0 0.0
    %8641 = vmatprep.subr.mxu0 0.0
    %8642 = vmatpush1.msra.mxu0 0.0
    %8643 = vmatprep.subr.mxu0 0.0
    %8644 = vmatpush1.msra.mxu0 0.0
    %8645 = vmatprep.subr.mxu0 0.0
    %8646 = vmatpush1.msra.mxu0 0.0
    %8647 = vmatprep.subr.mxu0 0.0
    %8648 = vmatpush1.msra.mxu0 0.0
    %8649 = vmatprep.subr.mxu0 0.0
    %8650 = vmatpush1.msra.mxu0 0.0
    %8651 = vmatprep.mubr.f32.mxu0 0.0
    %v8652 = vand.u32 %v4965, 4294901760
    %v8653 = vsub.f32 %v4965, %v8652
    %v8654 = vand.u32 %v8653, 4294901760
    %v8655 = vsub.f32 %v8653, %v8654
    %v8656 = vand.u32 %v8655, 4294901760
    %8657 = vmatmul.mubr.f32.gmra.mrb[0].mxu0 %v8656
    %v8658 = vpop.f32.mrb[0].mxu0
    %v8659 = vadd.f32 %v8576, %v8658
    %v8660 = vpop.f32.mrb[0].mxu0
    %8661 = vmatprep.mubr.f32.mxu0 0.0
    %v8662 = vand.u32 %v5480, 4294901760
    %v8663 = vsub.f32 %v5480, %v8662
    %v8664 = vand.u32 %v8663, 4294901760
    %v8665 = vsub.f32 %v8663, %v8664
    %v8666 = vand.u32 %v8665, 4294901760
    %8667 = vmatmul.mubr.f32.gmra.mrb[0].mxu0 %v8666
    %v8668 = vpop.f32.mrb[0].mxu0
    %v8669 = vadd.f32 %v8576, %v8668
    %v8670 = vpop.f32.mrb[0].mxu0
    %8671 = vmatprep.mubr.f32.mxu0 0.0
    %v8672 = vand.u32 %v5995, 4294901760
    %v8673 = vsub.f32 %v5995, %v8672
    %v8674 = vand.u32 %v8673, 4294901760
    %v8675 = vsub.f32 %v8673, %v8674
    %v8676 = vand.u32 %v8675, 4294901760
    %8677 = vmatmul.mubr.f32.gmra.mrb[0].mxu0 %v8676
    %v8678 = vpop.f32.mrb[0].mxu0
    %v8679 = vadd.f32 %v8576, %v8678
    %v8680 = vpop.f32.mrb[0].mxu0
    %8681 = vmatprep.mubr.f32.mxu0 0.0
    %v8682 = vand.u32 %v6510, 4294901760
    %v8683 = vsub.f32 %v6510, %v8682
    %v8684 = vand.u32 %v8683, 4294901760
    %v8685 = vsub.f32 %v8683, %v8684
    %v8686 = vand.u32 %v8685, 4294901760
    %8687 = vmatmul.mubr.f32.gmra.mrb[0].mxu0 %v8686
    %v8688 = vpop.f32.mrb[0].mxu0
    %v8689 = vadd.f32 %v8576, %v8688
    %v8690 = vpop.f32.mrb[0].mxu0
    %8691 = vmatprep.mubr.f32.mxu0 0.0
    %v8692 = vand.u32 %v7025, 4294901760
    %v8693 = vsub.f32 %v7025, %v8692
    %v8694 = vand.u32 %v8693, 4294901760
    %v8695 = vsub.f32 %v8693, %v8694
    %v8696 = vand.u32 %v8695, 4294901760
    %8697 = vmatmul.mubr.f32.gmra.mrb[0].mxu0 %v8696
    %v8698 = vpop.f32.mrb[0].mxu0
    %v8699 = vadd.f32 %v8576, %v8698
    %v8700 = vpop.f32.mrb[0].mxu0
    %8701 = vmatprep.mubr.f32.mxu0 0.0
    %v8702 = vand.u32 %v7540, 4294901760
    %v8703 = vsub.f32 %v7540, %v8702
    %v8704 = vand.u32 %v8703, 4294901760
    %v8705 = vsub.f32 %v8703, %v8704
    %v8706 = vand.u32 %v8705, 4294901760
    %8707 = vmatmul.mubr.f32.gmra.mrb[0].mxu0 %v8706
    %v8708 = vpop.f32.mrb[0].mxu0
    %v8709 = vadd.f32 %v8576, %v8708
    %v8710 = vpop.f32.mrb[0].mxu0
    %8711 = vmatprep.mubr.f32.mxu0 0.0
    %v8712 = vand.u32 %v8055, 4294901760
    %v8713 = vsub.f32 %v8055, %v8712
    %v8714 = vand.u32 %v8713, 4294901760
    %v8715 = vsub.f32 %v8713, %v8714
    %v8716 = vand.u32 %v8715, 4294901760
    %8717 = vmatmul.mubr.f32.gmra.mrb[0].mxu0 %v8716
    %v8718 = vpop.f32.mrb[0].mxu0
    %v8719 = vadd.f32 %v8576, %v8718
    %v8720 = vpop.f32.mrb[0].mxu0
    %8721 = vmatprep.mubr.f32.mxu0 0.0
    %v8722 = vand.u32 %v8581, 4294901760
    %v8723 = vsub.f32 %v8581, %v8722
    %v8724 = vand.u32 %v8723, 4294901760
    %v8725 = vsub.f32 %v8723, %v8724
    %v8726 = vand.u32 %v8725, 4294901760
    %8727 = vmatmul.mubr.f32.gmra.mrb[0].mxu0 %v8726
    %v8728 = vpop.f32.mrb[0].mxu0
    %v8729 = vadd.f32 %v8576, %v8728
    %v8730 = vpop.f32.mrb[0].mxu0
    %8731 = vdwg.mxu0
    %8732 = vmatprep.subr.mxu0 0.0
    %v8733 = vand.u32 %v8567, 4294901760
    %v8734 = vsub.f32 %v8567, %v8733
    %v8735 = vand.u32 %v8734, 4294901760
    %v8736 = vsub.f32 %v8734, %v8735
    %v8737 = vand.u32 %v8736, 4294901760
    %8738 = vmatpush1.msra.mxu0 %v8737
    %8739 = vmatprep.subr.mxu0 0.0
    %v8740 = vand.u32 %v8568, 4294901760
    %v8741 = vsub.f32 %v8568, %v8740
    %v8742 = vand.u32 %v8741, 4294901760
    %v8743 = vsub.f32 %v8741, %v8742
    %v8744 = vand.u32 %v8743, 4294901760
    %8745 = vmatpush1.msra.mxu0 %v8744
    %8746 = vmatprep.subr.mxu0 0.0
    %v8747 = vand.u32 %v8569, 4294901760
    %v8748 = vsub.f32 %v8569, %v8747
    %v8749 = vand.u32 %v8748, 4294901760
    %v8750 = vsub.f32 %v8748, %v8749
    %v8751 = vand.u32 %v8750, 4294901760
    %8752 = vmatpush1.msra.mxu0 %v8751
    %8753 = vmatprep.subr.mxu0 0.0
    %v8754 = vand.u32 %v8570, 4294901760
    %v8755 = vsub.f32 %v8570, %v8754
    %v8756 = vand.u32 %v8755, 4294901760
    %v8757 = vsub.f32 %v8755, %v8756
    %v8758 = vand.u32 %v8757, 4294901760
    %8759 = vmatpush1.msra.mxu0 %v8758
    %8760 = vmatprep.subr.mxu0 0.0
    %8761 = vmatpush1.msra.mxu0 0.0
    %8762 = vmatprep.subr.mxu0 0.0
    %8763 = vmatpush1.msra.mxu0 0.0
    %8764 = vmatprep.subr.mxu0 0.0
    %8765 = vmatpush1.msra.mxu0 0.0
    %8766 = vmatprep.subr.mxu0 0.0
    %8767 = vmatpush1.msra.mxu0 0.0
    %8768 = vmatprep.subr.mxu0 0.0
    %8769 = vmatpush1.msra.mxu0 0.0
    %8770 = vmatprep.subr.mxu0 0.0
    %8771 = vmatpush1.msra.mxu0 0.0
    %8772 = vmatprep.subr.mxu0 0.0
    %8773 = vmatpush1.msra.mxu0 0.0
    %8774 = vmatprep.subr.mxu0 0.0
    %8775 = vmatpush1.msra.mxu0 0.0
    %8776 = vmatprep.subr.mxu0 0.0
    %8777 = vmatpush1.msra.mxu0 0.0
    %8778 = vmatprep.subr.mxu0 0.0
    %8779 = vmatpush1.msra.mxu0 0.0
    %8780 = vmatprep.subr.mxu0 0.0
    %8781 = vmatpush1.msra.mxu0 0.0
    %8782 = vmatprep.subr.mxu0 0.0
    %8783 = vmatpush1.msra.mxu0 0.0
    %8784 = vmatprep.subr.mxu0 0.0
    %8785 = vmatpush1.msra.mxu0 0.0
    %8786 = vmatprep.subr.mxu0 0.0
    %8787 = vmatpush1.msra.mxu0 0.0
    %8788 = vmatprep.subr.mxu0 0.0
    %8789 = vmatpush1.msra.mxu0 0.0
    %8790 = vmatprep.subr.mxu0 0.0
    %8791 = vmatpush1.msra.mxu0 0.0
    %8792 = vmatprep.subr.mxu0 0.0
    %8793 = vmatpush1.msra.mxu0 0.0
    %8794 = vmatprep.subr.mxu0 0.0
    %8795 = vmatpush1.msra.mxu0 0.0
    %8796 = vmatprep.subr.mxu0 0.0
    %8797 = vmatpush1.msra.mxu0 0.0
    %8798 = vmatprep.subr.mxu0 0.0
    %8799 = vmatpush1.msra.mxu0 0.0
    %8800 = vmatprep.subr.mxu0 0.0
    %8801 = vmatpush1.msra.mxu0 0.0
    %8802 = vmatprep.subr.mxu0 0.0
    %8803 = vmatpush1.msra.mxu0 0.0
    %8804 = vmatprep.subr.mxu0 0.0
    %8805 = vmatpush1.msra.mxu0 0.0
    %8806 = vmatprep.subr.mxu0 0.0
    %8807 = vmatpush1.msra.mxu0 0.0
    %8808 = vmatprep.subr.mxu0 0.0
    %8809 = vmatpush1.msra.mxu0 0.0
    %8810 = vmatprep.subr.mxu0 0.0
    %8811 = vmatpush1.msra.mxu0 0.0
    %8812 = vmatprep.subr.mxu0 0.0
    %8813 = vmatpush1.msra.mxu0 0.0
    %8814 = vmatprep.subr.mxu0 0.0
    %8815 = vmatpush1.msra.mxu0 0.0
    %8816 = vmatprep.mubr.f32.mxu0 0.0
    %v8817 = vand.u32 %v4965, 4294901760
    %8818 = vmatmul.mubr.f32.gmra.mrb[0].mxu0 %v8817
    %v8819 = vpop.f32.mrb[0].mxu0
    %v8820 = vadd.f32 %v8659, %v8819
    %v8821 = vpop.f32.mrb[0].mxu0
    %8822 = vmatprep.mubr.f32.mxu0 0.0
    %v8823 = vand.u32 %v5480, 4294901760
    %8824 = vmatmul.mubr.f32.gmra.mrb[0].mxu0 %v8823
    %v8825 = vpop.f32.mrb[0].mxu0
    %v8826 = vadd.f32 %v8669, %v8825
    %v8827 = vpop.f32.mrb[0].mxu0
    %8828 = vmatprep.mubr.f32.mxu0 0.0
    %v8829 = vand.u32 %v5995, 4294901760
    %8830 = vmatmul.mubr.f32.gmra.mrb[0].mxu0 %v8829
    %v8831 = vpop.f32.mrb[0].mxu0
    %v8832 = vadd.f32 %v8679, %v8831
    %v8833 = vpop.f32.mrb[0].mxu0
    %8834 = vmatprep.mubr.f32.mxu0 0.0
    %v8835 = vand.u32 %v6510, 4294901760
    %8836 = vmatmul.mubr.f32.gmra.mrb[0].mxu0 %v8835
    %v8837 = vpop.f32.mrb[0].mxu0
    %v8838 = vadd.f32 %v8689, %v8837
    %v8839 = vpop.f32.mrb[0].mxu0
    %8840 = vmatprep.mubr.f32.mxu0 0.0
    %v8841 = vand.u32 %v7025, 4294901760
    %8842 = vmatmul.mubr.f32.gmra.mrb[0].mxu0 %v8841
    %v8843 = vpop.f32.mrb[0].mxu0
    %v8844 = vadd.f32 %v8699, %v8843
    %v8845 = vpop.f32.mrb[0].mxu0
    %8846 = vmatprep.mubr.f32.mxu0 0.0
    %v8847 = vand.u32 %v7540, 4294901760
    %8848 = vmatmul.mubr.f32.gmra.mrb[0].mxu0 %v8847
    %v8849 = vpop.f32.mrb[0].mxu0
    %v8850 = vadd.f32 %v8709, %v8849
    %v8851 = vpop.f32.mrb[0].mxu0
    %8852 = vmatprep.mubr.f32.mxu0 0.0
    %v8853 = vand.u32 %v8055, 4294901760
    %8854 = vmatmul.mubr.f32.gmra.mrb[0].mxu0 %v8853
    %v8855 = vpop.f32.mrb[0].mxu0
    %v8856 = vadd.f32 %v8719, %v8855
    %v8857 = vpop.f32.mrb[0].mxu0
    %8858 = vmatprep.mubr.f32.mxu0 0.0
    %v8859 = vand.u32 %v8581, 4294901760
    %8860 = vmatmul.mubr.f32.gmra.mrb[0].mxu0 %v8859
    %v8861 = vpop.f32.mrb[0].mxu0
    %v8862 = vadd.f32 %v8729, %v8861
    %v8863 = vpop.f32.mrb[0].mxu0
    %8864 = vdwg.mxu0
    %8865 = vmatprep.subr.mxu0 0.0
    %v8866 = vand.u32 %v8567, 4294901760
    %v8867 = vsub.f32 %v8567, %v8866
    %8868 = vmatpush1.msra.mxu0 %v8867
    %8869 = vmatprep.subr.mxu0 0.0
    %v8870 = vand.u32 %v8568, 4294901760
    %v8871 = vsub.f32 %v8568, %v8870
    %8872 = vmatpush1.msra.mxu0 %v8871
    %8873 = vmatprep.subr.mxu0 0.0
    %v8874 = vand.u32 %v8569, 4294901760
    %v8875 = vsub.f32 %v8569, %v8874
    %8876 = vmatpush1.msra.mxu0 %v8875
    %8877 = vmatprep.subr.mxu0 0.0
    %v8878 = vand.u32 %v8570, 4294901760
    %v8879 = vsub.f32 %v8570, %v8878
    %8880 = vmatpush1.msra.mxu0 %v8879
    %8881 = vmatprep.subr.mxu0 0.0
    %8882 = vmatpush1.msra.mxu0 0.0
    %8883 = vmatprep.subr.mxu0 0.0
    %8884 = vmatpush1.msra.mxu0 0.0
    %8885 = vmatprep.subr.mxu0 0.0
    %8886 = vmatpush1.msra.mxu0 0.0
    %8887 = vmatprep.subr.mxu0 0.0
    %8888 = vmatpush1.msra.mxu0 0.0
    %8889 = vmatprep.subr.mxu0 0.0
    %8890 = vmatpush1.msra.mxu0 0.0
    %8891 = vmatprep.subr.mxu0 0.0
    %8892 = vmatpush1.msra.mxu0 0.0
    %8893 = vmatprep.subr.mxu0 0.0
    %8894 = vmatpush1.msra.mxu0 0.0
    %8895 = vmatprep.subr.mxu0 0.0
    %8896 = vmatpush1.msra.mxu0 0.0
    %8897 = vmatprep.subr.mxu0 0.0
    %8898 = vmatpush1.msra.mxu0 0.0
    %8899 = vmatprep.subr.mxu0 0.0
    %8900 = vmatpush1.msra.mxu0 0.0
    %8901 = vmatprep.subr.mxu0 0.0
    %8902 = vmatpush1.msra.mxu0 0.0
    %8903 = vmatprep.subr.mxu0 0.0
    %8904 = vmatpush1.msra.mxu0 0.0
    %8905 = vmatprep.subr.mxu0 0.0
    %8906 = vmatpush1.msra.mxu0 0.0
    %8907 = vmatprep.subr.mxu0 0.0
    %8908 = vmatpush1.msra.mxu0 0.0
    %8909 = vmatprep.subr.mxu0 0.0
    %8910 = vmatpush1.msra.mxu0 0.0
    %8911 = vmatprep.subr.mxu0 0.0
    %8912 = vmatpush1.msra.mxu0 0.0
    %8913 = vmatprep.subr.mxu0 0.0
    %8914 = vmatpush1.msra.mxu0 0.0
    %8915 = vmatprep.subr.mxu0 0.0
    %8916 = vmatpush1.msra.mxu0 0.0
    %8917 = vmatprep.subr.mxu0 0.0
    %8918 = vmatpush1.msra.mxu0 0.0
    %8919 = vmatprep.subr.mxu0 0.0
    %8920 = vmatpush1.msra.mxu0 0.0
    %8921 = vmatprep.subr.mxu0 0.0
    %8922 = vmatpush1.msra.mxu0 0.0
    %8923 = vmatprep.subr.mxu0 0.0
    %8924 = vmatpush1.msra.mxu0 0.0
    %8925 = vmatprep.subr.mxu0 0.0
    %8926 = vmatpush1.msra.mxu0 0.0
    %8927 = vmatprep.subr.mxu0 0.0
    %8928 = vmatpush1.msra.mxu0 0.0
    %8929 = vmatprep.subr.mxu0 0.0
    %8930 = vmatpush1.msra.mxu0 0.0
    %8931 = vmatprep.subr.mxu0 0.0
    %8932 = vmatpush1.msra.mxu0 0.0
    %8933 = vmatprep.subr.mxu0 0.0
    %8934 = vmatpush1.msra.mxu0 0.0
    %8935 = vmatprep.subr.mxu0 0.0
    %8936 = vmatpush1.msra.mxu0 0.0
    %8937 = vmatprep.mubr.f32.mxu0 0.0
    %v8938 = vand.u32 %v4965, 4294901760
    %v8939 = vsub.f32 %v4965, %v8938
    %8940 = vmatmul.mubr.f32.gmra.mrb[0].mxu0 %v8939
    %v8941 = vpop.f32.mrb[0].mxu0
    %v8942 = vadd.f32 %v8820, %v8941
    %v8943 = vpop.f32.mrb[0].mxu0
    %8944 = vmatprep.mubr.f32.mxu0 0.0
    %v8945 = vand.u32 %v5480, 4294901760
    %v8946 = vsub.f32 %v5480, %v8945
    %8947 = vmatmul.mubr.f32.gmra.mrb[0].mxu0 %v8946
    %v8948 = vpop.f32.mrb[0].mxu0
    %v8949 = vadd.f32 %v8826, %v8948
    %v8950 = vpop.f32.mrb[0].mxu0
    %8951 = vmatprep.mubr.f32.mxu0 0.0
    %v8952 = vand.u32 %v5995, 4294901760
    %v8953 = vsub.f32 %v5995, %v8952
    %8954 = vmatmul.mubr.f32.gmra.mrb[0].mxu0 %v8953
    %v8955 = vpop.f32.mrb[0].mxu0
    %v8956 = vadd.f32 %v8832, %v8955
    %v8957 = vpop.f32.mrb[0].mxu0
    %8958 = vmatprep.mubr.f32.mxu0 0.0
    %v8959 = vand.u32 %v6510, 4294901760
    %v8960 = vsub.f32 %v6510, %v8959
    %8961 = vmatmul.mubr.f32.gmra.mrb[0].mxu0 %v8960
    %v8962 = vpop.f32.mrb[0].mxu0
    %v8963 = vadd.f32 %v8838, %v8962
    %v8964 = vpop.f32.mrb[0].mxu0
    %8965 = vmatprep.mubr.f32.mxu0 0.0
    %v8966 = vand.u32 %v7025, 4294901760
    %v8967 = vsub.f32 %v7025, %v8966
    %8968 = vmatmul.mubr.f32.gmra.mrb[0].mxu0 %v8967
    %v8969 = vpop.f32.mrb[0].mxu0
    %v8970 = vadd.f32 %v8844, %v8969
    %v8971 = vpop.f32.mrb[0].mxu0
    %8972 = vmatprep.mubr.f32.mxu0 0.0
    %v8973 = vand.u32 %v7540, 4294901760
    %v8974 = vsub.f32 %v7540, %v8973
    %8975 = vmatmul.mubr.f32.gmra.mrb[0].mxu0 %v8974
    %v8976 = vpop.f32.mrb[0].mxu0
    %v8977 = vadd.f32 %v8850, %v8976
    %v8978 = vpop.f32.mrb[0].mxu0
    %8979 = vmatprep.mubr.f32.mxu0 0.0
    %v8980 = vand.u32 %v8055, 4294901760
    %v8981 = vsub.f32 %v8055, %v8980
    %8982 = vmatmul.mubr.f32.gmra.mrb[0].mxu0 %v8981
    %v8983 = vpop.f32.mrb[0].mxu0
    %v8984 = vadd.f32 %v8856, %v8983
    %v8985 = vpop.f32.mrb[0].mxu0
    %8986 = vmatprep.mubr.f32.mxu0 0.0
    %v8987 = vand.u32 %v8581, 4294901760
    %v8988 = vsub.f32 %v8581, %v8987
    %8989 = vmatmul.mubr.f32.gmra.mrb[0].mxu0 %v8988
    %v8990 = vpop.f32.mrb[0].mxu0
    %v8991 = vadd.f32 %v8862, %v8990
    %v8992 = vpop.f32.mrb[0].mxu0
    %8993 = vdwg.mxu0
    %8994 = vmatprep.subr.mxu0 0.0
    %v8995 = vand.u32 %v8567, 4294901760
    %8996 = vmatpush1.msra.mxu0 %v8995
    %8997 = vmatprep.subr.mxu0 0.0
    %v8998 = vand.u32 %v8568, 4294901760
    %8999 = vmatpush1.msra.mxu0 %v8998
    %9000 = vmatprep.subr.mxu0 0.0
    %v9001 = vand.u32 %v8569, 4294901760
    %9002 = vmatpush1.msra.mxu0 %v9001
    %9003 = vmatprep.subr.mxu0 0.0
    %v9004 = vand.u32 %v8570, 4294901760
    %9005 = vmatpush1.msra.mxu0 %v9004
    %9006 = vmatprep.subr.mxu0 0.0
    %9007 = vmatpush1.msra.mxu0 0.0
    %9008 = vmatprep.subr.mxu0 0.0
    %9009 = vmatpush1.msra.mxu0 0.0
    %9010 = vmatprep.subr.mxu0 0.0
    %9011 = vmatpush1.msra.mxu0 0.0
    %9012 = vmatprep.subr.mxu0 0.0
    %9013 = vmatpush1.msra.mxu0 0.0
    %9014 = vmatprep.subr.mxu0 0.0
    %9015 = vmatpush1.msra.mxu0 0.0
    %9016 = vmatprep.subr.mxu0 0.0
    %9017 = vmatpush1.msra.mxu0 0.0
    %9018 = vmatprep.subr.mxu0 0.0
    %9019 = vmatpush1.msra.mxu0 0.0
    %9020 = vmatprep.subr.mxu0 0.0
    %9021 = vmatpush1.msra.mxu0 0.0
    %9022 = vmatprep.subr.mxu0 0.0
    %9023 = vmatpush1.msra.mxu0 0.0
    %9024 = vmatprep.subr.mxu0 0.0
    %9025 = vmatpush1.msra.mxu0 0.0
    %9026 = vmatprep.subr.mxu0 0.0
    %9027 = vmatpush1.msra.mxu0 0.0
    %9028 = vmatprep.subr.mxu0 0.0
    %9029 = vmatpush1.msra.mxu0 0.0
    %9030 = vmatprep.subr.mxu0 0.0
    %9031 = vmatpush1.msra.mxu0 0.0
    %9032 = vmatprep.subr.mxu0 0.0
    %9033 = vmatpush1.msra.mxu0 0.0
    %9034 = vmatprep.subr.mxu0 0.0
    %9035 = vmatpush1.msra.mxu0 0.0
    %9036 = vmatprep.subr.mxu0 0.0
    %9037 = vmatpush1.msra.mxu0 0.0
    %9038 = vmatprep.subr.mxu0 0.0
    %9039 = vmatpush1.msra.mxu0 0.0
    %9040 = vmatprep.subr.mxu0 0.0
    %9041 = vmatpush1.msra.mxu0 0.0
    %9042 = vmatprep.subr.mxu0 0.0
    %9043 = vmatpush1.msra.mxu0 0.0
    %9044 = vmatprep.subr.mxu0 0.0
    %9045 = vmatpush1.msra.mxu0 0.0
    %9046 = vmatprep.subr.mxu0 0.0
    %9047 = vmatpush1.msra.mxu0 0.0
    %9048 = vmatprep.subr.mxu0 0.0
    %9049 = vmatpush1.msra.mxu0 0.0
    %9050 = vmatprep.subr.mxu0 0.0
    %9051 = vmatpush1.msra.mxu0 0.0
    %9052 = vmatprep.subr.mxu0 0.0
    %9053 = vmatpush1.msra.mxu0 0.0
    %9054 = vmatprep.subr.mxu0 0.0
    %9055 = vmatpush1.msra.mxu0 0.0
    %9056 = vmatprep.subr.mxu0 0.0
    %9057 = vmatpush1.msra.mxu0 0.0
    %9058 = vmatprep.subr.mxu0 0.0
    %9059 = vmatpush1.msra.mxu0 0.0
    %9060 = vmatprep.subr.mxu0 0.0
    %9061 = vmatpush1.msra.mxu0 0.0
    %9062 = vmatprep.mubr.f32.mxu0 0.0
    %v9063 = vand.u32 %v4965, 4294901760
    %v9064 = vsub.f32 %v4965, %v9063
    %v9065 = vand.u32 %v9064, 4294901760
    %9066 = vmatmul.mubr.f32.gmra.mrb[0].mxu0 %v9065
    %v9067 = vpop.f32.mrb[0].mxu0
    %v9068 = vadd.f32 %v8942, %v9067
    %v9069 = vpop.f32.mrb[0].mxu0
    %9070 = vmatprep.mubr.f32.mxu0 0.0
    %v9071 = vand.u32 %v5480, 4294901760
    %v9072 = vsub.f32 %v5480, %v9071
    %v9073 = vand.u32 %v9072, 4294901760
    %9074 = vmatmul.mubr.f32.gmra.mrb[0].mxu0 %v9073
    %v9075 = vpop.f32.mrb[0].mxu0
    %v9076 = vadd.f32 %v8949, %v9075
    %v9077 = vpop.f32.mrb[0].mxu0
    %9078 = vmatprep.mubr.f32.mxu0 0.0
    %v9079 = vand.u32 %v5995, 4294901760
    %v9080 = vsub.f32 %v5995, %v9079
    %v9081 = vand.u32 %v9080, 4294901760
    %9082 = vmatmul.mubr.f32.gmra.mrb[0].mxu0 %v9081
    %v9083 = vpop.f32.mrb[0].mxu0
    %v9084 = vadd.f32 %v8956, %v9083
    %v9085 = vpop.f32.mrb[0].mxu0
    %9086 = vmatprep.mubr.f32.mxu0 0.0
    %v9087 = vand.u32 %v6510, 4294901760
    %v9088 = vsub.f32 %v6510, %v9087
    %v9089 = vand.u32 %v9088, 4294901760
    %9090 = vmatmul.mubr.f32.gmra.mrb[0].mxu0 %v9089
    %v9091 = vpop.f32.mrb[0].mxu0
    %v9092 = vadd.f32 %v8963, %v9091
    %v9093 = vpop.f32.mrb[0].mxu0
    %9094 = vmatprep.mubr.f32.mxu0 0.0
    %v9095 = vand.u32 %v7025, 4294901760
    %v9096 = vsub.f32 %v7025, %v9095
    %v9097 = vand.u32 %v9096, 4294901760
    %9098 = vmatmul.mubr.f32.gmra.mrb[0].mxu0 %v9097
    %v9099 = vpop.f32.mrb[0].mxu0
    %v9100 = vadd.f32 %v8970, %v9099
    %v9101 = vpop.f32.mrb[0].mxu0
    %9102 = vmatprep.mubr.f32.mxu0 0.0
    %v9103 = vand.u32 %v7540, 4294901760
    %v9104 = vsub.f32 %v7540, %v9103
    %v9105 = vand.u32 %v9104, 4294901760
    %9106 = vmatmul.mubr.f32.gmra.mrb[0].mxu0 %v9105
    %v9107 = vpop.f32.mrb[0].mxu0
    %v9108 = vadd.f32 %v8977, %v9107
    %v9109 = vpop.f32.mrb[0].mxu0
    %9110 = vmatprep.mubr.f32.mxu0 0.0
    %v9111 = vand.u32 %v8055, 4294901760
    %v9112 = vsub.f32 %v8055, %v9111
    %v9113 = vand.u32 %v9112, 4294901760
    %9114 = vmatmul.mubr.f32.gmra.mrb[0].mxu0 %v9113
    %v9115 = vpop.f32.mrb[0].mxu0
    %v9116 = vadd.f32 %v8984, %v9115
    %v9117 = vpop.f32.mrb[0].mxu0
    %9118 = vmatprep.mubr.f32.mxu0 0.0
    %v9119 = vand.u32 %v8581, 4294901760
    %v9120 = vsub.f32 %v8581, %v9119
    %v9121 = vand.u32 %v9120, 4294901760
    %9122 = vmatmul.mubr.f32.gmra.mrb[0].mxu0 %v9121
    %v9123 = vpop.f32.mrb[0].mxu0
    %v9124 = vadd.f32 %v8991, %v9123
    %v9125 = vpop.f32.mrb[0].mxu0
    %9126 = vdwg.mxu0
    %9127 = vmatprep.subr.mxu0 0.0
    %v9128 = vand.u32 %v8567, 4294901760
    %v9129 = vsub.f32 %v8567, %v9128
    %v9130 = vand.u32 %v9129, 4294901760
    %9131 = vmatpush1.msra.mxu0 %v9130
    %9132 = vmatprep.subr.mxu0 0.0
    %v9133 = vand.u32 %v8568, 4294901760
    %v9134 = vsub.f32 %v8568, %v9133
    %v9135 = vand.u32 %v9134, 4294901760
    %9136 = vmatpush1.msra.mxu0 %v9135
    %9137 = vmatprep.subr.mxu0 0.0
    %v9138 = vand.u32 %v8569, 4294901760
    %v9139 = vsub.f32 %v8569, %v9138
    %v9140 = vand.u32 %v9139, 4294901760
    %9141 = vmatpush1.msra.mxu0 %v9140
    %9142 = vmatprep.subr.mxu0 0.0
    %v9143 = vand.u32 %v8570, 4294901760
    %v9144 = vsub.f32 %v8570, %v9143
    %v9145 = vand.u32 %v9144, 4294901760
    %9146 = vmatpush1.msra.mxu0 %v9145
    %9147 = vmatprep.subr.mxu0 0.0
    %9148 = vmatpush1.msra.mxu0 0.0
    %9149 = vmatprep.subr.mxu0 0.0
    %9150 = vmatpush1.msra.mxu0 0.0
    %9151 = vmatprep.subr.mxu0 0.0
    %9152 = vmatpush1.msra.mxu0 0.0
    %9153 = vmatprep.subr.mxu0 0.0
    %9154 = vmatpush1.msra.mxu0 0.0
    %9155 = vmatprep.subr.mxu0 0.0
    %9156 = vmatpush1.msra.mxu0 0.0
    %9157 = vmatprep.subr.mxu0 0.0
    %9158 = vmatpush1.msra.mxu0 0.0
    %9159 = vmatprep.subr.mxu0 0.0
    %9160 = vmatpush1.msra.mxu0 0.0
    %9161 = vmatprep.subr.mxu0 0.0
    %9162 = vmatpush1.msra.mxu0 0.0
    %9163 = vmatprep.subr.mxu0 0.0
    %9164 = vmatpush1.msra.mxu0 0.0
    %9165 = vmatprep.subr.mxu0 0.0
    %9166 = vmatpush1.msra.mxu0 0.0
    %9167 = vmatprep.subr.mxu0 0.0
    %9168 = vmatpush1.msra.mxu0 0.0
    %9169 = vmatprep.subr.mxu0 0.0
    %9170 = vmatpush1.msra.mxu0 0.0
    %9171 = vmatprep.subr.mxu0 0.0
    %9172 = vmatpush1.msra.mxu0 0.0
    %9173 = vmatprep.subr.mxu0 0.0
    %9174 = vmatpush1.msra.mxu0 0.0
    %9175 = vmatprep.subr.mxu0 0.0
    %9176 = vmatpush1.msra.mxu0 0.0
    %9177 = vmatprep.subr.mxu0 0.0
    %9178 = vmatpush1.msra.mxu0 0.0
    %9179 = vmatprep.subr.mxu0 0.0
    %9180 = vmatpush1.msra.mxu0 0.0
    %9181 = vmatprep.subr.mxu0 0.0
    %9182 = vmatpush1.msra.mxu0 0.0
    %9183 = vmatprep.subr.mxu0 0.0
    %9184 = vmatpush1.msra.mxu0 0.0
    %9185 = vmatprep.subr.mxu0 0.0
    %9186 = vmatpush1.msra.mxu0 0.0
    %9187 = vmatprep.subr.mxu0 0.0
    %9188 = vmatpush1.msra.mxu0 0.0
    %9189 = vmatprep.subr.mxu0 0.0
    %9190 = vmatpush1.msra.mxu0 0.0
    %9191 = vmatprep.subr.mxu0 0.0
    %9192 = vmatpush1.msra.mxu0 0.0
    %9193 = vmatprep.subr.mxu0 0.0
    %9194 = vmatpush1.msra.mxu0 0.0
    %9195 = vmatprep.subr.mxu0 0.0
    %9196 = vmatpush1.msra.mxu0 0.0
    %9197 = vmatprep.subr.mxu0 0.0
    %9198 = vmatpush1.msra.mxu0 0.0
    %9199 = vmatprep.subr.mxu0 0.0
    %9200 = vmatpush1.msra.mxu0 0.0
    %9201 = vmatprep.subr.mxu0 0.0
    %9202 = vmatpush1.msra.mxu0 0.0
    %9203 = vmatprep.mubr.f32.mxu0 0.0
    %v9204 = vand.u32 %v4965, 4294901760
    %9205 = vmatmul.mubr.f32.gmra.mrb[0].mxu0 %v9204
    %v9206 = vpop.f32.mrb[0].mxu0
    %v9207 = vadd.f32 %v9068, %v9206
    %v9208 = vpop.f32.mrb[0].mxu0
    %9209 = vmatprep.mubr.f32.mxu0 0.0
    %v9210 = vand.u32 %v5480, 4294901760
    %9211 = vmatmul.mubr.f32.gmra.mrb[0].mxu0 %v9210
    %v9212 = vpop.f32.mrb[0].mxu0
    %v9213 = vadd.f32 %v9076, %v9212
    %v9214 = vpop.f32.mrb[0].mxu0
    %9215 = vmatprep.mubr.f32.mxu0 0.0
    %v9216 = vand.u32 %v5995, 4294901760
    %9217 = vmatmul.mubr.f32.gmra.mrb[0].mxu0 %v9216
    %v9218 = vpop.f32.mrb[0].mxu0
    %v9219 = vadd.f32 %v9084, %v9218
    %v9220 = vpop.f32.mrb[0].mxu0
    %9221 = vmatprep.mubr.f32.mxu0 0.0
    %v9222 = vand.u32 %v6510, 4294901760
    %9223 = vmatmul.mubr.f32.gmra.mrb[0].mxu0 %v9222
    %v9224 = vpop.f32.mrb[0].mxu0
    %v9225 = vadd.f32 %v9092, %v9224
    %v9226 = vpop.f32.mrb[0].mxu0
    %9227 = vmatprep.mubr.f32.mxu0 0.0
    %v9228 = vand.u32 %v7025, 4294901760
    %9229 = vmatmul.mubr.f32.gmra.mrb[0].mxu0 %v9228
    %v9230 = vpop.f32.mrb[0].mxu0
    %v9231 = vadd.f32 %v9100, %v9230
    %v9232 = vpop.f32.mrb[0].mxu0
    %9233 = vmatprep.mubr.f32.mxu0 0.0
    %v9234 = vand.u32 %v7540, 4294901760
    %9235 = vmatmul.mubr.f32.gmra.mrb[0].mxu0 %v9234
    %v9236 = vpop.f32.mrb[0].mxu0
    %v9237 = vadd.f32 %v9108, %v9236
    %v9238 = vpop.f32.mrb[0].mxu0
    %9239 = vmatprep.mubr.f32.mxu0 0.0
    %v9240 = vand.u32 %v8055, 4294901760
    %9241 = vmatmul.mubr.f32.gmra.mrb[0].mxu0 %v9240
    %v9242 = vpop.f32.mrb[0].mxu0
    %v9243 = vadd.f32 %v9116, %v9242
    %v9244 = vpop.f32.mrb[0].mxu0
    %9245 = vmatprep.mubr.f32.mxu0 0.0
    %v9246 = vand.u32 %v8581, 4294901760
    %9247 = vmatmul.mubr.f32.gmra.mrb[0].mxu0 %v9246
    %v9248 = vpop.f32.mrb[0].mxu0
    %v9249 = vadd.f32 %v9124, %v9248
    %v9250 = vpop.f32.mrb[0].mxu0
    %9251 = vdwg.mxu0
    %9252 = vmatprep.subr.mxu0 0.0
    %v9253 = vand.u32 %v8567, 4294901760
    %9254 = vmatpush1.msra.mxu0 %v9253
    %9255 = vmatprep.subr.mxu0 0.0
    %v9256 = vand.u32 %v8568, 4294901760
    %9257 = vmatpush1.msra.mxu0 %v9256
    %9258 = vmatprep.subr.mxu0 0.0
    %v9259 = vand.u32 %v8569, 4294901760
    %9260 = vmatpush1.msra.mxu0 %v9259
    %9261 = vmatprep.subr.mxu0 0.0
    %v9262 = vand.u32 %v8570, 4294901760
    %9263 = vmatpush1.msra.mxu0 %v9262
    %9264 = vmatprep.subr.mxu0 0.0
    %9265 = vmatpush1.msra.mxu0 0.0
    %9266 = vmatprep.subr.mxu0 0.0
    %9267 = vmatpush1.msra.mxu0 0.0
    %9268 = vmatprep.subr.mxu0 0.0
    %9269 = vmatpush1.msra.mxu0 0.0
    %9270 = vmatprep.subr.mxu0 0.0
    %9271 = vmatpush1.msra.mxu0 0.0
    %9272 = vmatprep.subr.mxu0 0.0
    %9273 = vmatpush1.msra.mxu0 0.0
    %9274 = vmatprep.subr.mxu0 0.0
    %9275 = vmatpush1.msra.mxu0 0.0
    %9276 = vmatprep.subr.mxu0 0.0
    %9277 = vmatpush1.msra.mxu0 0.0
    %9278 = vmatprep.subr.mxu0 0.0
    %9279 = vmatpush1.msra.mxu0 0.0
    %9280 = vmatprep.subr.mxu0 0.0
    %9281 = vmatpush1.msra.mxu0 0.0
    %9282 = vmatprep.subr.mxu0 0.0
    %9283 = vmatpush1.msra.mxu0 0.0
    %9284 = vmatprep.subr.mxu0 0.0
    %9285 = vmatpush1.msra.mxu0 0.0
    %9286 = vmatprep.subr.mxu0 0.0
    %9287 = vmatpush1.msra.mxu0 0.0
    %9288 = vmatprep.subr.mxu0 0.0
    %9289 = vmatpush1.msra.mxu0 0.0
    %9290 = vmatprep.subr.mxu0 0.0
    %9291 = vmatpush1.msra.mxu0 0.0
    %9292 = vmatprep.subr.mxu0 0.0
    %9293 = vmatpush1.msra.mxu0 0.0
    %9294 = vmatprep.subr.mxu0 0.0
    %9295 = vmatpush1.msra.mxu0 0.0
    %9296 = vmatprep.subr.mxu0 0.0
    %9297 = vmatpush1.msra.mxu0 0.0
    %9298 = vmatprep.subr.mxu0 0.0
    %9299 = vmatpush1.msra.mxu0 0.0
    %9300 = vmatprep.subr.mxu0 0.0
    %9301 = vmatpush1.msra.mxu0 0.0
    %9302 = vmatprep.subr.mxu0 0.0
    %9303 = vmatpush1.msra.mxu0 0.0
    %9304 = vmatprep.subr.mxu0 0.0
    %9305 = vmatpush1.msra.mxu0 0.0
    %9306 = vmatprep.subr.mxu0 0.0
    %9307 = vmatpush1.msra.mxu0 0.0
    %9308 = vmatprep.subr.mxu0 0.0
    %9309 = vmatpush1.msra.mxu0 0.0
    %9310 = vmatprep.subr.mxu0 0.0
    %9311 = vmatpush1.msra.mxu0 0.0
    %9312 = vmatprep.subr.mxu0 0.0
    %9313 = vmatpush1.msra.mxu0 0.0
    %9314 = vmatprep.subr.mxu0 0.0
    %9315 = vmatpush1.msra.mxu0 0.0
    %9316 = vmatprep.subr.mxu0 0.0
    %9317 = vmatpush1.msra.mxu0 0.0
    %9318 = vmatprep.subr.mxu0 0.0
    %9319 = vmatpush1.msra.mxu0 0.0
    %9320 = vmatprep.mubr.f32.mxu0 0.0
    %v9321 = vand.u32 %v4965, 4294901760
    %9322 = vmatmul.mubr.f32.gmra.mrb[0].mxu0 %v9321
    %v9323 = vpop.f32.mrb[0].mxu0
    %v9324 = vadd.f32 %v9207, %v9323
    %v9325 = vpop.f32.mrb[0].mxu0
    %9326 = vmatprep.mubr.f32.mxu0 0.0
    %v9327 = vand.u32 %v5480, 4294901760
    %9328 = vmatmul.mubr.f32.gmra.mrb[0].mxu0 %v9327
    %v9329 = vpop.f32.mrb[0].mxu0
    %v9330 = vadd.f32 %v9213, %v9329
    %v9331 = vpop.f32.mrb[0].mxu0
    %9332 = vmatprep.mubr.f32.mxu0 0.0
    %v9333 = vand.u32 %v5995, 4294901760
    %9334 = vmatmul.mubr.f32.gmra.mrb[0].mxu0 %v9333
    %v9335 = vpop.f32.mrb[0].mxu0
    %v9336 = vadd.f32 %v9219, %v9335
    %v9337 = vpop.f32.mrb[0].mxu0
    %9338 = vmatprep.mubr.f32.mxu0 0.0
    %v9339 = vand.u32 %v6510, 4294901760
    %9340 = vmatmul.mubr.f32.gmra.mrb[0].mxu0 %v9339
    %v9341 = vpop.f32.mrb[0].mxu0
    %v9342 = vadd.f32 %v9225, %v9341
    %v9343 = vpop.f32.mrb[0].mxu0
    %9344 = vmatprep.mubr.f32.mxu0 0.0
    %v9345 = vand.u32 %v7025, 4294901760
    %9346 = vmatmul.mubr.f32.gmra.mrb[0].mxu0 %v9345
    %v9347 = vpop.f32.mrb[0].mxu0
    %v9348 = vadd.f32 %v9231, %v9347
    %v9349 = vpop.f32.mrb[0].mxu0
    %9350 = vmatprep.mubr.f32.mxu0 0.0
    %v9351 = vand.u32 %v7540, 4294901760
    %9352 = vmatmul.mubr.f32.gmra.mrb[0].mxu0 %v9351
    %v9353 = vpop.f32.mrb[0].mxu0
    %v9354 = vadd.f32 %v9237, %v9353
    %v9355 = vpop.f32.mrb[0].mxu0
    %9356 = vmatprep.mubr.f32.mxu0 0.0
    %v9357 = vand.u32 %v8055, 4294901760
    %9358 = vmatmul.mubr.f32.gmra.mrb[0].mxu0 %v9357
    %v9359 = vpop.f32.mrb[0].mxu0
    %v9360 = vadd.f32 %v9243, %v9359
    %v9361 = vpop.f32.mrb[0].mxu0
    %9362 = vmatprep.mubr.f32.mxu0 0.0
    %v9363 = vand.u32 %v8581, 4294901760
    %9364 = vmatmul.mubr.f32.gmra.mrb[0].mxu0 %v9363
    %v9365 = vpop.f32.mrb[0].mxu0
    %v9366 = vadd.f32 %v9249, %v9365
    %v9367 = vpop.f32.mrb[0].mxu0
    %9368 = vdwg.mxu0
    %9369 = vst [vmem:[#allocation7] sm:$0xff] %v9324
    %9370 = vst [vmem:[#allocation7 + $0x8] sm:$0xff] %v9330
    %9371 = vst [vmem:[#allocation7 + $0x10] sm:$0xff] %v9336
    %9372 = vst [vmem:[#allocation7 + $0x18] sm:$0xff] %v9342
    %9373 = vst [vmem:[#allocation7 + $0x20] sm:$0xff] %v9348
    %9374 = vst [vmem:[#allocation7 + $0x28] sm:$0xff] %v9354
    %9375 = vst [vmem:[#allocation7 + $0x30] sm:$0xff] %v9360
    %9376 = vst [vmem:[#allocation7 + $0x38] sm:$0xff] %v9366
    // Predicated region
    $region46: #{tpu_custom_call.1} parent=1 // pred_check
      _
    $region47: #{tpu_custom_call.1} parent=1 // pred_check_branch
      %9378 = sbr.rel (0) target = $region49
    $region48: #{tpu_custom_call.1} parent=1 // pred_region
      %s9380 = ssub.s32 1024, 1024
      %9381 = vsyncadd [#allocation4], %s9380
      %s9382 = sshll.u32 [#allocation7], 4
      %s9383 = int_to_ptr.vmem [resolvable:$true] %s9382
      %9388 = dma.vmem_to_hbm [thread:$0]  %s9383, 1024, %s9, [#allocation4], 128, 128, 8
    $region49: #{tpu_custom_call.1} parent=1 // pred_fallthru
      _
    // Predicated region
    $region50: #{tpu_custom_call.1} parent=1 // pred_check
      _
    $region51: #{tpu_custom_call.1} parent=1 // pred_check_branch
      %9390 = sbr.rel (0) target = $region53
    $region52: #{tpu_custom_call.1} parent=1 // pred_region
      %9391 = dma.done [#allocation4], 1024
    $region53: #{tpu_custom_call.1} parent=1 // pred_fallthru
      _
    %9392 = vsyncpa [#allocation3], 1
    %9393 = vsyncpa [#allocation6], 1
    %9394 = vsyncpa [#allocation4], 1

</llo_original>
